<compile_context>
chip_gen: v5e
topology: v5e:2x2
jax: 0.10.0
libtpu: 0.0.40
codegen_flags: <defaults>
</compile_context>

<pallas_src>
import functools

import numpy as np
import jax
import jax.numpy as jnp
from jax.experimental import pallas as pl
from jax.experimental.pallas import tpu as pltpu

LEAKY_SLOPE = 0.01                    # InPlaceABN default leaky_relu slope
BN_EPS = 1e-5                         # InPlaceABN default eps
GEMM_DTYPE = jnp.bfloat16             # MXU operand dtype (accumulate/epilogue in f32)
VMEM_LIMIT_BYTES = 48 * 1024 * 1024   # explicit scoped-VMEM budget (< v7x 64 MiB)
SPATIAL_TILE_TARGET = 4096            # lanes per GEMM tile (~8 MiB double-buffered)


def _compiler_params(n_axes):
    return pltpu.CompilerParams(
        dimension_semantics=("parallel",) * n_axes,
        vmem_limit_bytes=VMEM_LIMIT_BYTES)


# ----------------------------------------------------------------------------
# Fused conv GEMM kernel: out = act(W @ patches + shift), lane-dense output
# ----------------------------------------------------------------------------
def _gemm_bias_act_kernel(w_ref, x_ref, b_ref, o_ref, *, act):
    # w: (Co, K)  x: (1, K, T)  b: (Co, 1)  o: (1, Co, T)
    acc = jnp.dot(w_ref[...], x_ref[0], preferred_element_type=jnp.float32)
    acc = acc + b_ref[...]                      # bias / folded-BN shift (f32)
    if act:
        acc = jnp.where(acc > 0, acc, LEAKY_SLOPE * acc)
    o_ref[0] = acc.astype(o_ref.dtype)


def _pick_spatial_tile(L, target=SPATIAL_TILE_TARGET):
    """Largest tile <= target that divides L and is a multiple of 128 (or L itself)."""
    if L <= target or L % 128 != 0:
        return L
    t = (target // 128) * 128
    while t > 128 and L % t != 0:
        t -= 128
    return t if L % t == 0 else L


def _gemm_bias_act(wmat, patches, shift, act):
    """(N, Co, L) = wmat (Co, K) @ patches (N, K, L), plus shift, optional leaky ReLU."""
    Co, K = wmat.shape
    N, _, L = patches.shape
    tile = _pick_spatial_tile(L)
    grid = (N, L // tile)
    kern = functools.partial(_gemm_bias_act_kernel, act=act)
    return pl.pallas_call(
        kern,
        out_shape=jax.ShapeDtypeStruct((N, Co, L), jnp.float32),
        grid=grid,
        in_specs=[
            pl.BlockSpec((Co, K), lambda n, l: (0, 0)),          # resident weights
            pl.BlockSpec((1, K, tile), lambda n, l: (n, 0, l)),  # pipelined patches
            pl.BlockSpec((Co, 1), lambda n, l: (0, 0)),          # resident shift
        ],
        out_specs=pl.BlockSpec((1, Co, tile), lambda n, l: (n, 0, l)),
        compiler_params=_compiler_params(2),
    )(wmat.astype(GEMM_DTYPE), patches.astype(GEMM_DTYPE),
      shift.reshape(Co, 1).astype(jnp.float32))


# ----------------------------------------------------------------------------
# Conv wrappers (im2col glue in plain JAX; 1x1 convs bypass im2col)
# ----------------------------------------------------------------------------
def conv2d(x, w_oihw, shift, stride=1, pad=0, act=False):
    """x: (N, Ci, H, W) NCHW.  w_oihw: PyTorch (Co, Ci, kh, kw).  Returns NCHW."""
    Co, Ci, kh, kw = w_oihw.shape
    N, _, H, W = x.shape
    if kh == 1 and kw == 1 and stride == 1 and pad == 0:
        Ho, Wo = H, W
        patches = x.reshape(N, Ci, H * W)        # 1x1 conv: no im2col copy at all
    else:
        # TODO(synk): 3x3/5x5 convs still materialize im2col patches once in HBM
        # (kh*kw read amplification); a haloed direct-conv kernel would remove it.
        Ho = (H + 2 * pad - kh) // stride + 1
        Wo = (W + 2 * pad - kw) // stride + 1
        xp = jnp.pad(x, ((0, 0), (0, 0), (pad, pad), (pad, pad)))
        taps = [xp[:, :, i:i + stride * (Ho - 1) + 1:stride,
                      j:j + stride * (Wo - 1) + 1:stride]
                for i in range(kh) for j in range(kw)]
        # (N, Ci, kh*kw, Ho, Wo) -> (N, Ci*kh*kw, Ho*Wo); k = ci*kh*kw + i*kw + j
        patches = jnp.stack(taps, axis=2).reshape(N, Ci * kh * kw, Ho * Wo)
    wmat = w_oihw.reshape(Co, Ci * kh * kw)      # matches patch K ordering
    out = _gemm_bias_act(wmat, patches, shift, act)
    return out.reshape(N, Co, Ho, Wo)


def conv_bn_relu(x, p, stride, pad):
    """ConvBnReLU: conv (no bias) + InPlaceABN (inference BN folded, leaky_relu 0.01)."""
    bn = p['bn']
    scale = bn['gamma'] * jax.lax.rsqrt(bn['var'] + BN_EPS)
    shift = bn['beta'] - bn['mean'] * scale
    w_folded = p['w'] * scale[:, None, None, None]   # fold BN scale into weights
    return conv2d(x, w_folded, shift, stride=stride, pad=pad, act=True)


def conv_bias(x, p, stride=1, pad=0):
    """Plain nn.Conv2d with bias, no activation."""
    return conv2d(x, p['w'], p['b'], stride=stride, pad=pad, act=False)


# ----------------------------------------------------------------------------
# Separable bilinear 2x upsample (align_corners=True) + skip add
# ----------------------------------------------------------------------------
@functools.lru_cache(maxsize=None)
def _interp_matrix(n_in, n_out):
    """(n_out, n_in) bilinear interpolation matrix, align_corners=True (numpy const)."""
    m = np.zeros((n_out, n_in), np.float32)
    if n_in == 1:
        m[:, 0] = 1.0
        return m
    src = np.arange(n_out, dtype=np.float64) * (n_in - 1) / (n_out - 1)
    lo = np.clip(np.floor(src).astype(np.int64), 0, n_in - 2)
    frac = (src - lo).astype(np.float32)
    m[np.arange(n_out), lo] += 1.0 - frac
    m[np.arange(n_out), lo + 1] += frac
    return m


def _upsample_add_kernel(r_ref, c_ref, x_ref, y_ref, o_ref, *, bc):
    # r: (2H, H)  c: (W, 2W)  x: (bc, H, W)  y, o: (bc, 2H, 2W)
    for b in range(bc):                      # small static unroll over the batch block
        u = jnp.dot(x_ref[b], c_ref[...], preferred_element_type=jnp.float32)
        o_ref[b] = (jnp.dot(r_ref[...], u, preferred_element_type=jnp.float32)
                    + y_ref[b]).astype(o_ref.dtype)


def _largest_divisor_leq(n, cap):
    cap = max(1, min(cap, n))
    for d in range(cap, 0, -1):
        if n % d == 0:
            return d
    return 1


def upsample2x_add(x, y):
    """x: (N,C,H,W) -> bilinear 2x upsample (align_corners=True), add y: (N,C,2H,2W)."""
    N, C, H, W = x.shape
    R = jnp.asarray(_interp_matrix(H, 2 * H))        # (2H, H)  row interp
    Ct = jnp.asarray(_interp_matrix(W, 2 * W).T)     # (W, 2W)  col interp (transposed)
    B = N * C
    per_item = 9 * H * W * 4 * 2                     # x + y + out, double-buffered
    bc = _largest_divisor_leq(B, max(1, min(8, (16 * 1024 * 1024) // per_item)))
    out = pl.pallas_call(
        functools.partial(_upsample_add_kernel, bc=bc),
        out_shape=jax.ShapeDtypeStruct((B, 2 * H, 2 * W), jnp.float32),
        grid=(B // bc,),
        in_specs=[
            pl.BlockSpec((2 * H, H), lambda b: (0, 0)),          # resident
            pl.BlockSpec((W, 2 * W), lambda b: (0, 0)),          # resident
            pl.BlockSpec((bc, H, W), lambda b: (b, 0, 0)),
            pl.BlockSpec((bc, 2 * H, 2 * W), lambda b: (b, 0, 0)),
        ],
        out_specs=pl.BlockSpec((bc, 2 * H, 2 * W), lambda b: (b, 0, 0)),
        compiler_params=_compiler_params(1),
    )(R, Ct, x.reshape(B, H, W), y.reshape(B, 2 * H, 2 * W))
    return out.reshape(N, C, 2 * H, 2 * W)


# ----------------------------------------------------------------------------
# Deterministic parameter initialization (synthetic, matches module shapes)
# ----------------------------------------------------------------------------
def init_params(key):
    keys = iter(jax.random.split(key, 64))

    def conv_w(ci, co, k):
        return jax.random.normal(next(keys), (co, ci, k, k), jnp.float32) / jnp.sqrt(
            float(ci * k * k))

    def bn(co):
        return dict(
            gamma=1.0 + 0.1 * jax.random.normal(next(keys), (co,), jnp.float32),
            beta=0.1 * jax.random.normal(next(keys), (co,), jnp.float32),
            mean=0.1 * jax.random.normal(next(keys), (co,), jnp.float32),
            var=1.0 + 0.1 * jax.random.uniform(next(keys), (co,), jnp.float32),
        )

    def cbr(ci, co, k):
        return dict(w=conv_w(ci, co, k), bn=bn(co))

    def conv_b(ci, co, k):
        return dict(w=conv_w(ci, co, k),
                    b=0.1 * jax.random.normal(next(keys), (co,), jnp.float32))

    params = {}
    params['conv0'] = [cbr(3, 8, 3), cbr(8, 8, 3)]
    params['conv1'] = [cbr(8, 16, 5), cbr(16, 16, 3), cbr(16, 16, 3)]
    params['conv2'] = [cbr(16, 32, 5), cbr(32, 32, 3), cbr(32, 32, 3)]
    params['toplayer'] = conv_b(32, 32, 1)
    params['lat1'] = conv_b(16, 32, 1)
    params['lat0'] = conv_b(8, 32, 1)
    params['smooth1'] = conv_b(32, 16, 3)
    params['smooth0'] = conv_b(32, 8, 3)
    for name in ['res_tr0', 'res_tr1', 'res_tr2',
                 'res_enc0', 'res_enc1', 'res_enc2']:
        params[name] = conv_b(256, 32, 1)
    return params


# ----------------------------------------------------------------------------
# FeatureNet forward (NCHW in / NCHW out, like the PyTorch module)
# ----------------------------------------------------------------------------
def feature_net_forward(params, x_nchw, res_enc_nchw, res_tr_nchw):
    # TODO(synk): SCAM's definition is not provided in the reference source; it is
    # treated as identity on conv2, so the six res_enc*/res_tr* 1x1 projection
    # convs that feed it are dead work and are intentionally not computed here
    # (their parameters are still created to match the module's shapes).
    del res_enc_nchw, res_tr_nchw

    c = conv_bn_relu(x_nchw, params['conv0'][0], 1, 1)
    conv0 = conv_bn_relu(c, params['conv0'][1], 1, 1)
    c = conv_bn_relu(conv0, params['conv1'][0], 2, 2)
    c = conv_bn_relu(c, params['conv1'][1], 1, 1)
    conv1 = conv_bn_relu(c, params['conv1'][2], 1, 1)
    c = conv_bn_relu(conv1, params['conv2'][0], 2, 2)
    c = conv_bn_relu(c, params['conv2'][1], 1, 1)
    conv2 = conv_bn_relu(c, params['conv2'][2], 1, 1)

    feat2 = conv_bias(conv2, params['toplayer'])
    feat1 = upsample2x_add(feat2, conv_bias(conv1, params['lat1']))
    feat0 = upsample2x_add(feat1, conv_bias(conv0, params['lat0']))
    feat1 = conv_bias(feat1, params['smooth1'], pad=1)
    feat0 = conv_bias(feat0, params['smooth0'], pad=1)

    return {'level_0': feat0, 'level_1': feat1, 'level_2': feat2}


# ----------------------------------------------------------------------------
if __name__ == "__main__":
    key = jax.random.PRNGKey(0)
    k_param, k_x, k_enc, k_tr = jax.random.split(key, 4)
    params = init_params(k_param)

    N, H, W = 2, 16, 16
    x = jax.random.normal(k_x, (N, 3, H, W), jnp.float32)
    res_enc = jax.random.normal(k_enc, (N, 256, H // 4, W // 4), jnp.float32)
    res_tr = jax.random.normal(k_tr, (N, 256, H // 4, W // 4), jnp.float32)

    fwd = jax.jit(feature_net_forward)
    feats = jax.block_until_ready(fwd(params, x, res_enc, res_tr))

    assert feats['level_0'].shape == (N, 8, H, W)
    assert feats['level_1'].shape == (N, 16, H // 2, W // 2)
    assert feats['level_2'].shape == (N, 32, H // 4, W // 4)
    assert all(bool(jnp.all(jnp.isfinite(v))) for v in feats.values())
    print("KERNEL_OK")
</pallas_src>

<mosaic_0001>
module attributes {stable_mosaic.version = 11 : i64} {
  func.func @_gemm_bias_act_kernel(%arg0: i32, %arg1: i32, %arg2: memref<8x27xbf16, #tpu.memory_space<vmem>>, %arg3: memref<1x27x256xbf16, #tpu.memory_space<vmem>>, %arg4: memref<8x1xf32, #tpu.memory_space<vmem>>, %arg5: memref<1x8x256xf32, #tpu.memory_space<vmem>>) attributes {dimension_semantics = [#tpu.dimension_semantics<parallel>, #tpu.dimension_semantics<parallel>], iteration_bounds = array<i64: 2, 1>, scalar_prefetch = 0 : i64, scratch_operands = 0 : i64, tpu.core_type = #tpu.core_type<tc>, window_params = [{pipeline_mode = #tpu.pipeline_mode<synchronous>, transform_indices = @transform_0, window_bounds = array<i64: 8, 27>}, {transform_indices = @transform_1, window_bounds = array<i64: 1, 27, 256>}, {pipeline_mode = #tpu.pipeline_mode<synchronous>, transform_indices = @transform_2, window_bounds = array<i64: 8, 1>}, {transform_indices = @transform_3, window_bounds = array<i64: 1, 8, 256>}]} {
    %c0 = arith.constant 0 : index
    %c0_0 = arith.constant 0 : index
    %0 = vector.load %arg2[%c0, %c0_0] : memref<8x27xbf16, #tpu.memory_space<vmem>>, vector<8x27xbf16>
    %c0_1 = arith.constant 0 : index
    %c0_2 = arith.constant 0 : index
    %c0_3 = arith.constant 0 : index
    %1 = vector.load %arg3[%c0_1, %c0_2, %c0_3] : memref<1x27x256xbf16, #tpu.memory_space<vmem>>, vector<1x27x256xbf16>
    %2 = vector.shape_cast %1 : vector<1x27x256xbf16> to vector<27x256xbf16>
    %cst = arith.constant dense<0.000000e+00> : vector<8x256xf32>
    %3 = tpu.matmul %0, %2, %cst {dimension_numbers = #tpu.dot_dimension_numbers<[1], [0], [0], [1], [0, 0, 1, 1], [], []>} : vector<8x27xbf16>, vector<27x256xbf16>, vector<8x256xf32> -> vector<8x256xf32>
    %c0_4 = arith.constant 0 : index
    %c0_5 = arith.constant 0 : index
    %4 = vector.load %arg4[%c0_4, %c0_5] : memref<8x1xf32, #tpu.memory_space<vmem>>, vector<8x1xf32>
    %5 = vector.broadcast %4 : vector<8x1xf32> to vector<8x256xf32>
    %6 = arith.addf %3, %5 : vector<8x256xf32>
    %cst_6 = arith.constant 0.000000e+00 : f32
    %7 = vector.broadcast %cst_6 : f32 to vector<8x256xf32>
    %8 = arith.cmpf ogt, %6, %7 : vector<8x256xf32>
    %cst_7 = arith.constant 0.00999999977 : f32
    %9 = vector.broadcast %cst_7 : f32 to vector<8x256xf32>
    %10 = arith.mulf %9, %6 : vector<8x256xf32>
    %11 = arith.select %8, %6, %10 : vector<8x256xi1>, vector<8x256xf32>
    %c0_8 = arith.constant 0 : index
    %c0_9 = arith.constant 0 : index
    %c0_10 = arith.constant 0 : index
    %12 = vector.load %arg5[%c0_8, %c0_9, %c0_10] : memref<1x8x256xf32, #tpu.memory_space<vmem>>, vector<1x8x256xf32>
    %13 = vector.shape_cast %12 : vector<1x8x256xf32> to vector<8x256xf32>
    %14 = vector.shape_cast %11 : vector<8x256xf32> to vector<1x8x256xf32>
    tpu.vector_store %arg5[%c0_8, %c0_9, %c0_10], %14 {strides = array<i32>} : memref<1x8x256xf32, #tpu.memory_space<vmem>>, vector<1x8x256xf32>,
    return
  }
  func.func @transform_0(%arg0: i32, %arg1: i32) -> (i32, i32) {
    %c0_i32 = arith.constant 0 : i32
    %c0_i32_0 = arith.constant 0 : i32
    %c0_i32_1 = arith.constant 0 : i32
    return %c0_i32, %c0_i32_0 : i32, i32
  }
  func.func @transform_1(%arg0: i32, %arg1: i32) -> (i32, i32, i32) {
    %c0_i32 = arith.constant 0 : i32
    %c0_i32_0 = arith.constant 0 : i32
    return %arg0, %c0_i32, %arg1 : i32, i32, i32
  }
  func.func @transform_2(%arg0: i32, %arg1: i32) -> (i32, i32) {
    %c0_i32 = arith.constant 0 : i32
    %c0_i32_0 = arith.constant 0 : i32
    %c0_i32_1 = arith.constant 0 : i32
    return %c0_i32, %c0_i32_0 : i32, i32
  }
  func.func @transform_3(%arg0: i32, %arg1: i32) -> (i32, i32, i32) {
    %c0_i32 = arith.constant 0 : i32
    %c0_i32_0 = arith.constant 0 : i32
    return %arg0, %c0_i32, %arg1 : i32, i32, i32
  }
}

module attributes {stable_mosaic.version = 11 : i64} {
  func.func @_gemm_bias_act_kernel(%arg0: i32, %arg1: i32, %arg2: memref<32x8xbf16, #tpu.memory_space<vmem>>, %arg3: memref<1x8x256xbf16, #tpu.memory_space<vmem>>, %arg4: memref<32x1xf32, #tpu.memory_space<vmem>>, %arg5: memref<1x32x256xf32, #tpu.memory_space<vmem>>) attributes {dimension_semantics = [#tpu.dimension_semantics<parallel>, #tpu.dimension_semantics<parallel>], iteration_bounds = array<i64: 2, 1>, scalar_prefetch = 0 : i64, scratch_operands = 0 : i64, tpu.core_type = #tpu.core_type<tc>, window_params = [{pipeline_mode = #tpu.pipeline_mode<synchronous>, transform_indices = @transform_0, window_bounds = array<i64: 32, 8>}, {transform_indices = @transform_1, window_bounds = array<i64: 1, 8, 256>}, {pipeline_mode = #tpu.pipeline_mode<synchronous>, transform_indices = @transform_2, window_bounds = array<i64: 32, 1>}, {transform_indices = @transform_3, window_bounds = array<i64: 1, 32, 256>}]} {
    %c0 = arith.constant 0 : index
    %c0_0 = arith.constant 0 : index
    %0 = vector.load %arg2[%c0, %c0_0] : memref<32x8xbf16, #tpu.memory_space<vmem>>, vector<32x8xbf16>
    %c0_1 = arith.constant 0 : index
    %c0_2 = arith.constant 0 : index
    %c0_3 = arith.constant 0 : index
    %1 = vector.load %arg3[%c0_1, %c0_2, %c0_3] : memref<1x8x256xbf16, #tpu.memory_space<vmem>>, vector<1x8x256xbf16>
    %2 = vector.shape_cast %1 : vector<1x8x256xbf16> to vector<8x256xbf16>
    %cst = arith.constant dense<0.000000e+00> : vector<32x256xf32>
    %3 = tpu.matmul %0, %2, %cst {dimension_numbers = #tpu.dot_dimension_numbers<[1], [0], [0], [1], [0, 0, 1, 1], [], []>} : vector<32x8xbf16>, vector<8x256xbf16>, vector<32x256xf32> -> vector<32x256xf32>
    %c0_4 = arith.constant 0 : index
    %c0_5 = arith.constant 0 : index
    %4 = vector.load %arg4[%c0_4, %c0_5] : memref<32x1xf32, #tpu.memory_space<vmem>>, vector<32x1xf32>
    %5 = vector.broadcast %4 : vector<32x1xf32> to vector<32x256xf32>
    %6 = arith.addf %3, %5 : vector<32x256xf32>
    %c0_6 = arith.constant 0 : index
    %c0_7 = arith.constant 0 : index
    %c0_8 = arith.constant 0 : index
    %7 = vector.load %arg5[%c0_6, %c0_7, %c0_8] : memref<1x32x256xf32, #tpu.memory_space<vmem>>, vector<1x32x256xf32>
    %8 = vector.shape_cast %7 : vector<1x32x256xf32> to vector<32x256xf32>
    %9 = vector.shape_cast %6 : vector<32x256xf32> to vector<1x32x256xf32>
    tpu.vector_store %arg5[%c0_6, %c0_7, %c0_8], %9 {strides = array<i32>} : memref<1x32x256xf32, #tpu.memory_space<vmem>>, vector<1x32x256xf32>,
    return
  }
  func.func @transform_0(%arg0: i32, %arg1: i32) -> (i32, i32) {
    %c0_i32 = arith.constant 0 : i32
    %c0_i32_0 = arith.constant 0 : i32
    %c0_i32_1 = arith.constant 0 : i32
    return %c0_i32, %c0_i32_0 : i32, i32
  }
  func.func @transform_1(%arg0: i32, %arg1: i32) -> (i32, i32, i32) {
    %c0_i32 = arith.constant 0 : i32
    %c0_i32_0 = arith.constant 0 : i32
    return %arg0, %c0_i32, %arg1 : i32, i32, i32
  }
  func.func @transform_2(%arg0: i32, %arg1: i32) -> (i32, i32) {
    %c0_i32 = arith.constant 0 : i32
    %c0_i32_0 = arith.constant 0 : i32
    %c0_i32_1 = arith.constant 0 : i32
    return %c0_i32, %c0_i32_0 : i32, i32
  }
  func.func @transform_3(%arg0: i32, %arg1: i32) -> (i32, i32, i32) {
    %c0_i32 = arith.constant 0 : i32
    %c0_i32_0 = arith.constant 0 : i32
    return %arg0, %c0_i32, %arg1 : i32, i32, i32
  }
}

module attributes {stable_mosaic.version = 11 : i64} {
  func.func @_gemm_bias_act_kernel(%arg0: i32, %arg1: i32, %arg2: memref<8x72xbf16, #tpu.memory_space<vmem>>, %arg3: memref<1x72x256xbf16, #tpu.memory_space<vmem>>, %arg4: memref<8x1xf32, #tpu.memory_space<vmem>>, %arg5: memref<1x8x256xf32, #tpu.memory_space<vmem>>) attributes {dimension_semantics = [#tpu.dimension_semantics<parallel>, #tpu.dimension_semantics<parallel>], iteration_bounds = array<i64: 2, 1>, scalar_prefetch = 0 : i64, scratch_operands = 0 : i64, tpu.core_type = #tpu.core_type<tc>, window_params = [{pipeline_mode = #tpu.pipeline_mode<synchronous>, transform_indices = @transform_0, window_bounds = array<i64: 8, 72>}, {transform_indices = @transform_1, window_bounds = array<i64: 1, 72, 256>}, {pipeline_mode = #tpu.pipeline_mode<synchronous>, transform_indices = @transform_2, window_bounds = array<i64: 8, 1>}, {transform_indices = @transform_3, window_bounds = array<i64: 1, 8, 256>}]} {
    %c0 = arith.constant 0 : index
    %c0_0 = arith.constant 0 : index
    %0 = vector.load %arg2[%c0, %c0_0] : memref<8x72xbf16, #tpu.memory_space<vmem>>, vector<8x72xbf16>
    %c0_1 = arith.constant 0 : index
    %c0_2 = arith.constant 0 : index
    %c0_3 = arith.constant 0 : index
    %1 = vector.load %arg3[%c0_1, %c0_2, %c0_3] : memref<1x72x256xbf16, #tpu.memory_space<vmem>>, vector<1x72x256xbf16>
    %2 = vector.shape_cast %1 : vector<1x72x256xbf16> to vector<72x256xbf16>
    %cst = arith.constant dense<0.000000e+00> : vector<8x256xf32>
    %3 = tpu.matmul %0, %2, %cst {dimension_numbers = #tpu.dot_dimension_numbers<[1], [0], [0], [1], [0, 0, 1, 1], [], []>} : vector<8x72xbf16>, vector<72x256xbf16>, vector<8x256xf32> -> vector<8x256xf32>
    %c0_4 = arith.constant 0 : index
    %c0_5 = arith.constant 0 : index
    %4 = vector.load %arg4[%c0_4, %c0_5] : memref<8x1xf32, #tpu.memory_space<vmem>>, vector<8x1xf32>
    %5 = vector.broadcast %4 : vector<8x1xf32> to vector<8x256xf32>
    %6 = arith.addf %3, %5 : vector<8x256xf32>
    %cst_6 = arith.constant 0.000000e+00 : f32
    %7 = vector.broadcast %cst_6 : f32 to vector<8x256xf32>
    %8 = arith.cmpf ogt, %6, %7 : vector<8x256xf32>
    %cst_7 = arith.constant 0.00999999977 : f32
    %9 = vector.broadcast %cst_7 : f32 to vector<8x256xf32>
    %10 = arith.mulf %9, %6 : vector<8x256xf32>
    %11 = arith.select %8, %6, %10 : vector<8x256xi1>, vector<8x256xf32>
    %c0_8 = arith.constant 0 : index
    %c0_9 = arith.constant 0 : index
    %c0_10 = arith.constant 0 : index
    %12 = vector.load %arg5[%c0_8, %c0_9, %c0_10] : memref<1x8x256xf32, #tpu.memory_space<vmem>>, vector<1x8x256xf32>
    %13 = vector.shape_cast %12 : vector<1x8x256xf32> to vector<8x256xf32>
    %14 = vector.shape_cast %11 : vector<8x256xf32> to vector<1x8x256xf32>
    tpu.vector_store %arg5[%c0_8, %c0_9, %c0_10], %14 {strides = array<i32>} : memref<1x8x256xf32, #tpu.memory_space<vmem>>, vector<1x8x256xf32>,
    return
  }
  func.func @transform_0(%arg0: i32, %arg1: i32) -> (i32, i32) {
    %c0_i32 = arith.constant 0 : i32
    %c0_i32_0 = arith.constant 0 : i32
    %c0_i32_1 = arith.constant 0 : i32
    return %c0_i32, %c0_i32_0 : i32, i32
  }
  func.func @transform_1(%arg0: i32, %arg1: i32) -> (i32, i32, i32) {
    %c0_i32 = arith.constant 0 : i32
    %c0_i32_0 = arith.constant 0 : i32
    return %arg0, %c0_i32, %arg1 : i32, i32, i32
  }
  func.func @transform_2(%arg0: i32, %arg1: i32) -> (i32, i32) {
    %c0_i32 = arith.constant 0 : i32
    %c0_i32_0 = arith.constant 0 : i32
    %c0_i32_1 = arith.constant 0 : i32
    return %c0_i32, %c0_i32_0 : i32, i32
  }
  func.func @transform_3(%arg0: i32, %arg1: i32) -> (i32, i32, i32) {
    %c0_i32 = arith.constant 0 : i32
    %c0_i32_0 = arith.constant 0 : i32
    return %arg0, %c0_i32, %arg1 : i32, i32, i32
  }
}

module attributes {stable_mosaic.version = 11 : i64} {
  func.func @_gemm_bias_act_kernel(%arg0: i32, %arg1: i32, %arg2: memref<16x200xbf16, #tpu.memory_space<vmem>>, %arg3: memref<1x200x64xbf16, #tpu.memory_space<vmem>>, %arg4: memref<16x1xf32, #tpu.memory_space<vmem>>, %arg5: memref<1x16x64xf32, #tpu.memory_space<vmem>>) attributes {dimension_semantics = [#tpu.dimension_semantics<parallel>, #tpu.dimension_semantics<parallel>], iteration_bounds = array<i64: 2, 1>, scalar_prefetch = 0 : i64, scratch_operands = 0 : i64, tpu.core_type = #tpu.core_type<tc>, window_params = [{pipeline_mode = #tpu.pipeline_mode<synchronous>, transform_indices = @transform_0, window_bounds = array<i64: 16, 200>}, {transform_indices = @transform_1, window_bounds = array<i64: 1, 200, 64>}, {pipeline_mode = #tpu.pipeline_mode<synchronous>, transform_indices = @transform_2, window_bounds = array<i64: 16, 1>}, {transform_indices = @transform_3, window_bounds = array<i64: 1, 16, 64>}]} {
    %c0 = arith.constant 0 : index
    %c0_0 = arith.constant 0 : index
    %0 = vector.load %arg2[%c0, %c0_0] : memref<16x200xbf16, #tpu.memory_space<vmem>>, vector<16x200xbf16>
    %c0_1 = arith.constant 0 : index
    %c0_2 = arith.constant 0 : index
    %c0_3 = arith.constant 0 : index
    %1 = vector.load %arg3[%c0_1, %c0_2, %c0_3] : memref<1x200x64xbf16, #tpu.memory_space<vmem>>, vector<1x200x64xbf16>
    %2 = vector.shape_cast %1 : vector<1x200x64xbf16> to vector<200x64xbf16>
    %cst = arith.constant dense<0.000000e+00> : vector<16x64xf32>
    %3 = tpu.matmul %0, %2, %cst {dimension_numbers = #tpu.dot_dimension_numbers<[1], [0], [0], [1], [0, 0, 1, 1], [], []>} : vector<16x200xbf16>, vector<200x64xbf16>, vector<16x64xf32> -> vector<16x64xf32>
    %c0_4 = arith.constant 0 : index
    %c0_5 = arith.constant 0 : index
    %4 = vector.load %arg4[%c0_4, %c0_5] : memref<16x1xf32, #tpu.memory_space<vmem>>, vector<16x1xf32>
    %5 = vector.broadcast %4 : vector<16x1xf32> to vector<16x64xf32>
    %6 = arith.addf %3, %5 : vector<16x64xf32>
    %cst_6 = arith.constant 0.000000e+00 : f32
    %7 = vector.broadcast %cst_6 : f32 to vector<16x64xf32>
    %8 = arith.cmpf ogt, %6, %7 : vector<16x64xf32>
    %cst_7 = arith.constant 0.00999999977 : f32
    %9 = vector.broadcast %cst_7 : f32 to vector<16x64xf32>
    %10 = arith.mulf %9, %6 : vector<16x64xf32>
    %11 = arith.select %8, %6, %10 : vector<16x64xi1>, vector<16x64xf32>
    %c0_8 = arith.constant 0 : index
    %c0_9 = arith.constant 0 : index
    %c0_10 = arith.constant 0 : index
    %12 = vector.load %arg5[%c0_8, %c0_9, %c0_10] : memref<1x16x64xf32, #tpu.memory_space<vmem>>, vector<1x16x64xf32>
    %13 = vector.shape_cast %12 : vector<1x16x64xf32> to vector<16x64xf32>
    %14 = vector.shape_cast %11 : vector<16x64xf32> to vector<1x16x64xf32>
    tpu.vector_store %arg5[%c0_8, %c0_9, %c0_10], %14 {strides = array<i32>} : memref<1x16x64xf32, #tpu.memory_space<vmem>>, vector<1x16x64xf32>,
    return
  }
  func.func @transform_0(%arg0: i32, %arg1: i32) -> (i32, i32) {
    %c0_i32 = arith.constant 0 : i32
    %c0_i32_0 = arith.constant 0 : i32
    %c0_i32_1 = arith.constant 0 : i32
    return %c0_i32, %c0_i32_0 : i32, i32
  }
  func.func @transform_1(%arg0: i32, %arg1: i32) -> (i32, i32, i32) {
    %c0_i32 = arith.constant 0 : i32
    %c0_i32_0 = arith.constant 0 : i32
    return %arg0, %c0_i32, %arg1 : i32, i32, i32
  }
  func.func @transform_2(%arg0: i32, %arg1: i32) -> (i32, i32) {
    %c0_i32 = arith.constant 0 : i32
    %c0_i32_0 = arith.constant 0 : i32
    %c0_i32_1 = arith.constant 0 : i32
    return %c0_i32, %c0_i32_0 : i32, i32
  }
  func.func @transform_3(%arg0: i32, %arg1: i32) -> (i32, i32, i32) {
    %c0_i32 = arith.constant 0 : i32
    %c0_i32_0 = arith.constant 0 : i32
    return %arg0, %c0_i32, %arg1 : i32, i32, i32
  }
}

module attributes {stable_mosaic.version = 11 : i64} {
  func.func @_gemm_bias_act_kernel(%arg0: i32, %arg1: i32, %arg2: memref<16x144xbf16, #tpu.memory_space<vmem>>, %arg3: memref<1x144x64xbf16, #tpu.memory_space<vmem>>, %arg4: memref<16x1xf32, #tpu.memory_space<vmem>>, %arg5: memref<1x16x64xf32, #tpu.memory_space<vmem>>) attributes {dimension_semantics = [#tpu.dimension_semantics<parallel>, #tpu.dimension_semantics<parallel>], iteration_bounds = array<i64: 2, 1>, scalar_prefetch = 0 : i64, scratch_operands = 0 : i64, tpu.core_type = #tpu.core_type<tc>, window_params = [{pipeline_mode = #tpu.pipeline_mode<synchronous>, transform_indices = @transform_0, window_bounds = array<i64: 16, 144>}, {transform_indices = @transform_1, window_bounds = array<i64: 1, 144, 64>}, {pipeline_mode = #tpu.pipeline_mode<synchronous>, transform_indices = @transform_2, window_bounds = array<i64: 16, 1>}, {transform_indices = @transform_3, window_bounds = array<i64: 1, 16, 64>}]} {
    %c0 = arith.constant 0 : index
    %c0_0 = arith.constant 0 : index
    %0 = vector.load %arg2[%c0, %c0_0] : memref<16x144xbf16, #tpu.memory_space<vmem>>, vector<16x144xbf16>
    %c0_1 = arith.constant 0 : index
    %c0_2 = arith.constant 0 : index
    %c0_3 = arith.constant 0 : index
    %1 = vector.load %arg3[%c0_1, %c0_2, %c0_3] : memref<1x144x64xbf16, #tpu.memory_space<vmem>>, vector<1x144x64xbf16>
    %2 = vector.shape_cast %1 : vector<1x144x64xbf16> to vector<144x64xbf16>
    %cst = arith.constant dense<0.000000e+00> : vector<16x64xf32>
    %3 = tpu.matmul %0, %2, %cst {dimension_numbers = #tpu.dot_dimension_numbers<[1], [0], [0], [1], [0, 0, 1, 1], [], []>} : vector<16x144xbf16>, vector<144x64xbf16>, vector<16x64xf32> -> vector<16x64xf32>
    %c0_4 = arith.constant 0 : index
    %c0_5 = arith.constant 0 : index
    %4 = vector.load %arg4[%c0_4, %c0_5] : memref<16x1xf32, #tpu.memory_space<vmem>>, vector<16x1xf32>
    %5 = vector.broadcast %4 : vector<16x1xf32> to vector<16x64xf32>
    %6 = arith.addf %3, %5 : vector<16x64xf32>
    %cst_6 = arith.constant 0.000000e+00 : f32
    %7 = vector.broadcast %cst_6 : f32 to vector<16x64xf32>
    %8 = arith.cmpf ogt, %6, %7 : vector<16x64xf32>
    %cst_7 = arith.constant 0.00999999977 : f32
    %9 = vector.broadcast %cst_7 : f32 to vector<16x64xf32>
    %10 = arith.mulf %9, %6 : vector<16x64xf32>
    %11 = arith.select %8, %6, %10 : vector<16x64xi1>, vector<16x64xf32>
    %c0_8 = arith.constant 0 : index
    %c0_9 = arith.constant 0 : index
    %c0_10 = arith.constant 0 : index
    %12 = vector.load %arg5[%c0_8, %c0_9, %c0_10] : memref<1x16x64xf32, #tpu.memory_space<vmem>>, vector<1x16x64xf32>
    %13 = vector.shape_cast %12 : vector<1x16x64xf32> to vector<16x64xf32>
    %14 = vector.shape_cast %11 : vector<16x64xf32> to vector<1x16x64xf32>
    tpu.vector_store %arg5[%c0_8, %c0_9, %c0_10], %14 {strides = array<i32>} : memref<1x16x64xf32, #tpu.memory_space<vmem>>, vector<1x16x64xf32>,
    return
  }
  func.func @transform_0(%arg0: i32, %arg1: i32) -> (i32, i32) {
    %c0_i32 = arith.constant 0 : i32
    %c0_i32_0 = arith.constant 0 : i32
    %c0_i32_1 = arith.constant 0 : i32
    return %c0_i32, %c0_i32_0 : i32, i32
  }
  func.func @transform_1(%arg0: i32, %arg1: i32) -> (i32, i32, i32) {
    %c0_i32 = arith.constant 0 : i32
    %c0_i32_0 = arith.constant 0 : i32
    return %arg0, %c0_i32, %arg1 : i32, i32, i32
  }
  func.func @transform_2(%arg0: i32, %arg1: i32) -> (i32, i32) {
    %c0_i32 = arith.constant 0 : i32
    %c0_i32_0 = arith.constant 0 : i32
    %c0_i32_1 = arith.constant 0 : i32
    return %c0_i32, %c0_i32_0 : i32, i32
  }
  func.func @transform_3(%arg0: i32, %arg1: i32) -> (i32, i32, i32) {
    %c0_i32 = arith.constant 0 : i32
    %c0_i32_0 = arith.constant 0 : i32
    return %arg0, %c0_i32, %arg1 : i32, i32, i32
  }
}

module attributes {stable_mosaic.version = 11 : i64} {
  func.func @_gemm_bias_act_kernel(%arg0: i32, %arg1: i32, %arg2: memref<32x16xbf16, #tpu.memory_space<vmem>>, %arg3: memref<1x16x64xbf16, #tpu.memory_space<vmem>>, %arg4: memref<32x1xf32, #tpu.memory_space<vmem>>, %arg5: memref<1x32x64xf32, #tpu.memory_space<vmem>>) attributes {dimension_semantics = [#tpu.dimension_semantics<parallel>, #tpu.dimension_semantics<parallel>], iteration_bounds = array<i64: 2, 1>, scalar_prefetch = 0 : i64, scratch_operands = 0 : i64, tpu.core_type = #tpu.core_type<tc>, window_params = [{pipeline_mode = #tpu.pipeline_mode<synchronous>, transform_indices = @transform_0, window_bounds = array<i64: 32, 16>}, {transform_indices = @transform_1, window_bounds = array<i64: 1, 16, 64>}, {pipeline_mode = #tpu.pipeline_mode<synchronous>, transform_indices = @transform_2, window_bounds = array<i64: 32, 1>}, {transform_indices = @transform_3, window_bounds = array<i64: 1, 32, 64>}]} {
    %c0 = arith.constant 0 : index
    %c0_0 = arith.constant 0 : index
    %0 = vector.load %arg2[%c0, %c0_0] : memref<32x16xbf16, #tpu.memory_space<vmem>>, vector<32x16xbf16>
    %c0_1 = arith.constant 0 : index
    %c0_2 = arith.constant 0 : index
    %c0_3 = arith.constant 0 : index
    %1 = vector.load %arg3[%c0_1, %c0_2, %c0_3] : memref<1x16x64xbf16, #tpu.memory_space<vmem>>, vector<1x16x64xbf16>
    %2 = vector.shape_cast %1 : vector<1x16x64xbf16> to vector<16x64xbf16>
    %cst = arith.constant dense<0.000000e+00> : vector<32x64xf32>
    %3 = tpu.matmul %0, %2, %cst {dimension_numbers = #tpu.dot_dimension_numbers<[1], [0], [0], [1], [0, 0, 1, 1], [], []>} : vector<32x16xbf16>, vector<16x64xbf16>, vector<32x64xf32> -> vector<32x64xf32>
    %c0_4 = arith.constant 0 : index
    %c0_5 = arith.constant 0 : index
    %4 = vector.load %arg4[%c0_4, %c0_5] : memref<32x1xf32, #tpu.memory_space<vmem>>, vector<32x1xf32>
    %5 = vector.broadcast %4 : vector<32x1xf32> to vector<32x64xf32>
    %6 = arith.addf %3, %5 : vector<32x64xf32>
    %c0_6 = arith.constant 0 : index
    %c0_7 = arith.constant 0 : index
    %c0_8 = arith.constant 0 : index
    %7 = vector.load %arg5[%c0_6, %c0_7, %c0_8] : memref<1x32x64xf32, #tpu.memory_space<vmem>>, vector<1x32x64xf32>
    %8 = vector.shape_cast %7 : vector<1x32x64xf32> to vector<32x64xf32>
    %9 = vector.shape_cast %6 : vector<32x64xf32> to vector<1x32x64xf32>
    tpu.vector_store %arg5[%c0_6, %c0_7, %c0_8], %9 {strides = array<i32>} : memref<1x32x64xf32, #tpu.memory_space<vmem>>, vector<1x32x64xf32>,
    return
  }
  func.func @transform_0(%arg0: i32, %arg1: i32) -> (i32, i32) {
    %c0_i32 = arith.constant 0 : i32
    %c0_i32_0 = arith.constant 0 : i32
    %c0_i32_1 = arith.constant 0 : i32
    return %c0_i32, %c0_i32_0 : i32, i32
  }
  func.func @transform_1(%arg0: i32, %arg1: i32) -> (i32, i32, i32) {
    %c0_i32 = arith.constant 0 : i32
    %c0_i32_0 = arith.constant 0 : i32
    return %arg0, %c0_i32, %arg1 : i32, i32, i32
  }
  func.func @transform_2(%arg0: i32, %arg1: i32) -> (i32, i32) {
    %c0_i32 = arith.constant 0 : i32
    %c0_i32_0 = arith.constant 0 : i32
    %c0_i32_1 = arith.constant 0 : i32
    return %c0_i32, %c0_i32_0 : i32, i32
  }
  func.func @transform_3(%arg0: i32, %arg1: i32) -> (i32, i32, i32) {
    %c0_i32 = arith.constant 0 : i32
    %c0_i32_0 = arith.constant 0 : i32
    return %arg0, %c0_i32, %arg1 : i32, i32, i32
  }
}

module attributes {stable_mosaic.version = 11 : i64} {
  func.func @_gemm_bias_act_kernel(%arg0: i32, %arg1: i32, %arg2: memref<32x400xbf16, #tpu.memory_space<vmem>>, %arg3: memref<1x400x16xbf16, #tpu.memory_space<vmem>>, %arg4: memref<32x1xf32, #tpu.memory_space<vmem>>, %arg5: memref<1x32x16xf32, #tpu.memory_space<vmem>>) attributes {dimension_semantics = [#tpu.dimension_semantics<parallel>, #tpu.dimension_semantics<parallel>], iteration_bounds = array<i64: 2, 1>, scalar_prefetch = 0 : i64, scratch_operands = 0 : i64, tpu.core_type = #tpu.core_type<tc>, window_params = [{pipeline_mode = #tpu.pipeline_mode<synchronous>, transform_indices = @transform_0, window_bounds = array<i64: 32, 400>}, {transform_indices = @transform_1, window_bounds = array<i64: 1, 400, 16>}, {pipeline_mode = #tpu.pipeline_mode<synchronous>, transform_indices = @transform_2, window_bounds = array<i64: 32, 1>}, {transform_indices = @transform_3, window_bounds = array<i64: 1, 32, 16>}]} {
    %c0 = arith.constant 0 : index
    %c0_0 = arith.constant 0 : index
    %0 = vector.load %arg2[%c0, %c0_0] : memref<32x400xbf16, #tpu.memory_space<vmem>>, vector<32x400xbf16>
    %c0_1 = arith.constant 0 : index
    %c0_2 = arith.constant 0 : index
    %c0_3 = arith.constant 0 : index
    %1 = vector.load %arg3[%c0_1, %c0_2, %c0_3] : memref<1x400x16xbf16, #tpu.memory_space<vmem>>, vector<1x400x16xbf16>
    %2 = vector.shape_cast %1 : vector<1x400x16xbf16> to vector<400x16xbf16>
    %cst = arith.constant dense<0.000000e+00> : vector<32x16xf32>
    %3 = tpu.matmul %0, %2, %cst {dimension_numbers = #tpu.dot_dimension_numbers<[1], [0], [0], [1], [0, 0, 1, 1], [], []>} : vector<32x400xbf16>, vector<400x16xbf16>, vector<32x16xf32> -> vector<32x16xf32>
    %c0_4 = arith.constant 0 : index
    %c0_5 = arith.constant 0 : index
    %4 = vector.load %arg4[%c0_4, %c0_5] : memref<32x1xf32, #tpu.memory_space<vmem>>, vector<32x1xf32>
    %5 = vector.broadcast %4 : vector<32x1xf32> to vector<32x16xf32>
    %6 = arith.addf %3, %5 : vector<32x16xf32>
    %cst_6 = arith.constant 0.000000e+00 : f32
    %7 = vector.broadcast %cst_6 : f32 to vector<32x16xf32>
    %8 = arith.cmpf ogt, %6, %7 : vector<32x16xf32>
    %cst_7 = arith.constant 0.00999999977 : f32
    %9 = vector.broadcast %cst_7 : f32 to vector<32x16xf32>
    %10 = arith.mulf %9, %6 : vector<32x16xf32>
    %11 = arith.select %8, %6, %10 : vector<32x16xi1>, vector<32x16xf32>
    %c0_8 = arith.constant 0 : index
    %c0_9 = arith.constant 0 : index
    %c0_10 = arith.constant 0 : index
    %12 = vector.load %arg5[%c0_8, %c0_9, %c0_10] : memref<1x32x16xf32, #tpu.memory_space<vmem>>, vector<1x32x16xf32>
    %13 = vector.shape_cast %12 : vector<1x32x16xf32> to vector<32x16xf32>
    %14 = vector.shape_cast %11 : vector<32x16xf32> to vector<1x32x16xf32>
    tpu.vector_store %arg5[%c0_8, %c0_9, %c0_10], %14 {strides = array<i32>} : memref<1x32x16xf32, #tpu.memory_space<vmem>>, vector<1x32x16xf32>,
    return
  }
  func.func @transform_0(%arg0: i32, %arg1: i32) -> (i32, i32) {
    %c0_i32 = arith.constant 0 : i32
    %c0_i32_0 = arith.constant 0 : i32
    %c0_i32_1 = arith.constant 0 : i32
    return %c0_i32, %c0_i32_0 : i32, i32
  }
  func.func @transform_1(%arg0: i32, %arg1: i32) -> (i32, i32, i32) {
    %c0_i32 = arith.constant 0 : i32
    %c0_i32_0 = arith.constant 0 : i32
    return %arg0, %c0_i32, %arg1 : i32, i32, i32
  }
  func.func @transform_2(%arg0: i32, %arg1: i32) -> (i32, i32) {
    %c0_i32 = arith.constant 0 : i32
    %c0_i32_0 = arith.constant 0 : i32
    %c0_i32_1 = arith.constant 0 : i32
    return %c0_i32, %c0_i32_0 : i32, i32
  }
  func.func @transform_3(%arg0: i32, %arg1: i32) -> (i32, i32, i32) {
    %c0_i32 = arith.constant 0 : i32
    %c0_i32_0 = arith.constant 0 : i32
    return %arg0, %c0_i32, %arg1 : i32, i32, i32
  }
}

module attributes {stable_mosaic.version = 11 : i64} {
  func.func @_gemm_bias_act_kernel(%arg0: i32, %arg1: i32, %arg2: memref<32x288xbf16, #tpu.memory_space<vmem>>, %arg3: memref<1x288x16xbf16, #tpu.memory_space<vmem>>, %arg4: memref<32x1xf32, #tpu.memory_space<vmem>>, %arg5: memref<1x32x16xf32, #tpu.memory_space<vmem>>) attributes {dimension_semantics = [#tpu.dimension_semantics<parallel>, #tpu.dimension_semantics<parallel>], iteration_bounds = array<i64: 2, 1>, scalar_prefetch = 0 : i64, scratch_operands = 0 : i64, tpu.core_type = #tpu.core_type<tc>, window_params = [{pipeline_mode = #tpu.pipeline_mode<synchronous>, transform_indices = @transform_0, window_bounds = array<i64: 32, 288>}, {transform_indices = @transform_1, window_bounds = array<i64: 1, 288, 16>}, {pipeline_mode = #tpu.pipeline_mode<synchronous>, transform_indices = @transform_2, window_bounds = array<i64: 32, 1>}, {transform_indices = @transform_3, window_bounds = array<i64: 1, 32, 16>}]} {
    %c0 = arith.constant 0 : index
    %c0_0 = arith.constant 0 : index
    %0 = vector.load %arg2[%c0, %c0_0] : memref<32x288xbf16, #tpu.memory_space<vmem>>, vector<32x288xbf16>
    %c0_1 = arith.constant 0 : index
    %c0_2 = arith.constant 0 : index
    %c0_3 = arith.constant 0 : index
    %1 = vector.load %arg3[%c0_1, %c0_2, %c0_3] : memref<1x288x16xbf16, #tpu.memory_space<vmem>>, vector<1x288x16xbf16>
    %2 = vector.shape_cast %1 : vector<1x288x16xbf16> to vector<288x16xbf16>
    %cst = arith.constant dense<0.000000e+00> : vector<32x16xf32>
    %3 = tpu.matmul %0, %2, %cst {dimension_numbers = #tpu.dot_dimension_numbers<[1], [0], [0], [1], [0, 0, 1, 1], [], []>} : vector<32x288xbf16>, vector<288x16xbf16>, vector<32x16xf32> -> vector<32x16xf32>
    %c0_4 = arith.constant 0 : index
    %c0_5 = arith.constant 0 : index
    %4 = vector.load %arg4[%c0_4, %c0_5] : memref<32x1xf32, #tpu.memory_space<vmem>>, vector<32x1xf32>
    %5 = vector.broadcast %4 : vector<32x1xf32> to vector<32x16xf32>
    %6 = arith.addf %3, %5 : vector<32x16xf32>
    %cst_6 = arith.constant 0.000000e+00 : f32
    %7 = vector.broadcast %cst_6 : f32 to vector<32x16xf32>
    %8 = arith.cmpf ogt, %6, %7 : vector<32x16xf32>
    %cst_7 = arith.constant 0.00999999977 : f32
    %9 = vector.broadcast %cst_7 : f32 to vector<32x16xf32>
    %10 = arith.mulf %9, %6 : vector<32x16xf32>
    %11 = arith.select %8, %6, %10 : vector<32x16xi1>, vector<32x16xf32>
    %c0_8 = arith.constant 0 : index
    %c0_9 = arith.constant 0 : index
    %c0_10 = arith.constant 0 : index
    %12 = vector.load %arg5[%c0_8, %c0_9, %c0_10] : memref<1x32x16xf32, #tpu.memory_space<vmem>>, vector<1x32x16xf32>
    %13 = vector.shape_cast %12 : vector<1x32x16xf32> to vector<32x16xf32>
    %14 = vector.shape_cast %11 : vector<32x16xf32> to vector<1x32x16xf32>
    tpu.vector_store %arg5[%c0_8, %c0_9, %c0_10], %14 {strides = array<i32>} : memref<1x32x16xf32, #tpu.memory_space<vmem>>, vector<1x32x16xf32>,
    return
  }
  func.func @transform_0(%arg0: i32, %arg1: i32) -> (i32, i32) {
    %c0_i32 = arith.constant 0 : i32
    %c0_i32_0 = arith.constant 0 : i32
    %c0_i32_1 = arith.constant 0 : i32
    return %c0_i32, %c0_i32_0 : i32, i32
  }
  func.func @transform_1(%arg0: i32, %arg1: i32) -> (i32, i32, i32) {
    %c0_i32 = arith.constant 0 : i32
    %c0_i32_0 = arith.constant 0 : i32
    return %arg0, %c0_i32, %arg1 : i32, i32, i32
  }
  func.func @transform_2(%arg0: i32, %arg1: i32) -> (i32, i32) {
    %c0_i32 = arith.constant 0 : i32
    %c0_i32_0 = arith.constant 0 : i32
    %c0_i32_1 = arith.constant 0 : i32
    return %c0_i32, %c0_i32_0 : i32, i32
  }
  func.func @transform_3(%arg0: i32, %arg1: i32) -> (i32, i32, i32) {
    %c0_i32 = arith.constant 0 : i32
    %c0_i32_0 = arith.constant 0 : i32
    return %arg0, %c0_i32, %arg1 : i32, i32, i32
  }
}

module attributes {stable_mosaic.version = 11 : i64} {
  func.func @_gemm_bias_act_kernel(%arg0: i32, %arg1: i32, %arg2: memref<32x32xbf16, #tpu.memory_space<vmem>>, %arg3: memref<1x32x16xbf16, #tpu.memory_space<vmem>>, %arg4: memref<32x1xf32, #tpu.memory_space<vmem>>, %arg5: memref<1x32x16xf32, #tpu.memory_space<vmem>>) attributes {dimension_semantics = [#tpu.dimension_semantics<parallel>, #tpu.dimension_semantics<parallel>], iteration_bounds = array<i64: 2, 1>, scalar_prefetch = 0 : i64, scratch_operands = 0 : i64, tpu.core_type = #tpu.core_type<tc>, window_params = [{pipeline_mode = #tpu.pipeline_mode<synchronous>, transform_indices = @transform_0, window_bounds = array<i64: 32, 32>}, {transform_indices = @transform_1, window_bounds = array<i64: 1, 32, 16>}, {pipeline_mode = #tpu.pipeline_mode<synchronous>, transform_indices = @transform_2, window_bounds = array<i64: 32, 1>}, {transform_indices = @transform_3, window_bounds = array<i64: 1, 32, 16>}]} {
    %c0 = arith.constant 0 : index
    %c0_0 = arith.constant 0 : index
    %0 = vector.load %arg2[%c0, %c0_0] : memref<32x32xbf16, #tpu.memory_space<vmem>>, vector<32x32xbf16>
    %c0_1 = arith.constant 0 : index
    %c0_2 = arith.constant 0 : index
    %c0_3 = arith.constant 0 : index
    %1 = vector.load %arg3[%c0_1, %c0_2, %c0_3] : memref<1x32x16xbf16, #tpu.memory_space<vmem>>, vector<1x32x16xbf16>
    %2 = vector.shape_cast %1 : vector<1x32x16xbf16> to vector<32x16xbf16>
    %cst = arith.constant dense<0.000000e+00> : vector<32x16xf32>
    %3 = tpu.matmul %0, %2, %cst {dimension_numbers = #tpu.dot_dimension_numbers<[1], [0], [0], [1], [0, 0, 1, 1], [], []>} : vector<32x32xbf16>, vector<32x16xbf16>, vector<32x16xf32> -> vector<32x16xf32>
    %c0_4 = arith.constant 0 : index
    %c0_5 = arith.constant 0 : index
    %4 = vector.load %arg4[%c0_4, %c0_5] : memref<32x1xf32, #tpu.memory_space<vmem>>, vector<32x1xf32>
    %5 = vector.broadcast %4 : vector<32x1xf32> to vector<32x16xf32>
    %6 = arith.addf %3, %5 : vector<32x16xf32>
    %c0_6 = arith.constant 0 : index
    %c0_7 = arith.constant 0 : index
    %c0_8 = arith.constant 0 : index
    %7 = vector.load %arg5[%c0_6, %c0_7, %c0_8] : memref<1x32x16xf32, #tpu.memory_space<vmem>>, vector<1x32x16xf32>
    %8 = vector.shape_cast %7 : vector<1x32x16xf32> to vector<32x16xf32>
    %9 = vector.shape_cast %6 : vector<32x16xf32> to vector<1x32x16xf32>
    tpu.vector_store %arg5[%c0_6, %c0_7, %c0_8], %9 {strides = array<i32>} : memref<1x32x16xf32, #tpu.memory_space<vmem>>, vector<1x32x16xf32>,
    return
  }
  func.func @transform_0(%arg0: i32, %arg1: i32) -> (i32, i32) {
    %c0_i32 = arith.constant 0 : i32
    %c0_i32_0 = arith.constant 0 : i32
    %c0_i32_1 = arith.constant 0 : i32
    return %c0_i32, %c0_i32_0 : i32, i32
  }
  func.func @transform_1(%arg0: i32, %arg1: i32) -> (i32, i32, i32) {
    %c0_i32 = arith.constant 0 : i32
    %c0_i32_0 = arith.constant 0 : i32
    return %arg0, %c0_i32, %arg1 : i32, i32, i32
  }
  func.func @transform_2(%arg0: i32, %arg1: i32) -> (i32, i32) {
    %c0_i32 = arith.constant 0 : i32
    %c0_i32_0 = arith.constant 0 : i32
    %c0_i32_1 = arith.constant 0 : i32
    return %c0_i32, %c0_i32_0 : i32, i32
  }
  func.func @transform_3(%arg0: i32, %arg1: i32) -> (i32, i32, i32) {
    %c0_i32 = arith.constant 0 : i32
    %c0_i32_0 = arith.constant 0 : i32
    return %arg0, %c0_i32, %arg1 : i32, i32, i32
  }
}

module attributes {stable_mosaic.version = 11 : i64} {
  func.func @_upsample_add_kernel(%arg0: i32, %arg1: memref<8x4xf32, #tpu.memory_space<vmem>>, %arg2: memref<4x8xf32, #tpu.memory_space<vmem>>, %arg3: memref<8x4x4xf32, #tpu.memory_space<vmem>>, %arg4: memref<8x8x8xf32, #tpu.memory_space<vmem>>, %arg5: memref<8x8x8xf32, #tpu.memory_space<vmem>>) attributes {dimension_semantics = [#tpu.dimension_semantics<parallel>], iteration_bounds = array<i64: 8>, scalar_prefetch = 0 : i64, scratch_operands = 0 : i64, tpu.core_type = #tpu.core_type<tc>, window_params = [{pipeline_mode = #tpu.pipeline_mode<synchronous>, transform_indices = @transform_0, window_bounds = array<i64: 8, 4>}, {pipeline_mode = #tpu.pipeline_mode<synchronous>, transform_indices = @transform_1, window_bounds = array<i64: 4, 8>}, {transform_indices = @transform_2, window_bounds = array<i64: 8, 4, 4>}, {transform_indices = @transform_3, window_bounds = array<i64: 8, 8, 8>}, {transform_indices = @transform_4, window_bounds = array<i64: 8, 8, 8>}]} {
    %c0 = arith.constant 0 : index
    %c0_0 = arith.constant 0 : index
    %c0_1 = arith.constant 0 : index
    %0 = vector.load %arg3[%c0, %c0_0, %c0_1] : memref<8x4x4xf32, #tpu.memory_space<vmem>>, vector<1x4x4xf32>
    %1 = vector.shape_cast %0 : vector<1x4x4xf32> to vector<4x4xf32>
    %c0_2 = arith.constant 0 : index
    %c0_3 = arith.constant 0 : index
    %2 = vector.load %arg2[%c0_2, %c0_3] : memref<4x8xf32, #tpu.memory_space<vmem>>, vector<4x8xf32>
    %cst = arith.constant dense<0.000000e+00> : vector<4x8xf32>
    %3 = tpu.matmul %1, %2, %cst {dimension_numbers = #tpu.dot_dimension_numbers<[1], [0], [0], [1], [0, 0, 1, 1], [], []>} : vector<4x4xf32>, vector<4x8xf32>, vector<4x8xf32> -> vector<4x8xf32>
    %c0_4 = arith.constant 0 : index
    %c0_5 = arith.constant 0 : index
    %4 = vector.load %arg1[%c0_4, %c0_5] : memref<8x4xf32, #tpu.memory_space<vmem>>, vector<8x4xf32>
    %cst_6 = arith.constant dense<0.000000e+00> : vector<8x8xf32>
    %5 = tpu.matmul %4, %3, %cst_6 {dimension_numbers = #tpu.dot_dimension_numbers<[1], [0], [0], [1], [0, 0, 1, 1], [], []>} : vector<8x4xf32>, vector<4x8xf32>, vector<8x8xf32> -> vector<8x8xf32>
    %c0_7 = arith.constant 0 : index
    %c0_8 = arith.constant 0 : index
    %c0_9 = arith.constant 0 : index
    %6 = vector.load %arg4[%c0_7, %c0_8, %c0_9] : memref<8x8x8xf32, #tpu.memory_space<vmem>>, vector<1x8x8xf32>
    %7 = vector.shape_cast %6 : vector<1x8x8xf32> to vector<8x8xf32>
    %8 = arith.addf %5, %7 : vector<8x8xf32>
    %c0_10 = arith.constant 0 : index
    %c0_11 = arith.constant 0 : index
    %c0_12 = arith.constant 0 : index
    %9 = vector.load %arg5[%c0_10, %c0_11, %c0_12] : memref<8x8x8xf32, #tpu.memory_space<vmem>>, vector<1x8x8xf32>
    %10 = vector.shape_cast %9 : vector<1x8x8xf32> to vector<8x8xf32>
    %11 = vector.shape_cast %8 : vector<8x8xf32> to vector<1x8x8xf32>
    tpu.vector_store %arg5[%c0_10, %c0_11, %c0_12], %11 {strides = array<i32>} : memref<8x8x8xf32, #tpu.memory_space<vmem>>, vector<1x8x8xf32>,
    %c1 = arith.constant 1 : index
    %c0_13 = arith.constant 0 : index
    %c0_14 = arith.constant 0 : index
    %12 = vector.load %arg3[%c1, %c0_13, %c0_14] : memref<8x4x4xf32, #tpu.memory_space<vmem>>, vector<1x4x4xf32>
    %13 = vector.shape_cast %12 : vector<1x4x4xf32> to vector<4x4xf32>
    %c0_15 = arith.constant 0 : index
    %c0_16 = arith.constant 0 : index
    %14 = vector.load %arg2[%c0_15, %c0_16] : memref<4x8xf32, #tpu.memory_space<vmem>>, vector<4x8xf32>
    %cst_17 = arith.constant dense<0.000000e+00> : vector<4x8xf32>
    %15 = tpu.matmul %13, %14, %cst_17 {dimension_numbers = #tpu.dot_dimension_numbers<[1], [0], [0], [1], [0, 0, 1, 1], [], []>} : vector<4x4xf32>, vector<4x8xf32>, vector<4x8xf32> -> vector<4x8xf32>
    %c0_18 = arith.constant 0 : index
    %c0_19 = arith.constant 0 : index
    %16 = vector.load %arg1[%c0_18, %c0_19] : memref<8x4xf32, #tpu.memory_space<vmem>>, vector<8x4xf32>
    %cst_20 = arith.constant dense<0.000000e+00> : vector<8x8xf32>
    %17 = tpu.matmul %16, %15, %cst_20 {dimension_numbers = #tpu.dot_dimension_numbers<[1], [0], [0], [1], [0, 0, 1, 1], [], []>} : vector<8x4xf32>, vector<4x8xf32>, vector<8x8xf32> -> vector<8x8xf32>
    %c1_21 = arith.constant 1 : index
    %c0_22 = arith.constant 0 : index
    %c0_23 = arith.constant 0 : index
    %18 = vector.load %arg4[%c1_21, %c0_22, %c0_23] : memref<8x8x8xf32, #tpu.memory_space<vmem>>, vector<1x8x8xf32>
    %19 = vector.shape_cast %18 : vector<1x8x8xf32> to vector<8x8xf32>
    %20 = arith.addf %17, %19 : vector<8x8xf32>
    %c1_24 = arith.constant 1 : index
    %c0_25 = arith.constant 0 : index
    %c0_26 = arith.constant 0 : index
    %21 = vector.load %arg5[%c1_24, %c0_25, %c0_26] : memref<8x8x8xf32, #tpu.memory_space<vmem>>, vector<1x8x8xf32>
    %22 = vector.shape_cast %21 : vector<1x8x8xf32> to vector<8x8xf32>
    %23 = vector.shape_cast %20 : vector<8x8xf32> to vector<1x8x8xf32>
    tpu.vector_store %arg5[%c1_24, %c0_25, %c0_26], %23 {strides = array<i32>} : memref<8x8x8xf32, #tpu.memory_space<vmem>>, vector<1x8x8xf32>,
    %c2 = arith.constant 2 : index
    %c0_27 = arith.constant 0 : index
    %c0_28 = arith.constant 0 : index
    %24 = vector.load %arg3[%c2, %c0_27, %c0_28] : memref<8x4x4xf32, #tpu.memory_space<vmem>>, vector<1x4x4xf32>
    %25 = vector.shape_cast %24 : vector<1x4x4xf32> to vector<4x4xf32>
    %c0_29 = arith.constant 0 : index
    %c0_30 = arith.constant 0 : index
    %26 = vector.load %arg2[%c0_29, %c0_30] : memref<4x8xf32, #tpu.memory_space<vmem>>, vector<4x8xf32>
    %cst_31 = arith.constant dense<0.000000e+00> : vector<4x8xf32>
    %27 = tpu.matmul %25, %26, %cst_31 {dimension_numbers = #tpu.dot_dimension_numbers<[1], [0], [0], [1], [0, 0, 1, 1], [], []>} : vector<4x4xf32>, vector<4x8xf32>, vector<4x8xf32> -> vector<4x8xf32>
    %c0_32 = arith.constant 0 : index
    %c0_33 = arith.constant 0 : index
    %28 = vector.load %arg1[%c0_32, %c0_33] : memref<8x4xf32, #tpu.memory_space<vmem>>, vector<8x4xf32>
    %cst_34 = arith.constant dense<0.000000e+00> : vector<8x8xf32>
    %29 = tpu.matmul %28, %27, %cst_34 {dimension_numbers = #tpu.dot_dimension_numbers<[1], [0], [0], [1], [0, 0, 1, 1], [], []>} : vector<8x4xf32>, vector<4x8xf32>, vector<8x8xf32> -> vector<8x8xf32>
    %c2_35 = arith.constant 2 : index
    %c0_36 = arith.constant 0 : index
    %c0_37 = arith.constant 0 : index
    %30 = vector.load %arg4[%c2_35, %c0_36, %c0_37] : memref<8x8x8xf32, #tpu.memory_space<vmem>>, vector<1x8x8xf32>
    %31 = vector.shape_cast %30 : vector<1x8x8xf32> to vector<8x8xf32>
    %32 = arith.addf %29, %31 : vector<8x8xf32>
    %c2_38 = arith.constant 2 : index
    %c0_39 = arith.constant 0 : index
    %c0_40 = arith.constant 0 : index
    %33 = vector.load %arg5[%c2_38, %c0_39, %c0_40] : memref<8x8x8xf32, #tpu.memory_space<vmem>>, vector<1x8x8xf32>
    %34 = vector.shape_cast %33 : vector<1x8x8xf32> to vector<8x8xf32>
    %35 = vector.shape_cast %32 : vector<8x8xf32> to vector<1x8x8xf32>
    tpu.vector_store %arg5[%c2_38, %c0_39, %c0_40], %35 {strides = array<i32>} : memref<8x8x8xf32, #tpu.memory_space<vmem>>, vector<1x8x8xf32>,
    %c3 = arith.constant 3 : index
    %c0_41 = arith.constant 0 : index
    %c0_42 = arith.constant 0 : index
    %36 = vector.load %arg3[%c3, %c0_41, %c0_42] : memref<8x4x4xf32, #tpu.memory_space<vmem>>, vector<1x4x4xf32>
    %37 = vector.shape_cast %36 : vector<1x4x4xf32> to vector<4x4xf32>
    %c0_43 = arith.constant 0 : index
    %c0_44 = arith.constant 0 : index
    %38 = vector.load %arg2[%c0_43, %c0_44] : memref<4x8xf32, #tpu.memory_space<vmem>>, vector<4x8xf32>
    %cst_45 = arith.constant dense<0.000000e+00> : vector<4x8xf32>
    %39 = tpu.matmul %37, %38, %cst_45 {dimension_numbers = #tpu.dot_dimension_numbers<[1], [0], [0], [1], [0, 0, 1, 1], [], []>} : vector<4x4xf32>, vector<4x8xf32>, vector<4x8xf32> -> vector<4x8xf32>
    %c0_46 = arith.constant 0 : index
    %c0_47 = arith.constant 0 : index
    %40 = vector.load %arg1[%c0_46, %c0_47] : memref<8x4xf32, #tpu.memory_space<vmem>>, vector<8x4xf32>
    %cst_48 = arith.constant dense<0.000000e+00> : vector<8x8xf32>
    %41 = tpu.matmul %40, %39, %cst_48 {dimension_numbers = #tpu.dot_dimension_numbers<[1], [0], [0], [1], [0, 0, 1, 1], [], []>} : vector<8x4xf32>, vector<4x8xf32>, vector<8x8xf32> -> vector<8x8xf32>
    %c3_49 = arith.constant 3 : index
    %c0_50 = arith.constant 0 : index
    %c0_51 = arith.constant 0 : index
    %42 = vector.load %arg4[%c3_49, %c0_50, %c0_51] : memref<8x8x8xf32, #tpu.memory_space<vmem>>, vector<1x8x8xf32>
    %43 = vector.shape_cast %42 : vector<1x8x8xf32> to vector<8x8xf32>
    %44 = arith.addf %41, %43 : vector<8x8xf32>
    %c3_52 = arith.constant 3 : index
    %c0_53 = arith.constant 0 : index
    %c0_54 = arith.constant 0 : index
    %45 = vector.load %arg5[%c3_52, %c0_53, %c0_54] : memref<8x8x8xf32, #tpu.memory_space<vmem>>, vector<1x8x8xf32>
    %46 = vector.shape_cast %45 : vector<1x8x8xf32> to vector<8x8xf32>
    %47 = vector.shape_cast %44 : vector<8x8xf32> to vector<1x8x8xf32>
    tpu.vector_store %arg5[%c3_52, %c0_53, %c0_54], %47 {strides = array<i32>} : memref<8x8x8xf32, #tpu.memory_space<vmem>>, vector<1x8x8xf32>,
    %c4 = arith.constant 4 : index
    %c0_55 = arith.constant 0 : index
    %c0_56 = arith.constant 0 : index
    %48 = vector.load %arg3[%c4, %c0_55, %c0_56] : memref<8x4x4xf32, #tpu.memory_space<vmem>>, vector<1x4x4xf32>
    %49 = vector.shape_cast %48 : vector<1x4x4xf32> to vector<4x4xf32>
    %c0_57 = arith.constant 0 : index
    %c0_58 = arith.constant 0 : index
    %50 = vector.load %arg2[%c0_57, %c0_58] : memref<4x8xf32, #tpu.memory_space<vmem>>, vector<4x8xf32>
    %cst_59 = arith.constant dense<0.000000e+00> : vector<4x8xf32>
    %51 = tpu.matmul %49, %50, %cst_59 {dimension_numbers = #tpu.dot_dimension_numbers<[1], [0], [0], [1], [0, 0, 1, 1], [], []>} : vector<4x4xf32>, vector<4x8xf32>, vector<4x8xf32> -> vector<4x8xf32>
    %c0_60 = arith.constant 0 : index
    %c0_61 = arith.constant 0 : index
    %52 = vector.load %arg1[%c0_60, %c0_61] : memref<8x4xf32, #tpu.memory_space<vmem>>, vector<8x4xf32>
    %cst_62 = arith.constant dense<0.000000e+00> : vector<8x8xf32>
    %53 = tpu.matmul %52, %51, %cst_62 {dimension_numbers = #tpu.dot_dimension_numbers<[1], [0], [0], [1], [0, 0, 1, 1], [], []>} : vector<8x4xf32>, vector<4x8xf32>, vector<8x8xf32> -> vector<8x8xf32>
    %c4_63 = arith.constant 4 : index
    %c0_64 = arith.constant 0 : index
    %c0_65 = arith.constant 0 : index
    %54 = vector.load %arg4[%c4_63, %c0_64, %c0_65] : memref<8x8x8xf32, #tpu.memory_space<vmem>>, vector<1x8x8xf32>
    %55 = vector.shape_cast %54 : vector<1x8x8xf32> to vector<8x8xf32>
    %56 = arith.addf %53, %55 : vector<8x8xf32>
    %c4_66 = arith.constant 4 : index
    %c0_67 = arith.constant 0 : index
    %c0_68 = arith.constant 0 : index
    %57 = vector.load %arg5[%c4_66, %c0_67, %c0_68] : memref<8x8x8xf32, #tpu.memory_space<vmem>>, vector<1x8x8xf32>
    %58 = vector.shape_cast %57 : vector<1x8x8xf32> to vector<8x8xf32>
    %59 = vector.shape_cast %56 : vector<8x8xf32> to vector<1x8x8xf32>
    tpu.vector_store %arg5[%c4_66, %c0_67, %c0_68], %59 {strides = array<i32>} : memref<8x8x8xf32, #tpu.memory_space<vmem>>, vector<1x8x8xf32>,
    %c5 = arith.constant 5 : index
    %c0_69 = arith.constant 0 : index
    %c0_70 = arith.constant 0 : index
    %60 = vector.load %arg3[%c5, %c0_69, %c0_70] : memref<8x4x4xf32, #tpu.memory_space<vmem>>, vector<1x4x4xf32>
    %61 = vector.shape_cast %60 : vector<1x4x4xf32> to vector<4x4xf32>
    %c0_71 = arith.constant 0 : index
    %c0_72 = arith.constant 0 : index
    %62 = vector.load %arg2[%c0_71, %c0_72] : memref<4x8xf32, #tpu.memory_space<vmem>>, vector<4x8xf32>
    %cst_73 = arith.constant dense<0.000000e+00> : vector<4x8xf32>
    %63 = tpu.matmul %61, %62, %cst_73 {dimension_numbers = #tpu.dot_dimension_numbers<[1], [0], [0], [1], [0, 0, 1, 1], [], []>} : vector<4x4xf32>, vector<4x8xf32>, vector<4x8xf32> -> vector<4x8xf32>
    %c0_74 = arith.constant 0 : index
    %c0_75 = arith.constant 0 : index
    %64 = vector.load %arg1[%c0_74, %c0_75] : memref<8x4xf32, #tpu.memory_space<vmem>>, vector<8x4xf32>
    %cst_76 = arith.constant dense<0.000000e+00> : vector<8x8xf32>
    %65 = tpu.matmul %64, %63, %cst_76 {dimension_numbers = #tpu.dot_dimension_numbers<[1], [0], [0], [1], [0, 0, 1, 1], [], []>} : vector<8x4xf32>, vector<4x8xf32>, vector<8x8xf32> -> vector<8x8xf32>
    %c5_77 = arith.constant 5 : index
    %c0_78 = arith.constant 0 : index
    %c0_79 = arith.constant 0 : index
    %66 = vector.load %arg4[%c5_77, %c0_78, %c0_79] : memref<8x8x8xf32, #tpu.memory_space<vmem>>, vector<1x8x8xf32>
    %67 = vector.shape_cast %66 : vector<1x8x8xf32> to vector<8x8xf32>
    %68 = arith.addf %65, %67 : vector<8x8xf32>
    %c5_80 = arith.constant 5 : index
    %c0_81 = arith.constant 0 : index
    %c0_82 = arith.constant 0 : index
    %69 = vector.load %arg5[%c5_80, %c0_81, %c0_82] : memref<8x8x8xf32, #tpu.memory_space<vmem>>, vector<1x8x8xf32>
    %70 = vector.shape_cast %69 : vector<1x8x8xf32> to vector<8x8xf32>
    %71 = vector.shape_cast %68 : vector<8x8xf32> to vector<1x8x8xf32>
    tpu.vector_store %arg5[%c5_80, %c0_81, %c0_82], %71 {strides = array<i32>} : memref<8x8x8xf32, #tpu.memory_space<vmem>>, vector<1x8x8xf32>,
    %c6 = arith.constant 6 : index
    %c0_83 = arith.constant 0 : index
    %c0_84 = arith.constant 0 : index
    %72 = vector.load %arg3[%c6, %c0_83, %c0_84] : memref<8x4x4xf32, #tpu.memory_space<vmem>>, vector<1x4x4xf32>
    %73 = vector.shape_cast %72 : vector<1x4x4xf32> to vector<4x4xf32>
    %c0_85 = arith.constant 0 : index
    %c0_86 = arith.constant 0 : index
    %74 = vector.load %arg2[%c0_85, %c0_86] : memref<4x8xf32, #tpu.memory_space<vmem>>, vector<4x8xf32>
    %cst_87 = arith.constant dense<0.000000e+00> : vector<4x8xf32>
    %75 = tpu.matmul %73, %74, %cst_87 {dimension_numbers = #tpu.dot_dimension_numbers<[1], [0], [0], [1], [0, 0, 1, 1], [], []>} : vector<4x4xf32>, vector<4x8xf32>, vector<4x8xf32> -> vector<4x8xf32>
    %c0_88 = arith.constant 0 : index
    %c0_89 = arith.constant 0 : index
    %76 = vector.load %arg1[%c0_88, %c0_89] : memref<8x4xf32, #tpu.memory_space<vmem>>, vector<8x4xf32>
    %cst_90 = arith.constant dense<0.000000e+00> : vector<8x8xf32>
    %77 = tpu.matmul %76, %75, %cst_90 {dimension_numbers = #tpu.dot_dimension_numbers<[1], [0], [0], [1], [0, 0, 1, 1], [], []>} : vector<8x4xf32>, vector<4x8xf32>, vector<8x8xf32> -> vector<8x8xf32>
    %c6_91 = arith.constant 6 : index
    %c0_92 = arith.constant 0 : index
    %c0_93 = arith.constant 0 : index
    %78 = vector.load %arg4[%c6_91, %c0_92, %c0_93] : memref<8x8x8xf32, #tpu.memory_space<vmem>>, vector<1x8x8xf32>
    %79 = vector.shape_cast %78 : vector<1x8x8xf32> to vector<8x8xf32>
    %80 = arith.addf %77, %79 : vector<8x8xf32>
    %c6_94 = arith.constant 6 : index
    %c0_95 = arith.constant 0 : index
    %c0_96 = arith.constant 0 : index
    %81 = vector.load %arg5[%c6_94, %c0_95, %c0_96] : memref<8x8x8xf32, #tpu.memory_space<vmem>>, vector<1x8x8xf32>
    %82 = vector.shape_cast %81 : vector<1x8x8xf32> to vector<8x8xf32>
    %83 = vector.shape_cast %80 : vector<8x8xf32> to vector<1x8x8xf32>
    tpu.vector_store %arg5[%c6_94, %c0_95, %c0_96], %83 {strides = array<i32>} : memref<8x8x8xf32, #tpu.memory_space<vmem>>, vector<1x8x8xf32>,
    %c7 = arith.constant 7 : index
    %c0_97 = arith.constant 0 : index
    %c0_98 = arith.constant 0 : index
    %84 = vector.load %arg3[%c7, %c0_97, %c0_98] : memref<8x4x4xf32, #tpu.memory_space<vmem>>, vector<1x4x4xf32>
    %85 = vector.shape_cast %84 : vector<1x4x4xf32> to vector<4x4xf32>
    %c0_99 = arith.constant 0 : index
    %c0_100 = arith.constant 0 : index
    %86 = vector.load %arg2[%c0_99, %c0_100] : memref<4x8xf32, #tpu.memory_space<vmem>>, vector<4x8xf32>
    %cst_101 = arith.constant dense<0.000000e+00> : vector<4x8xf32>
    %87 = tpu.matmul %85, %86, %cst_101 {dimension_numbers = #tpu.dot_dimension_numbers<[1], [0], [0], [1], [0, 0, 1, 1], [], []>} : vector<4x4xf32>, vector<4x8xf32>, vector<4x8xf32> -> vector<4x8xf32>
    %c0_102 = arith.constant 0 : index
    %c0_103 = arith.constant 0 : index
    %88 = vector.load %arg1[%c0_102, %c0_103] : memref<8x4xf32, #tpu.memory_space<vmem>>, vector<8x4xf32>
    %cst_104 = arith.constant dense<0.000000e+00> : vector<8x8xf32>
    %89 = tpu.matmul %88, %87, %cst_104 {dimension_numbers = #tpu.dot_dimension_numbers<[1], [0], [0], [1], [0, 0, 1, 1], [], []>} : vector<8x4xf32>, vector<4x8xf32>, vector<8x8xf32> -> vector<8x8xf32>
    %c7_105 = arith.constant 7 : index
    %c0_106 = arith.constant 0 : index
    %c0_107 = arith.constant 0 : index
    %90 = vector.load %arg4[%c7_105, %c0_106, %c0_107] : memref<8x8x8xf32, #tpu.memory_space<vmem>>, vector<1x8x8xf32>
    %91 = vector.shape_cast %90 : vector<1x8x8xf32> to vector<8x8xf32>
    %92 = arith.addf %89, %91 : vector<8x8xf32>
    %c7_108 = arith.constant 7 : index
    %c0_109 = arith.constant 0 : index
    %c0_110 = arith.constant 0 : index
    %93 = vector.load %arg5[%c7_108, %c0_109, %c0_110] : memref<8x8x8xf32, #tpu.memory_space<vmem>>, vector<1x8x8xf32>
    %94 = vector.shape_cast %93 : vector<1x8x8xf32> to vector<8x8xf32>
    %95 = vector.shape_cast %92 : vector<8x8xf32> to vector<1x8x8xf32>
    tpu.vector_store %arg5[%c7_108, %c0_109, %c0_110], %95 {strides = array<i32>} : memref<8x8x8xf32, #tpu.memory_space<vmem>>, vector<1x8x8xf32>,
    return
  }
  func.func @transform_0(%arg0: i32) -> (i32, i32) {
    %c0_i32 = arith.constant 0 : i32
    %c0_i32_0 = arith.constant 0 : i32
    %c0_i32_1 = arith.constant 0 : i32
    return %c0_i32, %c0_i32_0 : i32, i32
  }
  func.func @transform_1(%arg0: i32) -> (i32, i32) {
    %c0_i32 = arith.constant 0 : i32
    %c0_i32_0 = arith.constant 0 : i32
    %c0_i32_1 = arith.constant 0 : i32
    return %c0_i32, %c0_i32_0 : i32, i32
  }
  func.func @transform_2(%arg0: i32) -> (i32, i32, i32) {
    %c0_i32 = arith.constant 0 : i32
    %c0_i32_0 = arith.constant 0 : i32
    %c0_i32_1 = arith.constant 0 : i32
    return %arg0, %c0_i32, %c0_i32_0 : i32, i32, i32
  }
  func.func @transform_3(%arg0: i32) -> (i32, i32, i32) {
    %c0_i32 = arith.constant 0 : i32
    %c0_i32_0 = arith.constant 0 : i32
    %c0_i32_1 = arith.constant 0 : i32
    return %arg0, %c0_i32, %c0_i32_0 : i32, i32, i32
  }
  func.func @transform_4(%arg0: i32) -> (i32, i32, i32) {
    %c0_i32 = arith.constant 0 : i32
    %c0_i32_0 = arith.constant 0 : i32
    %c0_i32_1 = arith.constant 0 : i32
    return %arg0, %c0_i32, %c0_i32_0 : i32, i32, i32
  }
}

module attributes {stable_mosaic.version = 11 : i64} {
  func.func @_upsample_add_kernel(%arg0: i32, %arg1: memref<16x8xf32, #tpu.memory_space<vmem>>, %arg2: memref<8x16xf32, #tpu.memory_space<vmem>>, %arg3: memref<8x8x8xf32, #tpu.memory_space<vmem>>, %arg4: memref<8x16x16xf32, #tpu.memory_space<vmem>>, %arg5: memref<8x16x16xf32, #tpu.memory_space<vmem>>) attributes {dimension_semantics = [#tpu.dimension_semantics<parallel>], iteration_bounds = array<i64: 8>, scalar_prefetch = 0 : i64, scratch_operands = 0 : i64, tpu.core_type = #tpu.core_type<tc>, window_params = [{pipeline_mode = #tpu.pipeline_mode<synchronous>, transform_indices = @transform_0, window_bounds = array<i64: 16, 8>}, {pipeline_mode = #tpu.pipeline_mode<synchronous>, transform_indices = @transform_1, window_bounds = array<i64: 8, 16>}, {transform_indices = @transform_2, window_bounds = array<i64: 8, 8, 8>}, {transform_indices = @transform_3, window_bounds = array<i64: 8, 16, 16>}, {transform_indices = @transform_4, window_bounds = array<i64: 8, 16, 16>}]} {
    %c0 = arith.constant 0 : index
    %c0_0 = arith.constant 0 : index
    %c0_1 = arith.constant 0 : index
    %0 = vector.load %arg3[%c0, %c0_0, %c0_1] : memref<8x8x8xf32, #tpu.memory_space<vmem>>, vector<1x8x8xf32>
    %1 = vector.shape_cast %0 : vector<1x8x8xf32> to vector<8x8xf32>
    %c0_2 = arith.constant 0 : index
    %c0_3 = arith.constant 0 : index
    %2 = vector.load %arg2[%c0_2, %c0_3] : memref<8x16xf32, #tpu.memory_space<vmem>>, vector<8x16xf32>
    %cst = arith.constant dense<0.000000e+00> : vector<8x16xf32>
    %3 = tpu.matmul %1, %2, %cst {dimension_numbers = #tpu.dot_dimension_numbers<[1], [0], [0], [1], [0, 0, 1, 1], [], []>} : vector<8x8xf32>, vector<8x16xf32>, vector<8x16xf32> -> vector<8x16xf32>
    %c0_4 = arith.constant 0 : index
    %c0_5 = arith.constant 0 : index
    %4 = vector.load %arg1[%c0_4, %c0_5] : memref<16x8xf32, #tpu.memory_space<vmem>>, vector<16x8xf32>
    %cst_6 = arith.constant dense<0.000000e+00> : vector<16x16xf32>
    %5 = tpu.matmul %4, %3, %cst_6 {dimension_numbers = #tpu.dot_dimension_numbers<[1], [0], [0], [1], [0, 0, 1, 1], [], []>} : vector<16x8xf32>, vector<8x16xf32>, vector<16x16xf32> -> vector<16x16xf32>
    %c0_7 = arith.constant 0 : index
    %c0_8 = arith.constant 0 : index
    %c0_9 = arith.constant 0 : index
    %6 = vector.load %arg4[%c0_7, %c0_8, %c0_9] : memref<8x16x16xf32, #tpu.memory_space<vmem>>, vector<1x16x16xf32>
    %7 = vector.shape_cast %6 : vector<1x16x16xf32> to vector<16x16xf32>
    %8 = arith.addf %5, %7 : vector<16x16xf32>
    %c0_10 = arith.constant 0 : index
    %c0_11 = arith.constant 0 : index
    %c0_12 = arith.constant 0 : index
    %9 = vector.load %arg5[%c0_10, %c0_11, %c0_12] : memref<8x16x16xf32, #tpu.memory_space<vmem>>, vector<1x16x16xf32>
    %10 = vector.shape_cast %9 : vector<1x16x16xf32> to vector<16x16xf32>
    %11 = vector.shape_cast %8 : vector<16x16xf32> to vector<1x16x16xf32>
    tpu.vector_store %arg5[%c0_10, %c0_11, %c0_12], %11 {strides = array<i32>} : memref<8x16x16xf32, #tpu.memory_space<vmem>>, vector<1x16x16xf32>,
    %c1 = arith.constant 1 : index
    %c0_13 = arith.constant 0 : index
    %c0_14 = arith.constant 0 : index
    %12 = vector.load %arg3[%c1, %c0_13, %c0_14] : memref<8x8x8xf32, #tpu.memory_space<vmem>>, vector<1x8x8xf32>
    %13 = vector.shape_cast %12 : vector<1x8x8xf32> to vector<8x8xf32>
    %c0_15 = arith.constant 0 : index
    %c0_16 = arith.constant 0 : index
    %14 = vector.load %arg2[%c0_15, %c0_16] : memref<8x16xf32, #tpu.memory_space<vmem>>, vector<8x16xf32>
    %cst_17 = arith.constant dense<0.000000e+00> : vector<8x16xf32>
    %15 = tpu.matmul %13, %14, %cst_17 {dimension_numbers = #tpu.dot_dimension_numbers<[1], [0], [0], [1], [0, 0, 1, 1], [], []>} : vector<8x8xf32>, vector<8x16xf32>, vector<8x16xf32> -> vector<8x16xf32>
    %c0_18 = arith.constant 0 : index
    %c0_19 = arith.constant 0 : index
    %16 = vector.load %arg1[%c0_18, %c0_19] : memref<16x8xf32, #tpu.memory_space<vmem>>, vector<16x8xf32>
    %cst_20 = arith.constant dense<0.000000e+00> : vector<16x16xf32>
    %17 = tpu.matmul %16, %15, %cst_20 {dimension_numbers = #tpu.dot_dimension_numbers<[1], [0], [0], [1], [0, 0, 1, 1], [], []>} : vector<16x8xf32>, vector<8x16xf32>, vector<16x16xf32> -> vector<16x16xf32>
    %c1_21 = arith.constant 1 : index
    %c0_22 = arith.constant 0 : index
    %c0_23 = arith.constant 0 : index
    %18 = vector.load %arg4[%c1_21, %c0_22, %c0_23] : memref<8x16x16xf32, #tpu.memory_space<vmem>>, vector<1x16x16xf32>
    %19 = vector.shape_cast %18 : vector<1x16x16xf32> to vector<16x16xf32>
    %20 = arith.addf %17, %19 : vector<16x16xf32>
    %c1_24 = arith.constant 1 : index
    %c0_25 = arith.constant 0 : index
    %c0_26 = arith.constant 0 : index
    %21 = vector.load %arg5[%c1_24, %c0_25, %c0_26] : memref<8x16x16xf32, #tpu.memory_space<vmem>>, vector<1x16x16xf32>
    %22 = vector.shape_cast %21 : vector<1x16x16xf32> to vector<16x16xf32>
    %23 = vector.shape_cast %20 : vector<16x16xf32> to vector<1x16x16xf32>
    tpu.vector_store %arg5[%c1_24, %c0_25, %c0_26], %23 {strides = array<i32>} : memref<8x16x16xf32, #tpu.memory_space<vmem>>, vector<1x16x16xf32>,
    %c2 = arith.constant 2 : index
    %c0_27 = arith.constant 0 : index
    %c0_28 = arith.constant 0 : index
    %24 = vector.load %arg3[%c2, %c0_27, %c0_28] : memref<8x8x8xf32, #tpu.memory_space<vmem>>, vector<1x8x8xf32>
    %25 = vector.shape_cast %24 : vector<1x8x8xf32> to vector<8x8xf32>
    %c0_29 = arith.constant 0 : index
    %c0_30 = arith.constant 0 : index
    %26 = vector.load %arg2[%c0_29, %c0_30] : memref<8x16xf32, #tpu.memory_space<vmem>>, vector<8x16xf32>
    %cst_31 = arith.constant dense<0.000000e+00> : vector<8x16xf32>
    %27 = tpu.matmul %25, %26, %cst_31 {dimension_numbers = #tpu.dot_dimension_numbers<[1], [0], [0], [1], [0, 0, 1, 1], [], []>} : vector<8x8xf32>, vector<8x16xf32>, vector<8x16xf32> -> vector<8x16xf32>
    %c0_32 = arith.constant 0 : index
    %c0_33 = arith.constant 0 : index
    %28 = vector.load %arg1[%c0_32, %c0_33] : memref<16x8xf32, #tpu.memory_space<vmem>>, vector<16x8xf32>
    %cst_34 = arith.constant dense<0.000000e+00> : vector<16x16xf32>
    %29 = tpu.matmul %28, %27, %cst_34 {dimension_numbers = #tpu.dot_dimension_numbers<[1], [0], [0], [1], [0, 0, 1, 1], [], []>} : vector<16x8xf32>, vector<8x16xf32>, vector<16x16xf32> -> vector<16x16xf32>
    %c2_35 = arith.constant 2 : index
    %c0_36 = arith.constant 0 : index
    %c0_37 = arith.constant 0 : index
    %30 = vector.load %arg4[%c2_35, %c0_36, %c0_37] : memref<8x16x16xf32, #tpu.memory_space<vmem>>, vector<1x16x16xf32>
    %31 = vector.shape_cast %30 : vector<1x16x16xf32> to vector<16x16xf32>
    %32 = arith.addf %29, %31 : vector<16x16xf32>
    %c2_38 = arith.constant 2 : index
    %c0_39 = arith.constant 0 : index
    %c0_40 = arith.constant 0 : index
    %33 = vector.load %arg5[%c2_38, %c0_39, %c0_40] : memref<8x16x16xf32, #tpu.memory_space<vmem>>, vector<1x16x16xf32>
    %34 = vector.shape_cast %33 : vector<1x16x16xf32> to vector<16x16xf32>
    %35 = vector.shape_cast %32 : vector<16x16xf32> to vector<1x16x16xf32>
    tpu.vector_store %arg5[%c2_38, %c0_39, %c0_40], %35 {strides = array<i32>} : memref<8x16x16xf32, #tpu.memory_space<vmem>>, vector<1x16x16xf32>,
    %c3 = arith.constant 3 : index
    %c0_41 = arith.constant 0 : index
    %c0_42 = arith.constant 0 : index
    %36 = vector.load %arg3[%c3, %c0_41, %c0_42] : memref<8x8x8xf32, #tpu.memory_space<vmem>>, vector<1x8x8xf32>
    %37 = vector.shape_cast %36 : vector<1x8x8xf32> to vector<8x8xf32>
    %c0_43 = arith.constant 0 : index
    %c0_44 = arith.constant 0 : index
    %38 = vector.load %arg2[%c0_43, %c0_44] : memref<8x16xf32, #tpu.memory_space<vmem>>, vector<8x16xf32>
    %cst_45 = arith.constant dense<0.000000e+00> : vector<8x16xf32>
    %39 = tpu.matmul %37, %38, %cst_45 {dimension_numbers = #tpu.dot_dimension_numbers<[1], [0], [0], [1], [0, 0, 1, 1], [], []>} : vector<8x8xf32>, vector<8x16xf32>, vector<8x16xf32> -> vector<8x16xf32>
    %c0_46 = arith.constant 0 : index
    %c0_47 = arith.constant 0 : index
    %40 = vector.load %arg1[%c0_46, %c0_47] : memref<16x8xf32, #tpu.memory_space<vmem>>, vector<16x8xf32>
    %cst_48 = arith.constant dense<0.000000e+00> : vector<16x16xf32>
    %41 = tpu.matmul %40, %39, %cst_48 {dimension_numbers = #tpu.dot_dimension_numbers<[1], [0], [0], [1], [0, 0, 1, 1], [], []>} : vector<16x8xf32>, vector<8x16xf32>, vector<16x16xf32> -> vector<16x16xf32>
    %c3_49 = arith.constant 3 : index
    %c0_50 = arith.constant 0 : index
    %c0_51 = arith.constant 0 : index
    %42 = vector.load %arg4[%c3_49, %c0_50, %c0_51] : memref<8x16x16xf32, #tpu.memory_space<vmem>>, vector<1x16x16xf32>
    %43 = vector.shape_cast %42 : vector<1x16x16xf32> to vector<16x16xf32>
    %44 = arith.addf %41, %43 : vector<16x16xf32>
    %c3_52 = arith.constant 3 : index
    %c0_53 = arith.constant 0 : index
    %c0_54 = arith.constant 0 : index
    %45 = vector.load %arg5[%c3_52, %c0_53, %c0_54] : memref<8x16x16xf32, #tpu.memory_space<vmem>>, vector<1x16x16xf32>
    %46 = vector.shape_cast %45 : vector<1x16x16xf32> to vector<16x16xf32>
    %47 = vector.shape_cast %44 : vector<16x16xf32> to vector<1x16x16xf32>
    tpu.vector_store %arg5[%c3_52, %c0_53, %c0_54], %47 {strides = array<i32>} : memref<8x16x16xf32, #tpu.memory_space<vmem>>, vector<1x16x16xf32>,
    %c4 = arith.constant 4 : index
    %c0_55 = arith.constant 0 : index
    %c0_56 = arith.constant 0 : index
    %48 = vector.load %arg3[%c4, %c0_55, %c0_56] : memref<8x8x8xf32, #tpu.memory_space<vmem>>, vector<1x8x8xf32>
    %49 = vector.shape_cast %48 : vector<1x8x8xf32> to vector<8x8xf32>
    %c0_57 = arith.constant 0 : index
    %c0_58 = arith.constant 0 : index
    %50 = vector.load %arg2[%c0_57, %c0_58] : memref<8x16xf32, #tpu.memory_space<vmem>>, vector<8x16xf32>
    %cst_59 = arith.constant dense<0.000000e+00> : vector<8x16xf32>
    %51 = tpu.matmul %49, %50, %cst_59 {dimension_numbers = #tpu.dot_dimension_numbers<[1], [0], [0], [1], [0, 0, 1, 1], [], []>} : vector<8x8xf32>, vector<8x16xf32>, vector<8x16xf32> -> vector<8x16xf32>
    %c0_60 = arith.constant 0 : index
    %c0_61 = arith.constant 0 : index
    %52 = vector.load %arg1[%c0_60, %c0_61] : memref<16x8xf32, #tpu.memory_space<vmem>>, vector<16x8xf32>
    %cst_62 = arith.constant dense<0.000000e+00> : vector<16x16xf32>
    %53 = tpu.matmul %52, %51, %cst_62 {dimension_numbers = #tpu.dot_dimension_numbers<[1], [0], [0], [1], [0, 0, 1, 1], [], []>} : vector<16x8xf32>, vector<8x16xf32>, vector<16x16xf32> -> vector<16x16xf32>
    %c4_63 = arith.constant 4 : index
    %c0_64 = arith.constant 0 : index
    %c0_65 = arith.constant 0 : index
    %54 = vector.load %arg4[%c4_63, %c0_64, %c0_65] : memref<8x16x16xf32, #tpu.memory_space<vmem>>, vector<1x16x16xf32>
    %55 = vector.shape_cast %54 : vector<1x16x16xf32> to vector<16x16xf32>
    %56 = arith.addf %53, %55 : vector<16x16xf32>
    %c4_66 = arith.constant 4 : index
    %c0_67 = arith.constant 0 : index
    %c0_68 = arith.constant 0 : index
    %57 = vector.load %arg5[%c4_66, %c0_67, %c0_68] : memref<8x16x16xf32, #tpu.memory_space<vmem>>, vector<1x16x16xf32>
    %58 = vector.shape_cast %57 : vector<1x16x16xf32> to vector<16x16xf32>
    %59 = vector.shape_cast %56 : vector<16x16xf32> to vector<1x16x16xf32>
    tpu.vector_store %arg5[%c4_66, %c0_67, %c0_68], %59 {strides = array<i32>} : memref<8x16x16xf32, #tpu.memory_space<vmem>>, vector<1x16x16xf32>,
    %c5 = arith.constant 5 : index
    %c0_69 = arith.constant 0 : index
    %c0_70 = arith.constant 0 : index
    %60 = vector.load %arg3[%c5, %c0_69, %c0_70] : memref<8x8x8xf32, #tpu.memory_space<vmem>>, vector<1x8x8xf32>
    %61 = vector.shape_cast %60 : vector<1x8x8xf32> to vector<8x8xf32>
    %c0_71 = arith.constant 0 : index
    %c0_72 = arith.constant 0 : index
    %62 = vector.load %arg2[%c0_71, %c0_72] : memref<8x16xf32, #tpu.memory_space<vmem>>, vector<8x16xf32>
    %cst_73 = arith.constant dense<0.000000e+00> : vector<8x16xf32>
    %63 = tpu.matmul %61, %62, %cst_73 {dimension_numbers = #tpu.dot_dimension_numbers<[1], [0], [0], [1], [0, 0, 1, 1], [], []>} : vector<8x8xf32>, vector<8x16xf32>, vector<8x16xf32> -> vector<8x16xf32>
    %c0_74 = arith.constant 0 : index
    %c0_75 = arith.constant 0 : index
    %64 = vector.load %arg1[%c0_74, %c0_75] : memref<16x8xf32, #tpu.memory_space<vmem>>, vector<16x8xf32>
    %cst_76 = arith.constant dense<0.000000e+00> : vector<16x16xf32>
    %65 = tpu.matmul %64, %63, %cst_76 {dimension_numbers = #tpu.dot_dimension_numbers<[1], [0], [0], [1], [0, 0, 1, 1], [], []>} : vector<16x8xf32>, vector<8x16xf32>, vector<16x16xf32> -> vector<16x16xf32>
    %c5_77 = arith.constant 5 : index
    %c0_78 = arith.constant 0 : index
    %c0_79 = arith.constant 0 : index
    %66 = vector.load %arg4[%c5_77, %c0_78, %c0_79] : memref<8x16x16xf32, #tpu.memory_space<vmem>>, vector<1x16x16xf32>
    %67 = vector.shape_cast %66 : vector<1x16x16xf32> to vector<16x16xf32>
    %68 = arith.addf %65, %67 : vector<16x16xf32>
    %c5_80 = arith.constant 5 : index
    %c0_81 = arith.constant 0 : index
    %c0_82 = arith.constant 0 : index
    %69 = vector.load %arg5[%c5_80, %c0_81, %c0_82] : memref<8x16x16xf32, #tpu.memory_space<vmem>>, vector<1x16x16xf32>
    %70 = vector.shape_cast %69 : vector<1x16x16xf32> to vector<16x16xf32>
    %71 = vector.shape_cast %68 : vector<16x16xf32> to vector<1x16x16xf32>
    tpu.vector_store %arg5[%c5_80, %c0_81, %c0_82], %71 {strides = array<i32>} : memref<8x16x16xf32, #tpu.memory_space<vmem>>, vector<1x16x16xf32>,
    %c6 = arith.constant 6 : index
    %c0_83 = arith.constant 0 : index
    %c0_84 = arith.constant 0 : index
    %72 = vector.load %arg3[%c6, %c0_83, %c0_84] : memref<8x8x8xf32, #tpu.memory_space<vmem>>, vector<1x8x8xf32>
    %73 = vector.shape_cast %72 : vector<1x8x8xf32> to vector<8x8xf32>
    %c0_85 = arith.constant 0 : index
    %c0_86 = arith.constant 0 : index
    %74 = vector.load %arg2[%c0_85, %c0_86] : memref<8x16xf32, #tpu.memory_space<vmem>>, vector<8x16xf32>
    %cst_87 = arith.constant dense<0.000000e+00> : vector<8x16xf32>
    %75 = tpu.matmul %73, %74, %cst_87 {dimension_numbers = #tpu.dot_dimension_numbers<[1], [0], [0], [1], [0, 0, 1, 1], [], []>} : vector<8x8xf32>, vector<8x16xf32>, vector<8x16xf32> -> vector<8x16xf32>
    %c0_88 = arith.constant 0 : index
    %c0_89 = arith.constant 0 : index
    %76 = vector.load %arg1[%c0_88, %c0_89] : memref<16x8xf32, #tpu.memory_space<vmem>>, vector<16x8xf32>
    %cst_90 = arith.constant dense<0.000000e+00> : vector<16x16xf32>
    %77 = tpu.matmul %76, %75, %cst_90 {dimension_numbers = #tpu.dot_dimension_numbers<[1], [0], [0], [1], [0, 0, 1, 1], [], []>} : vector<16x8xf32>, vector<8x16xf32>, vector<16x16xf32> -> vector<16x16xf32>
    %c6_91 = arith.constant 6 : index
    %c0_92 = arith.constant 0 : index
    %c0_93 = arith.constant 0 : index
    %78 = vector.load %arg4[%c6_91, %c0_92, %c0_93] : memref<8x16x16xf32, #tpu.memory_space<vmem>>, vector<1x16x16xf32>
    %79 = vector.shape_cast %78 : vector<1x16x16xf32> to vector<16x16xf32>
    %80 = arith.addf %77, %79 : vector<16x16xf32>
    %c6_94 = arith.constant 6 : index
    %c0_95 = arith.constant 0 : index
    %c0_96 = arith.constant 0 : index
    %81 = vector.load %arg5[%c6_94, %c0_95, %c0_96] : memref<8x16x16xf32, #tpu.memory_space<vmem>>, vector<1x16x16xf32>
    %82 = vector.shape_cast %81 : vector<1x16x16xf32> to vector<16x16xf32>
    %83 = vector.shape_cast %80 : vector<16x16xf32> to vector<1x16x16xf32>
    tpu.vector_store %arg5[%c6_94, %c0_95, %c0_96], %83 {strides = array<i32>} : memref<8x16x16xf32, #tpu.memory_space<vmem>>, vector<1x16x16xf32>,
    %c7 = arith.constant 7 : index
    %c0_97 = arith.constant 0 : index
    %c0_98 = arith.constant 0 : index
    %84 = vector.load %arg3[%c7, %c0_97, %c0_98] : memref<8x8x8xf32, #tpu.memory_space<vmem>>, vector<1x8x8xf32>
    %85 = vector.shape_cast %84 : vector<1x8x8xf32> to vector<8x8xf32>
    %c0_99 = arith.constant 0 : index
    %c0_100 = arith.constant 0 : index
    %86 = vector.load %arg2[%c0_99, %c0_100] : memref<8x16xf32, #tpu.memory_space<vmem>>, vector<8x16xf32>
    %cst_101 = arith.constant dense<0.000000e+00> : vector<8x16xf32>
    %87 = tpu.matmul %85, %86, %cst_101 {dimension_numbers = #tpu.dot_dimension_numbers<[1], [0], [0], [1], [0, 0, 1, 1], [], []>} : vector<8x8xf32>, vector<8x16xf32>, vector<8x16xf32> -> vector<8x16xf32>
    %c0_102 = arith.constant 0 : index
    %c0_103 = arith.constant 0 : index
    %88 = vector.load %arg1[%c0_102, %c0_103] : memref<16x8xf32, #tpu.memory_space<vmem>>, vector<16x8xf32>
    %cst_104 = arith.constant dense<0.000000e+00> : vector<16x16xf32>
    %89 = tpu.matmul %88, %87, %cst_104 {dimension_numbers = #tpu.dot_dimension_numbers<[1], [0], [0], [1], [0, 0, 1, 1], [], []>} : vector<16x8xf32>, vector<8x16xf32>, vector<16x16xf32> -> vector<16x16xf32>
    %c7_105 = arith.constant 7 : index
    %c0_106 = arith.constant 0 : index
    %c0_107 = arith.constant 0 : index
    %90 = vector.load %arg4[%c7_105, %c0_106, %c0_107] : memref<8x16x16xf32, #tpu.memory_space<vmem>>, vector<1x16x16xf32>
    %91 = vector.shape_cast %90 : vector<1x16x16xf32> to vector<16x16xf32>
    %92 = arith.addf %89, %91 : vector<16x16xf32>
    %c7_108 = arith.constant 7 : index
    %c0_109 = arith.constant 0 : index
    %c0_110 = arith.constant 0 : index
    %93 = vector.load %arg5[%c7_108, %c0_109, %c0_110] : memref<8x16x16xf32, #tpu.memory_space<vmem>>, vector<1x16x16xf32>
    %94 = vector.shape_cast %93 : vector<1x16x16xf32> to vector<16x16xf32>
    %95 = vector.shape_cast %92 : vector<16x16xf32> to vector<1x16x16xf32>
    tpu.vector_store %arg5[%c7_108, %c0_109, %c0_110], %95 {strides = array<i32>} : memref<8x16x16xf32, #tpu.memory_space<vmem>>, vector<1x16x16xf32>,
    return
  }
  func.func @transform_0(%arg0: i32) -> (i32, i32) {
    %c0_i32 = arith.constant 0 : i32
    %c0_i32_0 = arith.constant 0 : i32
    %c0_i32_1 = arith.constant 0 : i32
    return %c0_i32, %c0_i32_0 : i32, i32
  }
  func.func @transform_1(%arg0: i32) -> (i32, i32) {
    %c0_i32 = arith.constant 0 : i32
    %c0_i32_0 = arith.constant 0 : i32
    %c0_i32_1 = arith.constant 0 : i32
    return %c0_i32, %c0_i32_0 : i32, i32
  }
  func.func @transform_2(%arg0: i32) -> (i32, i32, i32) {
    %c0_i32 = arith.constant 0 : i32
    %c0_i32_0 = arith.constant 0 : i32
    %c0_i32_1 = arith.constant 0 : i32
    return %arg0, %c0_i32, %c0_i32_0 : i32, i32, i32
  }
  func.func @transform_3(%arg0: i32) -> (i32, i32, i32) {
    %c0_i32 = arith.constant 0 : i32
    %c0_i32_0 = arith.constant 0 : i32
    %c0_i32_1 = arith.constant 0 : i32
    return %arg0, %c0_i32, %c0_i32_0 : i32, i32, i32
  }
  func.func @transform_4(%arg0: i32) -> (i32, i32, i32) {
    %c0_i32 = arith.constant 0 : i32
    %c0_i32_0 = arith.constant 0 : i32
    %c0_i32_1 = arith.constant 0 : i32
    return %arg0, %c0_i32, %c0_i32_0 : i32, i32, i32
  }
}

module attributes {stable_mosaic.version = 11 : i64} {
  func.func @_gemm_bias_act_kernel(%arg0: i32, %arg1: i32, %arg2: memref<16x288xbf16, #tpu.memory_space<vmem>>, %arg3: memref<1x288x64xbf16, #tpu.memory_space<vmem>>, %arg4: memref<16x1xf32, #tpu.memory_space<vmem>>, %arg5: memref<1x16x64xf32, #tpu.memory_space<vmem>>) attributes {dimension_semantics = [#tpu.dimension_semantics<parallel>, #tpu.dimension_semantics<parallel>], iteration_bounds = array<i64: 2, 1>, scalar_prefetch = 0 : i64, scratch_operands = 0 : i64, tpu.core_type = #tpu.core_type<tc>, window_params = [{pipeline_mode = #tpu.pipeline_mode<synchronous>, transform_indices = @transform_0, window_bounds = array<i64: 16, 288>}, {transform_indices = @transform_1, window_bounds = array<i64: 1, 288, 64>}, {pipeline_mode = #tpu.pipeline_mode<synchronous>, transform_indices = @transform_2, window_bounds = array<i64: 16, 1>}, {transform_indices = @transform_3, window_bounds = array<i64: 1, 16, 64>}]} {
    %c0 = arith.constant 0 : index
    %c0_0 = arith.constant 0 : index
    %0 = vector.load %arg2[%c0, %c0_0] : memref<16x288xbf16, #tpu.memory_space<vmem>>, vector<16x288xbf16>
    %c0_1 = arith.constant 0 : index
    %c0_2 = arith.constant 0 : index
    %c0_3 = arith.constant 0 : index
    %1 = vector.load %arg3[%c0_1, %c0_2, %c0_3] : memref<1x288x64xbf16, #tpu.memory_space<vmem>>, vector<1x288x64xbf16>
    %2 = vector.shape_cast %1 : vector<1x288x64xbf16> to vector<288x64xbf16>
    %cst = arith.constant dense<0.000000e+00> : vector<16x64xf32>
    %3 = tpu.matmul %0, %2, %cst {dimension_numbers = #tpu.dot_dimension_numbers<[1], [0], [0], [1], [0, 0, 1, 1], [], []>} : vector<16x288xbf16>, vector<288x64xbf16>, vector<16x64xf32> -> vector<16x64xf32>
    %c0_4 = arith.constant 0 : index
    %c0_5 = arith.constant 0 : index
    %4 = vector.load %arg4[%c0_4, %c0_5] : memref<16x1xf32, #tpu.memory_space<vmem>>, vector<16x1xf32>
    %5 = vector.broadcast %4 : vector<16x1xf32> to vector<16x64xf32>
    %6 = arith.addf %3, %5 : vector<16x64xf32>
    %c0_6 = arith.constant 0 : index
    %c0_7 = arith.constant 0 : index
    %c0_8 = arith.constant 0 : index
    %7 = vector.load %arg5[%c0_6, %c0_7, %c0_8] : memref<1x16x64xf32, #tpu.memory_space<vmem>>, vector<1x16x64xf32>
    %8 = vector.shape_cast %7 : vector<1x16x64xf32> to vector<16x64xf32>
    %9 = vector.shape_cast %6 : vector<16x64xf32> to vector<1x16x64xf32>
    tpu.vector_store %arg5[%c0_6, %c0_7, %c0_8], %9 {strides = array<i32>} : memref<1x16x64xf32, #tpu.memory_space<vmem>>, vector<1x16x64xf32>,
    return
  }
  func.func @transform_0(%arg0: i32, %arg1: i32) -> (i32, i32) {
    %c0_i32 = arith.constant 0 : i32
    %c0_i32_0 = arith.constant 0 : i32
    %c0_i32_1 = arith.constant 0 : i32
    return %c0_i32, %c0_i32_0 : i32, i32
  }
  func.func @transform_1(%arg0: i32, %arg1: i32) -> (i32, i32, i32) {
    %c0_i32 = arith.constant 0 : i32
    %c0_i32_0 = arith.constant 0 : i32
    return %arg0, %c0_i32, %arg1 : i32, i32, i32
  }
  func.func @transform_2(%arg0: i32, %arg1: i32) -> (i32, i32) {
    %c0_i32 = arith.constant 0 : i32
    %c0_i32_0 = arith.constant 0 : i32
    %c0_i32_1 = arith.constant 0 : i32
    return %c0_i32, %c0_i32_0 : i32, i32
  }
  func.func @transform_3(%arg0: i32, %arg1: i32) -> (i32, i32, i32) {
    %c0_i32 = arith.constant 0 : i32
    %c0_i32_0 = arith.constant 0 : i32
    return %arg0, %c0_i32, %arg1 : i32, i32, i32
  }
}

module attributes {stable_mosaic.version = 11 : i64} {
  func.func @_gemm_bias_act_kernel(%arg0: i32, %arg1: i32, %arg2: memref<8x288xbf16, #tpu.memory_space<vmem>>, %arg3: memref<1x288x256xbf16, #tpu.memory_space<vmem>>, %arg4: memref<8x1xf32, #tpu.memory_space<vmem>>, %arg5: memref<1x8x256xf32, #tpu.memory_space<vmem>>) attributes {dimension_semantics = [#tpu.dimension_semantics<parallel>, #tpu.dimension_semantics<parallel>], iteration_bounds = array<i64: 2, 1>, scalar_prefetch = 0 : i64, scratch_operands = 0 : i64, tpu.core_type = #tpu.core_type<tc>, window_params = [{pipeline_mode = #tpu.pipeline_mode<synchronous>, transform_indices = @transform_0, window_bounds = array<i64: 8, 288>}, {transform_indices = @transform_1, window_bounds = array<i64: 1, 288, 256>}, {pipeline_mode = #tpu.pipeline_mode<synchronous>, transform_indices = @transform_2, window_bounds = array<i64: 8, 1>}, {transform_indices = @transform_3, window_bounds = array<i64: 1, 8, 256>}]} {
    %c0 = arith.constant 0 : index
    %c0_0 = arith.constant 0 : index
    %0 = vector.load %arg2[%c0, %c0_0] : memref<8x288xbf16, #tpu.memory_space<vmem>>, vector<8x288xbf16>
    %c0_1 = arith.constant 0 : index
    %c0_2 = arith.constant 0 : index
    %c0_3 = arith.constant 0 : index
    %1 = vector.load %arg3[%c0_1, %c0_2, %c0_3] : memref<1x288x256xbf16, #tpu.memory_space<vmem>>, vector<1x288x256xbf16>
    %2 = vector.shape_cast %1 : vector<1x288x256xbf16> to vector<288x256xbf16>
    %cst = arith.constant dense<0.000000e+00> : vector<8x256xf32>
    %3 = tpu.matmul %0, %2, %cst {dimension_numbers = #tpu.dot_dimension_numbers<[1], [0], [0], [1], [0, 0, 1, 1], [], []>} : vector<8x288xbf16>, vector<288x256xbf16>, vector<8x256xf32> -> vector<8x256xf32>
    %c0_4 = arith.constant 0 : index
    %c0_5 = arith.constant 0 : index
    %4 = vector.load %arg4[%c0_4, %c0_5] : memref<8x1xf32, #tpu.memory_space<vmem>>, vector<8x1xf32>
    %5 = vector.broadcast %4 : vector<8x1xf32> to vector<8x256xf32>
    %6 = arith.addf %3, %5 : vector<8x256xf32>
    %c0_6 = arith.constant 0 : index
    %c0_7 = arith.constant 0 : index
    %c0_8 = arith.constant 0 : index
    %7 = vector.load %arg5[%c0_6, %c0_7, %c0_8] : memref<1x8x256xf32, #tpu.memory_space<vmem>>, vector<1x8x256xf32>
    %8 = vector.shape_cast %7 : vector<1x8x256xf32> to vector<8x256xf32>
    %9 = vector.shape_cast %6 : vector<8x256xf32> to vector<1x8x256xf32>
    tpu.vector_store %arg5[%c0_6, %c0_7, %c0_8], %9 {strides = array<i32>} : memref<1x8x256xf32, #tpu.memory_space<vmem>>, vector<1x8x256xf32>,
    return
  }
  func.func @transform_0(%arg0: i32, %arg1: i32) -> (i32, i32) {
    %c0_i32 = arith.constant 0 : i32
    %c0_i32_0 = arith.constant 0 : i32
    %c0_i32_1 = arith.constant 0 : i32
    return %c0_i32, %c0_i32_0 : i32, i32
  }
  func.func @transform_1(%arg0: i32, %arg1: i32) -> (i32, i32, i32) {
    %c0_i32 = arith.constant 0 : i32
    %c0_i32_0 = arith.constant 0 : i32
    return %arg0, %c0_i32, %arg1 : i32, i32, i32
  }
  func.func @transform_2(%arg0: i32, %arg1: i32) -> (i32, i32) {
    %c0_i32 = arith.constant 0 : i32
    %c0_i32_0 = arith.constant 0 : i32
    %c0_i32_1 = arith.constant 0 : i32
    return %c0_i32, %c0_i32_0 : i32, i32
  }
  func.func @transform_3(%arg0: i32, %arg1: i32) -> (i32, i32, i32) {
    %c0_i32 = arith.constant 0 : i32
    %c0_i32_0 = arith.constant 0 : i32
    return %arg0, %c0_i32, %arg1 : i32, i32, i32
  }
}

</mosaic_0001>

<llo_original>
// kernel: feature_net_forward.15
$region0: #{feature_net_forward.15}
  #allocation0 [shape = 'u32[]', space=smem, size = 0x4, offset = 0x4, fixed_abs, tag = 'smem constant byte address 0x4 - core index']
  #allocation1 [shape = 'u32[72,128]{1,0:T(1,128)}', space=vmem, size = 0x9000, scoped, tag = 'internal scratch']
  %s0 = inlined_call_operand.vmem [shape: bf16[8,27], index: 0, kind: input, shape index: {}]
  %s1 = inlined_call_operand.vmem [shape: bf16[2,27,256], index: 1, kind: input, shape index: {}]
  %s2 = inlined_call_operand.vmem [shape: f32[8,1], index: 2, kind: input, shape index: {}]
  %s3 = inlined_call_operand.vmem [shape: f32[2,8,256], index: 3, kind: output, shape index: {}]
  %s4 = sld [smem:[#allocation0]]
  $region45: #{feature_net_forward.15} parent=0
    _
  %s6 = ssub.s32 1, %s4
  %s7 = scalar_select 0, %s6, %s4
  loop: start=0, step=1, limit=4
  $region2: #{feature_net_forward.15} parent=0 // loop_pre_header
    _
  $region3: #{feature_net_forward.15} parent=0 // loop_header
    %s9 = sphi 0, %s13
    %p10 = scmp.ge.s32.totalorder %s9, 4
    %s16 = sphi 0, %s28
    %s17 = sphi 0, %s24
    %s18 = sphi 0, %s16
    %s19 = sphi 0, %s17
    %s20 = sphi 0, %s18
    %s21 = sphi 0, %s19
    %s29 = sphi 0, %s29
    %s31 = sphi 0, %s29
    %s32 = sphi 0, %s31
    %s46 = sphi 0, %s32
    %s54 = sphi 0, %s56
    %s57 = sphi 0, %s54
    %s58 = sphi 0, %s57
    %s74 = sphi 0, %s58
    %s78 = sphi 0, %s78
    %s80 = sphi 0, %s78
    %s81 = sphi 0, %s80
    %s95 = sphi 0, %s81
    %s103 = sphi 0, %s105
    %s106 = sphi 0, %s103
    %s107 = sphi 0, %s106
    %s123 = sphi 0, %s107
  $region4: #{feature_net_forward.15} parent=0 // loop_header_branch
    %12 = sbr.rel (%p10) target = $region8
  $region5: #{feature_net_forward.15} parent=0 // loop_body
    %s14 = ssub.s32 %s9, 1
    %s15 = ssub.s32 %s9, 2
    %s22 = sadd.s32 1, %s17
    %p23 = scmp.ge.s32.totalorder %s22, 1
    %s24 = scalar_select %p23, 0, %s22
    %s25 = sadd.s32 1, %s16
    %s26 = scalar_select %p23, %s25, %s16
    %p27 = scmp.ge.s32.totalorder %s26, 2
    %s28 = scalar_select %p27, 0, %s26
    %s30 = sadd.s32 %s29, 1
    %p33 = scmp.eq.s32.totalorder %s9, 1
    %p34 = scmp.ne.s32.totalorder %s29, %s31
    %p35 = scmp.eq.s32.totalorder %s9, 0
    %p36 = por %p34, %p35
    %p37 = scmp.ne.s32.totalorder %s29, %s31
    %p38 = scmp.eq.s32.totalorder %s14, 1
    %p39 = por %p37, %p38
    %p40 = scmp.ne.s32.totalorder %s31, %s32
    %p41 = scmp.eq.s32.totalorder %s14, 0
    %p42 = por %p40, %p41
    %p43 = scmp.ne.s32.totalorder %s31, %s32
    %p44 = scmp.eq.s32.totalorder %s15, 1
    %p45 = por %p43, %p44
    %p47 = scmp.ne.s32.totalorder %s32, %s46
    %p48 = scmp.eq.s32.totalorder %s15, 0
    %p49 = por %p47, %p48
    %s50 = ssub.s32 %s16, %s28
    %s51 = ssub.s32 %s17, %s24
    %s52 = sor.u32 %s50, %s51
    %p53 = scmp.eq.s32.totalorder %s52, 0
    %s55 = sadd.s32 %s54, 1
    %s56 = scalar_select %p53, %s54, %s55
    %p59 = pneg %p53
    %p60 = scmp.eq.s32.totalorder %s9, 1
    %p61 = por %p59, %p60
    %p62 = scmp.ne.s32.totalorder %s54, %s57
    %p63 = scmp.eq.s32.totalorder %s9, 0
    %p64 = por %p62, %p63
    %p65 = scmp.ne.s32.totalorder %s54, %s57
    %p66 = scmp.eq.s32.totalorder %s14, 1
    %p67 = por %p65, %p66
    %p68 = scmp.ne.s32.totalorder %s57, %s58
    %p69 = scmp.eq.s32.totalorder %s14, 0
    %p70 = por %p68, %p69
    %p71 = scmp.ne.s32.totalorder %s57, %s58
    %p72 = scmp.eq.s32.totalorder %s15, 1
    %p73 = por %p71, %p72
    %p75 = scmp.ne.s32.totalorder %s58, %s74
    %p76 = scmp.eq.s32.totalorder %s15, 0
    %p77 = por %p75, %p76
    %s79 = sadd.s32 %s78, 1
    %p82 = scmp.eq.s32.totalorder %s9, 1
    %p83 = scmp.ne.s32.totalorder %s78, %s80
    %p84 = scmp.eq.s32.totalorder %s9, 0
    %p85 = por %p83, %p84
    %p86 = scmp.ne.s32.totalorder %s78, %s80
    %p87 = scmp.eq.s32.totalorder %s14, 1
    %p88 = por %p86, %p87
    %p89 = scmp.ne.s32.totalorder %s80, %s81
    %p90 = scmp.eq.s32.totalorder %s14, 0
    %p91 = por %p89, %p90
    %p92 = scmp.ne.s32.totalorder %s80, %s81
    %p93 = scmp.eq.s32.totalorder %s15, 1
    %p94 = por %p92, %p93
    %p96 = scmp.ne.s32.totalorder %s81, %s95
    %p97 = scmp.eq.s32.totalorder %s15, 0
    %p98 = por %p96, %p97
    %s99 = ssub.s32 %s16, %s28
    %s100 = ssub.s32 %s17, %s24
    %s101 = sor.u32 %s99, %s100
    %p102 = scmp.eq.s32.totalorder %s101, 0
    %s104 = sadd.s32 %s103, 1
    %s105 = scalar_select %p102, %s103, %s104
    %p108 = pneg %p102
    %p109 = scmp.eq.s32.totalorder %s9, 1
    %p110 = por %p108, %p109
    %p111 = scmp.ne.s32.totalorder %s103, %s106
    %p112 = scmp.eq.s32.totalorder %s9, 0
    %p113 = por %p111, %p112
    %p114 = scmp.ne.s32.totalorder %s103, %s106
    %p115 = scmp.eq.s32.totalorder %s14, 1
    %p116 = por %p114, %p115
    %p117 = scmp.ne.s32.totalorder %s106, %s107
    %p118 = scmp.eq.s32.totalorder %s14, 0
    %p119 = por %p117, %p118
    %p120 = scmp.ne.s32.totalorder %s106, %s107
    %p121 = scmp.eq.s32.totalorder %s15, 1
    %p122 = por %p120, %p121
    %p124 = scmp.ne.s32.totalorder %s107, %s123
    %p125 = scmp.eq.s32.totalorder %s15, 0
    %p126 = por %p124, %p125
    %p127 = scmp.le.s32.totalorder 1, %s9
    %p128 = scmp.lt.s32.totalorder %s9, 3
    %p129 = pnand %p127, %p128
    %p130 = pneg %p129
    // Predicated region
    $region9: #{feature_net_forward.15} parent=5 // pred_check
      _
    $region10: #{feature_net_forward.15} parent=5 // pred_check_branch
      %132 = sbr.rel (%p129) target = $region12
    $region11: #{feature_net_forward.15} parent=5 // pred_region
      %s133 = ssub.s32 %s9, 1
      // Predicated region
      $region13: #{feature_net_forward.15} parent=11 // pred_check
        %p134 = pneg %p42
      $region14: #{feature_net_forward.15} parent=11 // pred_check_branch
        %136 = sbr.rel (%p134) target = $region16
      $region15: #{feature_net_forward.15} parent=11 // pred_region
        _
      $region16: #{feature_net_forward.15} parent=11 // pred_fallthru
        _
      // Predicated region
      $region17: #{feature_net_forward.15} parent=11 // pred_check
        %p137 = pneg %p91
      $region18: #{feature_net_forward.15} parent=11 // pred_check_branch
        %139 = sbr.rel (%p137) target = $region20
      $region19: #{feature_net_forward.15} parent=11 // pred_region
        _
      $region20: #{feature_net_forward.15} parent=11 // pred_fallthru
        _
    $region12: #{feature_net_forward.15} parent=5 // pred_fallthru
      _
    %p140 = scmp.lt.s32.totalorder %s9, 2
    // Predicated region
    $region21: #{feature_net_forward.15} parent=5 // pred_check
      %p141 = pneg %p140
    $region22: #{feature_net_forward.15} parent=5 // pred_check_branch
      %143 = sbr.rel (%p141) target = $region24
    $region23: #{feature_net_forward.15} parent=5 // pred_region
      // Predicated region
      $region25: #{feature_net_forward.15} parent=23 // pred_check
        %p144 = pneg %p64
      $region26: #{feature_net_forward.15} parent=23 // pred_check_branch
        %146 = sbr.rel (%p144) target = $region28
      $region27: #{feature_net_forward.15} parent=23 // pred_region
        %s147 = smul.u32 2, %s17
        %p148 = scmp.lt.s32.totalorder %s16, 1
        %s149 = scalar_select %p148, %s16, 1
        %p150 = scmp.lt.s32.totalorder %s147, 1
        %s151 = scalar_select %p150, %s147, 1
        %s152 = smul.addr %s149, 8
        %s153 = sadd.s32 %s151, %s152
        %s154 = smul.addr %s153, 4
        %s155 = scalar_lea.vmem %s1, %s154
        %s156 = smul.u32 2, %s17
      $region28: #{feature_net_forward.15} parent=23 // pred_fallthru
        _
    $region24: #{feature_net_forward.15} parent=5 // pred_fallthru
      _
    %p157 = scmp.le.s32.totalorder 1, %s9
    %p158 = scmp.lt.s32.totalorder %s9, 3
    %p159 = pnand %p157, %p158
    %p160 = pneg %p159
    // Predicated region
    $region29: #{feature_net_forward.15} parent=5 // pred_check
      _
    $region30: #{feature_net_forward.15} parent=5 // pred_check_branch
      %162 = sbr.rel (%p159) target = $region32
    $region31: #{feature_net_forward.15} parent=5 // pred_region
      %s163 = ssub.s32 %s9, 1
      %p164 = pneg %p42
      %p165 = pneg %p39
      %s166 = smul.u32 2, %s19
      %p167 = scmp.lt.s32.totalorder %s18, 1
      %s168 = scalar_select %p167, %s18, 1
      %p169 = scmp.lt.s32.totalorder %s166, 1
      %s170 = scalar_select %p169, %s166, 1
      %s171 = smul.addr %s168, 8
      %s172 = sadd.s32 %s170, %s171
      %s173 = smul.addr %s172, 4
      %s174 = scalar_lea.vmem %s1, %s173
      %p175 = pneg %p70
      %p176 = pneg %p67
      %p177 = pneg %p91
      %p178 = pneg %p88
      %p179 = pneg %p119
      %p180 = pneg %p116
      %s181 = smul.u32 2, %s19
      %p182 = scmp.lt.s32.totalorder %s18, 1
      %s183 = scalar_select %p182, %s18, 1
      %p184 = scmp.lt.s32.totalorder %s181, 1
      %s185 = scalar_select %p184, %s181, 1
      %s186 = smul.addr %s183, 2
      %s187 = sadd.s32 %s185, %s186
      %s188 = smul.addr %s187, 8
      %s189 = scalar_lea.vmem %s3, %s188
      %s190 = smul.u32 2, %s19
      %p191 = scmp.lt.s32.totalorder %s18, 1
      %s192 = scalar_select %p191, %s18, 1
      %p193 = scmp.lt.s32.totalorder %s190, 1
      %s194 = scalar_select %p193, %s190, 1
      %s195 = smul.addr %s192, 8
      %s196 = sadd.s32 %s194, %s195
      %s197 = smul.addr %s196, 4
      %s198 = scalar_lea.vmem %s1, %s197
      %s199 = smul.u32 2, %s19
      %s200 = smul.u32 2, %s19
      %p201 = scmp.lt.s32.totalorder %s18, 1
      %s202 = scalar_select %p201, %s18, 1
      %p203 = scmp.lt.s32.totalorder %s200, 1
      %s204 = scalar_select %p203, %s200, 1
      %s205 = smul.addr %s202, 2
      %s206 = sadd.s32 %s204, %s205
      %s207 = smul.addr %s206, 8
      %s208 = scalar_lea.vmem %s3, %s207
      %s209 = smul.u32 2, %s19
      %v211 = vld [vmem:[%s0] sm:$0xf]
      %v212 = vld [vmem:[%s198] sm:$0xff]
      %v213 = vld [vmem:[%s198 + $0x8] sm:$0xff]
      %v214 = vld [vmem:[%s198 + $0x10] sm:$0xff]
      %v215 = vld [vmem:[%s198 + $0x18] sm:$0x33]
      %v216 = vld [vmem:[%s2] sm:$0xff]
      %218 = vset.pattern.permute.xlu0 0
      %219 = vperm.xlu0 %218, %v216
      %v220 = vpop.permute.xlu0 %219
      %v226 = vunpack.c.l.b16 %v212
      %v227 = vunpack.c.h.b16 %v212
      %v228 = vunpack.c.l.b16 %v213
      %v229 = vunpack.c.h.b16 %v213
      %v230 = vunpack.c.l.b16 %v214
      %v231 = vunpack.c.h.b16 %v214
      %v232 = vunpack.c.l.b16 %v215
      %v233 = vunpack.c.h.b16 %v215
      %v234 = vpack.c.b16 %v228, %v226
      %v235 = vpack.c.b16 %v229, %v227
      %v236 = vpack.c.b16 %v232, %v230
      %v237 = vpack.c.b16 %v233, %v231
      %vm240 = vcmask 220160
      %v242 = vsel %vm240, %v211, 0
      %vm244 = vcmask 1044480
      %vm245 = vcmask 1045504
      %v246 = vsel %vm244, 4294967295, 65535
      %v247 = vsel %vm245, %v246, 0
      %v249 = vand.u32 %v236, %v247
      %v252 = vand.u32 %v237, %v247
      %254 = vmatpush.bf16.msra.mxu0 0
      %255 = vmatpush.bf16.msra.mxu0 0
      %256 = vmatpush.bf16.msra.mxu0 0
      %257 = vmatpush.bf16.msra.mxu0 0
      %258 = vmatpush.bf16.msra.mxu0 0
      %259 = vmatpush.bf16.msra.mxu0 0
      %260 = vmatpush.bf16.msra.mxu0 %v249
      %261 = vmatpush.bf16.msra.mxu0 %v234
      %262 = vmatmul.bf16.gmra.mxu0 %v242
      %v263 = vpop.f32.mrf.mxu0
      %v264 = vadd.f32 %v220, %v263
      %v265 = vpop.f32.mrf.mxu0
      %266 = vdwg.mxu0
      %267 = vmatpush.bf16.msra.mxu0 0
      %268 = vmatpush.bf16.msra.mxu0 0
      %269 = vmatpush.bf16.msra.mxu0 0
      %270 = vmatpush.bf16.msra.mxu0 0
      %271 = vmatpush.bf16.msra.mxu0 0
      %272 = vmatpush.bf16.msra.mxu0 0
      %273 = vmatpush.bf16.msra.mxu0 %v252
      %274 = vmatpush.bf16.msra.mxu0 %v235
      %275 = vmatmul.bf16.gmra.mxu0 %v242
      %v276 = vpop.f32.mrf.mxu0
      %v277 = vadd.f32 %v220, %v276
      %v278 = vpop.f32.mrf.mxu0
      %279 = vdwg.mxu0
      %vm280 = vcmp.gt.f32.partialorder %v264, 0.0
      %vm281 = vcmp.gt.f32.partialorder %v277, 0.0
      %v282 = vmul.f32 %v264, 0.01
      %v283 = vmul.f32 %v277, 0.01
      %v284 = vsel %vm280, %v264, %v282
      %v285 = vsel %vm281, %v277, %v283
      %286 = vst [vmem:[%s208] sm:$0xff] %v284
      %287 = vst [vmem:[%s208 + $0x8] sm:$0xff] %v285
      %s288 = smul.u32 2, %s19
      %p289 = scmp.lt.s32.totalorder %s18, 1
      %s290 = scalar_select %p289, %s18, 1
      %p291 = scmp.lt.s32.totalorder %s288, 1
      %s292 = scalar_select %p291, %s288, 1
      %s293 = smul.addr %s290, 2
      %s294 = sadd.s32 %s292, %s293
      %s295 = smul.addr %s294, 8
      %s296 = scalar_lea.vmem %s3, %s295
      // Predicated region
      $region33: #{feature_net_forward.15} parent=31 // pred_check
        %p297 = pneg %p116
      $region34: #{feature_net_forward.15} parent=31 // pred_check_branch
        %299 = sbr.rel (%p297) target = $region36
      $region35: #{feature_net_forward.15} parent=31 // pred_region
        %s300 = smul.u32 2, %s19
      $region36: #{feature_net_forward.15} parent=31 // pred_fallthru
        _
    $region32: #{feature_net_forward.15} parent=5 // pred_fallthru
      _
    %p301 = scmp.le.s32.totalorder 2, %s9
    // Predicated region
    $region37: #{feature_net_forward.15} parent=5 // pred_check
      %p302 = pneg %p301
    $region38: #{feature_net_forward.15} parent=5 // pred_check_branch
      %304 = sbr.rel (%p302) target = $region40
    $region39: #{feature_net_forward.15} parent=5 // pred_region
      %s305 = ssub.s32 %s9, 2
      // Predicated region
      $region41: #{feature_net_forward.15} parent=39 // pred_check
        %p306 = pneg %p122
      $region42: #{feature_net_forward.15} parent=39 // pred_check_branch
        %308 = sbr.rel (%p306) target = $region44
      $region43: #{feature_net_forward.15} parent=39 // pred_region
        %s309 = smul.u32 2, %s21
        %p310 = scmp.lt.s32.totalorder %s20, 1
        %s311 = scalar_select %p310, %s20, 1
        %p312 = scmp.lt.s32.totalorder %s309, 1
        %s313 = scalar_select %p312, %s309, 1
        %s314 = smul.addr %s311, 2
        %s315 = sadd.s32 %s313, %s314
        %s316 = smul.addr %s315, 8
        %s317 = scalar_lea.vmem %s3, %s316
      $region44: #{feature_net_forward.15} parent=39 // pred_fallthru
        _
    $region40: #{feature_net_forward.15} parent=5 // pred_fallthru
      _
  $region6: #{feature_net_forward.15} parent=0 // loop_footer
    %s13 = sadd.s32 1, %s9
  $region7: #{feature_net_forward.15} parent=0 // loop_footer_branch
    %8 = sbr.rel target = $region3
  $region8: #{feature_net_forward.15} parent=0 // loop_exit
    _

// kernel: feature_net_forward.26
$region0: #{feature_net_forward.26}
  #allocation0 [shape = 'u32[]', space=smem, size = 0x4, offset = 0x4, fixed_abs, tag = 'smem constant byte address 0x4 - core index']
  #allocation1 [shape = 'u32[72,128]{1,0:T(1,128)}', space=vmem, size = 0x9000, scoped, tag = 'internal scratch']
  %s0 = inlined_call_operand.vmem [shape: bf16[32,8], index: 0, kind: input, shape index: {}]
  %s1 = inlined_call_operand.vmem [shape: bf16[2,8,256], index: 1, kind: input, shape index: {}]
  %s2 = inlined_call_operand.vmem [shape: f32[32,1], index: 2, kind: input, shape index: {}]
  %s3 = inlined_call_operand.vmem [shape: f32[2,32,256], index: 3, kind: output, shape index: {}]
  %s4 = sld [smem:[#allocation0]]
  $region45: #{feature_net_forward.26} parent=0
    _
  %s6 = ssub.s32 1, %s4
  %s7 = scalar_select 0, %s6, %s4
  loop: start=0, step=1, limit=4
  $region2: #{feature_net_forward.26} parent=0 // loop_pre_header
    _
  $region3: #{feature_net_forward.26} parent=0 // loop_header
    %s9 = sphi 0, %s13
    %p10 = scmp.ge.s32.totalorder %s9, 4
    %s16 = sphi 0, %s28
    %s17 = sphi 0, %s24
    %s18 = sphi 0, %s16
    %s19 = sphi 0, %s17
    %s20 = sphi 0, %s18
    %s21 = sphi 0, %s19
    %s29 = sphi 0, %s29
    %s31 = sphi 0, %s29
    %s32 = sphi 0, %s31
    %s46 = sphi 0, %s32
    %s54 = sphi 0, %s56
    %s57 = sphi 0, %s54
    %s58 = sphi 0, %s57
    %s74 = sphi 0, %s58
    %s78 = sphi 0, %s78
    %s80 = sphi 0, %s78
    %s81 = sphi 0, %s80
    %s95 = sphi 0, %s81
    %s103 = sphi 0, %s105
    %s106 = sphi 0, %s103
    %s107 = sphi 0, %s106
    %s123 = sphi 0, %s107
  $region4: #{feature_net_forward.26} parent=0 // loop_header_branch
    %12 = sbr.rel (%p10) target = $region8
  $region5: #{feature_net_forward.26} parent=0 // loop_body
    %s14 = ssub.s32 %s9, 1
    %s15 = ssub.s32 %s9, 2
    %s22 = sadd.s32 1, %s17
    %p23 = scmp.ge.s32.totalorder %s22, 1
    %s24 = scalar_select %p23, 0, %s22
    %s25 = sadd.s32 1, %s16
    %s26 = scalar_select %p23, %s25, %s16
    %p27 = scmp.ge.s32.totalorder %s26, 2
    %s28 = scalar_select %p27, 0, %s26
    %s30 = sadd.s32 %s29, 1
    %p33 = scmp.eq.s32.totalorder %s9, 1
    %p34 = scmp.ne.s32.totalorder %s29, %s31
    %p35 = scmp.eq.s32.totalorder %s9, 0
    %p36 = por %p34, %p35
    %p37 = scmp.ne.s32.totalorder %s29, %s31
    %p38 = scmp.eq.s32.totalorder %s14, 1
    %p39 = por %p37, %p38
    %p40 = scmp.ne.s32.totalorder %s31, %s32
    %p41 = scmp.eq.s32.totalorder %s14, 0
    %p42 = por %p40, %p41
    %p43 = scmp.ne.s32.totalorder %s31, %s32
    %p44 = scmp.eq.s32.totalorder %s15, 1
    %p45 = por %p43, %p44
    %p47 = scmp.ne.s32.totalorder %s32, %s46
    %p48 = scmp.eq.s32.totalorder %s15, 0
    %p49 = por %p47, %p48
    %s50 = ssub.s32 %s16, %s28
    %s51 = ssub.s32 %s17, %s24
    %s52 = sor.u32 %s50, %s51
    %p53 = scmp.eq.s32.totalorder %s52, 0
    %s55 = sadd.s32 %s54, 1
    %s56 = scalar_select %p53, %s54, %s55
    %p59 = pneg %p53
    %p60 = scmp.eq.s32.totalorder %s9, 1
    %p61 = por %p59, %p60
    %p62 = scmp.ne.s32.totalorder %s54, %s57
    %p63 = scmp.eq.s32.totalorder %s9, 0
    %p64 = por %p62, %p63
    %p65 = scmp.ne.s32.totalorder %s54, %s57
    %p66 = scmp.eq.s32.totalorder %s14, 1
    %p67 = por %p65, %p66
    %p68 = scmp.ne.s32.totalorder %s57, %s58
    %p69 = scmp.eq.s32.totalorder %s14, 0
    %p70 = por %p68, %p69
    %p71 = scmp.ne.s32.totalorder %s57, %s58
    %p72 = scmp.eq.s32.totalorder %s15, 1
    %p73 = por %p71, %p72
    %p75 = scmp.ne.s32.totalorder %s58, %s74
    %p76 = scmp.eq.s32.totalorder %s15, 0
    %p77 = por %p75, %p76
    %s79 = sadd.s32 %s78, 1
    %p82 = scmp.eq.s32.totalorder %s9, 1
    %p83 = scmp.ne.s32.totalorder %s78, %s80
    %p84 = scmp.eq.s32.totalorder %s9, 0
    %p85 = por %p83, %p84
    %p86 = scmp.ne.s32.totalorder %s78, %s80
    %p87 = scmp.eq.s32.totalorder %s14, 1
    %p88 = por %p86, %p87
    %p89 = scmp.ne.s32.totalorder %s80, %s81
    %p90 = scmp.eq.s32.totalorder %s14, 0
    %p91 = por %p89, %p90
    %p92 = scmp.ne.s32.totalorder %s80, %s81
    %p93 = scmp.eq.s32.totalorder %s15, 1
    %p94 = por %p92, %p93
    %p96 = scmp.ne.s32.totalorder %s81, %s95
    %p97 = scmp.eq.s32.totalorder %s15, 0
    %p98 = por %p96, %p97
    %s99 = ssub.s32 %s16, %s28
    %s100 = ssub.s32 %s17, %s24
    %s101 = sor.u32 %s99, %s100
    %p102 = scmp.eq.s32.totalorder %s101, 0
    %s104 = sadd.s32 %s103, 1
    %s105 = scalar_select %p102, %s103, %s104
    %p108 = pneg %p102
    %p109 = scmp.eq.s32.totalorder %s9, 1
    %p110 = por %p108, %p109
    %p111 = scmp.ne.s32.totalorder %s103, %s106
    %p112 = scmp.eq.s32.totalorder %s9, 0
    %p113 = por %p111, %p112
    %p114 = scmp.ne.s32.totalorder %s103, %s106
    %p115 = scmp.eq.s32.totalorder %s14, 1
    %p116 = por %p114, %p115
    %p117 = scmp.ne.s32.totalorder %s106, %s107
    %p118 = scmp.eq.s32.totalorder %s14, 0
    %p119 = por %p117, %p118
    %p120 = scmp.ne.s32.totalorder %s106, %s107
    %p121 = scmp.eq.s32.totalorder %s15, 1
    %p122 = por %p120, %p121
    %p124 = scmp.ne.s32.totalorder %s107, %s123
    %p125 = scmp.eq.s32.totalorder %s15, 0
    %p126 = por %p124, %p125
    %p127 = scmp.le.s32.totalorder 1, %s9
    %p128 = scmp.lt.s32.totalorder %s9, 3
    %p129 = pnand %p127, %p128
    %p130 = pneg %p129
    // Predicated region
    $region9: #{feature_net_forward.26} parent=5 // pred_check
      _
    $region10: #{feature_net_forward.26} parent=5 // pred_check_branch
      %132 = sbr.rel (%p129) target = $region12
    $region11: #{feature_net_forward.26} parent=5 // pred_region
      %s133 = ssub.s32 %s9, 1
      // Predicated region
      $region13: #{feature_net_forward.26} parent=11 // pred_check
        %p134 = pneg %p42
      $region14: #{feature_net_forward.26} parent=11 // pred_check_branch
        %136 = sbr.rel (%p134) target = $region16
      $region15: #{feature_net_forward.26} parent=11 // pred_region
        _
      $region16: #{feature_net_forward.26} parent=11 // pred_fallthru
        _
      // Predicated region
      $region17: #{feature_net_forward.26} parent=11 // pred_check
        %p137 = pneg %p91
      $region18: #{feature_net_forward.26} parent=11 // pred_check_branch
        %139 = sbr.rel (%p137) target = $region20
      $region19: #{feature_net_forward.26} parent=11 // pred_region
        _
      $region20: #{feature_net_forward.26} parent=11 // pred_fallthru
        _
    $region12: #{feature_net_forward.26} parent=5 // pred_fallthru
      _
    %p140 = scmp.lt.s32.totalorder %s9, 2
    // Predicated region
    $region21: #{feature_net_forward.26} parent=5 // pred_check
      %p141 = pneg %p140
    $region22: #{feature_net_forward.26} parent=5 // pred_check_branch
      %143 = sbr.rel (%p141) target = $region24
    $region23: #{feature_net_forward.26} parent=5 // pred_region
      // Predicated region
      $region25: #{feature_net_forward.26} parent=23 // pred_check
        %p144 = pneg %p64
      $region26: #{feature_net_forward.26} parent=23 // pred_check_branch
        %146 = sbr.rel (%p144) target = $region28
      $region27: #{feature_net_forward.26} parent=23 // pred_region
        %s147 = smul.u32 2, %s17
        %p148 = scmp.lt.s32.totalorder %s16, 1
        %s149 = scalar_select %p148, %s16, 1
        %p150 = scmp.lt.s32.totalorder %s147, 1
        %s151 = scalar_select %p150, %s147, 1
        %s152 = smul.addr %s149, 2
        %s153 = sadd.s32 %s151, %s152
        %s154 = smul.addr %s153, 4
        %s155 = scalar_lea.vmem %s1, %s154
        %s156 = smul.u32 2, %s17
      $region28: #{feature_net_forward.26} parent=23 // pred_fallthru
        _
    $region24: #{feature_net_forward.26} parent=5 // pred_fallthru
      _
    %p157 = scmp.le.s32.totalorder 1, %s9
    %p158 = scmp.lt.s32.totalorder %s9, 3
    %p159 = pnand %p157, %p158
    %p160 = pneg %p159
    // Predicated region
    $region29: #{feature_net_forward.26} parent=5 // pred_check
      _
    $region30: #{feature_net_forward.26} parent=5 // pred_check_branch
      %162 = sbr.rel (%p159) target = $region32
    $region31: #{feature_net_forward.26} parent=5 // pred_region
      %s163 = ssub.s32 %s9, 1
      %p164 = pneg %p42
      %p165 = pneg %p39
      %s166 = smul.u32 2, %s19
      %p167 = scmp.lt.s32.totalorder %s18, 1
      %s168 = scalar_select %p167, %s18, 1
      %p169 = scmp.lt.s32.totalorder %s166, 1
      %s170 = scalar_select %p169, %s166, 1
      %s171 = smul.addr %s168, 2
      %s172 = sadd.s32 %s170, %s171
      %s173 = smul.addr %s172, 4
      %s174 = scalar_lea.vmem %s1, %s173
      %p175 = pneg %p70
      %p176 = pneg %p67
      %p177 = pneg %p91
      %p178 = pneg %p88
      %p179 = pneg %p119
      %p180 = pneg %p116
      %s181 = smul.u32 2, %s19
      %p182 = scmp.lt.s32.totalorder %s18, 1
      %s183 = scalar_select %p182, %s18, 1
      %p184 = scmp.lt.s32.totalorder %s181, 1
      %s185 = scalar_select %p184, %s181, 1
      %s186 = smul.addr %s183, 8
      %s187 = sadd.s32 %s185, %s186
      %s188 = smul.addr %s187, 8
      %s189 = scalar_lea.vmem %s3, %s188
      %s190 = smul.u32 2, %s19
      %p191 = scmp.lt.s32.totalorder %s18, 1
      %s192 = scalar_select %p191, %s18, 1
      %p193 = scmp.lt.s32.totalorder %s190, 1
      %s194 = scalar_select %p193, %s190, 1
      %s195 = smul.addr %s192, 2
      %s196 = sadd.s32 %s194, %s195
      %s197 = smul.addr %s196, 4
      %s198 = scalar_lea.vmem %s1, %s197
      %s199 = smul.u32 2, %s19
      %s200 = smul.u32 2, %s19
      %p201 = scmp.lt.s32.totalorder %s18, 1
      %s202 = scalar_select %p201, %s18, 1
      %p203 = scmp.lt.s32.totalorder %s200, 1
      %s204 = scalar_select %p203, %s200, 1
      %s205 = smul.addr %s202, 8
      %s206 = sadd.s32 %s204, %s205
      %s207 = smul.addr %s206, 8
      %s208 = scalar_lea.vmem %s3, %s207
      %s209 = smul.u32 2, %s19
      %v211 = vld [vmem:[%s0] sm:$0xf]
      %v212 = vld [vmem:[%s0 + $0x4] sm:$0xf]
      %v213 = vld [vmem:[%s0 + $0x8] sm:$0xf]
      %v214 = vld [vmem:[%s0 + $0xc] sm:$0xf]
      %v215 = vld [vmem:[%s198] sm:$0xff]
      %v216 = vld [vmem:[%s2] sm:$0xff]
      %v217 = vld [vmem:[%s2 + $0x8] sm:$0xff]
      %v218 = vld [vmem:[%s2 + $0x10] sm:$0xff]
      %v219 = vld [vmem:[%s2 + $0x18] sm:$0xff]
      %221 = vset.pattern.permute.xlu0 0
      %222 = vperm.xlu0 %221, %v216
      %v223 = vpop.permute.xlu0 %222
      %226 = vset.pattern.permute.xlu0 0
      %227 = vperm.xlu0 %226, %v217
      %v228 = vpop.permute.xlu0 %227
      %231 = vset.pattern.permute.xlu0 0
      %232 = vperm.xlu0 %231, %v218
      %v233 = vpop.permute.xlu0 %232
      %236 = vset.pattern.permute.xlu0 0
      %237 = vperm.xlu0 %236, %v219
      %v238 = vpop.permute.xlu0 %237
      %v244 = vunpack.c.l.b16 %v211
      %v245 = vunpack.c.l.b16 %v212
      %v246 = vunpack.c.l.b16 %v213
      %v247 = vunpack.c.l.b16 %v214
      %v248 = vpack.c.b16 %v245, %v244
      %v249 = vpack.c.b16 %v247, %v246
      %v251 = vunpack.c.l.b16 %v215
      %v252 = vunpack.c.h.b16 %v215
      %v253 = vpack.c.b16 %v251, %v251
      %v254 = vpack.c.b16 %v252, %v252
      %vm255 = vcmask 64512
      %v257 = vsel %vm255, %v248, 0
      %v260 = vsel %vm255, %v249, 0
      %vm262 = vcmask 1043456
      %v264 = vsel %vm262, %v253, 0
      %v267 = vsel %vm262, %v254, 0
      %269 = vmatpush.bf16.msra.mxu0 0
      %270 = vmatpush.bf16.msra.mxu0 0
      %271 = vmatpush.bf16.msra.mxu0 0
      %272 = vmatpush.bf16.msra.mxu0 0
      %273 = vmatpush.bf16.msra.mxu0 0
      %274 = vmatpush.bf16.msra.mxu0 0
      %275 = vmatpush.bf16.msra.mxu0 0
      %276 = vmatpush.bf16.msra.mxu0 %v264
      %277 = vmatmul.bf16.gmra.mxu0 %v257
      %v278 = vpop.f32.mrf.mxu0
      %v279 = vadd.f32 %v223, %v278
      %v280 = vpop.f32.mrf.mxu0
      %v281 = vadd.f32 %v228, %v280
      %282 = vmatmul.bf16.gmra.mxu0 %v260
      %v283 = vpop.f32.mrf.mxu0
      %v284 = vadd.f32 %v233, %v283
      %v285 = vpop.f32.mrf.mxu0
      %v286 = vadd.f32 %v238, %v285
      %287 = vdwg.mxu0
      %288 = vmatpush.bf16.msra.mxu0 0
      %289 = vmatpush.bf16.msra.mxu0 0
      %290 = vmatpush.bf16.msra.mxu0 0
      %291 = vmatpush.bf16.msra.mxu0 0
      %292 = vmatpush.bf16.msra.mxu0 0
      %293 = vmatpush.bf16.msra.mxu0 0
      %294 = vmatpush.bf16.msra.mxu0 0
      %295 = vmatpush.bf16.msra.mxu0 %v267
      %296 = vmatmul.bf16.gmra.mxu0 %v257
      %v297 = vpop.f32.mrf.mxu0
      %v298 = vadd.f32 %v223, %v297
      %v299 = vpop.f32.mrf.mxu0
      %v300 = vadd.f32 %v228, %v299
      %301 = vmatmul.bf16.gmra.mxu0 %v260
      %v302 = vpop.f32.mrf.mxu0
      %v303 = vadd.f32 %v233, %v302
      %v304 = vpop.f32.mrf.mxu0
      %v305 = vadd.f32 %v238, %v304
      %306 = vdwg.mxu0
      %307 = vst [vmem:[%s208] sm:$0xff] %v279
      %308 = vst [vmem:[%s208 + $0x8] sm:$0xff] %v298
      %309 = vst [vmem:[%s208 + $0x10] sm:$0xff] %v281
      %310 = vst [vmem:[%s208 + $0x18] sm:$0xff] %v300
      %311 = vst [vmem:[%s208 + $0x20] sm:$0xff] %v284
      %312 = vst [vmem:[%s208 + $0x28] sm:$0xff] %v303
      %313 = vst [vmem:[%s208 + $0x30] sm:$0xff] %v286
      %314 = vst [vmem:[%s208 + $0x38] sm:$0xff] %v305
      %s315 = smul.u32 2, %s19
      %p316 = scmp.lt.s32.totalorder %s18, 1
      %s317 = scalar_select %p316, %s18, 1
      %p318 = scmp.lt.s32.totalorder %s315, 1
      %s319 = scalar_select %p318, %s315, 1
      %s320 = smul.addr %s317, 8
      %s321 = sadd.s32 %s319, %s320
      %s322 = smul.addr %s321, 8
      %s323 = scalar_lea.vmem %s3, %s322
      // Predicated region
      $region33: #{feature_net_forward.26} parent=31 // pred_check
        %p324 = pneg %p116
      $region34: #{feature_net_forward.26} parent=31 // pred_check_branch
        %326 = sbr.rel (%p324) target = $region36
      $region35: #{feature_net_forward.26} parent=31 // pred_region
        %s327 = smul.u32 2, %s19
      $region36: #{feature_net_forward.26} parent=31 // pred_fallthru
        _
    $region32: #{feature_net_forward.26} parent=5 // pred_fallthru
      _
    %p328 = scmp.le.s32.totalorder 2, %s9
    // Predicated region
    $region37: #{feature_net_forward.26} parent=5 // pred_check
      %p329 = pneg %p328
    $region38: #{feature_net_forward.26} parent=5 // pred_check_branch
      %331 = sbr.rel (%p329) target = $region40
    $region39: #{feature_net_forward.26} parent=5 // pred_region
      %s332 = ssub.s32 %s9, 2
      // Predicated region
      $region41: #{feature_net_forward.26} parent=39 // pred_check
        %p333 = pneg %p122
      $region42: #{feature_net_forward.26} parent=39 // pred_check_branch
        %335 = sbr.rel (%p333) target = $region44
      $region43: #{feature_net_forward.26} parent=39 // pred_region
        %s336 = smul.u32 2, %s21
        %p337 = scmp.lt.s32.totalorder %s20, 1
        %s338 = scalar_select %p337, %s20, 1
        %p339 = scmp.lt.s32.totalorder %s336, 1
        %s340 = scalar_select %p339, %s336, 1
        %s341 = smul.addr %s338, 8
        %s342 = sadd.s32 %s340, %s341
        %s343 = smul.addr %s342, 8
        %s344 = scalar_lea.vmem %s3, %s343
      $region44: #{feature_net_forward.26} parent=39 // pred_fallthru
        _
    $region40: #{feature_net_forward.26} parent=5 // pred_fallthru
      _
  $region6: #{feature_net_forward.26} parent=0 // loop_footer
    %s13 = sadd.s32 1, %s9
  $region7: #{feature_net_forward.26} parent=0 // loop_footer_branch
    %8 = sbr.rel target = $region3
  $region8: #{feature_net_forward.26} parent=0 // loop_exit
    _

// kernel: feature_net_forward.16
$region0: #{feature_net_forward.16}
  #allocation0 [shape = 'u32[]', space=smem, size = 0x4, offset = 0x4, fixed_abs, tag = 'smem constant byte address 0x4 - core index']
  #allocation1 [shape = 'u32[72,128]{1,0:T(1,128)}', space=vmem, size = 0x9000, scoped, tag = 'internal scratch']
  %s0 = inlined_call_operand.vmem [shape: bf16[8,72], index: 0, kind: input, shape index: {}]
  %s1 = inlined_call_operand.vmem [shape: bf16[2,72,256], index: 1, kind: input, shape index: {}]
  %s2 = inlined_call_operand.vmem [shape: f32[8,1], index: 2, kind: input, shape index: {}]
  %s3 = inlined_call_operand.vmem [shape: f32[2,8,256], index: 3, kind: output, shape index: {}]
  %s4 = sld [smem:[#allocation0]]
  $region45: #{feature_net_forward.16} parent=0
    _
  %s6 = ssub.s32 1, %s4
  %s7 = scalar_select 0, %s6, %s4
  loop: start=0, step=1, limit=4
  $region2: #{feature_net_forward.16} parent=0 // loop_pre_header
    _
  $region3: #{feature_net_forward.16} parent=0 // loop_header
    %s9 = sphi 0, %s13
    %p10 = scmp.ge.s32.totalorder %s9, 4
    %s16 = sphi 0, %s28
    %s17 = sphi 0, %s24
    %s18 = sphi 0, %s16
    %s19 = sphi 0, %s17
    %s20 = sphi 0, %s18
    %s21 = sphi 0, %s19
    %s29 = sphi 0, %s29
    %s31 = sphi 0, %s29
    %s32 = sphi 0, %s31
    %s46 = sphi 0, %s32
    %s54 = sphi 0, %s56
    %s57 = sphi 0, %s54
    %s58 = sphi 0, %s57
    %s74 = sphi 0, %s58
    %s78 = sphi 0, %s78
    %s80 = sphi 0, %s78
    %s81 = sphi 0, %s80
    %s95 = sphi 0, %s81
    %s103 = sphi 0, %s105
    %s106 = sphi 0, %s103
    %s107 = sphi 0, %s106
    %s123 = sphi 0, %s107
  $region4: #{feature_net_forward.16} parent=0 // loop_header_branch
    %12 = sbr.rel (%p10) target = $region8
  $region5: #{feature_net_forward.16} parent=0 // loop_body
    %s14 = ssub.s32 %s9, 1
    %s15 = ssub.s32 %s9, 2
    %s22 = sadd.s32 1, %s17
    %p23 = scmp.ge.s32.totalorder %s22, 1
    %s24 = scalar_select %p23, 0, %s22
    %s25 = sadd.s32 1, %s16
    %s26 = scalar_select %p23, %s25, %s16
    %p27 = scmp.ge.s32.totalorder %s26, 2
    %s28 = scalar_select %p27, 0, %s26
    %s30 = sadd.s32 %s29, 1
    %p33 = scmp.eq.s32.totalorder %s9, 1
    %p34 = scmp.ne.s32.totalorder %s29, %s31
    %p35 = scmp.eq.s32.totalorder %s9, 0
    %p36 = por %p34, %p35
    %p37 = scmp.ne.s32.totalorder %s29, %s31
    %p38 = scmp.eq.s32.totalorder %s14, 1
    %p39 = por %p37, %p38
    %p40 = scmp.ne.s32.totalorder %s31, %s32
    %p41 = scmp.eq.s32.totalorder %s14, 0
    %p42 = por %p40, %p41
    %p43 = scmp.ne.s32.totalorder %s31, %s32
    %p44 = scmp.eq.s32.totalorder %s15, 1
    %p45 = por %p43, %p44
    %p47 = scmp.ne.s32.totalorder %s32, %s46
    %p48 = scmp.eq.s32.totalorder %s15, 0
    %p49 = por %p47, %p48
    %s50 = ssub.s32 %s16, %s28
    %s51 = ssub.s32 %s17, %s24
    %s52 = sor.u32 %s50, %s51
    %p53 = scmp.eq.s32.totalorder %s52, 0
    %s55 = sadd.s32 %s54, 1
    %s56 = scalar_select %p53, %s54, %s55
    %p59 = pneg %p53
    %p60 = scmp.eq.s32.totalorder %s9, 1
    %p61 = por %p59, %p60
    %p62 = scmp.ne.s32.totalorder %s54, %s57
    %p63 = scmp.eq.s32.totalorder %s9, 0
    %p64 = por %p62, %p63
    %p65 = scmp.ne.s32.totalorder %s54, %s57
    %p66 = scmp.eq.s32.totalorder %s14, 1
    %p67 = por %p65, %p66
    %p68 = scmp.ne.s32.totalorder %s57, %s58
    %p69 = scmp.eq.s32.totalorder %s14, 0
    %p70 = por %p68, %p69
    %p71 = scmp.ne.s32.totalorder %s57, %s58
    %p72 = scmp.eq.s32.totalorder %s15, 1
    %p73 = por %p71, %p72
    %p75 = scmp.ne.s32.totalorder %s58, %s74
    %p76 = scmp.eq.s32.totalorder %s15, 0
    %p77 = por %p75, %p76
    %s79 = sadd.s32 %s78, 1
    %p82 = scmp.eq.s32.totalorder %s9, 1
    %p83 = scmp.ne.s32.totalorder %s78, %s80
    %p84 = scmp.eq.s32.totalorder %s9, 0
    %p85 = por %p83, %p84
    %p86 = scmp.ne.s32.totalorder %s78, %s80
    %p87 = scmp.eq.s32.totalorder %s14, 1
    %p88 = por %p86, %p87
    %p89 = scmp.ne.s32.totalorder %s80, %s81
    %p90 = scmp.eq.s32.totalorder %s14, 0
    %p91 = por %p89, %p90
    %p92 = scmp.ne.s32.totalorder %s80, %s81
    %p93 = scmp.eq.s32.totalorder %s15, 1
    %p94 = por %p92, %p93
    %p96 = scmp.ne.s32.totalorder %s81, %s95
    %p97 = scmp.eq.s32.totalorder %s15, 0
    %p98 = por %p96, %p97
    %s99 = ssub.s32 %s16, %s28
    %s100 = ssub.s32 %s17, %s24
    %s101 = sor.u32 %s99, %s100
    %p102 = scmp.eq.s32.totalorder %s101, 0
    %s104 = sadd.s32 %s103, 1
    %s105 = scalar_select %p102, %s103, %s104
    %p108 = pneg %p102
    %p109 = scmp.eq.s32.totalorder %s9, 1
    %p110 = por %p108, %p109
    %p111 = scmp.ne.s32.totalorder %s103, %s106
    %p112 = scmp.eq.s32.totalorder %s9, 0
    %p113 = por %p111, %p112
    %p114 = scmp.ne.s32.totalorder %s103, %s106
    %p115 = scmp.eq.s32.totalorder %s14, 1
    %p116 = por %p114, %p115
    %p117 = scmp.ne.s32.totalorder %s106, %s107
    %p118 = scmp.eq.s32.totalorder %s14, 0
    %p119 = por %p117, %p118
    %p120 = scmp.ne.s32.totalorder %s106, %s107
    %p121 = scmp.eq.s32.totalorder %s15, 1
    %p122 = por %p120, %p121
    %p124 = scmp.ne.s32.totalorder %s107, %s123
    %p125 = scmp.eq.s32.totalorder %s15, 0
    %p126 = por %p124, %p125
    %p127 = scmp.le.s32.totalorder 1, %s9
    %p128 = scmp.lt.s32.totalorder %s9, 3
    %p129 = pnand %p127, %p128
    %p130 = pneg %p129
    // Predicated region
    $region9: #{feature_net_forward.16} parent=5 // pred_check
      _
    $region10: #{feature_net_forward.16} parent=5 // pred_check_branch
      %132 = sbr.rel (%p129) target = $region12
    $region11: #{feature_net_forward.16} parent=5 // pred_region
      %s133 = ssub.s32 %s9, 1
      // Predicated region
      $region13: #{feature_net_forward.16} parent=11 // pred_check
        %p134 = pneg %p42
      $region14: #{feature_net_forward.16} parent=11 // pred_check_branch
        %136 = sbr.rel (%p134) target = $region16
      $region15: #{feature_net_forward.16} parent=11 // pred_region
        _
      $region16: #{feature_net_forward.16} parent=11 // pred_fallthru
        _
      // Predicated region
      $region17: #{feature_net_forward.16} parent=11 // pred_check
        %p137 = pneg %p91
      $region18: #{feature_net_forward.16} parent=11 // pred_check_branch
        %139 = sbr.rel (%p137) target = $region20
      $region19: #{feature_net_forward.16} parent=11 // pred_region
        _
      $region20: #{feature_net_forward.16} parent=11 // pred_fallthru
        _
    $region12: #{feature_net_forward.16} parent=5 // pred_fallthru
      _
    %p140 = scmp.lt.s32.totalorder %s9, 2
    // Predicated region
    $region21: #{feature_net_forward.16} parent=5 // pred_check
      %p141 = pneg %p140
    $region22: #{feature_net_forward.16} parent=5 // pred_check_branch
      %143 = sbr.rel (%p141) target = $region24
    $region23: #{feature_net_forward.16} parent=5 // pred_region
      // Predicated region
      $region25: #{feature_net_forward.16} parent=23 // pred_check
        %p144 = pneg %p64
      $region26: #{feature_net_forward.16} parent=23 // pred_check_branch
        %146 = sbr.rel (%p144) target = $region28
      $region27: #{feature_net_forward.16} parent=23 // pred_region
        %s147 = smul.u32 2, %s17
        %p148 = scmp.lt.s32.totalorder %s16, 1
        %s149 = scalar_select %p148, %s16, 1
        %p150 = scmp.lt.s32.totalorder %s147, 1
        %s151 = scalar_select %p150, %s147, 1
        %s152 = smul.addr %s149, 18
        %s153 = sadd.s32 %s151, %s152
        %s154 = smul.addr %s153, 4
        %s155 = scalar_lea.vmem %s1, %s154
        %s156 = smul.u32 2, %s17
      $region28: #{feature_net_forward.16} parent=23 // pred_fallthru
        _
    $region24: #{feature_net_forward.16} parent=5 // pred_fallthru
      _
    %p157 = scmp.le.s32.totalorder 1, %s9
    %p158 = scmp.lt.s32.totalorder %s9, 3
    %p159 = pnand %p157, %p158
    %p160 = pneg %p159
    // Predicated region
    $region29: #{feature_net_forward.16} parent=5 // pred_check
      _
    $region30: #{feature_net_forward.16} parent=5 // pred_check_branch
      %162 = sbr.rel (%p159) target = $region32
    $region31: #{feature_net_forward.16} parent=5 // pred_region
      %s163 = ssub.s32 %s9, 1
      %p164 = pneg %p42
      %p165 = pneg %p39
      %s166 = smul.u32 2, %s19
      %p167 = scmp.lt.s32.totalorder %s18, 1
      %s168 = scalar_select %p167, %s18, 1
      %p169 = scmp.lt.s32.totalorder %s166, 1
      %s170 = scalar_select %p169, %s166, 1
      %s171 = smul.addr %s168, 18
      %s172 = sadd.s32 %s170, %s171
      %s173 = smul.addr %s172, 4
      %s174 = scalar_lea.vmem %s1, %s173
      %p175 = pneg %p70
      %p176 = pneg %p67
      %p177 = pneg %p91
      %p178 = pneg %p88
      %p179 = pneg %p119
      %p180 = pneg %p116
      %s181 = smul.u32 2, %s19
      %p182 = scmp.lt.s32.totalorder %s18, 1
      %s183 = scalar_select %p182, %s18, 1
      %p184 = scmp.lt.s32.totalorder %s181, 1
      %s185 = scalar_select %p184, %s181, 1
      %s186 = smul.addr %s183, 2
      %s187 = sadd.s32 %s185, %s186
      %s188 = smul.addr %s187, 8
      %s189 = scalar_lea.vmem %s3, %s188
      %s190 = smul.u32 2, %s19
      %p191 = scmp.lt.s32.totalorder %s18, 1
      %s192 = scalar_select %p191, %s18, 1
      %p193 = scmp.lt.s32.totalorder %s190, 1
      %s194 = scalar_select %p193, %s190, 1
      %s195 = smul.addr %s192, 18
      %s196 = sadd.s32 %s194, %s195
      %s197 = smul.addr %s196, 4
      %s198 = scalar_lea.vmem %s1, %s197
      %s199 = smul.u32 2, %s19
      %s200 = smul.u32 2, %s19
      %p201 = scmp.lt.s32.totalorder %s18, 1
      %s202 = scalar_select %p201, %s18, 1
      %p203 = scmp.lt.s32.totalorder %s200, 1
      %s204 = scalar_select %p203, %s200, 1
      %s205 = smul.addr %s202, 2
      %s206 = sadd.s32 %s204, %s205
      %s207 = smul.addr %s206, 8
      %s208 = scalar_lea.vmem %s3, %s207
      %s209 = smul.u32 2, %s19
      %v211 = vld [vmem:[%s0] sm:$0xf]
      %v212 = vld [vmem:[%s198] sm:$0xff]
      %v213 = vld [vmem:[%s198 + $0x8] sm:$0xff]
      %v214 = vld [vmem:[%s198 + $0x10] sm:$0xff]
      %v215 = vld [vmem:[%s198 + $0x18] sm:$0xff]
      %v216 = vld [vmem:[%s198 + $0x20] sm:$0xff]
      %v217 = vld [vmem:[%s198 + $0x28] sm:$0xff]
      %v218 = vld [vmem:[%s198 + $0x30] sm:$0xff]
      %v219 = vld [vmem:[%s198 + $0x38] sm:$0xff]
      %v220 = vld [vmem:[%s198 + $0x40] sm:$0xff]
      %v221 = vld [vmem:[%s2] sm:$0xff]
      %223 = vset.pattern.permute.xlu0 0
      %224 = vperm.xlu0 %223, %v221
      %v225 = vpop.permute.xlu0 %224
      %v236 = vunpack.c.l.b16 %v212
      %v237 = vunpack.c.h.b16 %v212
      %v238 = vunpack.c.l.b16 %v213
      %v239 = vunpack.c.h.b16 %v213
      %v240 = vunpack.c.l.b16 %v214
      %v241 = vunpack.c.h.b16 %v214
      %v242 = vunpack.c.l.b16 %v215
      %v243 = vunpack.c.h.b16 %v215
      %v244 = vunpack.c.l.b16 %v216
      %v245 = vunpack.c.h.b16 %v216
      %v246 = vunpack.c.l.b16 %v217
      %v247 = vunpack.c.h.b16 %v217
      %v248 = vunpack.c.l.b16 %v218
      %v249 = vunpack.c.h.b16 %v218
      %v250 = vunpack.c.l.b16 %v219
      %v251 = vunpack.c.h.b16 %v219
      %v252 = vunpack.c.l.b16 %v220
      %v253 = vunpack.c.h.b16 %v220
      %v254 = vpack.c.b16 %v238, %v236
      %v255 = vpack.c.b16 %v239, %v237
      %v256 = vpack.c.b16 %v242, %v240
      %v257 = vpack.c.b16 %v243, %v241
      %v258 = vpack.c.b16 %v246, %v244
      %v259 = vpack.c.b16 %v247, %v245
      %v260 = vpack.c.b16 %v250, %v248
      %v261 = vpack.c.b16 %v251, %v249
      %v262 = vpack.c.b16 %v252, %v252
      %v263 = vpack.c.b16 %v253, %v253
      %vm272 = vcmask 588800
      %v274 = vsel %vm272, %v211, 0
      %vm276 = vcmask 1043456
      %v278 = vsel %vm276, %v262, 0
      %v281 = vsel %vm276, %v263, 0
      %283 = vmatpush.bf16.msra.mxu0 0
      %284 = vmatpush.bf16.msra.mxu0 0
      %285 = vmatpush.bf16.msra.mxu0 0
      %286 = vmatpush.bf16.msra.mxu0 %v278
      %287 = vmatpush.bf16.msra.mxu0 %v260
      %288 = vmatpush.bf16.msra.mxu0 %v258
      %289 = vmatpush.bf16.msra.mxu0 %v256
      %290 = vmatpush.bf16.msra.mxu0 %v254
      %291 = vmatmul.bf16.gmra.mxu0 %v274
      %v292 = vpop.f32.mrf.mxu0
      %v293 = vadd.f32 %v225, %v292
      %v294 = vpop.f32.mrf.mxu0
      %295 = vdwg.mxu0
      %296 = vmatpush.bf16.msra.mxu0 0
      %297 = vmatpush.bf16.msra.mxu0 0
      %298 = vmatpush.bf16.msra.mxu0 0
      %299 = vmatpush.bf16.msra.mxu0 %v281
      %300 = vmatpush.bf16.msra.mxu0 %v261
      %301 = vmatpush.bf16.msra.mxu0 %v259
      %302 = vmatpush.bf16.msra.mxu0 %v257
      %303 = vmatpush.bf16.msra.mxu0 %v255
      %304 = vmatmul.bf16.gmra.mxu0 %v274
      %v305 = vpop.f32.mrf.mxu0
      %v306 = vadd.f32 %v225, %v305
      %v307 = vpop.f32.mrf.mxu0
      %308 = vdwg.mxu0
      %vm309 = vcmp.gt.f32.partialorder %v293, 0.0
      %vm310 = vcmp.gt.f32.partialorder %v306, 0.0
      %v311 = vmul.f32 %v293, 0.01
      %v312 = vmul.f32 %v306, 0.01
      %v313 = vsel %vm309, %v293, %v311
      %v314 = vsel %vm310, %v306, %v312
      %315 = vst [vmem:[%s208] sm:$0xff] %v313
      %316 = vst [vmem:[%s208 + $0x8] sm:$0xff] %v314
      %s317 = smul.u32 2, %s19
      %p318 = scmp.lt.s32.totalorder %s18, 1
      %s319 = scalar_select %p318, %s18, 1
      %p320 = scmp.lt.s32.totalorder %s317, 1
      %s321 = scalar_select %p320, %s317, 1
      %s322 = smul.addr %s319, 2
      %s323 = sadd.s32 %s321, %s322
      %s324 = smul.addr %s323, 8
      %s325 = scalar_lea.vmem %s3, %s324
      // Predicated region
      $region33: #{feature_net_forward.16} parent=31 // pred_check
        %p326 = pneg %p116
      $region34: #{feature_net_forward.16} parent=31 // pred_check_branch
        %328 = sbr.rel (%p326) target = $region36
      $region35: #{feature_net_forward.16} parent=31 // pred_region
        %s329 = smul.u32 2, %s19
      $region36: #{feature_net_forward.16} parent=31 // pred_fallthru
        _
    $region32: #{feature_net_forward.16} parent=5 // pred_fallthru
      _
    %p330 = scmp.le.s32.totalorder 2, %s9
    // Predicated region
    $region37: #{feature_net_forward.16} parent=5 // pred_check
      %p331 = pneg %p330
    $region38: #{feature_net_forward.16} parent=5 // pred_check_branch
      %333 = sbr.rel (%p331) target = $region40
    $region39: #{feature_net_forward.16} parent=5 // pred_region
      %s334 = ssub.s32 %s9, 2
      // Predicated region
      $region41: #{feature_net_forward.16} parent=39 // pred_check
        %p335 = pneg %p122
      $region42: #{feature_net_forward.16} parent=39 // pred_check_branch
        %337 = sbr.rel (%p335) target = $region44
      $region43: #{feature_net_forward.16} parent=39 // pred_region
        %s338 = smul.u32 2, %s21
        %p339 = scmp.lt.s32.totalorder %s20, 1
        %s340 = scalar_select %p339, %s20, 1
        %p341 = scmp.lt.s32.totalorder %s338, 1
        %s342 = scalar_select %p341, %s338, 1
        %s343 = smul.addr %s340, 2
        %s344 = sadd.s32 %s342, %s343
        %s345 = smul.addr %s344, 8
        %s346 = scalar_lea.vmem %s3, %s345
      $region44: #{feature_net_forward.16} parent=39 // pred_fallthru
        _
    $region40: #{feature_net_forward.16} parent=5 // pred_fallthru
      _
  $region6: #{feature_net_forward.16} parent=0 // loop_footer
    %s13 = sadd.s32 1, %s9
  $region7: #{feature_net_forward.16} parent=0 // loop_footer_branch
    %8 = sbr.rel target = $region3
  $region8: #{feature_net_forward.16} parent=0 // loop_exit
    _

// kernel: feature_net_forward.17
$region0: #{feature_net_forward.17}
  #allocation0 [shape = 'u32[]', space=smem, size = 0x4, offset = 0x4, fixed_abs, tag = 'smem constant byte address 0x4 - core index']
  #allocation1 [shape = 'u32[72,128]{1,0:T(1,128)}', space=vmem, size = 0x9000, scoped, tag = 'internal scratch']
  %s0 = inlined_call_operand.vmem [shape: bf16[16,200], index: 0, kind: input, shape index: {}]
  %s1 = inlined_call_operand.vmem [shape: bf16[2,200,64], index: 1, kind: input, shape index: {}]
  %s2 = inlined_call_operand.vmem [shape: f32[16,1], index: 2, kind: input, shape index: {}]
  %s3 = inlined_call_operand.vmem [shape: f32[2,16,64], index: 3, kind: output, shape index: {}]
  %s4 = sld [smem:[#allocation0]]
  $region45: #{feature_net_forward.17} parent=0
    _
  %s6 = ssub.s32 1, %s4
  %s7 = scalar_select 0, %s6, %s4
  loop: start=0, step=1, limit=4
  $region2: #{feature_net_forward.17} parent=0 // loop_pre_header
    _
  $region3: #{feature_net_forward.17} parent=0 // loop_header
    %s9 = sphi 0, %s13
    %p10 = scmp.ge.s32.totalorder %s9, 4
    %s16 = sphi 0, %s28
    %s17 = sphi 0, %s24
    %s18 = sphi 0, %s16
    %s19 = sphi 0, %s17
    %s20 = sphi 0, %s18
    %s21 = sphi 0, %s19
    %s29 = sphi 0, %s29
    %s31 = sphi 0, %s29
    %s32 = sphi 0, %s31
    %s46 = sphi 0, %s32
    %s54 = sphi 0, %s56
    %s57 = sphi 0, %s54
    %s58 = sphi 0, %s57
    %s74 = sphi 0, %s58
    %s78 = sphi 0, %s78
    %s80 = sphi 0, %s78
    %s81 = sphi 0, %s80
    %s95 = sphi 0, %s81
    %s103 = sphi 0, %s105
    %s106 = sphi 0, %s103
    %s107 = sphi 0, %s106
    %s123 = sphi 0, %s107
  $region4: #{feature_net_forward.17} parent=0 // loop_header_branch
    %12 = sbr.rel (%p10) target = $region8
  $region5: #{feature_net_forward.17} parent=0 // loop_body
    %s14 = ssub.s32 %s9, 1
    %s15 = ssub.s32 %s9, 2
    %s22 = sadd.s32 1, %s17
    %p23 = scmp.ge.s32.totalorder %s22, 1
    %s24 = scalar_select %p23, 0, %s22
    %s25 = sadd.s32 1, %s16
    %s26 = scalar_select %p23, %s25, %s16
    %p27 = scmp.ge.s32.totalorder %s26, 2
    %s28 = scalar_select %p27, 0, %s26
    %s30 = sadd.s32 %s29, 1
    %p33 = scmp.eq.s32.totalorder %s9, 1
    %p34 = scmp.ne.s32.totalorder %s29, %s31
    %p35 = scmp.eq.s32.totalorder %s9, 0
    %p36 = por %p34, %p35
    %p37 = scmp.ne.s32.totalorder %s29, %s31
    %p38 = scmp.eq.s32.totalorder %s14, 1
    %p39 = por %p37, %p38
    %p40 = scmp.ne.s32.totalorder %s31, %s32
    %p41 = scmp.eq.s32.totalorder %s14, 0
    %p42 = por %p40, %p41
    %p43 = scmp.ne.s32.totalorder %s31, %s32
    %p44 = scmp.eq.s32.totalorder %s15, 1
    %p45 = por %p43, %p44
    %p47 = scmp.ne.s32.totalorder %s32, %s46
    %p48 = scmp.eq.s32.totalorder %s15, 0
    %p49 = por %p47, %p48
    %s50 = ssub.s32 %s16, %s28
    %s51 = ssub.s32 %s17, %s24
    %s52 = sor.u32 %s50, %s51
    %p53 = scmp.eq.s32.totalorder %s52, 0
    %s55 = sadd.s32 %s54, 1
    %s56 = scalar_select %p53, %s54, %s55
    %p59 = pneg %p53
    %p60 = scmp.eq.s32.totalorder %s9, 1
    %p61 = por %p59, %p60
    %p62 = scmp.ne.s32.totalorder %s54, %s57
    %p63 = scmp.eq.s32.totalorder %s9, 0
    %p64 = por %p62, %p63
    %p65 = scmp.ne.s32.totalorder %s54, %s57
    %p66 = scmp.eq.s32.totalorder %s14, 1
    %p67 = por %p65, %p66
    %p68 = scmp.ne.s32.totalorder %s57, %s58
    %p69 = scmp.eq.s32.totalorder %s14, 0
    %p70 = por %p68, %p69
    %p71 = scmp.ne.s32.totalorder %s57, %s58
    %p72 = scmp.eq.s32.totalorder %s15, 1
    %p73 = por %p71, %p72
    %p75 = scmp.ne.s32.totalorder %s58, %s74
    %p76 = scmp.eq.s32.totalorder %s15, 0
    %p77 = por %p75, %p76
    %s79 = sadd.s32 %s78, 1
    %p82 = scmp.eq.s32.totalorder %s9, 1
    %p83 = scmp.ne.s32.totalorder %s78, %s80
    %p84 = scmp.eq.s32.totalorder %s9, 0
    %p85 = por %p83, %p84
    %p86 = scmp.ne.s32.totalorder %s78, %s80
    %p87 = scmp.eq.s32.totalorder %s14, 1
    %p88 = por %p86, %p87
    %p89 = scmp.ne.s32.totalorder %s80, %s81
    %p90 = scmp.eq.s32.totalorder %s14, 0
    %p91 = por %p89, %p90
    %p92 = scmp.ne.s32.totalorder %s80, %s81
    %p93 = scmp.eq.s32.totalorder %s15, 1
    %p94 = por %p92, %p93
    %p96 = scmp.ne.s32.totalorder %s81, %s95
    %p97 = scmp.eq.s32.totalorder %s15, 0
    %p98 = por %p96, %p97
    %s99 = ssub.s32 %s16, %s28
    %s100 = ssub.s32 %s17, %s24
    %s101 = sor.u32 %s99, %s100
    %p102 = scmp.eq.s32.totalorder %s101, 0
    %s104 = sadd.s32 %s103, 1
    %s105 = scalar_select %p102, %s103, %s104
    %p108 = pneg %p102
    %p109 = scmp.eq.s32.totalorder %s9, 1
    %p110 = por %p108, %p109
    %p111 = scmp.ne.s32.totalorder %s103, %s106
    %p112 = scmp.eq.s32.totalorder %s9, 0
    %p113 = por %p111, %p112
    %p114 = scmp.ne.s32.totalorder %s103, %s106
    %p115 = scmp.eq.s32.totalorder %s14, 1
    %p116 = por %p114, %p115
    %p117 = scmp.ne.s32.totalorder %s106, %s107
    %p118 = scmp.eq.s32.totalorder %s14, 0
    %p119 = por %p117, %p118
    %p120 = scmp.ne.s32.totalorder %s106, %s107
    %p121 = scmp.eq.s32.totalorder %s15, 1
    %p122 = por %p120, %p121
    %p124 = scmp.ne.s32.totalorder %s107, %s123
    %p125 = scmp.eq.s32.totalorder %s15, 0
    %p126 = por %p124, %p125
    %p127 = scmp.le.s32.totalorder 1, %s9
    %p128 = scmp.lt.s32.totalorder %s9, 3
    %p129 = pnand %p127, %p128
    %p130 = pneg %p129
    // Predicated region
    $region9: #{feature_net_forward.17} parent=5 // pred_check
      _
    $region10: #{feature_net_forward.17} parent=5 // pred_check_branch
      %132 = sbr.rel (%p129) target = $region12
    $region11: #{feature_net_forward.17} parent=5 // pred_region
      %s133 = ssub.s32 %s9, 1
      // Predicated region
      $region13: #{feature_net_forward.17} parent=11 // pred_check
        %p134 = pneg %p42
      $region14: #{feature_net_forward.17} parent=11 // pred_check_branch
        %136 = sbr.rel (%p134) target = $region16
      $region15: #{feature_net_forward.17} parent=11 // pred_region
        _
      $region16: #{feature_net_forward.17} parent=11 // pred_fallthru
        _
      // Predicated region
      $region17: #{feature_net_forward.17} parent=11 // pred_check
        %p137 = pneg %p91
      $region18: #{feature_net_forward.17} parent=11 // pred_check_branch
        %139 = sbr.rel (%p137) target = $region20
      $region19: #{feature_net_forward.17} parent=11 // pred_region
        _
      $region20: #{feature_net_forward.17} parent=11 // pred_fallthru
        _
    $region12: #{feature_net_forward.17} parent=5 // pred_fallthru
      _
    %p140 = scmp.lt.s32.totalorder %s9, 2
    // Predicated region
    $region21: #{feature_net_forward.17} parent=5 // pred_check
      %p141 = pneg %p140
    $region22: #{feature_net_forward.17} parent=5 // pred_check_branch
      %143 = sbr.rel (%p141) target = $region24
    $region23: #{feature_net_forward.17} parent=5 // pred_region
      // Predicated region
      $region25: #{feature_net_forward.17} parent=23 // pred_check
        %p144 = pneg %p64
      $region26: #{feature_net_forward.17} parent=23 // pred_check_branch
        %146 = sbr.rel (%p144) target = $region28
      $region27: #{feature_net_forward.17} parent=23 // pred_region
        %p147 = scmp.lt.s32.totalorder %s16, 1
        %s148 = scalar_select %p147, %s16, 1
        %p149 = scmp.lt.s32.totalorder %s17, 0
        %s150 = scalar_select %p149, %s17, 0
        %s151 = smul.addr %s148, 25
        %s152 = sadd.s32 %s150, %s151
        %s153 = smul.addr %s152, 4
        %s154 = scalar_lea.vmem %s1, %s153
      $region28: #{feature_net_forward.17} parent=23 // pred_fallthru
        _
    $region24: #{feature_net_forward.17} parent=5 // pred_fallthru
      _
    %p155 = scmp.le.s32.totalorder 1, %s9
    %p156 = scmp.lt.s32.totalorder %s9, 3
    %p157 = pnand %p155, %p156
    %p158 = pneg %p157
    // Predicated region
    $region29: #{feature_net_forward.17} parent=5 // pred_check
      _
    $region30: #{feature_net_forward.17} parent=5 // pred_check_branch
      %160 = sbr.rel (%p157) target = $region32
    $region31: #{feature_net_forward.17} parent=5 // pred_region
      %s161 = ssub.s32 %s9, 1
      %p162 = pneg %p42
      %p163 = pneg %p39
      %p164 = scmp.lt.s32.totalorder %s18, 1
      %s165 = scalar_select %p164, %s18, 1
      %p166 = scmp.lt.s32.totalorder %s19, 0
      %s167 = scalar_select %p166, %s19, 0
      %s168 = smul.addr %s165, 25
      %s169 = sadd.s32 %s167, %s168
      %s170 = smul.addr %s169, 4
      %s171 = scalar_lea.vmem %s1, %s170
      %p172 = pneg %p70
      %p173 = pneg %p67
      %p174 = pneg %p91
      %p175 = pneg %p88
      %p176 = pneg %p119
      %p177 = pneg %p116
      %p178 = scmp.lt.s32.totalorder %s18, 1
      %s179 = scalar_select %p178, %s18, 1
      %p180 = scmp.lt.s32.totalorder %s19, 0
      %s181 = scalar_select %p180, %s19, 0
      %s182 = smul.addr %s179, 2
      %s183 = sadd.s32 %s181, %s182
      %s184 = smul.addr %s183, 8
      %s185 = scalar_lea.vmem %s3, %s184
      %p186 = scmp.lt.s32.totalorder %s18, 1
      %s187 = scalar_select %p186, %s18, 1
      %p188 = scmp.lt.s32.totalorder %s19, 0
      %s189 = scalar_select %p188, %s19, 0
      %s190 = smul.addr %s187, 25
      %s191 = sadd.s32 %s189, %s190
      %s192 = smul.addr %s191, 4
      %s193 = scalar_lea.vmem %s1, %s192
      %p194 = scmp.lt.s32.totalorder %s18, 1
      %s195 = scalar_select %p194, %s18, 1
      %p196 = scmp.lt.s32.totalorder %s19, 0
      %s197 = scalar_select %p196, %s19, 0
      %s198 = smul.addr %s195, 2
      %s199 = sadd.s32 %s197, %s198
      %s200 = smul.addr %s199, 8
      %s201 = scalar_lea.vmem %s3, %s200
      %v203 = vld [vmem:[%s0] sm:$0xff]
      %v204 = vld [vmem:[%s0 + $0x8] sm:$0xff]
      %v205 = vld [vmem:[%s193] sm:$0xf]
      %v206 = vld [vmem:[%s193 + $0x4] sm:$0xf]
      %v207 = vld [vmem:[%s193 + $0x8] sm:$0xf]
      %v208 = vld [vmem:[%s193 + $0xc] sm:$0xf]
      %v209 = vld [vmem:[%s193 + $0x10] sm:$0xf]
      %v210 = vld [vmem:[%s193 + $0x14] sm:$0xf]
      %v211 = vld [vmem:[%s193 + $0x18] sm:$0xf]
      %v212 = vld [vmem:[%s193 + $0x1c] sm:$0xf]
      %v213 = vld [vmem:[%s193 + $0x20] sm:$0xf]
      %v214 = vld [vmem:[%s193 + $0x24] sm:$0xf]
      %v215 = vld [vmem:[%s193 + $0x28] sm:$0xf]
      %v216 = vld [vmem:[%s193 + $0x2c] sm:$0xf]
      %v217 = vld [vmem:[%s193 + $0x30] sm:$0xf]
      %v218 = vld [vmem:[%s193 + $0x34] sm:$0xf]
      %v219 = vld [vmem:[%s193 + $0x38] sm:$0xf]
      %v220 = vld [vmem:[%s193 + $0x3c] sm:$0xf]
      %v221 = vld [vmem:[%s193 + $0x40] sm:$0xf]
      %v222 = vld [vmem:[%s193 + $0x44] sm:$0xf]
      %v223 = vld [vmem:[%s193 + $0x48] sm:$0xf]
      %v224 = vld [vmem:[%s193 + $0x4c] sm:$0xf]
      %v225 = vld [vmem:[%s193 + $0x50] sm:$0xf]
      %v226 = vld [vmem:[%s193 + $0x54] sm:$0xf]
      %v227 = vld [vmem:[%s193 + $0x58] sm:$0xf]
      %v228 = vld [vmem:[%s193 + $0x5c] sm:$0xf]
      %v229 = vld [vmem:[%s193 + $0x60] sm:$0xf]
      %v230 = vld [vmem:[%s2] sm:$0xff]
      %v231 = vld [vmem:[%s2 + $0x8] sm:$0xff]
      %233 = vset.pattern.permute.xlu0 0
      %234 = vperm.xlu0 %233, %v230
      %v235 = vpop.permute.xlu0 %234
      %238 = vset.pattern.permute.xlu0 0
      %239 = vperm.xlu0 %238, %v231
      %v240 = vpop.permute.xlu0 %239
      %v244 = vunpack.c.l.b16 %v203
      %v245 = vunpack.c.h.b16 %v203
      %v246 = vunpack.c.l.b16 %v204
      %v247 = vunpack.c.h.b16 %v204
      %v248 = vpack.c.b16 %v246, %v244
      %v249 = vpack.c.b16 %v247, %v245
      %v276 = vunpack.c.l.b16 %v205
      %v277 = vunpack.c.l.b16 %v206
      %v278 = vunpack.c.l.b16 %v207
      %v279 = vunpack.c.l.b16 %v208
      %v280 = vunpack.c.l.b16 %v209
      %v281 = vunpack.c.l.b16 %v210
      %v282 = vunpack.c.l.b16 %v211
      %v283 = vunpack.c.l.b16 %v212
      %v284 = vunpack.c.l.b16 %v213
      %v285 = vunpack.c.l.b16 %v214
      %v286 = vunpack.c.l.b16 %v215
      %v287 = vunpack.c.l.b16 %v216
      %v288 = vunpack.c.l.b16 %v217
      %v289 = vunpack.c.l.b16 %v218
      %v290 = vunpack.c.l.b16 %v219
      %v291 = vunpack.c.l.b16 %v220
      %v292 = vunpack.c.l.b16 %v221
      %v293 = vunpack.c.l.b16 %v222
      %v294 = vunpack.c.l.b16 %v223
      %v295 = vunpack.c.l.b16 %v224
      %v296 = vunpack.c.l.b16 %v225
      %v297 = vunpack.c.l.b16 %v226
      %v298 = vunpack.c.l.b16 %v227
      %v299 = vunpack.c.l.b16 %v228
      %v300 = vunpack.c.l.b16 %v229
      %v301 = vpack.c.b16 %v277, %v276
      %v302 = vpack.c.b16 %v279, %v278
      %v303 = vpack.c.b16 %v281, %v280
      %v304 = vpack.c.b16 %v283, %v282
      %v305 = vpack.c.b16 %v285, %v284
      %v306 = vpack.c.b16 %v287, %v286
      %v307 = vpack.c.b16 %v289, %v288
      %v308 = vpack.c.b16 %v291, %v290
      %v309 = vpack.c.b16 %v293, %v292
      %v310 = vpack.c.b16 %v295, %v294
      %v311 = vpack.c.b16 %v297, %v296
      %v312 = vpack.c.b16 %v299, %v298
      %v313 = vpack.c.b16 %v300, %v300
      %vm326 = vcmask 588800
      %v328 = vsel %vm326, %v249, 0
      %vm330 = vcmask 1043456
      %v332 = vsel %vm330, %v313, 0
      %334 = vmatpush.bf16.msra.mxu0 %v308
      %335 = vmatpush.bf16.msra.mxu0 %v307
      %336 = vmatpush.bf16.msra.mxu0 %v306
      %337 = vmatpush.bf16.msra.mxu0 %v305
      %338 = vmatpush.bf16.msra.mxu0 %v304
      %339 = vmatpush.bf16.msra.mxu0 %v303
      %340 = vmatpush.bf16.msra.mxu0 %v302
      %341 = vmatpush.bf16.msra.mxu0 %v301
      %342 = vmatmul.bf16.gmra.mxu0 %v248
      %v343 = vpop.f32.mrf.mxu0
      %v344 = vadd.f32 %v235, %v343
      %v345 = vpop.f32.mrf.mxu0
      %v346 = vadd.f32 %v240, %v345
      %347 = vdwg.mxu0
      %348 = vmatpush.bf16.msra.mxu0 0
      %349 = vmatpush.bf16.msra.mxu0 0
      %350 = vmatpush.bf16.msra.mxu0 0
      %351 = vmatpush.bf16.msra.mxu0 %v332
      %352 = vmatpush.bf16.msra.mxu0 %v312
      %353 = vmatpush.bf16.msra.mxu0 %v311
      %354 = vmatpush.bf16.msra.mxu0 %v310
      %355 = vmatpush.bf16.msra.mxu0 %v309
      %356 = vmatmul.bf16.gmra.mxu0 %v328
      %v357 = vpop.f32.mrf.mxu0
      %v358 = vadd.f32 %v344, %v357
      %v359 = vpop.f32.mrf.mxu0
      %v360 = vadd.f32 %v346, %v359
      %361 = vdwg.mxu0
      %vm362 = vcmp.gt.f32.partialorder %v358, 0.0
      %vm363 = vcmp.gt.f32.partialorder %v360, 0.0
      %v364 = vmul.f32 %v358, 0.01
      %v365 = vmul.f32 %v360, 0.01
      %v366 = vsel %vm362, %v358, %v364
      %v367 = vsel %vm363, %v360, %v365
      %vm368 = vcmask 523264
      %369 = vst.msk [vmem:[%s201] sm:$0xff] %vm368, %v366
      %370 = vst.msk [vmem:[%s201 + $0x8] sm:$0xff] %vm368, %v367
      %p371 = scmp.lt.s32.totalorder %s18, 1
      %s372 = scalar_select %p371, %s18, 1
      %p373 = scmp.lt.s32.totalorder %s19, 0
      %s374 = scalar_select %p373, %s19, 0
      %s375 = smul.addr %s372, 2
      %s376 = sadd.s32 %s374, %s375
      %s377 = smul.addr %s376, 8
      %s378 = scalar_lea.vmem %s3, %s377
      // Predicated region
      $region33: #{feature_net_forward.17} parent=31 // pred_check
        %p379 = pneg %p116
      $region34: #{feature_net_forward.17} parent=31 // pred_check_branch
        %381 = sbr.rel (%p379) target = $region36
      $region35: #{feature_net_forward.17} parent=31 // pred_region
        _
      $region36: #{feature_net_forward.17} parent=31 // pred_fallthru
        _
    $region32: #{feature_net_forward.17} parent=5 // pred_fallthru
      _
    %p382 = scmp.le.s32.totalorder 2, %s9
    // Predicated region
    $region37: #{feature_net_forward.17} parent=5 // pred_check
      %p383 = pneg %p382
    $region38: #{feature_net_forward.17} parent=5 // pred_check_branch
      %385 = sbr.rel (%p383) target = $region40
    $region39: #{feature_net_forward.17} parent=5 // pred_region
      %s386 = ssub.s32 %s9, 2
      // Predicated region
      $region41: #{feature_net_forward.17} parent=39 // pred_check
        %p387 = pneg %p122
      $region42: #{feature_net_forward.17} parent=39 // pred_check_branch
        %389 = sbr.rel (%p387) target = $region44
      $region43: #{feature_net_forward.17} parent=39 // pred_region
        %p390 = scmp.lt.s32.totalorder %s20, 1
        %s391 = scalar_select %p390, %s20, 1
        %p392 = scmp.lt.s32.totalorder %s21, 0
        %s393 = scalar_select %p392, %s21, 0
        %s394 = smul.addr %s391, 2
        %s395 = sadd.s32 %s393, %s394
        %s396 = smul.addr %s395, 8
        %s397 = scalar_lea.vmem %s3, %s396
      $region44: #{feature_net_forward.17} parent=39 // pred_fallthru
        _
    $region40: #{feature_net_forward.17} parent=5 // pred_fallthru
      _
  $region6: #{feature_net_forward.17} parent=0 // loop_footer
    %s13 = sadd.s32 1, %s9
  $region7: #{feature_net_forward.17} parent=0 // loop_footer_branch
    %8 = sbr.rel target = $region3
  $region8: #{feature_net_forward.17} parent=0 // loop_exit
    _

// kernel: feature_net_forward.18
$region0: #{feature_net_forward.18}
  #allocation0 [shape = 'u32[]', space=smem, size = 0x4, offset = 0x4, fixed_abs, tag = 'smem constant byte address 0x4 - core index']
  #allocation1 [shape = 'u32[72,128]{1,0:T(1,128)}', space=vmem, size = 0x9000, scoped, tag = 'internal scratch']
  %s0 = inlined_call_operand.vmem [shape: bf16[16,144], index: 0, kind: input, shape index: {}]
  %s1 = inlined_call_operand.vmem [shape: bf16[2,144,64], index: 1, kind: input, shape index: {}]
  %s2 = inlined_call_operand.vmem [shape: f32[16,1], index: 2, kind: input, shape index: {}]
  %s3 = inlined_call_operand.vmem [shape: f32[2,16,64], index: 3, kind: output, shape index: {}]
  %s4 = sld [smem:[#allocation0]]
  $region45: #{feature_net_forward.18} parent=0
    _
  %s6 = ssub.s32 1, %s4
  %s7 = scalar_select 0, %s6, %s4
  loop: start=0, step=1, limit=4
  $region2: #{feature_net_forward.18} parent=0 // loop_pre_header
    _
  $region3: #{feature_net_forward.18} parent=0 // loop_header
    %s9 = sphi 0, %s13
    %p10 = scmp.ge.s32.totalorder %s9, 4
    %s16 = sphi 0, %s28
    %s17 = sphi 0, %s24
    %s18 = sphi 0, %s16
    %s19 = sphi 0, %s17
    %s20 = sphi 0, %s18
    %s21 = sphi 0, %s19
    %s29 = sphi 0, %s29
    %s31 = sphi 0, %s29
    %s32 = sphi 0, %s31
    %s46 = sphi 0, %s32
    %s54 = sphi 0, %s56
    %s57 = sphi 0, %s54
    %s58 = sphi 0, %s57
    %s74 = sphi 0, %s58
    %s78 = sphi 0, %s78
    %s80 = sphi 0, %s78
    %s81 = sphi 0, %s80
    %s95 = sphi 0, %s81
    %s103 = sphi 0, %s105
    %s106 = sphi 0, %s103
    %s107 = sphi 0, %s106
    %s123 = sphi 0, %s107
  $region4: #{feature_net_forward.18} parent=0 // loop_header_branch
    %12 = sbr.rel (%p10) target = $region8
  $region5: #{feature_net_forward.18} parent=0 // loop_body
    %s14 = ssub.s32 %s9, 1
    %s15 = ssub.s32 %s9, 2
    %s22 = sadd.s32 1, %s17
    %p23 = scmp.ge.s32.totalorder %s22, 1
    %s24 = scalar_select %p23, 0, %s22
    %s25 = sadd.s32 1, %s16
    %s26 = scalar_select %p23, %s25, %s16
    %p27 = scmp.ge.s32.totalorder %s26, 2
    %s28 = scalar_select %p27, 0, %s26
    %s30 = sadd.s32 %s29, 1
    %p33 = scmp.eq.s32.totalorder %s9, 1
    %p34 = scmp.ne.s32.totalorder %s29, %s31
    %p35 = scmp.eq.s32.totalorder %s9, 0
    %p36 = por %p34, %p35
    %p37 = scmp.ne.s32.totalorder %s29, %s31
    %p38 = scmp.eq.s32.totalorder %s14, 1
    %p39 = por %p37, %p38
    %p40 = scmp.ne.s32.totalorder %s31, %s32
    %p41 = scmp.eq.s32.totalorder %s14, 0
    %p42 = por %p40, %p41
    %p43 = scmp.ne.s32.totalorder %s31, %s32
    %p44 = scmp.eq.s32.totalorder %s15, 1
    %p45 = por %p43, %p44
    %p47 = scmp.ne.s32.totalorder %s32, %s46
    %p48 = scmp.eq.s32.totalorder %s15, 0
    %p49 = por %p47, %p48
    %s50 = ssub.s32 %s16, %s28
    %s51 = ssub.s32 %s17, %s24
    %s52 = sor.u32 %s50, %s51
    %p53 = scmp.eq.s32.totalorder %s52, 0
    %s55 = sadd.s32 %s54, 1
    %s56 = scalar_select %p53, %s54, %s55
    %p59 = pneg %p53
    %p60 = scmp.eq.s32.totalorder %s9, 1
    %p61 = por %p59, %p60
    %p62 = scmp.ne.s32.totalorder %s54, %s57
    %p63 = scmp.eq.s32.totalorder %s9, 0
    %p64 = por %p62, %p63
    %p65 = scmp.ne.s32.totalorder %s54, %s57
    %p66 = scmp.eq.s32.totalorder %s14, 1
    %p67 = por %p65, %p66
    %p68 = scmp.ne.s32.totalorder %s57, %s58
    %p69 = scmp.eq.s32.totalorder %s14, 0
    %p70 = por %p68, %p69
    %p71 = scmp.ne.s32.totalorder %s57, %s58
    %p72 = scmp.eq.s32.totalorder %s15, 1
    %p73 = por %p71, %p72
    %p75 = scmp.ne.s32.totalorder %s58, %s74
    %p76 = scmp.eq.s32.totalorder %s15, 0
    %p77 = por %p75, %p76
    %s79 = sadd.s32 %s78, 1
    %p82 = scmp.eq.s32.totalorder %s9, 1
    %p83 = scmp.ne.s32.totalorder %s78, %s80
    %p84 = scmp.eq.s32.totalorder %s9, 0
    %p85 = por %p83, %p84
    %p86 = scmp.ne.s32.totalorder %s78, %s80
    %p87 = scmp.eq.s32.totalorder %s14, 1
    %p88 = por %p86, %p87
    %p89 = scmp.ne.s32.totalorder %s80, %s81
    %p90 = scmp.eq.s32.totalorder %s14, 0
    %p91 = por %p89, %p90
    %p92 = scmp.ne.s32.totalorder %s80, %s81
    %p93 = scmp.eq.s32.totalorder %s15, 1
    %p94 = por %p92, %p93
    %p96 = scmp.ne.s32.totalorder %s81, %s95
    %p97 = scmp.eq.s32.totalorder %s15, 0
    %p98 = por %p96, %p97
    %s99 = ssub.s32 %s16, %s28
    %s100 = ssub.s32 %s17, %s24
    %s101 = sor.u32 %s99, %s100
    %p102 = scmp.eq.s32.totalorder %s101, 0
    %s104 = sadd.s32 %s103, 1
    %s105 = scalar_select %p102, %s103, %s104
    %p108 = pneg %p102
    %p109 = scmp.eq.s32.totalorder %s9, 1
    %p110 = por %p108, %p109
    %p111 = scmp.ne.s32.totalorder %s103, %s106
    %p112 = scmp.eq.s32.totalorder %s9, 0
    %p113 = por %p111, %p112
    %p114 = scmp.ne.s32.totalorder %s103, %s106
    %p115 = scmp.eq.s32.totalorder %s14, 1
    %p116 = por %p114, %p115
    %p117 = scmp.ne.s32.totalorder %s106, %s107
    %p118 = scmp.eq.s32.totalorder %s14, 0
    %p119 = por %p117, %p118
    %p120 = scmp.ne.s32.totalorder %s106, %s107
    %p121 = scmp.eq.s32.totalorder %s15, 1
    %p122 = por %p120, %p121
    %p124 = scmp.ne.s32.totalorder %s107, %s123
    %p125 = scmp.eq.s32.totalorder %s15, 0
    %p126 = por %p124, %p125
    %p127 = scmp.le.s32.totalorder 1, %s9
    %p128 = scmp.lt.s32.totalorder %s9, 3
    %p129 = pnand %p127, %p128
    %p130 = pneg %p129
    // Predicated region
    $region9: #{feature_net_forward.18} parent=5 // pred_check
      _
    $region10: #{feature_net_forward.18} parent=5 // pred_check_branch
      %132 = sbr.rel (%p129) target = $region12
    $region11: #{feature_net_forward.18} parent=5 // pred_region
      %s133 = ssub.s32 %s9, 1
      // Predicated region
      $region13: #{feature_net_forward.18} parent=11 // pred_check
        %p134 = pneg %p42
      $region14: #{feature_net_forward.18} parent=11 // pred_check_branch
        %136 = sbr.rel (%p134) target = $region16
      $region15: #{feature_net_forward.18} parent=11 // pred_region
        _
      $region16: #{feature_net_forward.18} parent=11 // pred_fallthru
        _
      // Predicated region
      $region17: #{feature_net_forward.18} parent=11 // pred_check
        %p137 = pneg %p91
      $region18: #{feature_net_forward.18} parent=11 // pred_check_branch
        %139 = sbr.rel (%p137) target = $region20
      $region19: #{feature_net_forward.18} parent=11 // pred_region
        _
      $region20: #{feature_net_forward.18} parent=11 // pred_fallthru
        _
    $region12: #{feature_net_forward.18} parent=5 // pred_fallthru
      _
    %p140 = scmp.lt.s32.totalorder %s9, 2
    // Predicated region
    $region21: #{feature_net_forward.18} parent=5 // pred_check
      %p141 = pneg %p140
    $region22: #{feature_net_forward.18} parent=5 // pred_check_branch
      %143 = sbr.rel (%p141) target = $region24
    $region23: #{feature_net_forward.18} parent=5 // pred_region
      // Predicated region
      $region25: #{feature_net_forward.18} parent=23 // pred_check
        %p144 = pneg %p64
      $region26: #{feature_net_forward.18} parent=23 // pred_check_branch
        %146 = sbr.rel (%p144) target = $region28
      $region27: #{feature_net_forward.18} parent=23 // pred_region
        %p147 = scmp.lt.s32.totalorder %s16, 1
        %s148 = scalar_select %p147, %s16, 1
        %p149 = scmp.lt.s32.totalorder %s17, 0
        %s150 = scalar_select %p149, %s17, 0
        %s151 = smul.addr %s148, 18
        %s152 = sadd.s32 %s150, %s151
        %s153 = smul.addr %s152, 4
        %s154 = scalar_lea.vmem %s1, %s153
      $region28: #{feature_net_forward.18} parent=23 // pred_fallthru
        _
    $region24: #{feature_net_forward.18} parent=5 // pred_fallthru
      _
    %p155 = scmp.le.s32.totalorder 1, %s9
    %p156 = scmp.lt.s32.totalorder %s9, 3
    %p157 = pnand %p155, %p156
    %p158 = pneg %p157
    // Predicated region
    $region29: #{feature_net_forward.18} parent=5 // pred_check
      _
    $region30: #{feature_net_forward.18} parent=5 // pred_check_branch
      %160 = sbr.rel (%p157) target = $region32
    $region31: #{feature_net_forward.18} parent=5 // pred_region
      %s161 = ssub.s32 %s9, 1
      %p162 = pneg %p42
      %p163 = pneg %p39
      %p164 = scmp.lt.s32.totalorder %s18, 1
      %s165 = scalar_select %p164, %s18, 1
      %p166 = scmp.lt.s32.totalorder %s19, 0
      %s167 = scalar_select %p166, %s19, 0
      %s168 = smul.addr %s165, 18
      %s169 = sadd.s32 %s167, %s168
      %s170 = smul.addr %s169, 4
      %s171 = scalar_lea.vmem %s1, %s170
      %p172 = pneg %p70
      %p173 = pneg %p67
      %p174 = pneg %p91
      %p175 = pneg %p88
      %p176 = pneg %p119
      %p177 = pneg %p116
      %p178 = scmp.lt.s32.totalorder %s18, 1
      %s179 = scalar_select %p178, %s18, 1
      %p180 = scmp.lt.s32.totalorder %s19, 0
      %s181 = scalar_select %p180, %s19, 0
      %s182 = smul.addr %s179, 2
      %s183 = sadd.s32 %s181, %s182
      %s184 = smul.addr %s183, 8
      %s185 = scalar_lea.vmem %s3, %s184
      %p186 = scmp.lt.s32.totalorder %s18, 1
      %s187 = scalar_select %p186, %s18, 1
      %p188 = scmp.lt.s32.totalorder %s19, 0
      %s189 = scalar_select %p188, %s19, 0
      %s190 = smul.addr %s187, 18
      %s191 = sadd.s32 %s189, %s190
      %s192 = smul.addr %s191, 4
      %s193 = scalar_lea.vmem %s1, %s192
      %p194 = scmp.lt.s32.totalorder %s18, 1
      %s195 = scalar_select %p194, %s18, 1
      %p196 = scmp.lt.s32.totalorder %s19, 0
      %s197 = scalar_select %p196, %s19, 0
      %s198 = smul.addr %s195, 2
      %s199 = sadd.s32 %s197, %s198
      %s200 = smul.addr %s199, 8
      %s201 = scalar_lea.vmem %s3, %s200
      %v203 = vld [vmem:[%s0] sm:$0xff]
      %v204 = vld [vmem:[%s0 + $0x8] sm:$0xff]
      %v205 = vld [vmem:[%s193] sm:$0xf]
      %v206 = vld [vmem:[%s193 + $0x4] sm:$0xf]
      %v207 = vld [vmem:[%s193 + $0x8] sm:$0xf]
      %v208 = vld [vmem:[%s193 + $0xc] sm:$0xf]
      %v209 = vld [vmem:[%s193 + $0x10] sm:$0xf]
      %v210 = vld [vmem:[%s193 + $0x14] sm:$0xf]
      %v211 = vld [vmem:[%s193 + $0x18] sm:$0xf]
      %v212 = vld [vmem:[%s193 + $0x1c] sm:$0xf]
      %v213 = vld [vmem:[%s193 + $0x20] sm:$0xf]
      %v214 = vld [vmem:[%s193 + $0x24] sm:$0xf]
      %v215 = vld [vmem:[%s193 + $0x28] sm:$0xf]
      %v216 = vld [vmem:[%s193 + $0x2c] sm:$0xf]
      %v217 = vld [vmem:[%s193 + $0x30] sm:$0xf]
      %v218 = vld [vmem:[%s193 + $0x34] sm:$0xf]
      %v219 = vld [vmem:[%s193 + $0x38] sm:$0xf]
      %v220 = vld [vmem:[%s193 + $0x3c] sm:$0xf]
      %v221 = vld [vmem:[%s193 + $0x40] sm:$0xf]
      %v222 = vld [vmem:[%s193 + $0x44] sm:$0xf]
      %v223 = vld [vmem:[%s2] sm:$0xff]
      %v224 = vld [vmem:[%s2 + $0x8] sm:$0xff]
      %226 = vset.pattern.permute.xlu0 0
      %227 = vperm.xlu0 %226, %v223
      %v228 = vpop.permute.xlu0 %227
      %231 = vset.pattern.permute.xlu0 0
      %232 = vperm.xlu0 %231, %v224
      %v233 = vpop.permute.xlu0 %232
      %v237 = vunpack.c.l.b16 %v203
      %v238 = vunpack.c.h.b16 %v203
      %v239 = vunpack.c.l.b16 %v204
      %v240 = vunpack.c.h.b16 %v204
      %v241 = vpack.c.b16 %v239, %v237
      %v242 = vpack.c.b16 %v240, %v238
      %v262 = vunpack.c.l.b16 %v205
      %v263 = vunpack.c.l.b16 %v206
      %v264 = vunpack.c.l.b16 %v207
      %v265 = vunpack.c.l.b16 %v208
      %v266 = vunpack.c.l.b16 %v209
      %v267 = vunpack.c.l.b16 %v210
      %v268 = vunpack.c.l.b16 %v211
      %v269 = vunpack.c.l.b16 %v212
      %v270 = vunpack.c.l.b16 %v213
      %v271 = vunpack.c.l.b16 %v214
      %v272 = vunpack.c.l.b16 %v215
      %v273 = vunpack.c.l.b16 %v216
      %v274 = vunpack.c.l.b16 %v217
      %v275 = vunpack.c.l.b16 %v218
      %v276 = vunpack.c.l.b16 %v219
      %v277 = vunpack.c.l.b16 %v220
      %v278 = vunpack.c.l.b16 %v221
      %v279 = vunpack.c.l.b16 %v222
      %v280 = vpack.c.b16 %v263, %v262
      %v281 = vpack.c.b16 %v265, %v264
      %v282 = vpack.c.b16 %v267, %v266
      %v283 = vpack.c.b16 %v269, %v268
      %v284 = vpack.c.b16 %v271, %v270
      %v285 = vpack.c.b16 %v273, %v272
      %v286 = vpack.c.b16 %v275, %v274
      %v287 = vpack.c.b16 %v277, %v276
      %v288 = vpack.c.b16 %v279, %v278
      %vm298 = vcmask 130048
      %v300 = vsel %vm298, %v242, 0
      %302 = vmatpush.bf16.msra.mxu0 %v287
      %303 = vmatpush.bf16.msra.mxu0 %v286
      %304 = vmatpush.bf16.msra.mxu0 %v285
      %305 = vmatpush.bf16.msra.mxu0 %v284
      %306 = vmatpush.bf16.msra.mxu0 %v283
      %307 = vmatpush.bf16.msra.mxu0 %v282
      %308 = vmatpush.bf16.msra.mxu0 %v281
      %309 = vmatpush.bf16.msra.mxu0 %v280
      %310 = vmatmul.bf16.gmra.mxu0 %v241
      %v311 = vpop.f32.mrf.mxu0
      %v312 = vadd.f32 %v228, %v311
      %v313 = vpop.f32.mrf.mxu0
      %v314 = vadd.f32 %v233, %v313
      %315 = vdwg.mxu0
      %316 = vmatpush.bf16.msra.mxu0 0
      %317 = vmatpush.bf16.msra.mxu0 0
      %318 = vmatpush.bf16.msra.mxu0 0
      %319 = vmatpush.bf16.msra.mxu0 0
      %320 = vmatpush.bf16.msra.mxu0 0
      %321 = vmatpush.bf16.msra.mxu0 0
      %322 = vmatpush.bf16.msra.mxu0 0
      %323 = vmatpush.bf16.msra.mxu0 %v288
      %324 = vmatmul.bf16.gmra.mxu0 %v300
      %v325 = vpop.f32.mrf.mxu0
      %v326 = vadd.f32 %v312, %v325
      %v327 = vpop.f32.mrf.mxu0
      %v328 = vadd.f32 %v314, %v327
      %329 = vdwg.mxu0
      %vm330 = vcmp.gt.f32.partialorder %v326, 0.0
      %vm331 = vcmp.gt.f32.partialorder %v328, 0.0
      %v332 = vmul.f32 %v326, 0.01
      %v333 = vmul.f32 %v328, 0.01
      %v334 = vsel %vm330, %v326, %v332
      %v335 = vsel %vm331, %v328, %v333
      %vm336 = vcmask 523264
      %337 = vst.msk [vmem:[%s201] sm:$0xff] %vm336, %v334
      %338 = vst.msk [vmem:[%s201 + $0x8] sm:$0xff] %vm336, %v335
      %p339 = scmp.lt.s32.totalorder %s18, 1
      %s340 = scalar_select %p339, %s18, 1
      %p341 = scmp.lt.s32.totalorder %s19, 0
      %s342 = scalar_select %p341, %s19, 0
      %s343 = smul.addr %s340, 2
      %s344 = sadd.s32 %s342, %s343
      %s345 = smul.addr %s344, 8
      %s346 = scalar_lea.vmem %s3, %s345
      // Predicated region
      $region33: #{feature_net_forward.18} parent=31 // pred_check
        %p347 = pneg %p116
      $region34: #{feature_net_forward.18} parent=31 // pred_check_branch
        %349 = sbr.rel (%p347) target = $region36
      $region35: #{feature_net_forward.18} parent=31 // pred_region
        _
      $region36: #{feature_net_forward.18} parent=31 // pred_fallthru
        _
    $region32: #{feature_net_forward.18} parent=5 // pred_fallthru
      _
    %p350 = scmp.le.s32.totalorder 2, %s9
    // Predicated region
    $region37: #{feature_net_forward.18} parent=5 // pred_check
      %p351 = pneg %p350
    $region38: #{feature_net_forward.18} parent=5 // pred_check_branch
      %353 = sbr.rel (%p351) target = $region40
    $region39: #{feature_net_forward.18} parent=5 // pred_region
      %s354 = ssub.s32 %s9, 2
      // Predicated region
      $region41: #{feature_net_forward.18} parent=39 // pred_check
        %p355 = pneg %p122
      $region42: #{feature_net_forward.18} parent=39 // pred_check_branch
        %357 = sbr.rel (%p355) target = $region44
      $region43: #{feature_net_forward.18} parent=39 // pred_region
        %p358 = scmp.lt.s32.totalorder %s20, 1
        %s359 = scalar_select %p358, %s20, 1
        %p360 = scmp.lt.s32.totalorder %s21, 0
        %s361 = scalar_select %p360, %s21, 0
        %s362 = smul.addr %s359, 2
        %s363 = sadd.s32 %s361, %s362
        %s364 = smul.addr %s363, 8
        %s365 = scalar_lea.vmem %s3, %s364
      $region44: #{feature_net_forward.18} parent=39 // pred_fallthru
        _
    $region40: #{feature_net_forward.18} parent=5 // pred_fallthru
      _
  $region6: #{feature_net_forward.18} parent=0 // loop_footer
    %s13 = sadd.s32 1, %s9
  $region7: #{feature_net_forward.18} parent=0 // loop_footer_branch
    %8 = sbr.rel target = $region3
  $region8: #{feature_net_forward.18} parent=0 // loop_exit
    _

// kernel: feature_net_forward.24
$region0: #{feature_net_forward.24}
  #allocation0 [shape = 'u32[]', space=smem, size = 0x4, offset = 0x4, fixed_abs, tag = 'smem constant byte address 0x4 - core index']
  #allocation1 [shape = 'u32[72,128]{1,0:T(1,128)}', space=vmem, size = 0x9000, scoped, tag = 'internal scratch']
  %s0 = inlined_call_operand.vmem [shape: bf16[32,16], index: 0, kind: input, shape index: {}]
  %s1 = inlined_call_operand.vmem [shape: bf16[2,16,64], index: 1, kind: input, shape index: {}]
  %s2 = inlined_call_operand.vmem [shape: f32[32,1], index: 2, kind: input, shape index: {}]
  %s3 = inlined_call_operand.vmem [shape: f32[2,32,64], index: 3, kind: output, shape index: {}]
  %s4 = sld [smem:[#allocation0]]
  $region45: #{feature_net_forward.24} parent=0
    _
  %s6 = ssub.s32 1, %s4
  %s7 = scalar_select 0, %s6, %s4
  loop: start=0, step=1, limit=4
  $region2: #{feature_net_forward.24} parent=0 // loop_pre_header
    _
  $region3: #{feature_net_forward.24} parent=0 // loop_header
    %s9 = sphi 0, %s13
    %p10 = scmp.ge.s32.totalorder %s9, 4
    %s16 = sphi 0, %s28
    %s17 = sphi 0, %s24
    %s18 = sphi 0, %s16
    %s19 = sphi 0, %s17
    %s20 = sphi 0, %s18
    %s21 = sphi 0, %s19
    %s29 = sphi 0, %s29
    %s31 = sphi 0, %s29
    %s32 = sphi 0, %s31
    %s46 = sphi 0, %s32
    %s54 = sphi 0, %s56
    %s57 = sphi 0, %s54
    %s58 = sphi 0, %s57
    %s74 = sphi 0, %s58
    %s78 = sphi 0, %s78
    %s80 = sphi 0, %s78
    %s81 = sphi 0, %s80
    %s95 = sphi 0, %s81
    %s103 = sphi 0, %s105
    %s106 = sphi 0, %s103
    %s107 = sphi 0, %s106
    %s123 = sphi 0, %s107
  $region4: #{feature_net_forward.24} parent=0 // loop_header_branch
    %12 = sbr.rel (%p10) target = $region8
  $region5: #{feature_net_forward.24} parent=0 // loop_body
    %s14 = ssub.s32 %s9, 1
    %s15 = ssub.s32 %s9, 2
    %s22 = sadd.s32 1, %s17
    %p23 = scmp.ge.s32.totalorder %s22, 1
    %s24 = scalar_select %p23, 0, %s22
    %s25 = sadd.s32 1, %s16
    %s26 = scalar_select %p23, %s25, %s16
    %p27 = scmp.ge.s32.totalorder %s26, 2
    %s28 = scalar_select %p27, 0, %s26
    %s30 = sadd.s32 %s29, 1
    %p33 = scmp.eq.s32.totalorder %s9, 1
    %p34 = scmp.ne.s32.totalorder %s29, %s31
    %p35 = scmp.eq.s32.totalorder %s9, 0
    %p36 = por %p34, %p35
    %p37 = scmp.ne.s32.totalorder %s29, %s31
    %p38 = scmp.eq.s32.totalorder %s14, 1
    %p39 = por %p37, %p38
    %p40 = scmp.ne.s32.totalorder %s31, %s32
    %p41 = scmp.eq.s32.totalorder %s14, 0
    %p42 = por %p40, %p41
    %p43 = scmp.ne.s32.totalorder %s31, %s32
    %p44 = scmp.eq.s32.totalorder %s15, 1
    %p45 = por %p43, %p44
    %p47 = scmp.ne.s32.totalorder %s32, %s46
    %p48 = scmp.eq.s32.totalorder %s15, 0
    %p49 = por %p47, %p48
    %s50 = ssub.s32 %s16, %s28
    %s51 = ssub.s32 %s17, %s24
    %s52 = sor.u32 %s50, %s51
    %p53 = scmp.eq.s32.totalorder %s52, 0
    %s55 = sadd.s32 %s54, 1
    %s56 = scalar_select %p53, %s54, %s55
    %p59 = pneg %p53
    %p60 = scmp.eq.s32.totalorder %s9, 1
    %p61 = por %p59, %p60
    %p62 = scmp.ne.s32.totalorder %s54, %s57
    %p63 = scmp.eq.s32.totalorder %s9, 0
    %p64 = por %p62, %p63
    %p65 = scmp.ne.s32.totalorder %s54, %s57
    %p66 = scmp.eq.s32.totalorder %s14, 1
    %p67 = por %p65, %p66
    %p68 = scmp.ne.s32.totalorder %s57, %s58
    %p69 = scmp.eq.s32.totalorder %s14, 0
    %p70 = por %p68, %p69
    %p71 = scmp.ne.s32.totalorder %s57, %s58
    %p72 = scmp.eq.s32.totalorder %s15, 1
    %p73 = por %p71, %p72
    %p75 = scmp.ne.s32.totalorder %s58, %s74
    %p76 = scmp.eq.s32.totalorder %s15, 0
    %p77 = por %p75, %p76
    %s79 = sadd.s32 %s78, 1
    %p82 = scmp.eq.s32.totalorder %s9, 1
    %p83 = scmp.ne.s32.totalorder %s78, %s80
    %p84 = scmp.eq.s32.totalorder %s9, 0
    %p85 = por %p83, %p84
    %p86 = scmp.ne.s32.totalorder %s78, %s80
    %p87 = scmp.eq.s32.totalorder %s14, 1
    %p88 = por %p86, %p87
    %p89 = scmp.ne.s32.totalorder %s80, %s81
    %p90 = scmp.eq.s32.totalorder %s14, 0
    %p91 = por %p89, %p90
    %p92 = scmp.ne.s32.totalorder %s80, %s81
    %p93 = scmp.eq.s32.totalorder %s15, 1
    %p94 = por %p92, %p93
    %p96 = scmp.ne.s32.totalorder %s81, %s95
    %p97 = scmp.eq.s32.totalorder %s15, 0
    %p98 = por %p96, %p97
    %s99 = ssub.s32 %s16, %s28
    %s100 = ssub.s32 %s17, %s24
    %s101 = sor.u32 %s99, %s100
    %p102 = scmp.eq.s32.totalorder %s101, 0
    %s104 = sadd.s32 %s103, 1
    %s105 = scalar_select %p102, %s103, %s104
    %p108 = pneg %p102
    %p109 = scmp.eq.s32.totalorder %s9, 1
    %p110 = por %p108, %p109
    %p111 = scmp.ne.s32.totalorder %s103, %s106
    %p112 = scmp.eq.s32.totalorder %s9, 0
    %p113 = por %p111, %p112
    %p114 = scmp.ne.s32.totalorder %s103, %s106
    %p115 = scmp.eq.s32.totalorder %s14, 1
    %p116 = por %p114, %p115
    %p117 = scmp.ne.s32.totalorder %s106, %s107
    %p118 = scmp.eq.s32.totalorder %s14, 0
    %p119 = por %p117, %p118
    %p120 = scmp.ne.s32.totalorder %s106, %s107
    %p121 = scmp.eq.s32.totalorder %s15, 1
    %p122 = por %p120, %p121
    %p124 = scmp.ne.s32.totalorder %s107, %s123
    %p125 = scmp.eq.s32.totalorder %s15, 0
    %p126 = por %p124, %p125
    %p127 = scmp.le.s32.totalorder 1, %s9
    %p128 = scmp.lt.s32.totalorder %s9, 3
    %p129 = pnand %p127, %p128
    %p130 = pneg %p129
    // Predicated region
    $region9: #{feature_net_forward.24} parent=5 // pred_check
      _
    $region10: #{feature_net_forward.24} parent=5 // pred_check_branch
      %132 = sbr.rel (%p129) target = $region12
    $region11: #{feature_net_forward.24} parent=5 // pred_region
      %s133 = ssub.s32 %s9, 1
      // Predicated region
      $region13: #{feature_net_forward.24} parent=11 // pred_check
        %p134 = pneg %p42
      $region14: #{feature_net_forward.24} parent=11 // pred_check_branch
        %136 = sbr.rel (%p134) target = $region16
      $region15: #{feature_net_forward.24} parent=11 // pred_region
        _
      $region16: #{feature_net_forward.24} parent=11 // pred_fallthru
        _
      // Predicated region
      $region17: #{feature_net_forward.24} parent=11 // pred_check
        %p137 = pneg %p91
      $region18: #{feature_net_forward.24} parent=11 // pred_check_branch
        %139 = sbr.rel (%p137) target = $region20
      $region19: #{feature_net_forward.24} parent=11 // pred_region
        _
      $region20: #{feature_net_forward.24} parent=11 // pred_fallthru
        _
    $region12: #{feature_net_forward.24} parent=5 // pred_fallthru
      _
    %p140 = scmp.lt.s32.totalorder %s9, 2
    // Predicated region
    $region21: #{feature_net_forward.24} parent=5 // pred_check
      %p141 = pneg %p140
    $region22: #{feature_net_forward.24} parent=5 // pred_check_branch
      %143 = sbr.rel (%p141) target = $region24
    $region23: #{feature_net_forward.24} parent=5 // pred_region
      // Predicated region
      $region25: #{feature_net_forward.24} parent=23 // pred_check
        %p144 = pneg %p64
      $region26: #{feature_net_forward.24} parent=23 // pred_check_branch
        %146 = sbr.rel (%p144) target = $region28
      $region27: #{feature_net_forward.24} parent=23 // pred_region
        %p147 = scmp.lt.s32.totalorder %s16, 1
        %s148 = scalar_select %p147, %s16, 1
        %p149 = scmp.lt.s32.totalorder %s17, 0
        %s150 = scalar_select %p149, %s17, 0
        %s151 = smul.addr %s148, 2
        %s152 = sadd.s32 %s150, %s151
        %s153 = smul.addr %s152, 4
        %s154 = scalar_lea.vmem %s1, %s153
      $region28: #{feature_net_forward.24} parent=23 // pred_fallthru
        _
    $region24: #{feature_net_forward.24} parent=5 // pred_fallthru
      _
    %p155 = scmp.le.s32.totalorder 1, %s9
    %p156 = scmp.lt.s32.totalorder %s9, 3
    %p157 = pnand %p155, %p156
    %p158 = pneg %p157
    // Predicated region
    $region29: #{feature_net_forward.24} parent=5 // pred_check
      _
    $region30: #{feature_net_forward.24} parent=5 // pred_check_branch
      %160 = sbr.rel (%p157) target = $region32
    $region31: #{feature_net_forward.24} parent=5 // pred_region
      %s161 = ssub.s32 %s9, 1
      %p162 = pneg %p42
      %p163 = pneg %p39
      %p164 = scmp.lt.s32.totalorder %s18, 1
      %s165 = scalar_select %p164, %s18, 1
      %p166 = scmp.lt.s32.totalorder %s19, 0
      %s167 = scalar_select %p166, %s19, 0
      %s168 = smul.addr %s165, 2
      %s169 = sadd.s32 %s167, %s168
      %s170 = smul.addr %s169, 4
      %s171 = scalar_lea.vmem %s1, %s170
      %p172 = pneg %p70
      %p173 = pneg %p67
      %p174 = pneg %p91
      %p175 = pneg %p88
      %p176 = pneg %p119
      %p177 = pneg %p116
      %p178 = scmp.lt.s32.totalorder %s18, 1
      %s179 = scalar_select %p178, %s18, 1
      %p180 = scmp.lt.s32.totalorder %s19, 0
      %s181 = scalar_select %p180, %s19, 0
      %s182 = smul.addr %s179, 4
      %s183 = sadd.s32 %s181, %s182
      %s184 = smul.addr %s183, 8
      %s185 = scalar_lea.vmem %s3, %s184
      %p186 = scmp.lt.s32.totalorder %s18, 1
      %s187 = scalar_select %p186, %s18, 1
      %p188 = scmp.lt.s32.totalorder %s19, 0
      %s189 = scalar_select %p188, %s19, 0
      %s190 = smul.addr %s187, 2
      %s191 = sadd.s32 %s189, %s190
      %s192 = smul.addr %s191, 4
      %s193 = scalar_lea.vmem %s1, %s192
      %p194 = scmp.lt.s32.totalorder %s18, 1
      %s195 = scalar_select %p194, %s18, 1
      %p196 = scmp.lt.s32.totalorder %s19, 0
      %s197 = scalar_select %p196, %s19, 0
      %s198 = smul.addr %s195, 4
      %s199 = sadd.s32 %s197, %s198
      %s200 = smul.addr %s199, 8
      %s201 = scalar_lea.vmem %s3, %s200
      %v203 = vld [vmem:[%s0] sm:$0xf]
      %v204 = vld [vmem:[%s0 + $0x4] sm:$0xf]
      %v205 = vld [vmem:[%s0 + $0x8] sm:$0xf]
      %v206 = vld [vmem:[%s0 + $0xc] sm:$0xf]
      %v207 = vld [vmem:[%s193] sm:$0xf]
      %v208 = vld [vmem:[%s193 + $0x4] sm:$0xf]
      %v209 = vld [vmem:[%s2] sm:$0xff]
      %v210 = vld [vmem:[%s2 + $0x8] sm:$0xff]
      %v211 = vld [vmem:[%s2 + $0x10] sm:$0xff]
      %v212 = vld [vmem:[%s2 + $0x18] sm:$0xff]
      %214 = vset.pattern.permute.xlu0 0
      %215 = vperm.xlu0 %214, %v209
      %v216 = vpop.permute.xlu0 %215
      %219 = vset.pattern.permute.xlu0 0
      %220 = vperm.xlu0 %219, %v210
      %v221 = vpop.permute.xlu0 %220
      %224 = vset.pattern.permute.xlu0 0
      %225 = vperm.xlu0 %224, %v211
      %v226 = vpop.permute.xlu0 %225
      %229 = vset.pattern.permute.xlu0 0
      %230 = vperm.xlu0 %229, %v212
      %v231 = vpop.permute.xlu0 %230
      %v237 = vunpack.c.l.b16 %v203
      %v238 = vunpack.c.l.b16 %v204
      %v239 = vunpack.c.l.b16 %v205
      %v240 = vunpack.c.l.b16 %v206
      %v241 = vpack.c.b16 %v238, %v237
      %v242 = vpack.c.b16 %v240, %v239
      %v245 = vunpack.c.l.b16 %v207
      %v246 = vunpack.c.l.b16 %v208
      %v247 = vpack.c.b16 %v246, %v245
      %vm249 = vcmask 130048
      %v251 = vsel %vm249, %v241, 0
      %v254 = vsel %vm249, %v242, 0
      %256 = vmatpush.bf16.msra.mxu0 0
      %257 = vmatpush.bf16.msra.mxu0 0
      %258 = vmatpush.bf16.msra.mxu0 0
      %259 = vmatpush.bf16.msra.mxu0 0
      %260 = vmatpush.bf16.msra.mxu0 0
      %261 = vmatpush.bf16.msra.mxu0 0
      %262 = vmatpush.bf16.msra.mxu0 0
      %263 = vmatpush.bf16.msra.mxu0 %v247
      %264 = vmatmul.bf16.gmra.mxu0 %v251
      %v265 = vpop.f32.mrf.mxu0
      %v266 = vadd.f32 %v216, %v265
      %v267 = vpop.f32.mrf.mxu0
      %v268 = vadd.f32 %v221, %v267
      %269 = vmatmul.bf16.gmra.mxu0 %v254
      %v270 = vpop.f32.mrf.mxu0
      %v271 = vadd.f32 %v226, %v270
      %v272 = vpop.f32.mrf.mxu0
      %v273 = vadd.f32 %v231, %v272
      %274 = vdwg.mxu0
      %vm275 = vcmask 523264
      %276 = vst.msk [vmem:[%s201] sm:$0xff] %vm275, %v266
      %277 = vst.msk [vmem:[%s201 + $0x8] sm:$0xff] %vm275, %v268
      %278 = vst.msk [vmem:[%s201 + $0x10] sm:$0xff] %vm275, %v271
      %279 = vst.msk [vmem:[%s201 + $0x18] sm:$0xff] %vm275, %v273
      %p280 = scmp.lt.s32.totalorder %s18, 1
      %s281 = scalar_select %p280, %s18, 1
      %p282 = scmp.lt.s32.totalorder %s19, 0
      %s283 = scalar_select %p282, %s19, 0
      %s284 = smul.addr %s281, 4
      %s285 = sadd.s32 %s283, %s284
      %s286 = smul.addr %s285, 8
      %s287 = scalar_lea.vmem %s3, %s286
      // Predicated region
      $region33: #{feature_net_forward.24} parent=31 // pred_check
        %p288 = pneg %p116
      $region34: #{feature_net_forward.24} parent=31 // pred_check_branch
        %290 = sbr.rel (%p288) target = $region36
      $region35: #{feature_net_forward.24} parent=31 // pred_region
        _
      $region36: #{feature_net_forward.24} parent=31 // pred_fallthru
        _
    $region32: #{feature_net_forward.24} parent=5 // pred_fallthru
      _
    %p291 = scmp.le.s32.totalorder 2, %s9
    // Predicated region
    $region37: #{feature_net_forward.24} parent=5 // pred_check
      %p292 = pneg %p291
    $region38: #{feature_net_forward.24} parent=5 // pred_check_branch
      %294 = sbr.rel (%p292) target = $region40
    $region39: #{feature_net_forward.24} parent=5 // pred_region
      %s295 = ssub.s32 %s9, 2
      // Predicated region
      $region41: #{feature_net_forward.24} parent=39 // pred_check
        %p296 = pneg %p122
      $region42: #{feature_net_forward.24} parent=39 // pred_check_branch
        %298 = sbr.rel (%p296) target = $region44
      $region43: #{feature_net_forward.24} parent=39 // pred_region
        %p299 = scmp.lt.s32.totalorder %s20, 1
        %s300 = scalar_select %p299, %s20, 1
        %p301 = scmp.lt.s32.totalorder %s21, 0
        %s302 = scalar_select %p301, %s21, 0
        %s303 = smul.addr %s300, 4
        %s304 = sadd.s32 %s302, %s303
        %s305 = smul.addr %s304, 8
        %s306 = scalar_lea.vmem %s3, %s305
      $region44: #{feature_net_forward.24} parent=39 // pred_fallthru
        _
    $region40: #{feature_net_forward.24} parent=5 // pred_fallthru
      _
  $region6: #{feature_net_forward.24} parent=0 // loop_footer
    %s13 = sadd.s32 1, %s9
  $region7: #{feature_net_forward.24} parent=0 // loop_footer_branch
    %8 = sbr.rel target = $region3
  $region8: #{feature_net_forward.24} parent=0 // loop_exit
    _

// kernel: feature_net_forward.20
$region0: #{feature_net_forward.20}
  #allocation0 [shape = 'u32[]', space=smem, size = 0x4, offset = 0x4, fixed_abs, tag = 'smem constant byte address 0x4 - core index']
  #allocation1 [shape = 'u32[72,128]{1,0:T(1,128)}', space=vmem, size = 0x9000, scoped, tag = 'internal scratch']
  %s0 = inlined_call_operand.vmem [shape: bf16[32,400], index: 0, kind: input, shape index: {}]
  %s1 = inlined_call_operand.vmem [shape: bf16[2,400,16], index: 1, kind: input, shape index: {}]
  %s2 = inlined_call_operand.vmem [shape: f32[32,1], index: 2, kind: input, shape index: {}]
  %s3 = inlined_call_operand.vmem [shape: f32[2,32,16], index: 3, kind: output, shape index: {}]
  %s4 = sld [smem:[#allocation0]]
  $region45: #{feature_net_forward.20} parent=0
    _
  %s6 = ssub.s32 1, %s4
  %s7 = scalar_select 0, %s6, %s4
  loop: start=0, step=1, limit=4
  $region2: #{feature_net_forward.20} parent=0 // loop_pre_header
    _
  $region3: #{feature_net_forward.20} parent=0 // loop_header
    %s9 = sphi 0, %s13
    %p10 = scmp.ge.s32.totalorder %s9, 4
    %s16 = sphi 0, %s28
    %s17 = sphi 0, %s24
    %s18 = sphi 0, %s16
    %s19 = sphi 0, %s17
    %s20 = sphi 0, %s18
    %s21 = sphi 0, %s19
    %s29 = sphi 0, %s29
    %s31 = sphi 0, %s29
    %s32 = sphi 0, %s31
    %s46 = sphi 0, %s32
    %s54 = sphi 0, %s56
    %s57 = sphi 0, %s54
    %s58 = sphi 0, %s57
    %s74 = sphi 0, %s58
    %s78 = sphi 0, %s78
    %s80 = sphi 0, %s78
    %s81 = sphi 0, %s80
    %s95 = sphi 0, %s81
    %s103 = sphi 0, %s105
    %s106 = sphi 0, %s103
    %s107 = sphi 0, %s106
    %s123 = sphi 0, %s107
  $region4: #{feature_net_forward.20} parent=0 // loop_header_branch
    %12 = sbr.rel (%p10) target = $region8
  $region5: #{feature_net_forward.20} parent=0 // loop_body
    %s14 = ssub.s32 %s9, 1
    %s15 = ssub.s32 %s9, 2
    %s22 = sadd.s32 1, %s17
    %p23 = scmp.ge.s32.totalorder %s22, 1
    %s24 = scalar_select %p23, 0, %s22
    %s25 = sadd.s32 1, %s16
    %s26 = scalar_select %p23, %s25, %s16
    %p27 = scmp.ge.s32.totalorder %s26, 2
    %s28 = scalar_select %p27, 0, %s26
    %s30 = sadd.s32 %s29, 1
    %p33 = scmp.eq.s32.totalorder %s9, 1
    %p34 = scmp.ne.s32.totalorder %s29, %s31
    %p35 = scmp.eq.s32.totalorder %s9, 0
    %p36 = por %p34, %p35
    %p37 = scmp.ne.s32.totalorder %s29, %s31
    %p38 = scmp.eq.s32.totalorder %s14, 1
    %p39 = por %p37, %p38
    %p40 = scmp.ne.s32.totalorder %s31, %s32
    %p41 = scmp.eq.s32.totalorder %s14, 0
    %p42 = por %p40, %p41
    %p43 = scmp.ne.s32.totalorder %s31, %s32
    %p44 = scmp.eq.s32.totalorder %s15, 1
    %p45 = por %p43, %p44
    %p47 = scmp.ne.s32.totalorder %s32, %s46
    %p48 = scmp.eq.s32.totalorder %s15, 0
    %p49 = por %p47, %p48
    %s50 = ssub.s32 %s16, %s28
    %s51 = ssub.s32 %s17, %s24
    %s52 = sor.u32 %s50, %s51
    %p53 = scmp.eq.s32.totalorder %s52, 0
    %s55 = sadd.s32 %s54, 1
    %s56 = scalar_select %p53, %s54, %s55
    %p59 = pneg %p53
    %p60 = scmp.eq.s32.totalorder %s9, 1
    %p61 = por %p59, %p60
    %p62 = scmp.ne.s32.totalorder %s54, %s57
    %p63 = scmp.eq.s32.totalorder %s9, 0
    %p64 = por %p62, %p63
    %p65 = scmp.ne.s32.totalorder %s54, %s57
    %p66 = scmp.eq.s32.totalorder %s14, 1
    %p67 = por %p65, %p66
    %p68 = scmp.ne.s32.totalorder %s57, %s58
    %p69 = scmp.eq.s32.totalorder %s14, 0
    %p70 = por %p68, %p69
    %p71 = scmp.ne.s32.totalorder %s57, %s58
    %p72 = scmp.eq.s32.totalorder %s15, 1
    %p73 = por %p71, %p72
    %p75 = scmp.ne.s32.totalorder %s58, %s74
    %p76 = scmp.eq.s32.totalorder %s15, 0
    %p77 = por %p75, %p76
    %s79 = sadd.s32 %s78, 1
    %p82 = scmp.eq.s32.totalorder %s9, 1
    %p83 = scmp.ne.s32.totalorder %s78, %s80
    %p84 = scmp.eq.s32.totalorder %s9, 0
    %p85 = por %p83, %p84
    %p86 = scmp.ne.s32.totalorder %s78, %s80
    %p87 = scmp.eq.s32.totalorder %s14, 1
    %p88 = por %p86, %p87
    %p89 = scmp.ne.s32.totalorder %s80, %s81
    %p90 = scmp.eq.s32.totalorder %s14, 0
    %p91 = por %p89, %p90
    %p92 = scmp.ne.s32.totalorder %s80, %s81
    %p93 = scmp.eq.s32.totalorder %s15, 1
    %p94 = por %p92, %p93
    %p96 = scmp.ne.s32.totalorder %s81, %s95
    %p97 = scmp.eq.s32.totalorder %s15, 0
    %p98 = por %p96, %p97
    %s99 = ssub.s32 %s16, %s28
    %s100 = ssub.s32 %s17, %s24
    %s101 = sor.u32 %s99, %s100
    %p102 = scmp.eq.s32.totalorder %s101, 0
    %s104 = sadd.s32 %s103, 1
    %s105 = scalar_select %p102, %s103, %s104
    %p108 = pneg %p102
    %p109 = scmp.eq.s32.totalorder %s9, 1
    %p110 = por %p108, %p109
    %p111 = scmp.ne.s32.totalorder %s103, %s106
    %p112 = scmp.eq.s32.totalorder %s9, 0
    %p113 = por %p111, %p112
    %p114 = scmp.ne.s32.totalorder %s103, %s106
    %p115 = scmp.eq.s32.totalorder %s14, 1
    %p116 = por %p114, %p115
    %p117 = scmp.ne.s32.totalorder %s106, %s107
    %p118 = scmp.eq.s32.totalorder %s14, 0
    %p119 = por %p117, %p118
    %p120 = scmp.ne.s32.totalorder %s106, %s107
    %p121 = scmp.eq.s32.totalorder %s15, 1
    %p122 = por %p120, %p121
    %p124 = scmp.ne.s32.totalorder %s107, %s123
    %p125 = scmp.eq.s32.totalorder %s15, 0
    %p126 = por %p124, %p125
    %p127 = scmp.le.s32.totalorder 1, %s9
    %p128 = scmp.lt.s32.totalorder %s9, 3
    %p129 = pnand %p127, %p128
    %p130 = pneg %p129
    // Predicated region
    $region9: #{feature_net_forward.20} parent=5 // pred_check
      _
    $region10: #{feature_net_forward.20} parent=5 // pred_check_branch
      %132 = sbr.rel (%p129) target = $region12
    $region11: #{feature_net_forward.20} parent=5 // pred_region
      %s133 = ssub.s32 %s9, 1
      // Predicated region
      $region13: #{feature_net_forward.20} parent=11 // pred_check
        %p134 = pneg %p42
      $region14: #{feature_net_forward.20} parent=11 // pred_check_branch
        %136 = sbr.rel (%p134) target = $region16
      $region15: #{feature_net_forward.20} parent=11 // pred_region
        _
      $region16: #{feature_net_forward.20} parent=11 // pred_fallthru
        _
      // Predicated region
      $region17: #{feature_net_forward.20} parent=11 // pred_check
        %p137 = pneg %p91
      $region18: #{feature_net_forward.20} parent=11 // pred_check_branch
        %139 = sbr.rel (%p137) target = $region20
      $region19: #{feature_net_forward.20} parent=11 // pred_region
        _
      $region20: #{feature_net_forward.20} parent=11 // pred_fallthru
        _
    $region12: #{feature_net_forward.20} parent=5 // pred_fallthru
      _
    %p140 = scmp.lt.s32.totalorder %s9, 2
    // Predicated region
    $region21: #{feature_net_forward.20} parent=5 // pred_check
      %p141 = pneg %p140
    $region22: #{feature_net_forward.20} parent=5 // pred_check_branch
      %143 = sbr.rel (%p141) target = $region24
    $region23: #{feature_net_forward.20} parent=5 // pred_region
      // Predicated region
      $region25: #{feature_net_forward.20} parent=23 // pred_check
        %p144 = pneg %p64
      $region26: #{feature_net_forward.20} parent=23 // pred_check_branch
        %146 = sbr.rel (%p144) target = $region28
      $region27: #{feature_net_forward.20} parent=23 // pred_region
        %p147 = scmp.lt.s32.totalorder %s16, 1
        %s148 = scalar_select %p147, %s16, 1
        %p149 = scmp.lt.s32.totalorder %s17, 0
        %s150 = scalar_select %p149, %s17, 0
        %s151 = smul.addr %s148, 50
        %s152 = sadd.s32 %s150, %s151
        %s153 = smul.addr %s152, 4
        %s154 = scalar_lea.vmem %s1, %s153
      $region28: #{feature_net_forward.20} parent=23 // pred_fallthru
        _
    $region24: #{feature_net_forward.20} parent=5 // pred_fallthru
      _
    %p155 = scmp.le.s32.totalorder 1, %s9
    %p156 = scmp.lt.s32.totalorder %s9, 3
    %p157 = pnand %p155, %p156
    %p158 = pneg %p157
    // Predicated region
    $region29: #{feature_net_forward.20} parent=5 // pred_check
      _
    $region30: #{feature_net_forward.20} parent=5 // pred_check_branch
      %160 = sbr.rel (%p157) target = $region32
    $region31: #{feature_net_forward.20} parent=5 // pred_region
      %s161 = ssub.s32 %s9, 1
      %p162 = pneg %p42
      %p163 = pneg %p39
      %p164 = scmp.lt.s32.totalorder %s18, 1
      %s165 = scalar_select %p164, %s18, 1
      %p166 = scmp.lt.s32.totalorder %s19, 0
      %s167 = scalar_select %p166, %s19, 0
      %s168 = smul.addr %s165, 50
      %s169 = sadd.s32 %s167, %s168
      %s170 = smul.addr %s169, 4
      %s171 = scalar_lea.vmem %s1, %s170
      %p172 = pneg %p70
      %p173 = pneg %p67
      %p174 = pneg %p91
      %p175 = pneg %p88
      %p176 = pneg %p119
      %p177 = pneg %p116
      %p178 = scmp.lt.s32.totalorder %s18, 1
      %s179 = scalar_select %p178, %s18, 1
      %p180 = scmp.lt.s32.totalorder %s19, 0
      %s181 = scalar_select %p180, %s19, 0
      %s182 = smul.addr %s179, 4
      %s183 = sadd.s32 %s181, %s182
      %s184 = smul.addr %s183, 8
      %s185 = scalar_lea.vmem %s3, %s184
      %p186 = scmp.lt.s32.totalorder %s18, 1
      %s187 = scalar_select %p186, %s18, 1
      %p188 = scmp.lt.s32.totalorder %s19, 0
      %s189 = scalar_select %p188, %s19, 0
      %s190 = smul.addr %s187, 50
      %s191 = sadd.s32 %s189, %s190
      %s192 = smul.addr %s191, 4
      %s193 = scalar_lea.vmem %s1, %s192
      %p194 = scmp.lt.s32.totalorder %s18, 1
      %s195 = scalar_select %p194, %s18, 1
      %p196 = scmp.lt.s32.totalorder %s19, 0
      %s197 = scalar_select %p196, %s19, 0
      %s198 = smul.addr %s195, 4
      %s199 = sadd.s32 %s197, %s198
      %s200 = smul.addr %s199, 8
      %s201 = scalar_lea.vmem %s3, %s200
      %v203 = vld [vmem:[%s0] sm:$0xff]
      %v204 = vld [vmem:[%s0 + $0x8] sm:$0xff]
      %v205 = vld [vmem:[%s0 + $0x10] sm:$0xff]
      %v206 = vld [vmem:[%s0 + $0x18] sm:$0xff]
      %v207 = vld [vmem:[%s0 + $0x20] sm:$0xff]
      %v208 = vld [vmem:[%s0 + $0x28] sm:$0xff]
      %v209 = vld [vmem:[%s0 + $0x30] sm:$0xff]
      %v210 = vld [vmem:[%s0 + $0x38] sm:$0xff]
      %v211 = vld [vmem:[%s193] sm:$0xf]
      %v212 = vld [vmem:[%s193 + $0x4] sm:$0xf]
      %v213 = vld [vmem:[%s193 + $0x8] sm:$0xf]
      %v214 = vld [vmem:[%s193 + $0xc] sm:$0xf]
      %v215 = vld [vmem:[%s193 + $0x10] sm:$0xf]
      %v216 = vld [vmem:[%s193 + $0x14] sm:$0xf]
      %v217 = vld [vmem:[%s193 + $0x18] sm:$0xf]
      %v218 = vld [vmem:[%s193 + $0x1c] sm:$0xf]
      %v219 = vld [vmem:[%s193 + $0x20] sm:$0xf]
      %v220 = vld [vmem:[%s193 + $0x24] sm:$0xf]
      %v221 = vld [vmem:[%s193 + $0x28] sm:$0xf]
      %v222 = vld [vmem:[%s193 + $0x2c] sm:$0xf]
      %v223 = vld [vmem:[%s193 + $0x30] sm:$0xf]
      %v224 = vld [vmem:[%s193 + $0x34] sm:$0xf]
      %v225 = vld [vmem:[%s193 + $0x38] sm:$0xf]
      %v226 = vld [vmem:[%s193 + $0x3c] sm:$0xf]
      %v227 = vld [vmem:[%s193 + $0x40] sm:$0xf]
      %v228 = vld [vmem:[%s193 + $0x44] sm:$0xf]
      %v229 = vld [vmem:[%s193 + $0x48] sm:$0xf]
      %v230 = vld [vmem:[%s193 + $0x4c] sm:$0xf]
      %v231 = vld [vmem:[%s193 + $0x50] sm:$0xf]
      %v232 = vld [vmem:[%s193 + $0x54] sm:$0xf]
      %v233 = vld [vmem:[%s193 + $0x58] sm:$0xf]
      %v234 = vld [vmem:[%s193 + $0x5c] sm:$0xf]
      %v235 = vld [vmem:[%s193 + $0x60] sm:$0xf]
      %v236 = vld [vmem:[%s193 + $0x64] sm:$0xf]
      %v237 = vld [vmem:[%s193 + $0x68] sm:$0xf]
      %v238 = vld [vmem:[%s193 + $0x6c] sm:$0xf]
      %v239 = vld [vmem:[%s193 + $0x70] sm:$0xf]
      %v240 = vld [vmem:[%s193 + $0x74] sm:$0xf]
      %v241 = vld [vmem:[%s193 + $0x78] sm:$0xf]
      %v242 = vld [vmem:[%s193 + $0x7c] sm:$0xf]
      %v243 = vld [vmem:[%s193 + $0x80] sm:$0xf]
      %v244 = vld [vmem:[%s193 + $0x84] sm:$0xf]
      %v245 = vld [vmem:[%s193 + $0x88] sm:$0xf]
      %v246 = vld [vmem:[%s193 + $0x8c] sm:$0xf]
      %v247 = vld [vmem:[%s193 + $0x90] sm:$0xf]
      %v248 = vld [vmem:[%s193 + $0x94] sm:$0xf]
      %v249 = vld [vmem:[%s193 + $0x98] sm:$0xf]
      %v250 = vld [vmem:[%s193 + $0x9c] sm:$0xf]
      %v251 = vld [vmem:[%s193 + $0xa0] sm:$0xf]
      %v252 = vld [vmem:[%s193 + $0xa4] sm:$0xf]
      %v253 = vld [vmem:[%s193 + $0xa8] sm:$0xf]
      %v254 = vld [vmem:[%s193 + $0xac] sm:$0xf]
      %v255 = vld [vmem:[%s193 + $0xb0] sm:$0xf]
      %v256 = vld [vmem:[%s193 + $0xb4] sm:$0xf]
      %v257 = vld [vmem:[%s193 + $0xb8] sm:$0xf]
      %v258 = vld [vmem:[%s193 + $0xbc] sm:$0xf]
      %v259 = vld [vmem:[%s193 + $0xc0] sm:$0xf]
      %v260 = vld [vmem:[%s193 + $0xc4] sm:$0xf]
      %v261 = vld [vmem:[%s2] sm:$0xff]
      %v262 = vld [vmem:[%s2 + $0x8] sm:$0xff]
      %v263 = vld [vmem:[%s2 + $0x10] sm:$0xff]
      %v264 = vld [vmem:[%s2 + $0x18] sm:$0xff]
      %266 = vset.pattern.permute.xlu0 0
      %267 = vperm.xlu0 %266, %v261
      %v268 = vpop.permute.xlu0 %267
      %271 = vset.pattern.permute.xlu0 0
      %272 = vperm.xlu0 %271, %v262
      %v273 = vpop.permute.xlu0 %272
      %276 = vset.pattern.permute.xlu0 0
      %277 = vperm.xlu0 %276, %v263
      %v278 = vpop.permute.xlu0 %277
      %281 = vset.pattern.permute.xlu0 0
      %282 = vperm.xlu0 %281, %v264
      %v283 = vpop.permute.xlu0 %282
      %v293 = vunpack.c.l.b16 %v203
      %v294 = vunpack.c.h.b16 %v203
      %v295 = vunpack.c.l.b16 %v204
      %v296 = vunpack.c.h.b16 %v204
      %v297 = vunpack.c.l.b16 %v205
      %v298 = vunpack.c.h.b16 %v205
      %v299 = vunpack.c.l.b16 %v206
      %v300 = vunpack.c.h.b16 %v206
      %v301 = vunpack.c.l.b16 %v207
      %v302 = vunpack.c.h.b16 %v207
      %v303 = vunpack.c.l.b16 %v208
      %v304 = vunpack.c.h.b16 %v208
      %v305 = vunpack.c.l.b16 %v209
      %v306 = vunpack.c.h.b16 %v209
      %v307 = vunpack.c.l.b16 %v210
      %v308 = vunpack.c.h.b16 %v210
      %v309 = vpack.c.b16 %v297, %v293
      %v310 = vpack.c.b16 %v298, %v294
      %v311 = vpack.c.b16 %v299, %v295
      %v312 = vpack.c.b16 %v300, %v296
      %v313 = vpack.c.b16 %v305, %v301
      %v314 = vpack.c.b16 %v306, %v302
      %v315 = vpack.c.b16 %v307, %v303
      %v316 = vpack.c.b16 %v308, %v304
      %v373 = vunpack.c.l.b16 %v211
      %v374 = vunpack.c.l.b16 %v212
      %v375 = vunpack.c.l.b16 %v213
      %v376 = vunpack.c.l.b16 %v214
      %v377 = vunpack.c.l.b16 %v215
      %v378 = vunpack.c.l.b16 %v216
      %v379 = vunpack.c.l.b16 %v217
      %v380 = vunpack.c.l.b16 %v218
      %v381 = vunpack.c.l.b16 %v219
      %v382 = vunpack.c.l.b16 %v220
      %v383 = vunpack.c.l.b16 %v221
      %v384 = vunpack.c.l.b16 %v222
      %v385 = vunpack.c.l.b16 %v223
      %v386 = vunpack.c.l.b16 %v224
      %v387 = vunpack.c.l.b16 %v225
      %v388 = vunpack.c.l.b16 %v226
      %v389 = vunpack.c.l.b16 %v227
      %v390 = vunpack.c.l.b16 %v228
      %v391 = vunpack.c.l.b16 %v229
      %v392 = vunpack.c.l.b16 %v230
      %v393 = vunpack.c.l.b16 %v231
      %v394 = vunpack.c.l.b16 %v232
      %v395 = vunpack.c.l.b16 %v233
      %v396 = vunpack.c.l.b16 %v234
      %v397 = vunpack.c.l.b16 %v235
      %v398 = vunpack.c.l.b16 %v236
      %v399 = vunpack.c.l.b16 %v237
      %v400 = vunpack.c.l.b16 %v238
      %v401 = vunpack.c.l.b16 %v239
      %v402 = vunpack.c.l.b16 %v240
      %v403 = vunpack.c.l.b16 %v241
      %v404 = vunpack.c.l.b16 %v242
      %v405 = vunpack.c.l.b16 %v243
      %v406 = vunpack.c.l.b16 %v244
      %v407 = vunpack.c.l.b16 %v245
      %v408 = vunpack.c.l.b16 %v246
      %v409 = vunpack.c.l.b16 %v247
      %v410 = vunpack.c.l.b16 %v248
      %v411 = vunpack.c.l.b16 %v249
      %v412 = vunpack.c.l.b16 %v250
      %v413 = vunpack.c.l.b16 %v251
      %v414 = vunpack.c.l.b16 %v252
      %v415 = vunpack.c.l.b16 %v253
      %v416 = vunpack.c.l.b16 %v254
      %v417 = vunpack.c.l.b16 %v255
      %v418 = vunpack.c.l.b16 %v256
      %v419 = vunpack.c.l.b16 %v257
      %v420 = vunpack.c.l.b16 %v258
      %v421 = vunpack.c.l.b16 %v259
      %v422 = vunpack.c.l.b16 %v260
      %v423 = vpack.c.b16 %v374, %v373
      %v424 = vpack.c.b16 %v376, %v375
      %v425 = vpack.c.b16 %v378, %v377
      %v426 = vpack.c.b16 %v380, %v379
      %v427 = vpack.c.b16 %v382, %v381
      %v428 = vpack.c.b16 %v384, %v383
      %v429 = vpack.c.b16 %v386, %v385
      %v430 = vpack.c.b16 %v388, %v387
      %v431 = vpack.c.b16 %v390, %v389
      %v432 = vpack.c.b16 %v392, %v391
      %v433 = vpack.c.b16 %v394, %v393
      %v434 = vpack.c.b16 %v396, %v395
      %v435 = vpack.c.b16 %v398, %v397
      %v436 = vpack.c.b16 %v400, %v399
      %v437 = vpack.c.b16 %v402, %v401
      %v438 = vpack.c.b16 %v404, %v403
      %v439 = vpack.c.b16 %v406, %v405
      %v440 = vpack.c.b16 %v408, %v407
      %v441 = vpack.c.b16 %v410, %v409
      %v442 = vpack.c.b16 %v412, %v411
      %v443 = vpack.c.b16 %v414, %v413
      %v444 = vpack.c.b16 %v416, %v415
      %v445 = vpack.c.b16 %v418, %v417
      %v446 = vpack.c.b16 %v420, %v419
      %v447 = vpack.c.b16 %v422, %v421
      %vm473 = vcmask 130048
      %v475 = vsel %vm473, %v312, 0
      %v478 = vsel %vm473, %v316, 0
      %480 = vmatpush.bf16.msra.mxu0 %v430
      %481 = vmatpush.bf16.msra.mxu0 %v429
      %482 = vmatpush.bf16.msra.mxu0 %v428
      %483 = vmatpush.bf16.msra.mxu0 %v427
      %484 = vmatpush.bf16.msra.mxu0 %v426
      %485 = vmatpush.bf16.msra.mxu0 %v425
      %486 = vmatpush.bf16.msra.mxu0 %v424
      %487 = vmatpush.bf16.msra.mxu0 %v423
      %488 = vmatmul.bf16.gmra.mxu0 %v309
      %v489 = vpop.f32.mrf.mxu0
      %v490 = vadd.f32 %v268, %v489
      %v491 = vpop.f32.mrf.mxu0
      %v492 = vadd.f32 %v273, %v491
      %493 = vmatmul.bf16.gmra.mxu0 %v313
      %v494 = vpop.f32.mrf.mxu0
      %v495 = vadd.f32 %v278, %v494
      %v496 = vpop.f32.mrf.mxu0
      %v497 = vadd.f32 %v283, %v496
      %498 = vdwg.mxu0
      %499 = vmatpush.bf16.msra.mxu0 %v438
      %500 = vmatpush.bf16.msra.mxu0 %v437
      %501 = vmatpush.bf16.msra.mxu0 %v436
      %502 = vmatpush.bf16.msra.mxu0 %v435
      %503 = vmatpush.bf16.msra.mxu0 %v434
      %504 = vmatpush.bf16.msra.mxu0 %v433
      %505 = vmatpush.bf16.msra.mxu0 %v432
      %506 = vmatpush.bf16.msra.mxu0 %v431
      %507 = vmatmul.bf16.gmra.mxu0 %v310
      %v508 = vpop.f32.mrf.mxu0
      %v509 = vadd.f32 %v490, %v508
      %v510 = vpop.f32.mrf.mxu0
      %v511 = vadd.f32 %v492, %v510
      %512 = vmatmul.bf16.gmra.mxu0 %v314
      %v513 = vpop.f32.mrf.mxu0
      %v514 = vadd.f32 %v495, %v513
      %v515 = vpop.f32.mrf.mxu0
      %v516 = vadd.f32 %v497, %v515
      %517 = vdwg.mxu0
      %518 = vmatpush.bf16.msra.mxu0 %v446
      %519 = vmatpush.bf16.msra.mxu0 %v445
      %520 = vmatpush.bf16.msra.mxu0 %v444
      %521 = vmatpush.bf16.msra.mxu0 %v443
      %522 = vmatpush.bf16.msra.mxu0 %v442
      %523 = vmatpush.bf16.msra.mxu0 %v441
      %524 = vmatpush.bf16.msra.mxu0 %v440
      %525 = vmatpush.bf16.msra.mxu0 %v439
      %526 = vmatmul.bf16.gmra.mxu0 %v311
      %v527 = vpop.f32.mrf.mxu0
      %v528 = vadd.f32 %v509, %v527
      %v529 = vpop.f32.mrf.mxu0
      %v530 = vadd.f32 %v511, %v529
      %531 = vmatmul.bf16.gmra.mxu0 %v315
      %v532 = vpop.f32.mrf.mxu0
      %v533 = vadd.f32 %v514, %v532
      %v534 = vpop.f32.mrf.mxu0
      %v535 = vadd.f32 %v516, %v534
      %536 = vdwg.mxu0
      %537 = vmatpush.bf16.msra.mxu0 0
      %538 = vmatpush.bf16.msra.mxu0 0
      %539 = vmatpush.bf16.msra.mxu0 0
      %540 = vmatpush.bf16.msra.mxu0 0
      %541 = vmatpush.bf16.msra.mxu0 0
      %542 = vmatpush.bf16.msra.mxu0 0
      %543 = vmatpush.bf16.msra.mxu0 0
      %544 = vmatpush.bf16.msra.mxu0 %v447
      %545 = vmatmul.bf16.gmra.mxu0 %v475
      %v546 = vpop.f32.mrf.mxu0
      %v547 = vadd.f32 %v528, %v546
      %v548 = vpop.f32.mrf.mxu0
      %v549 = vadd.f32 %v530, %v548
      %550 = vmatmul.bf16.gmra.mxu0 %v478
      %v551 = vpop.f32.mrf.mxu0
      %v552 = vadd.f32 %v533, %v551
      %v553 = vpop.f32.mrf.mxu0
      %v554 = vadd.f32 %v535, %v553
      %555 = vdwg.mxu0
      %vm556 = vcmp.gt.f32.partialorder %v547, 0.0
      %vm557 = vcmp.gt.f32.partialorder %v549, 0.0
      %vm558 = vcmp.gt.f32.partialorder %v552, 0.0
      %vm559 = vcmp.gt.f32.partialorder %v554, 0.0
      %v560 = vmul.f32 %v547, 0.01
      %v561 = vmul.f32 %v549, 0.01
      %v562 = vmul.f32 %v552, 0.01
      %v563 = vmul.f32 %v554, 0.01
      %v564 = vsel %vm556, %v547, %v560
      %v565 = vsel %vm557, %v549, %v561
      %v566 = vsel %vm558, %v552, %v562
      %v567 = vsel %vm559, %v554, %v563
      %568 = vst.msk [vmem:[%s201] sm:$0xff] %vm473, %v564
      %569 = vst.msk [vmem:[%s201 + $0x8] sm:$0xff] %vm473, %v565
      %570 = vst.msk [vmem:[%s201 + $0x10] sm:$0xff] %vm473, %v566
      %571 = vst.msk [vmem:[%s201 + $0x18] sm:$0xff] %vm473, %v567
      %p572 = scmp.lt.s32.totalorder %s18, 1
      %s573 = scalar_select %p572, %s18, 1
      %p574 = scmp.lt.s32.totalorder %s19, 0
      %s575 = scalar_select %p574, %s19, 0
      %s576 = smul.addr %s573, 4
      %s577 = sadd.s32 %s575, %s576
      %s578 = smul.addr %s577, 8
      %s579 = scalar_lea.vmem %s3, %s578
      // Predicated region
      $region33: #{feature_net_forward.20} parent=31 // pred_check
        %p580 = pneg %p116
      $region34: #{feature_net_forward.20} parent=31 // pred_check_branch
        %582 = sbr.rel (%p580) target = $region36
      $region35: #{feature_net_forward.20} parent=31 // pred_region
        _
      $region36: #{feature_net_forward.20} parent=31 // pred_fallthru
        _
    $region32: #{feature_net_forward.20} parent=5 // pred_fallthru
      _
    %p583 = scmp.le.s32.totalorder 2, %s9
    // Predicated region
    $region37: #{feature_net_forward.20} parent=5 // pred_check
      %p584 = pneg %p583
    $region38: #{feature_net_forward.20} parent=5 // pred_check_branch
      %586 = sbr.rel (%p584) target = $region40
    $region39: #{feature_net_forward.20} parent=5 // pred_region
      %s587 = ssub.s32 %s9, 2
      // Predicated region
      $region41: #{feature_net_forward.20} parent=39 // pred_check
        %p588 = pneg %p122
      $region42: #{feature_net_forward.20} parent=39 // pred_check_branch
        %590 = sbr.rel (%p588) target = $region44
      $region43: #{feature_net_forward.20} parent=39 // pred_region
        %p591 = scmp.lt.s32.totalorder %s20, 1
        %s592 = scalar_select %p591, %s20, 1
        %p593 = scmp.lt.s32.totalorder %s21, 0
        %s594 = scalar_select %p593, %s21, 0
        %s595 = smul.addr %s592, 4
        %s596 = sadd.s32 %s594, %s595
        %s597 = smul.addr %s596, 8
        %s598 = scalar_lea.vmem %s3, %s597
      $region44: #{feature_net_forward.20} parent=39 // pred_fallthru
        _
    $region40: #{feature_net_forward.20} parent=5 // pred_fallthru
      _
  $region6: #{feature_net_forward.20} parent=0 // loop_footer
    %s13 = sadd.s32 1, %s9
  $region7: #{feature_net_forward.20} parent=0 // loop_footer_branch
    %8 = sbr.rel target = $region3
  $region8: #{feature_net_forward.20} parent=0 // loop_exit
    _

// kernel: feature_net_forward.23
$region0: #{feature_net_forward.23}
  #allocation0 [shape = 'u32[]', space=smem, size = 0x4, offset = 0x4, fixed_abs, tag = 'smem constant byte address 0x4 - core index']
  #allocation1 [shape = 'u32[72,128]{1,0:T(1,128)}', space=vmem, size = 0x9000, scoped, tag = 'internal scratch']
  %s0 = inlined_call_operand.vmem [shape: bf16[32,32], index: 0, kind: input, shape index: {}]
  %s1 = inlined_call_operand.vmem [shape: bf16[2,32,16], index: 1, kind: input, shape index: {}]
  %s2 = inlined_call_operand.vmem [shape: f32[32,1], index: 2, kind: input, shape index: {}]
  %s3 = inlined_call_operand.vmem [shape: f32[2,32,16], index: 3, kind: output, shape index: {}]
  %s4 = sld [smem:[#allocation0]]
  $region45: #{feature_net_forward.23} parent=0
    _
  %s6 = ssub.s32 1, %s4
  %s7 = scalar_select 0, %s6, %s4
  loop: start=0, step=1, limit=4
  $region2: #{feature_net_forward.23} parent=0 // loop_pre_header
    _
  $region3: #{feature_net_forward.23} parent=0 // loop_header
    %s9 = sphi 0, %s13
    %p10 = scmp.ge.s32.totalorder %s9, 4
    %s16 = sphi 0, %s28
    %s17 = sphi 0, %s24
    %s18 = sphi 0, %s16
    %s19 = sphi 0, %s17
    %s20 = sphi 0, %s18
    %s21 = sphi 0, %s19
    %s29 = sphi 0, %s29
    %s31 = sphi 0, %s29
    %s32 = sphi 0, %s31
    %s46 = sphi 0, %s32
    %s54 = sphi 0, %s56
    %s57 = sphi 0, %s54
    %s58 = sphi 0, %s57
    %s74 = sphi 0, %s58
    %s78 = sphi 0, %s78
    %s80 = sphi 0, %s78
    %s81 = sphi 0, %s80
    %s95 = sphi 0, %s81
    %s103 = sphi 0, %s105
    %s106 = sphi 0, %s103
    %s107 = sphi 0, %s106
    %s123 = sphi 0, %s107
  $region4: #{feature_net_forward.23} parent=0 // loop_header_branch
    %12 = sbr.rel (%p10) target = $region8
  $region5: #{feature_net_forward.23} parent=0 // loop_body
    %s14 = ssub.s32 %s9, 1
    %s15 = ssub.s32 %s9, 2
    %s22 = sadd.s32 1, %s17
    %p23 = scmp.ge.s32.totalorder %s22, 1
    %s24 = scalar_select %p23, 0, %s22
    %s25 = sadd.s32 1, %s16
    %s26 = scalar_select %p23, %s25, %s16
    %p27 = scmp.ge.s32.totalorder %s26, 2
    %s28 = scalar_select %p27, 0, %s26
    %s30 = sadd.s32 %s29, 1
    %p33 = scmp.eq.s32.totalorder %s9, 1
    %p34 = scmp.ne.s32.totalorder %s29, %s31
    %p35 = scmp.eq.s32.totalorder %s9, 0
    %p36 = por %p34, %p35
    %p37 = scmp.ne.s32.totalorder %s29, %s31
    %p38 = scmp.eq.s32.totalorder %s14, 1
    %p39 = por %p37, %p38
    %p40 = scmp.ne.s32.totalorder %s31, %s32
    %p41 = scmp.eq.s32.totalorder %s14, 0
    %p42 = por %p40, %p41
    %p43 = scmp.ne.s32.totalorder %s31, %s32
    %p44 = scmp.eq.s32.totalorder %s15, 1
    %p45 = por %p43, %p44
    %p47 = scmp.ne.s32.totalorder %s32, %s46
    %p48 = scmp.eq.s32.totalorder %s15, 0
    %p49 = por %p47, %p48
    %s50 = ssub.s32 %s16, %s28
    %s51 = ssub.s32 %s17, %s24
    %s52 = sor.u32 %s50, %s51
    %p53 = scmp.eq.s32.totalorder %s52, 0
    %s55 = sadd.s32 %s54, 1
    %s56 = scalar_select %p53, %s54, %s55
    %p59 = pneg %p53
    %p60 = scmp.eq.s32.totalorder %s9, 1
    %p61 = por %p59, %p60
    %p62 = scmp.ne.s32.totalorder %s54, %s57
    %p63 = scmp.eq.s32.totalorder %s9, 0
    %p64 = por %p62, %p63
    %p65 = scmp.ne.s32.totalorder %s54, %s57
    %p66 = scmp.eq.s32.totalorder %s14, 1
    %p67 = por %p65, %p66
    %p68 = scmp.ne.s32.totalorder %s57, %s58
    %p69 = scmp.eq.s32.totalorder %s14, 0
    %p70 = por %p68, %p69
    %p71 = scmp.ne.s32.totalorder %s57, %s58
    %p72 = scmp.eq.s32.totalorder %s15, 1
    %p73 = por %p71, %p72
    %p75 = scmp.ne.s32.totalorder %s58, %s74
    %p76 = scmp.eq.s32.totalorder %s15, 0
    %p77 = por %p75, %p76
    %s79 = sadd.s32 %s78, 1
    %p82 = scmp.eq.s32.totalorder %s9, 1
    %p83 = scmp.ne.s32.totalorder %s78, %s80
    %p84 = scmp.eq.s32.totalorder %s9, 0
    %p85 = por %p83, %p84
    %p86 = scmp.ne.s32.totalorder %s78, %s80
    %p87 = scmp.eq.s32.totalorder %s14, 1
    %p88 = por %p86, %p87
    %p89 = scmp.ne.s32.totalorder %s80, %s81
    %p90 = scmp.eq.s32.totalorder %s14, 0
    %p91 = por %p89, %p90
    %p92 = scmp.ne.s32.totalorder %s80, %s81
    %p93 = scmp.eq.s32.totalorder %s15, 1
    %p94 = por %p92, %p93
    %p96 = scmp.ne.s32.totalorder %s81, %s95
    %p97 = scmp.eq.s32.totalorder %s15, 0
    %p98 = por %p96, %p97
    %s99 = ssub.s32 %s16, %s28
    %s100 = ssub.s32 %s17, %s24
    %s101 = sor.u32 %s99, %s100
    %p102 = scmp.eq.s32.totalorder %s101, 0
    %s104 = sadd.s32 %s103, 1
    %s105 = scalar_select %p102, %s103, %s104
    %p108 = pneg %p102
    %p109 = scmp.eq.s32.totalorder %s9, 1
    %p110 = por %p108, %p109
    %p111 = scmp.ne.s32.totalorder %s103, %s106
    %p112 = scmp.eq.s32.totalorder %s9, 0
    %p113 = por %p111, %p112
    %p114 = scmp.ne.s32.totalorder %s103, %s106
    %p115 = scmp.eq.s32.totalorder %s14, 1
    %p116 = por %p114, %p115
    %p117 = scmp.ne.s32.totalorder %s106, %s107
    %p118 = scmp.eq.s32.totalorder %s14, 0
    %p119 = por %p117, %p118
    %p120 = scmp.ne.s32.totalorder %s106, %s107
    %p121 = scmp.eq.s32.totalorder %s15, 1
    %p122 = por %p120, %p121
    %p124 = scmp.ne.s32.totalorder %s107, %s123
    %p125 = scmp.eq.s32.totalorder %s15, 0
    %p126 = por %p124, %p125
    %p127 = scmp.le.s32.totalorder 1, %s9
    %p128 = scmp.lt.s32.totalorder %s9, 3
    %p129 = pnand %p127, %p128
    %p130 = pneg %p129
    // Predicated region
    $region9: #{feature_net_forward.23} parent=5 // pred_check
      _
    $region10: #{feature_net_forward.23} parent=5 // pred_check_branch
      %132 = sbr.rel (%p129) target = $region12
    $region11: #{feature_net_forward.23} parent=5 // pred_region
      %s133 = ssub.s32 %s9, 1
      // Predicated region
      $region13: #{feature_net_forward.23} parent=11 // pred_check
        %p134 = pneg %p42
      $region14: #{feature_net_forward.23} parent=11 // pred_check_branch
        %136 = sbr.rel (%p134) target = $region16
      $region15: #{feature_net_forward.23} parent=11 // pred_region
        _
      $region16: #{feature_net_forward.23} parent=11 // pred_fallthru
        _
      // Predicated region
      $region17: #{feature_net_forward.23} parent=11 // pred_check
        %p137 = pneg %p91
      $region18: #{feature_net_forward.23} parent=11 // pred_check_branch
        %139 = sbr.rel (%p137) target = $region20
      $region19: #{feature_net_forward.23} parent=11 // pred_region
        _
      $region20: #{feature_net_forward.23} parent=11 // pred_fallthru
        _
    $region12: #{feature_net_forward.23} parent=5 // pred_fallthru
      _
    %p140 = scmp.lt.s32.totalorder %s9, 2
    // Predicated region
    $region21: #{feature_net_forward.23} parent=5 // pred_check
      %p141 = pneg %p140
    $region22: #{feature_net_forward.23} parent=5 // pred_check_branch
      %143 = sbr.rel (%p141) target = $region24
    $region23: #{feature_net_forward.23} parent=5 // pred_region
      // Predicated region
      $region25: #{feature_net_forward.23} parent=23 // pred_check
        %p144 = pneg %p64
      $region26: #{feature_net_forward.23} parent=23 // pred_check_branch
        %146 = sbr.rel (%p144) target = $region28
      $region27: #{feature_net_forward.23} parent=23 // pred_region
        %p147 = scmp.lt.s32.totalorder %s16, 1
        %s148 = scalar_select %p147, %s16, 1
        %p149 = scmp.lt.s32.totalorder %s17, 0
        %s150 = scalar_select %p149, %s17, 0
        %s151 = smul.addr %s148, 4
        %s152 = sadd.s32 %s150, %s151
        %s153 = smul.addr %s152, 4
        %s154 = scalar_lea.vmem %s1, %s153
      $region28: #{feature_net_forward.23} parent=23 // pred_fallthru
        _
    $region24: #{feature_net_forward.23} parent=5 // pred_fallthru
      _
    %p155 = scmp.le.s32.totalorder 1, %s9
    %p156 = scmp.lt.s32.totalorder %s9, 3
    %p157 = pnand %p155, %p156
    %p158 = pneg %p157
    // Predicated region
    $region29: #{feature_net_forward.23} parent=5 // pred_check
      _
    $region30: #{feature_net_forward.23} parent=5 // pred_check_branch
      %160 = sbr.rel (%p157) target = $region32
    $region31: #{feature_net_forward.23} parent=5 // pred_region
      %s161 = ssub.s32 %s9, 1
      %p162 = pneg %p42
      %p163 = pneg %p39
      %p164 = scmp.lt.s32.totalorder %s18, 1
      %s165 = scalar_select %p164, %s18, 1
      %p166 = scmp.lt.s32.totalorder %s19, 0
      %s167 = scalar_select %p166, %s19, 0
      %s168 = smul.addr %s165, 4
      %s169 = sadd.s32 %s167, %s168
      %s170 = smul.addr %s169, 4
      %s171 = scalar_lea.vmem %s1, %s170
      %p172 = pneg %p70
      %p173 = pneg %p67
      %p174 = pneg %p91
      %p175 = pneg %p88
      %p176 = pneg %p119
      %p177 = pneg %p116
      %p178 = scmp.lt.s32.totalorder %s18, 1
      %s179 = scalar_select %p178, %s18, 1
      %p180 = scmp.lt.s32.totalorder %s19, 0
      %s181 = scalar_select %p180, %s19, 0
      %s182 = smul.addr %s179, 4
      %s183 = sadd.s32 %s181, %s182
      %s184 = smul.addr %s183, 8
      %s185 = scalar_lea.vmem %s3, %s184
      %p186 = scmp.lt.s32.totalorder %s18, 1
      %s187 = scalar_select %p186, %s18, 1
      %p188 = scmp.lt.s32.totalorder %s19, 0
      %s189 = scalar_select %p188, %s19, 0
      %s190 = smul.addr %s187, 4
      %s191 = sadd.s32 %s189, %s190
      %s192 = smul.addr %s191, 4
      %s193 = scalar_lea.vmem %s1, %s192
      %p194 = scmp.lt.s32.totalorder %s18, 1
      %s195 = scalar_select %p194, %s18, 1
      %p196 = scmp.lt.s32.totalorder %s19, 0
      %s197 = scalar_select %p196, %s19, 0
      %s198 = smul.addr %s195, 4
      %s199 = sadd.s32 %s197, %s198
      %s200 = smul.addr %s199, 8
      %s201 = scalar_lea.vmem %s3, %s200
      %v203 = vld [vmem:[%s0] sm:$0xf]
      %v204 = vld [vmem:[%s0 + $0x4] sm:$0xf]
      %v205 = vld [vmem:[%s0 + $0x8] sm:$0xf]
      %v206 = vld [vmem:[%s0 + $0xc] sm:$0xf]
      %v207 = vld [vmem:[%s193] sm:$0xf]
      %v208 = vld [vmem:[%s193 + $0x4] sm:$0xf]
      %v209 = vld [vmem:[%s193 + $0x8] sm:$0xf]
      %v210 = vld [vmem:[%s193 + $0xc] sm:$0xf]
      %v211 = vld [vmem:[%s2] sm:$0xff]
      %v212 = vld [vmem:[%s2 + $0x8] sm:$0xff]
      %v213 = vld [vmem:[%s2 + $0x10] sm:$0xff]
      %v214 = vld [vmem:[%s2 + $0x18] sm:$0xff]
      %216 = vset.pattern.permute.xlu0 0
      %217 = vperm.xlu0 %216, %v211
      %v218 = vpop.permute.xlu0 %217
      %221 = vset.pattern.permute.xlu0 0
      %222 = vperm.xlu0 %221, %v212
      %v223 = vpop.permute.xlu0 %222
      %226 = vset.pattern.permute.xlu0 0
      %227 = vperm.xlu0 %226, %v213
      %v228 = vpop.permute.xlu0 %227
      %231 = vset.pattern.permute.xlu0 0
      %232 = vperm.xlu0 %231, %v214
      %v233 = vpop.permute.xlu0 %232
      %v239 = vunpack.c.l.b16 %v203
      %v240 = vunpack.c.l.b16 %v204
      %v241 = vunpack.c.l.b16 %v205
      %v242 = vunpack.c.l.b16 %v206
      %v243 = vpack.c.b16 %v240, %v239
      %v244 = vpack.c.b16 %v242, %v241
      %v249 = vunpack.c.l.b16 %v207
      %v250 = vunpack.c.l.b16 %v208
      %v251 = vunpack.c.l.b16 %v209
      %v252 = vunpack.c.l.b16 %v210
      %v253 = vpack.c.b16 %v250, %v249
      %v254 = vpack.c.b16 %v252, %v251
      %vm257 = vcmask 261120
      %v259 = vsel %vm257, %v243, 0
      %v262 = vsel %vm257, %v244, 0
      %264 = vmatpush.bf16.msra.mxu0 0
      %265 = vmatpush.bf16.msra.mxu0 0
      %266 = vmatpush.bf16.msra.mxu0 0
      %267 = vmatpush.bf16.msra.mxu0 0
      %268 = vmatpush.bf16.msra.mxu0 0
      %269 = vmatpush.bf16.msra.mxu0 0
      %270 = vmatpush.bf16.msra.mxu0 %v254
      %271 = vmatpush.bf16.msra.mxu0 %v253
      %272 = vmatmul.bf16.gmra.mxu0 %v259
      %v273 = vpop.f32.mrf.mxu0
      %v274 = vadd.f32 %v218, %v273
      %v275 = vpop.f32.mrf.mxu0
      %v276 = vadd.f32 %v223, %v275
      %277 = vmatmul.bf16.gmra.mxu0 %v262
      %v278 = vpop.f32.mrf.mxu0
      %v279 = vadd.f32 %v228, %v278
      %v280 = vpop.f32.mrf.mxu0
      %v281 = vadd.f32 %v233, %v280
      %282 = vdwg.mxu0
      %vm283 = vcmask 130048
      %284 = vst.msk [vmem:[%s201] sm:$0xff] %vm283, %v274
      %285 = vst.msk [vmem:[%s201 + $0x8] sm:$0xff] %vm283, %v276
      %286 = vst.msk [vmem:[%s201 + $0x10] sm:$0xff] %vm283, %v279
      %287 = vst.msk [vmem:[%s201 + $0x18] sm:$0xff] %vm283, %v281
      %p288 = scmp.lt.s32.totalorder %s18, 1
      %s289 = scalar_select %p288, %s18, 1
      %p290 = scmp.lt.s32.totalorder %s19, 0
      %s291 = scalar_select %p290, %s19, 0
      %s292 = smul.addr %s289, 4
      %s293 = sadd.s32 %s291, %s292
      %s294 = smul.addr %s293, 8
      %s295 = scalar_lea.vmem %s3, %s294
      // Predicated region
      $region33: #{feature_net_forward.23} parent=31 // pred_check
        %p296 = pneg %p116
      $region34: #{feature_net_forward.23} parent=31 // pred_check_branch
        %298 = sbr.rel (%p296) target = $region36
      $region35: #{feature_net_forward.23} parent=31 // pred_region
        _
      $region36: #{feature_net_forward.23} parent=31 // pred_fallthru
        _
    $region32: #{feature_net_forward.23} parent=5 // pred_fallthru
      _
    %p299 = scmp.le.s32.totalorder 2, %s9
    // Predicated region
    $region37: #{feature_net_forward.23} parent=5 // pred_check
      %p300 = pneg %p299
    $region38: #{feature_net_forward.23} parent=5 // pred_check_branch
      %302 = sbr.rel (%p300) target = $region40
    $region39: #{feature_net_forward.23} parent=5 // pred_region
      %s303 = ssub.s32 %s9, 2
      // Predicated region
      $region41: #{feature_net_forward.23} parent=39 // pred_check
        %p304 = pneg %p122
      $region42: #{feature_net_forward.23} parent=39 // pred_check_branch
        %306 = sbr.rel (%p304) target = $region44
      $region43: #{feature_net_forward.23} parent=39 // pred_region
        %p307 = scmp.lt.s32.totalorder %s20, 1
        %s308 = scalar_select %p307, %s20, 1
        %p309 = scmp.lt.s32.totalorder %s21, 0
        %s310 = scalar_select %p309, %s21, 0
        %s311 = smul.addr %s308, 4
        %s312 = sadd.s32 %s310, %s311
        %s313 = smul.addr %s312, 8
        %s314 = scalar_lea.vmem %s3, %s313
      $region44: #{feature_net_forward.23} parent=39 // pred_fallthru
        _
    $region40: #{feature_net_forward.23} parent=5 // pred_fallthru
      _
  $region6: #{feature_net_forward.23} parent=0 // loop_footer
    %s13 = sadd.s32 1, %s9
  $region7: #{feature_net_forward.23} parent=0 // loop_footer_branch
    %8 = sbr.rel target = $region3
  $region8: #{feature_net_forward.23} parent=0 // loop_exit
    _

// kernel: feature_net_forward.21
$region0: #{feature_net_forward.21}
  #allocation0 [shape = 'u32[]', space=smem, size = 0x4, offset = 0x4, fixed_abs, tag = 'smem constant byte address 0x4 - core index']
  #allocation1 [shape = 'u32[72,128]{1,0:T(1,128)}', space=vmem, size = 0x9000, scoped, tag = 'internal scratch']
  %s0 = inlined_call_operand.vmem [shape: bf16[32,288], index: 0, kind: input, shape index: {}]
  %s1 = inlined_call_operand.vmem [shape: bf16[2,288,16], index: 1, kind: input, shape index: {}]
  %s2 = inlined_call_operand.vmem [shape: f32[32,1], index: 2, kind: input, shape index: {}]
  %s3 = inlined_call_operand.vmem [shape: f32[2,32,16], index: 3, kind: output, shape index: {}]
  %s4 = sld [smem:[#allocation0]]
  $region45: #{feature_net_forward.21} parent=0
    _
  %s6 = ssub.s32 1, %s4
  %s7 = scalar_select 0, %s6, %s4
  loop: start=0, step=1, limit=4
  $region2: #{feature_net_forward.21} parent=0 // loop_pre_header
    _
  $region3: #{feature_net_forward.21} parent=0 // loop_header
    %s9 = sphi 0, %s13
    %p10 = scmp.ge.s32.totalorder %s9, 4
    %s16 = sphi 0, %s28
    %s17 = sphi 0, %s24
    %s18 = sphi 0, %s16
    %s19 = sphi 0, %s17
    %s20 = sphi 0, %s18
    %s21 = sphi 0, %s19
    %s29 = sphi 0, %s29
    %s31 = sphi 0, %s29
    %s32 = sphi 0, %s31
    %s46 = sphi 0, %s32
    %s54 = sphi 0, %s56
    %s57 = sphi 0, %s54
    %s58 = sphi 0, %s57
    %s74 = sphi 0, %s58
    %s78 = sphi 0, %s78
    %s80 = sphi 0, %s78
    %s81 = sphi 0, %s80
    %s95 = sphi 0, %s81
    %s103 = sphi 0, %s105
    %s106 = sphi 0, %s103
    %s107 = sphi 0, %s106
    %s123 = sphi 0, %s107
  $region4: #{feature_net_forward.21} parent=0 // loop_header_branch
    %12 = sbr.rel (%p10) target = $region8
  $region5: #{feature_net_forward.21} parent=0 // loop_body
    %s14 = ssub.s32 %s9, 1
    %s15 = ssub.s32 %s9, 2
    %s22 = sadd.s32 1, %s17
    %p23 = scmp.ge.s32.totalorder %s22, 1
    %s24 = scalar_select %p23, 0, %s22
    %s25 = sadd.s32 1, %s16
    %s26 = scalar_select %p23, %s25, %s16
    %p27 = scmp.ge.s32.totalorder %s26, 2
    %s28 = scalar_select %p27, 0, %s26
    %s30 = sadd.s32 %s29, 1
    %p33 = scmp.eq.s32.totalorder %s9, 1
    %p34 = scmp.ne.s32.totalorder %s29, %s31
    %p35 = scmp.eq.s32.totalorder %s9, 0
    %p36 = por %p34, %p35
    %p37 = scmp.ne.s32.totalorder %s29, %s31
    %p38 = scmp.eq.s32.totalorder %s14, 1
    %p39 = por %p37, %p38
    %p40 = scmp.ne.s32.totalorder %s31, %s32
    %p41 = scmp.eq.s32.totalorder %s14, 0
    %p42 = por %p40, %p41
    %p43 = scmp.ne.s32.totalorder %s31, %s32
    %p44 = scmp.eq.s32.totalorder %s15, 1
    %p45 = por %p43, %p44
    %p47 = scmp.ne.s32.totalorder %s32, %s46
    %p48 = scmp.eq.s32.totalorder %s15, 0
    %p49 = por %p47, %p48
    %s50 = ssub.s32 %s16, %s28
    %s51 = ssub.s32 %s17, %s24
    %s52 = sor.u32 %s50, %s51
    %p53 = scmp.eq.s32.totalorder %s52, 0
    %s55 = sadd.s32 %s54, 1
    %s56 = scalar_select %p53, %s54, %s55
    %p59 = pneg %p53
    %p60 = scmp.eq.s32.totalorder %s9, 1
    %p61 = por %p59, %p60
    %p62 = scmp.ne.s32.totalorder %s54, %s57
    %p63 = scmp.eq.s32.totalorder %s9, 0
    %p64 = por %p62, %p63
    %p65 = scmp.ne.s32.totalorder %s54, %s57
    %p66 = scmp.eq.s32.totalorder %s14, 1
    %p67 = por %p65, %p66
    %p68 = scmp.ne.s32.totalorder %s57, %s58
    %p69 = scmp.eq.s32.totalorder %s14, 0
    %p70 = por %p68, %p69
    %p71 = scmp.ne.s32.totalorder %s57, %s58
    %p72 = scmp.eq.s32.totalorder %s15, 1
    %p73 = por %p71, %p72
    %p75 = scmp.ne.s32.totalorder %s58, %s74
    %p76 = scmp.eq.s32.totalorder %s15, 0
    %p77 = por %p75, %p76
    %s79 = sadd.s32 %s78, 1
    %p82 = scmp.eq.s32.totalorder %s9, 1
    %p83 = scmp.ne.s32.totalorder %s78, %s80
    %p84 = scmp.eq.s32.totalorder %s9, 0
    %p85 = por %p83, %p84
    %p86 = scmp.ne.s32.totalorder %s78, %s80
    %p87 = scmp.eq.s32.totalorder %s14, 1
    %p88 = por %p86, %p87
    %p89 = scmp.ne.s32.totalorder %s80, %s81
    %p90 = scmp.eq.s32.totalorder %s14, 0
    %p91 = por %p89, %p90
    %p92 = scmp.ne.s32.totalorder %s80, %s81
    %p93 = scmp.eq.s32.totalorder %s15, 1
    %p94 = por %p92, %p93
    %p96 = scmp.ne.s32.totalorder %s81, %s95
    %p97 = scmp.eq.s32.totalorder %s15, 0
    %p98 = por %p96, %p97
    %s99 = ssub.s32 %s16, %s28
    %s100 = ssub.s32 %s17, %s24
    %s101 = sor.u32 %s99, %s100
    %p102 = scmp.eq.s32.totalorder %s101, 0
    %s104 = sadd.s32 %s103, 1
    %s105 = scalar_select %p102, %s103, %s104
    %p108 = pneg %p102
    %p109 = scmp.eq.s32.totalorder %s9, 1
    %p110 = por %p108, %p109
    %p111 = scmp.ne.s32.totalorder %s103, %s106
    %p112 = scmp.eq.s32.totalorder %s9, 0
    %p113 = por %p111, %p112
    %p114 = scmp.ne.s32.totalorder %s103, %s106
    %p115 = scmp.eq.s32.totalorder %s14, 1
    %p116 = por %p114, %p115
    %p117 = scmp.ne.s32.totalorder %s106, %s107
    %p118 = scmp.eq.s32.totalorder %s14, 0
    %p119 = por %p117, %p118
    %p120 = scmp.ne.s32.totalorder %s106, %s107
    %p121 = scmp.eq.s32.totalorder %s15, 1
    %p122 = por %p120, %p121
    %p124 = scmp.ne.s32.totalorder %s107, %s123
    %p125 = scmp.eq.s32.totalorder %s15, 0
    %p126 = por %p124, %p125
    %p127 = scmp.le.s32.totalorder 1, %s9
    %p128 = scmp.lt.s32.totalorder %s9, 3
    %p129 = pnand %p127, %p128
    %p130 = pneg %p129
    // Predicated region
    $region9: #{feature_net_forward.21} parent=5 // pred_check
      _
    $region10: #{feature_net_forward.21} parent=5 // pred_check_branch
      %132 = sbr.rel (%p129) target = $region12
    $region11: #{feature_net_forward.21} parent=5 // pred_region
      %s133 = ssub.s32 %s9, 1
      // Predicated region
      $region13: #{feature_net_forward.21} parent=11 // pred_check
        %p134 = pneg %p42
      $region14: #{feature_net_forward.21} parent=11 // pred_check_branch
        %136 = sbr.rel (%p134) target = $region16
      $region15: #{feature_net_forward.21} parent=11 // pred_region
        _
      $region16: #{feature_net_forward.21} parent=11 // pred_fallthru
        _
      // Predicated region
      $region17: #{feature_net_forward.21} parent=11 // pred_check
        %p137 = pneg %p91
      $region18: #{feature_net_forward.21} parent=11 // pred_check_branch
        %139 = sbr.rel (%p137) target = $region20
      $region19: #{feature_net_forward.21} parent=11 // pred_region
        _
      $region20: #{feature_net_forward.21} parent=11 // pred_fallthru
        _
    $region12: #{feature_net_forward.21} parent=5 // pred_fallthru
      _
    %p140 = scmp.lt.s32.totalorder %s9, 2
    // Predicated region
    $region21: #{feature_net_forward.21} parent=5 // pred_check
      %p141 = pneg %p140
    $region22: #{feature_net_forward.21} parent=5 // pred_check_branch
      %143 = sbr.rel (%p141) target = $region24
    $region23: #{feature_net_forward.21} parent=5 // pred_region
      // Predicated region
      $region25: #{feature_net_forward.21} parent=23 // pred_check
        %p144 = pneg %p64
      $region26: #{feature_net_forward.21} parent=23 // pred_check_branch
        %146 = sbr.rel (%p144) target = $region28
      $region27: #{feature_net_forward.21} parent=23 // pred_region
        %p147 = scmp.lt.s32.totalorder %s16, 1
        %s148 = scalar_select %p147, %s16, 1
        %p149 = scmp.lt.s32.totalorder %s17, 0
        %s150 = scalar_select %p149, %s17, 0
        %s151 = smul.addr %s148, 36
        %s152 = sadd.s32 %s150, %s151
        %s153 = smul.addr %s152, 4
        %s154 = scalar_lea.vmem %s1, %s153
      $region28: #{feature_net_forward.21} parent=23 // pred_fallthru
        _
    $region24: #{feature_net_forward.21} parent=5 // pred_fallthru
      _
    %p155 = scmp.le.s32.totalorder 1, %s9
    %p156 = scmp.lt.s32.totalorder %s9, 3
    %p157 = pnand %p155, %p156
    %p158 = pneg %p157
    // Predicated region
    $region29: #{feature_net_forward.21} parent=5 // pred_check
      _
    $region30: #{feature_net_forward.21} parent=5 // pred_check_branch
      %160 = sbr.rel (%p157) target = $region32
    $region31: #{feature_net_forward.21} parent=5 // pred_region
      %s161 = ssub.s32 %s9, 1
      %p162 = pneg %p42
      %p163 = pneg %p39
      %p164 = scmp.lt.s32.totalorder %s18, 1
      %s165 = scalar_select %p164, %s18, 1
      %p166 = scmp.lt.s32.totalorder %s19, 0
      %s167 = scalar_select %p166, %s19, 0
      %s168 = smul.addr %s165, 36
      %s169 = sadd.s32 %s167, %s168
      %s170 = smul.addr %s169, 4
      %s171 = scalar_lea.vmem %s1, %s170
      %p172 = pneg %p70
      %p173 = pneg %p67
      %p174 = pneg %p91
      %p175 = pneg %p88
      %p176 = pneg %p119
      %p177 = pneg %p116
      %p178 = scmp.lt.s32.totalorder %s18, 1
      %s179 = scalar_select %p178, %s18, 1
      %p180 = scmp.lt.s32.totalorder %s19, 0
      %s181 = scalar_select %p180, %s19, 0
      %s182 = smul.addr %s179, 4
      %s183 = sadd.s32 %s181, %s182
      %s184 = smul.addr %s183, 8
      %s185 = scalar_lea.vmem %s3, %s184
      %p186 = scmp.lt.s32.totalorder %s18, 1
      %s187 = scalar_select %p186, %s18, 1
      %p188 = scmp.lt.s32.totalorder %s19, 0
      %s189 = scalar_select %p188, %s19, 0
      %s190 = smul.addr %s187, 36
      %s191 = sadd.s32 %s189, %s190
      %s192 = smul.addr %s191, 4
      %s193 = scalar_lea.vmem %s1, %s192
      %p194 = scmp.lt.s32.totalorder %s18, 1
      %s195 = scalar_select %p194, %s18, 1
      %p196 = scmp.lt.s32.totalorder %s19, 0
      %s197 = scalar_select %p196, %s19, 0
      %s198 = smul.addr %s195, 4
      %s199 = sadd.s32 %s197, %s198
      %s200 = smul.addr %s199, 8
      %s201 = scalar_lea.vmem %s3, %s200
      %v203 = vld [vmem:[%s0] sm:$0xff]
      %v204 = vld [vmem:[%s0 + $0x8] sm:$0xf]
      %v205 = vld [vmem:[%s0 + $0xc] sm:$0xff]
      %v206 = vld [vmem:[%s0 + $0x14] sm:$0xf]
      %v207 = vld [vmem:[%s0 + $0x18] sm:$0xff]
      %v208 = vld [vmem:[%s0 + $0x20] sm:$0xf]
      %v209 = vld [vmem:[%s0 + $0x24] sm:$0xff]
      %v210 = vld [vmem:[%s0 + $0x2c] sm:$0xf]
      %v211 = vld [vmem:[%s193] sm:$0xf]
      %v212 = vld [vmem:[%s193 + $0x4] sm:$0xf]
      %v213 = vld [vmem:[%s193 + $0x8] sm:$0xf]
      %v214 = vld [vmem:[%s193 + $0xc] sm:$0xf]
      %v215 = vld [vmem:[%s193 + $0x10] sm:$0xf]
      %v216 = vld [vmem:[%s193 + $0x14] sm:$0xf]
      %v217 = vld [vmem:[%s193 + $0x18] sm:$0xf]
      %v218 = vld [vmem:[%s193 + $0x1c] sm:$0xf]
      %v219 = vld [vmem:[%s193 + $0x20] sm:$0xf]
      %v220 = vld [vmem:[%s193 + $0x24] sm:$0xf]
      %v221 = vld [vmem:[%s193 + $0x28] sm:$0xf]
      %v222 = vld [vmem:[%s193 + $0x2c] sm:$0xf]
      %v223 = vld [vmem:[%s193 + $0x30] sm:$0xf]
      %v224 = vld [vmem:[%s193 + $0x34] sm:$0xf]
      %v225 = vld [vmem:[%s193 + $0x38] sm:$0xf]
      %v226 = vld [vmem:[%s193 + $0x3c] sm:$0xf]
      %v227 = vld [vmem:[%s193 + $0x40] sm:$0xf]
      %v228 = vld [vmem:[%s193 + $0x44] sm:$0xf]
      %v229 = vld [vmem:[%s193 + $0x48] sm:$0xf]
      %v230 = vld [vmem:[%s193 + $0x4c] sm:$0xf]
      %v231 = vld [vmem:[%s193 + $0x50] sm:$0xf]
      %v232 = vld [vmem:[%s193 + $0x54] sm:$0xf]
      %v233 = vld [vmem:[%s193 + $0x58] sm:$0xf]
      %v234 = vld [vmem:[%s193 + $0x5c] sm:$0xf]
      %v235 = vld [vmem:[%s193 + $0x60] sm:$0xf]
      %v236 = vld [vmem:[%s193 + $0x64] sm:$0xf]
      %v237 = vld [vmem:[%s193 + $0x68] sm:$0xf]
      %v238 = vld [vmem:[%s193 + $0x6c] sm:$0xf]
      %v239 = vld [vmem:[%s193 + $0x70] sm:$0xf]
      %v240 = vld [vmem:[%s193 + $0x74] sm:$0xf]
      %v241 = vld [vmem:[%s193 + $0x78] sm:$0xf]
      %v242 = vld [vmem:[%s193 + $0x7c] sm:$0xf]
      %v243 = vld [vmem:[%s193 + $0x80] sm:$0xf]
      %v244 = vld [vmem:[%s193 + $0x84] sm:$0xf]
      %v245 = vld [vmem:[%s193 + $0x88] sm:$0xf]
      %v246 = vld [vmem:[%s193 + $0x8c] sm:$0xf]
      %v247 = vld [vmem:[%s2] sm:$0xff]
      %v248 = vld [vmem:[%s2 + $0x8] sm:$0xff]
      %v249 = vld [vmem:[%s2 + $0x10] sm:$0xff]
      %v250 = vld [vmem:[%s2 + $0x18] sm:$0xff]
      %252 = vset.pattern.permute.xlu0 0
      %253 = vperm.xlu0 %252, %v247
      %v254 = vpop.permute.xlu0 %253
      %257 = vset.pattern.permute.xlu0 0
      %258 = vperm.xlu0 %257, %v248
      %v259 = vpop.permute.xlu0 %258
      %262 = vset.pattern.permute.xlu0 0
      %263 = vperm.xlu0 %262, %v249
      %v264 = vpop.permute.xlu0 %263
      %267 = vset.pattern.permute.xlu0 0
      %268 = vperm.xlu0 %267, %v250
      %v269 = vpop.permute.xlu0 %268
      %v279 = vunpack.c.l.b16 %v203
      %v280 = vunpack.c.h.b16 %v203
      %v281 = vunpack.c.l.b16 %v204
      %v282 = vunpack.c.l.b16 %v205
      %v283 = vunpack.c.h.b16 %v205
      %v284 = vunpack.c.l.b16 %v206
      %v285 = vunpack.c.l.b16 %v207
      %v286 = vunpack.c.h.b16 %v207
      %v287 = vunpack.c.l.b16 %v208
      %v288 = vunpack.c.l.b16 %v209
      %v289 = vunpack.c.h.b16 %v209
      %v290 = vunpack.c.l.b16 %v210
      %v291 = vpack.c.b16 %v282, %v279
      %v292 = vpack.c.b16 %v283, %v280
      %v293 = vpack.c.b16 %v284, %v281
      %v294 = vpack.c.b16 %v288, %v285
      %v295 = vpack.c.b16 %v289, %v286
      %v296 = vpack.c.b16 %v290, %v287
      %v337 = vunpack.c.l.b16 %v211
      %v338 = vunpack.c.l.b16 %v212
      %v339 = vunpack.c.l.b16 %v213
      %v340 = vunpack.c.l.b16 %v214
      %v341 = vunpack.c.l.b16 %v215
      %v342 = vunpack.c.l.b16 %v216
      %v343 = vunpack.c.l.b16 %v217
      %v344 = vunpack.c.l.b16 %v218
      %v345 = vunpack.c.l.b16 %v219
      %v346 = vunpack.c.l.b16 %v220
      %v347 = vunpack.c.l.b16 %v221
      %v348 = vunpack.c.l.b16 %v222
      %v349 = vunpack.c.l.b16 %v223
      %v350 = vunpack.c.l.b16 %v224
      %v351 = vunpack.c.l.b16 %v225
      %v352 = vunpack.c.l.b16 %v226
      %v353 = vunpack.c.l.b16 %v227
      %v354 = vunpack.c.l.b16 %v228
      %v355 = vunpack.c.l.b16 %v229
      %v356 = vunpack.c.l.b16 %v230
      %v357 = vunpack.c.l.b16 %v231
      %v358 = vunpack.c.l.b16 %v232
      %v359 = vunpack.c.l.b16 %v233
      %v360 = vunpack.c.l.b16 %v234
      %v361 = vunpack.c.l.b16 %v235
      %v362 = vunpack.c.l.b16 %v236
      %v363 = vunpack.c.l.b16 %v237
      %v364 = vunpack.c.l.b16 %v238
      %v365 = vunpack.c.l.b16 %v239
      %v366 = vunpack.c.l.b16 %v240
      %v367 = vunpack.c.l.b16 %v241
      %v368 = vunpack.c.l.b16 %v242
      %v369 = vunpack.c.l.b16 %v243
      %v370 = vunpack.c.l.b16 %v244
      %v371 = vunpack.c.l.b16 %v245
      %v372 = vunpack.c.l.b16 %v246
      %v373 = vpack.c.b16 %v338, %v337
      %v374 = vpack.c.b16 %v340, %v339
      %v375 = vpack.c.b16 %v342, %v341
      %v376 = vpack.c.b16 %v344, %v343
      %v377 = vpack.c.b16 %v346, %v345
      %v378 = vpack.c.b16 %v348, %v347
      %v379 = vpack.c.b16 %v350, %v349
      %v380 = vpack.c.b16 %v352, %v351
      %v381 = vpack.c.b16 %v354, %v353
      %v382 = vpack.c.b16 %v356, %v355
      %v383 = vpack.c.b16 %v358, %v357
      %v384 = vpack.c.b16 %v360, %v359
      %v385 = vpack.c.b16 %v362, %v361
      %v386 = vpack.c.b16 %v364, %v363
      %v387 = vpack.c.b16 %v366, %v365
      %v388 = vpack.c.b16 %v368, %v367
      %v389 = vpack.c.b16 %v370, %v369
      %v390 = vpack.c.b16 %v372, %v371
      %vm409 = vcmask 261120
      %v411 = vsel %vm409, %v293, 0
      %v414 = vsel %vm409, %v296, 0
      %416 = vmatpush.bf16.msra.mxu0 %v380
      %417 = vmatpush.bf16.msra.mxu0 %v379
      %418 = vmatpush.bf16.msra.mxu0 %v378
      %419 = vmatpush.bf16.msra.mxu0 %v377
      %420 = vmatpush.bf16.msra.mxu0 %v376
      %421 = vmatpush.bf16.msra.mxu0 %v375
      %422 = vmatpush.bf16.msra.mxu0 %v374
      %423 = vmatpush.bf16.msra.mxu0 %v373
      %424 = vmatmul.bf16.gmra.mxu0 %v291
      %v425 = vpop.f32.mrf.mxu0
      %v426 = vadd.f32 %v254, %v425
      %v427 = vpop.f32.mrf.mxu0
      %v428 = vadd.f32 %v259, %v427
      %429 = vmatmul.bf16.gmra.mxu0 %v294
      %v430 = vpop.f32.mrf.mxu0
      %v431 = vadd.f32 %v264, %v430
      %v432 = vpop.f32.mrf.mxu0
      %v433 = vadd.f32 %v269, %v432
      %434 = vdwg.mxu0
      %435 = vmatpush.bf16.msra.mxu0 %v388
      %436 = vmatpush.bf16.msra.mxu0 %v387
      %437 = vmatpush.bf16.msra.mxu0 %v386
      %438 = vmatpush.bf16.msra.mxu0 %v385
      %439 = vmatpush.bf16.msra.mxu0 %v384
      %440 = vmatpush.bf16.msra.mxu0 %v383
      %441 = vmatpush.bf16.msra.mxu0 %v382
      %442 = vmatpush.bf16.msra.mxu0 %v381
      %443 = vmatmul.bf16.gmra.mxu0 %v292
      %v444 = vpop.f32.mrf.mxu0
      %v445 = vadd.f32 %v426, %v444
      %v446 = vpop.f32.mrf.mxu0
      %v447 = vadd.f32 %v428, %v446
      %448 = vmatmul.bf16.gmra.mxu0 %v295
      %v449 = vpop.f32.mrf.mxu0
      %v450 = vadd.f32 %v431, %v449
      %v451 = vpop.f32.mrf.mxu0
      %v452 = vadd.f32 %v433, %v451
      %453 = vdwg.mxu0
      %454 = vmatpush.bf16.msra.mxu0 0
      %455 = vmatpush.bf16.msra.mxu0 0
      %456 = vmatpush.bf16.msra.mxu0 0
      %457 = vmatpush.bf16.msra.mxu0 0
      %458 = vmatpush.bf16.msra.mxu0 0
      %459 = vmatpush.bf16.msra.mxu0 0
      %460 = vmatpush.bf16.msra.mxu0 %v390
      %461 = vmatpush.bf16.msra.mxu0 %v389
      %462 = vmatmul.bf16.gmra.mxu0 %v411
      %v463 = vpop.f32.mrf.mxu0
      %v464 = vadd.f32 %v445, %v463
      %v465 = vpop.f32.mrf.mxu0
      %v466 = vadd.f32 %v447, %v465
      %467 = vmatmul.bf16.gmra.mxu0 %v414
      %v468 = vpop.f32.mrf.mxu0
      %v469 = vadd.f32 %v450, %v468
      %v470 = vpop.f32.mrf.mxu0
      %v471 = vadd.f32 %v452, %v470
      %472 = vdwg.mxu0
      %vm473 = vcmp.gt.f32.partialorder %v464, 0.0
      %vm474 = vcmp.gt.f32.partialorder %v466, 0.0
      %vm475 = vcmp.gt.f32.partialorder %v469, 0.0
      %vm476 = vcmp.gt.f32.partialorder %v471, 0.0
      %v477 = vmul.f32 %v464, 0.01
      %v478 = vmul.f32 %v466, 0.01
      %v479 = vmul.f32 %v469, 0.01
      %v480 = vmul.f32 %v471, 0.01
      %v481 = vsel %vm473, %v464, %v477
      %v482 = vsel %vm474, %v466, %v478
      %v483 = vsel %vm475, %v469, %v479
      %v484 = vsel %vm476, %v471, %v480
      %vm485 = vcmask 130048
      %486 = vst.msk [vmem:[%s201] sm:$0xff] %vm485, %v481
      %487 = vst.msk [vmem:[%s201 + $0x8] sm:$0xff] %vm485, %v482
      %488 = vst.msk [vmem:[%s201 + $0x10] sm:$0xff] %vm485, %v483
      %489 = vst.msk [vmem:[%s201 + $0x18] sm:$0xff] %vm485, %v484
      %p490 = scmp.lt.s32.totalorder %s18, 1
      %s491 = scalar_select %p490, %s18, 1
      %p492 = scmp.lt.s32.totalorder %s19, 0
      %s493 = scalar_select %p492, %s19, 0
      %s494 = smul.addr %s491, 4
      %s495 = sadd.s32 %s493, %s494
      %s496 = smul.addr %s495, 8
      %s497 = scalar_lea.vmem %s3, %s496
      // Predicated region
      $region33: #{feature_net_forward.21} parent=31 // pred_check
        %p498 = pneg %p116
      $region34: #{feature_net_forward.21} parent=31 // pred_check_branch
        %500 = sbr.rel (%p498) target = $region36
      $region35: #{feature_net_forward.21} parent=31 // pred_region
        _
      $region36: #{feature_net_forward.21} parent=31 // pred_fallthru
        _
    $region32: #{feature_net_forward.21} parent=5 // pred_fallthru
      _
    %p501 = scmp.le.s32.totalorder 2, %s9
    // Predicated region
    $region37: #{feature_net_forward.21} parent=5 // pred_check
      %p502 = pneg %p501
    $region38: #{feature_net_forward.21} parent=5 // pred_check_branch
      %504 = sbr.rel (%p502) target = $region40
    $region39: #{feature_net_forward.21} parent=5 // pred_region
      %s505 = ssub.s32 %s9, 2
      // Predicated region
      $region41: #{feature_net_forward.21} parent=39 // pred_check
        %p506 = pneg %p122
      $region42: #{feature_net_forward.21} parent=39 // pred_check_branch
        %508 = sbr.rel (%p506) target = $region44
      $region43: #{feature_net_forward.21} parent=39 // pred_region
        %p509 = scmp.lt.s32.totalorder %s20, 1
        %s510 = scalar_select %p509, %s20, 1
        %p511 = scmp.lt.s32.totalorder %s21, 0
        %s512 = scalar_select %p511, %s21, 0
        %s513 = smul.addr %s510, 4
        %s514 = sadd.s32 %s512, %s513
        %s515 = smul.addr %s514, 8
        %s516 = scalar_lea.vmem %s3, %s515
      $region44: #{feature_net_forward.21} parent=39 // pred_fallthru
        _
    $region40: #{feature_net_forward.21} parent=5 // pred_fallthru
      _
  $region6: #{feature_net_forward.21} parent=0 // loop_footer
    %s13 = sadd.s32 1, %s9
  $region7: #{feature_net_forward.21} parent=0 // loop_footer_branch
    %8 = sbr.rel target = $region3
  $region8: #{feature_net_forward.21} parent=0 // loop_exit
    _

// kernel: feature_net_forward.25
$region0: #{feature_net_forward.25}
  #allocation0 [shape = 'u32[]', space=smem, size = 0x4, offset = 0x4, fixed_abs, tag = 'smem constant byte address 0x4 - core index']
  #allocation1 [shape = 'u32[72,128]{1,0:T(1,128)}', space=vmem, size = 0x9000, scoped, tag = 'internal scratch']
  %s0 = inlined_call_operand.vmem [shape: f32[8,4], index: 0, kind: input, shape index: {}]
  %s1 = inlined_call_operand.vmem [shape: f32[4,8], index: 1, kind: input, shape index: {}]
  %s2 = inlined_call_operand.vmem [shape: f32[64,4,4], index: 2, kind: input, shape index: {}]
  %s3 = inlined_call_operand.vmem [shape: f32[64,8,8], index: 3, kind: input, shape index: {}]
  %s4 = inlined_call_operand.vmem [shape: f32[64,8,8], index: 4, kind: output, shape index: {}]
  %s5 = sld [smem:[#allocation0]]
  $region49: #{feature_net_forward.25} parent=0
    _
  %s7 = ssub.s32 1, %s5
  %s8 = scalar_select 0, %s7, %s5
  loop: start=0, step=1, limit=10
  $region2: #{feature_net_forward.25} parent=0 // loop_pre_header
    _
  $region3: #{feature_net_forward.25} parent=0 // loop_header
    %s10 = sphi 0, %s14
    %p11 = scmp.ge.s32.totalorder %s10, 10
    %s18 = sphi 0, %s18
    %s20 = sphi 0, %s18
    %s21 = sphi 0, %s20
    %s35 = sphi 0, %s21
    %s39 = sphi 0, %s39
    %s41 = sphi 0, %s39
    %s42 = sphi 0, %s41
    %s56 = sphi 0, %s42
    %s62 = sphi 0, %s64
    %s65 = sphi 0, %s62
    %s66 = sphi 0, %s65
    %s82 = sphi 0, %s66
    %s88 = sphi 0, %s90
    %s91 = sphi 0, %s88
    %s92 = sphi 0, %s91
    %s108 = sphi 0, %s92
    %s114 = sphi 0, %s116
    %s117 = sphi 0, %s114
    %s118 = sphi 0, %s117
    %s134 = sphi 0, %s118
  $region4: #{feature_net_forward.25} parent=0 // loop_header_branch
    %13 = sbr.rel (%p11) target = $region8
  $region5: #{feature_net_forward.25} parent=0 // loop_body
    %s15 = ssub.s32 %s10, 1
    %s16 = ssub.s32 %s10, 2
    %s17 = sadd.s32 %s10, 1
    %s19 = sadd.s32 %s18, 1
    %p22 = scmp.eq.s32.totalorder %s10, 7
    %p23 = scmp.ne.s32.totalorder %s18, %s20
    %p24 = scmp.eq.s32.totalorder %s10, 0
    %p25 = por %p23, %p24
    %p26 = scmp.ne.s32.totalorder %s18, %s20
    %p27 = scmp.eq.s32.totalorder %s15, 7
    %p28 = por %p26, %p27
    %p29 = scmp.ne.s32.totalorder %s20, %s21
    %p30 = scmp.eq.s32.totalorder %s15, 0
    %p31 = por %p29, %p30
    %p32 = scmp.ne.s32.totalorder %s20, %s21
    %p33 = scmp.eq.s32.totalorder %s16, 7
    %p34 = por %p32, %p33
    %p36 = scmp.ne.s32.totalorder %s21, %s35
    %p37 = scmp.eq.s32.totalorder %s16, 0
    %p38 = por %p36, %p37
    %s40 = sadd.s32 %s39, 1
    %p43 = scmp.eq.s32.totalorder %s10, 7
    %p44 = scmp.ne.s32.totalorder %s39, %s41
    %p45 = scmp.eq.s32.totalorder %s10, 0
    %p46 = por %p44, %p45
    %p47 = scmp.ne.s32.totalorder %s39, %s41
    %p48 = scmp.eq.s32.totalorder %s15, 7
    %p49 = por %p47, %p48
    %p50 = scmp.ne.s32.totalorder %s41, %s42
    %p51 = scmp.eq.s32.totalorder %s15, 0
    %p52 = por %p50, %p51
    %p53 = scmp.ne.s32.totalorder %s41, %s42
    %p54 = scmp.eq.s32.totalorder %s16, 7
    %p55 = por %p53, %p54
    %p57 = scmp.ne.s32.totalorder %s42, %s56
    %p58 = scmp.eq.s32.totalorder %s16, 0
    %p59 = por %p57, %p58
    %s60 = ssub.s32 %s10, %s17
    %p61 = scmp.eq.s32.totalorder %s60, 0
    %s63 = sadd.s32 %s62, 1
    %s64 = scalar_select %p61, %s62, %s63
    %p67 = pneg %p61
    %p68 = scmp.eq.s32.totalorder %s10, 7
    %p69 = por %p67, %p68
    %p70 = scmp.ne.s32.totalorder %s62, %s65
    %p71 = scmp.eq.s32.totalorder %s10, 0
    %p72 = por %p70, %p71
    %p73 = scmp.ne.s32.totalorder %s62, %s65
    %p74 = scmp.eq.s32.totalorder %s15, 7
    %p75 = por %p73, %p74
    %p76 = scmp.ne.s32.totalorder %s65, %s66
    %p77 = scmp.eq.s32.totalorder %s15, 0
    %p78 = por %p76, %p77
    %p79 = scmp.ne.s32.totalorder %s65, %s66
    %p80 = scmp.eq.s32.totalorder %s16, 7
    %p81 = por %p79, %p80
    %p83 = scmp.ne.s32.totalorder %s66, %s82
    %p84 = scmp.eq.s32.totalorder %s16, 0
    %p85 = por %p83, %p84
    %s86 = ssub.s32 %s10, %s17
    %p87 = scmp.eq.s32.totalorder %s86, 0
    %s89 = sadd.s32 %s88, 1
    %s90 = scalar_select %p87, %s88, %s89
    %p93 = pneg %p87
    %p94 = scmp.eq.s32.totalorder %s10, 7
    %p95 = por %p93, %p94
    %p96 = scmp.ne.s32.totalorder %s88, %s91
    %p97 = scmp.eq.s32.totalorder %s10, 0
    %p98 = por %p96, %p97
    %p99 = scmp.ne.s32.totalorder %s88, %s91
    %p100 = scmp.eq.s32.totalorder %s15, 7
    %p101 = por %p99, %p100
    %p102 = scmp.ne.s32.totalorder %s91, %s92
    %p103 = scmp.eq.s32.totalorder %s15, 0
    %p104 = por %p102, %p103
    %p105 = scmp.ne.s32.totalorder %s91, %s92
    %p106 = scmp.eq.s32.totalorder %s16, 7
    %p107 = por %p105, %p106
    %p109 = scmp.ne.s32.totalorder %s92, %s108
    %p110 = scmp.eq.s32.totalorder %s16, 0
    %p111 = por %p109, %p110
    %s112 = ssub.s32 %s10, %s17
    %p113 = scmp.eq.s32.totalorder %s112, 0
    %s115 = sadd.s32 %s114, 1
    %s116 = scalar_select %p113, %s114, %s115
    %p119 = pneg %p113
    %p120 = scmp.eq.s32.totalorder %s10, 7
    %p121 = por %p119, %p120
    %p122 = scmp.ne.s32.totalorder %s114, %s117
    %p123 = scmp.eq.s32.totalorder %s10, 0
    %p124 = por %p122, %p123
    %p125 = scmp.ne.s32.totalorder %s114, %s117
    %p126 = scmp.eq.s32.totalorder %s15, 7
    %p127 = por %p125, %p126
    %p128 = scmp.ne.s32.totalorder %s117, %s118
    %p129 = scmp.eq.s32.totalorder %s15, 0
    %p130 = por %p128, %p129
    %p131 = scmp.ne.s32.totalorder %s117, %s118
    %p132 = scmp.eq.s32.totalorder %s16, 7
    %p133 = por %p131, %p132
    %p135 = scmp.ne.s32.totalorder %s118, %s134
    %p136 = scmp.eq.s32.totalorder %s16, 0
    %p137 = por %p135, %p136
    %p138 = scmp.le.s32.totalorder 1, %s10
    %p139 = scmp.lt.s32.totalorder %s10, 9
    %p140 = pnand %p138, %p139
    %p141 = pneg %p140
    // Predicated region
    $region9: #{feature_net_forward.25} parent=5 // pred_check
      _
    $region10: #{feature_net_forward.25} parent=5 // pred_check_branch
      %143 = sbr.rel (%p140) target = $region12
    $region11: #{feature_net_forward.25} parent=5 // pred_region
      %s144 = ssub.s32 %s10, 1
      // Predicated region
      $region13: #{feature_net_forward.25} parent=11 // pred_check
        %p145 = pneg %p31
      $region14: #{feature_net_forward.25} parent=11 // pred_check_branch
        %147 = sbr.rel (%p145) target = $region16
      $region15: #{feature_net_forward.25} parent=11 // pred_region
        _
      $region16: #{feature_net_forward.25} parent=11 // pred_fallthru
        _
      // Predicated region
      $region17: #{feature_net_forward.25} parent=11 // pred_check
        %p148 = pneg %p52
      $region18: #{feature_net_forward.25} parent=11 // pred_check_branch
        %150 = sbr.rel (%p148) target = $region20
      $region19: #{feature_net_forward.25} parent=11 // pred_region
        _
      $region20: #{feature_net_forward.25} parent=11 // pred_fallthru
        _
    $region12: #{feature_net_forward.25} parent=5 // pred_fallthru
      _
    %p151 = scmp.lt.s32.totalorder %s10, 8
    // Predicated region
    $region21: #{feature_net_forward.25} parent=5 // pred_check
      %p152 = pneg %p151
    $region22: #{feature_net_forward.25} parent=5 // pred_check_branch
      %154 = sbr.rel (%p152) target = $region24
    $region23: #{feature_net_forward.25} parent=5 // pred_region
      // Predicated region
      $region25: #{feature_net_forward.25} parent=23 // pred_check
        %p155 = pneg %p72
      $region26: #{feature_net_forward.25} parent=23 // pred_check_branch
        %157 = sbr.rel (%p155) target = $region28
      $region27: #{feature_net_forward.25} parent=23 // pred_region
        %s158 = smul.u32 8, %s10
        %p159 = scmp.lt.s32.totalorder %s158, 63
        %s160 = scalar_select %p159, %s158, 63
        %s161 = smul.addr %s160, 4
        %s162 = scalar_lea.vmem %s2, %s161
        %s163 = smul.u32 8, %s10
      $region28: #{feature_net_forward.25} parent=23 // pred_fallthru
        _
      // Predicated region
      $region29: #{feature_net_forward.25} parent=23 // pred_check
        %p164 = pneg %p98
      $region30: #{feature_net_forward.25} parent=23 // pred_check_branch
        %166 = sbr.rel (%p164) target = $region32
      $region31: #{feature_net_forward.25} parent=23 // pred_region
        %s167 = smul.u32 8, %s10
        %p168 = scmp.lt.s32.totalorder %s167, 63
        %s169 = scalar_select %p168, %s167, 63
        %s170 = smul.addr %s169, 8
        %s171 = scalar_lea.vmem %s3, %s170
        %s172 = smul.u32 8, %s10
      $region32: #{feature_net_forward.25} parent=23 // pred_fallthru
        _
    $region24: #{feature_net_forward.25} parent=5 // pred_fallthru
      _
    %p173 = scmp.le.s32.totalorder 1, %s10
    %p174 = scmp.lt.s32.totalorder %s10, 9
    %p175 = pnand %p173, %p174
    %p176 = pneg %p175
    // Predicated region
    $region33: #{feature_net_forward.25} parent=5 // pred_check
      _
    $region34: #{feature_net_forward.25} parent=5 // pred_check_branch
      %178 = sbr.rel (%p175) target = $region36
    $region35: #{feature_net_forward.25} parent=5 // pred_region
      %s179 = ssub.s32 %s10, 1
      %p180 = pneg %p31
      %p181 = pneg %p28
      %p182 = pneg %p52
      %p183 = pneg %p49
      %s184 = smul.u32 8, %s15
      %p185 = scmp.lt.s32.totalorder %s184, 63
      %s186 = scalar_select %p185, %s184, 63
      %s187 = smul.addr %s186, 4
      %s188 = scalar_lea.vmem %s2, %s187
      %p189 = pneg %p78
      %p190 = pneg %p75
      %s191 = smul.u32 8, %s15
      %p192 = scmp.lt.s32.totalorder %s191, 63
      %s193 = scalar_select %p192, %s191, 63
      %s194 = smul.addr %s193, 8
      %s195 = scalar_lea.vmem %s3, %s194
      %p196 = pneg %p104
      %p197 = pneg %p101
      %p198 = pneg %p130
      %p199 = pneg %p127
      %s200 = smul.u32 8, %s15
      %p201 = scmp.lt.s32.totalorder %s200, 63
      %s202 = scalar_select %p201, %s200, 63
      %s203 = smul.addr %s202, 8
      %s204 = scalar_lea.vmem %s4, %s203
      %s205 = smul.u32 8, %s15
      %p206 = scmp.lt.s32.totalorder %s205, 63
      %s207 = scalar_select %p206, %s205, 63
      %s208 = smul.addr %s207, 4
      %s209 = scalar_lea.vmem %s2, %s208
      %s210 = smul.u32 8, %s15
      %s211 = smul.u32 8, %s15
      %p212 = scmp.lt.s32.totalorder %s211, 63
      %s213 = scalar_select %p212, %s211, 63
      %s214 = smul.addr %s213, 8
      %s215 = scalar_lea.vmem %s3, %s214
      %s216 = smul.u32 8, %s15
      %s217 = smul.u32 8, %s15
      %p218 = scmp.lt.s32.totalorder %s217, 63
      %s219 = scalar_select %p218, %s217, 63
      %s220 = smul.addr %s219, 8
      %s221 = scalar_lea.vmem %s4, %s220
      %s222 = smul.u32 8, %s15
      %v223 = vld [vmem:[%s209] sm:$0xf]
      %v224 = vld [vmem:[%s1] sm:$0xf]
      %vm225 = vcmask 31744
      %v227 = vsel %vm225, %v223, 0
      %vm229 = vcmask 1043456
      %v231 = vsel %vm229, %v224, 0
      %233 = vmatpush.msra.mxu0 0.0
      %234 = vmatpush.msra.mxu0 0.0
      %235 = vmatpush.msra.mxu0 0.0
      %236 = vmatpush.msra.mxu0 0.0
      %237 = vmatpush.msra.mxu0 0.0
      %238 = vmatpush.msra.mxu0 0.0
      %239 = vmatpush.msra.mxu0 0.0
      %240 = vmatpush.msra.mxu0 0.0
      %241 = vmatpush.msra.mxu0 0.0
      %242 = vmatpush.msra.mxu0 0.0
      %243 = vmatpush.msra.mxu0 0.0
      %244 = vmatpush.msra.mxu0 0.0
      %245 = vmatpush.msra.mxu0 0.0
      %246 = vmatpush.msra.mxu0 0.0
      %247 = vmatpush.msra.mxu0 0.0
      %248 = vmatpush.msra.mxu0 %v231
      %249 = vmatmul.f32.gmra.mxu0 %v227
      %v250 = vpop.f32.mrf.mxu0
      %v251 = vadd.f32 0.0, %v250
      %252 = vdwg.mxu0
      %v253 = vld [vmem:[%s0] sm:$0xff]
      %v254 = vld [vmem:[%s215] sm:$0xff]
      %v256 = vsel %vm225, %v253, 0
      %v259 = vsel %vm229, %v251, 0
      %261 = vmatpush.msra.mxu0 0.0
      %262 = vmatpush.msra.mxu0 0.0
      %263 = vmatpush.msra.mxu0 0.0
      %264 = vmatpush.msra.mxu0 0.0
      %265 = vmatpush.msra.mxu0 0.0
      %266 = vmatpush.msra.mxu0 0.0
      %267 = vmatpush.msra.mxu0 0.0
      %268 = vmatpush.msra.mxu0 0.0
      %269 = vmatpush.msra.mxu0 0.0
      %270 = vmatpush.msra.mxu0 0.0
      %271 = vmatpush.msra.mxu0 0.0
      %272 = vmatpush.msra.mxu0 0.0
      %273 = vmatpush.msra.mxu0 0.0
      %274 = vmatpush.msra.mxu0 0.0
      %275 = vmatpush.msra.mxu0 0.0
      %276 = vmatpush.msra.mxu0 %v259
      %277 = vmatmul.f32.gmra.mxu0 %v256
      %v278 = vpop.f32.mrf.mxu0
      %v279 = vadd.f32 %v254, %v278
      %280 = vdwg.mxu0
      %vm281 = vcmask 64512
      %282 = vst.msk [vmem:[%s221] sm:$0xff] %vm281, %v279
      %s283 = scalar_lea.vmem %s209, 4
      %v284 = vld [vmem:[%s283] sm:$0xf]
      %v285 = vld [vmem:[%s1] sm:$0xf]
      %v287 = vsel %vm225, %v284, 0
      %v290 = vsel %vm229, %v285, 0
      %292 = vmatpush.msra.mxu0 0.0
      %293 = vmatpush.msra.mxu0 0.0
      %294 = vmatpush.msra.mxu0 0.0
      %295 = vmatpush.msra.mxu0 0.0
      %296 = vmatpush.msra.mxu0 0.0
      %297 = vmatpush.msra.mxu0 0.0
      %298 = vmatpush.msra.mxu0 0.0
      %299 = vmatpush.msra.mxu0 0.0
      %300 = vmatpush.msra.mxu0 0.0
      %301 = vmatpush.msra.mxu0 0.0
      %302 = vmatpush.msra.mxu0 0.0
      %303 = vmatpush.msra.mxu0 0.0
      %304 = vmatpush.msra.mxu0 0.0
      %305 = vmatpush.msra.mxu0 0.0
      %306 = vmatpush.msra.mxu0 0.0
      %307 = vmatpush.msra.mxu0 %v290
      %308 = vmatmul.f32.gmra.mxu0 %v287
      %v309 = vpop.f32.mrf.mxu0
      %v310 = vadd.f32 0.0, %v309
      %311 = vdwg.mxu0
      %v312 = vld [vmem:[%s0] sm:$0xff]
      %s313 = scalar_lea.vmem %s215, 8
      %v314 = vld [vmem:[%s313] sm:$0xff]
      %v316 = vsel %vm225, %v312, 0
      %v319 = vsel %vm229, %v310, 0
      %321 = vmatpush.msra.mxu0 0.0
      %322 = vmatpush.msra.mxu0 0.0
      %323 = vmatpush.msra.mxu0 0.0
      %324 = vmatpush.msra.mxu0 0.0
      %325 = vmatpush.msra.mxu0 0.0
      %326 = vmatpush.msra.mxu0 0.0
      %327 = vmatpush.msra.mxu0 0.0
      %328 = vmatpush.msra.mxu0 0.0
      %329 = vmatpush.msra.mxu0 0.0
      %330 = vmatpush.msra.mxu0 0.0
      %331 = vmatpush.msra.mxu0 0.0
      %332 = vmatpush.msra.mxu0 0.0
      %333 = vmatpush.msra.mxu0 0.0
      %334 = vmatpush.msra.mxu0 0.0
      %335 = vmatpush.msra.mxu0 0.0
      %336 = vmatpush.msra.mxu0 %v319
      %337 = vmatmul.f32.gmra.mxu0 %v316
      %v338 = vpop.f32.mrf.mxu0
      %v339 = vadd.f32 %v314, %v338
      %340 = vdwg.mxu0
      %s341 = scalar_lea.vmem %s221, 8
      %342 = vst.msk [vmem:[%s341] sm:$0xff] %vm281, %v339
      %s343 = scalar_lea.vmem %s209, 8
      %v344 = vld [vmem:[%s343] sm:$0xf]
      %v345 = vld [vmem:[%s1] sm:$0xf]
      %v347 = vsel %vm225, %v344, 0
      %v350 = vsel %vm229, %v345, 0
      %352 = vmatpush.msra.mxu0 0.0
      %353 = vmatpush.msra.mxu0 0.0
      %354 = vmatpush.msra.mxu0 0.0
      %355 = vmatpush.msra.mxu0 0.0
      %356 = vmatpush.msra.mxu0 0.0
      %357 = vmatpush.msra.mxu0 0.0
      %358 = vmatpush.msra.mxu0 0.0
      %359 = vmatpush.msra.mxu0 0.0
      %360 = vmatpush.msra.mxu0 0.0
      %361 = vmatpush.msra.mxu0 0.0
      %362 = vmatpush.msra.mxu0 0.0
      %363 = vmatpush.msra.mxu0 0.0
      %364 = vmatpush.msra.mxu0 0.0
      %365 = vmatpush.msra.mxu0 0.0
      %366 = vmatpush.msra.mxu0 0.0
      %367 = vmatpush.msra.mxu0 %v350
      %368 = vmatmul.f32.gmra.mxu0 %v347
      %v369 = vpop.f32.mrf.mxu0
      %v370 = vadd.f32 0.0, %v369
      %371 = vdwg.mxu0
      %v372 = vld [vmem:[%s0] sm:$0xff]
      %s373 = scalar_lea.vmem %s215, 16
      %v374 = vld [vmem:[%s373] sm:$0xff]
      %v376 = vsel %vm225, %v372, 0
      %v379 = vsel %vm229, %v370, 0
      %381 = vmatpush.msra.mxu0 0.0
      %382 = vmatpush.msra.mxu0 0.0
      %383 = vmatpush.msra.mxu0 0.0
      %384 = vmatpush.msra.mxu0 0.0
      %385 = vmatpush.msra.mxu0 0.0
      %386 = vmatpush.msra.mxu0 0.0
      %387 = vmatpush.msra.mxu0 0.0
      %388 = vmatpush.msra.mxu0 0.0
      %389 = vmatpush.msra.mxu0 0.0
      %390 = vmatpush.msra.mxu0 0.0
      %391 = vmatpush.msra.mxu0 0.0
      %392 = vmatpush.msra.mxu0 0.0
      %393 = vmatpush.msra.mxu0 0.0
      %394 = vmatpush.msra.mxu0 0.0
      %395 = vmatpush.msra.mxu0 0.0
      %396 = vmatpush.msra.mxu0 %v379
      %397 = vmatmul.f32.gmra.mxu0 %v376
      %v398 = vpop.f32.mrf.mxu0
      %v399 = vadd.f32 %v374, %v398
      %400 = vdwg.mxu0
      %s401 = scalar_lea.vmem %s221, 16
      %402 = vst.msk [vmem:[%s401] sm:$0xff] %vm281, %v399
      %s403 = scalar_lea.vmem %s209, 12
      %v404 = vld [vmem:[%s403] sm:$0xf]
      %v405 = vld [vmem:[%s1] sm:$0xf]
      %v407 = vsel %vm225, %v404, 0
      %v410 = vsel %vm229, %v405, 0
      %412 = vmatpush.msra.mxu0 0.0
      %413 = vmatpush.msra.mxu0 0.0
      %414 = vmatpush.msra.mxu0 0.0
      %415 = vmatpush.msra.mxu0 0.0
      %416 = vmatpush.msra.mxu0 0.0
      %417 = vmatpush.msra.mxu0 0.0
      %418 = vmatpush.msra.mxu0 0.0
      %419 = vmatpush.msra.mxu0 0.0
      %420 = vmatpush.msra.mxu0 0.0
      %421 = vmatpush.msra.mxu0 0.0
      %422 = vmatpush.msra.mxu0 0.0
      %423 = vmatpush.msra.mxu0 0.0
      %424 = vmatpush.msra.mxu0 0.0
      %425 = vmatpush.msra.mxu0 0.0
      %426 = vmatpush.msra.mxu0 0.0
      %427 = vmatpush.msra.mxu0 %v410
      %428 = vmatmul.f32.gmra.mxu0 %v407
      %v429 = vpop.f32.mrf.mxu0
      %v430 = vadd.f32 0.0, %v429
      %431 = vdwg.mxu0
      %v432 = vld [vmem:[%s0] sm:$0xff]
      %s433 = scalar_lea.vmem %s215, 24
      %v434 = vld [vmem:[%s433] sm:$0xff]
      %v436 = vsel %vm225, %v432, 0
      %v439 = vsel %vm229, %v430, 0
      %441 = vmatpush.msra.mxu0 0.0
      %442 = vmatpush.msra.mxu0 0.0
      %443 = vmatpush.msra.mxu0 0.0
      %444 = vmatpush.msra.mxu0 0.0
      %445 = vmatpush.msra.mxu0 0.0
      %446 = vmatpush.msra.mxu0 0.0
      %447 = vmatpush.msra.mxu0 0.0
      %448 = vmatpush.msra.mxu0 0.0
      %449 = vmatpush.msra.mxu0 0.0
      %450 = vmatpush.msra.mxu0 0.0
      %451 = vmatpush.msra.mxu0 0.0
      %452 = vmatpush.msra.mxu0 0.0
      %453 = vmatpush.msra.mxu0 0.0
      %454 = vmatpush.msra.mxu0 0.0
      %455 = vmatpush.msra.mxu0 0.0
      %456 = vmatpush.msra.mxu0 %v439
      %457 = vmatmul.f32.gmra.mxu0 %v436
      %v458 = vpop.f32.mrf.mxu0
      %v459 = vadd.f32 %v434, %v458
      %460 = vdwg.mxu0
      %s461 = scalar_lea.vmem %s221, 24
      %462 = vst.msk [vmem:[%s461] sm:$0xff] %vm281, %v459
      %s463 = scalar_lea.vmem %s209, 16
      %v464 = vld [vmem:[%s463] sm:$0xf]
      %v465 = vld [vmem:[%s1] sm:$0xf]
      %v467 = vsel %vm225, %v464, 0
      %v470 = vsel %vm229, %v465, 0
      %472 = vmatpush.msra.mxu0 0.0
      %473 = vmatpush.msra.mxu0 0.0
      %474 = vmatpush.msra.mxu0 0.0
      %475 = vmatpush.msra.mxu0 0.0
      %476 = vmatpush.msra.mxu0 0.0
      %477 = vmatpush.msra.mxu0 0.0
      %478 = vmatpush.msra.mxu0 0.0
      %479 = vmatpush.msra.mxu0 0.0
      %480 = vmatpush.msra.mxu0 0.0
      %481 = vmatpush.msra.mxu0 0.0
      %482 = vmatpush.msra.mxu0 0.0
      %483 = vmatpush.msra.mxu0 0.0
      %484 = vmatpush.msra.mxu0 0.0
      %485 = vmatpush.msra.mxu0 0.0
      %486 = vmatpush.msra.mxu0 0.0
      %487 = vmatpush.msra.mxu0 %v470
      %488 = vmatmul.f32.gmra.mxu0 %v467
      %v489 = vpop.f32.mrf.mxu0
      %v490 = vadd.f32 0.0, %v489
      %491 = vdwg.mxu0
      %v492 = vld [vmem:[%s0] sm:$0xff]
      %s493 = scalar_lea.vmem %s215, 32
      %v494 = vld [vmem:[%s493] sm:$0xff]
      %v496 = vsel %vm225, %v492, 0
      %v499 = vsel %vm229, %v490, 0
      %501 = vmatpush.msra.mxu0 0.0
      %502 = vmatpush.msra.mxu0 0.0
      %503 = vmatpush.msra.mxu0 0.0
      %504 = vmatpush.msra.mxu0 0.0
      %505 = vmatpush.msra.mxu0 0.0
      %506 = vmatpush.msra.mxu0 0.0
      %507 = vmatpush.msra.mxu0 0.0
      %508 = vmatpush.msra.mxu0 0.0
      %509 = vmatpush.msra.mxu0 0.0
      %510 = vmatpush.msra.mxu0 0.0
      %511 = vmatpush.msra.mxu0 0.0
      %512 = vmatpush.msra.mxu0 0.0
      %513 = vmatpush.msra.mxu0 0.0
      %514 = vmatpush.msra.mxu0 0.0
      %515 = vmatpush.msra.mxu0 0.0
      %516 = vmatpush.msra.mxu0 %v499
      %517 = vmatmul.f32.gmra.mxu0 %v496
      %v518 = vpop.f32.mrf.mxu0
      %v519 = vadd.f32 %v494, %v518
      %520 = vdwg.mxu0
      %s521 = scalar_lea.vmem %s221, 32
      %522 = vst.msk [vmem:[%s521] sm:$0xff] %vm281, %v519
      %s523 = scalar_lea.vmem %s209, 20
      %v524 = vld [vmem:[%s523] sm:$0xf]
      %v525 = vld [vmem:[%s1] sm:$0xf]
      %v527 = vsel %vm225, %v524, 0
      %v530 = vsel %vm229, %v525, 0
      %532 = vmatpush.msra.mxu0 0.0
      %533 = vmatpush.msra.mxu0 0.0
      %534 = vmatpush.msra.mxu0 0.0
      %535 = vmatpush.msra.mxu0 0.0
      %536 = vmatpush.msra.mxu0 0.0
      %537 = vmatpush.msra.mxu0 0.0
      %538 = vmatpush.msra.mxu0 0.0
      %539 = vmatpush.msra.mxu0 0.0
      %540 = vmatpush.msra.mxu0 0.0
      %541 = vmatpush.msra.mxu0 0.0
      %542 = vmatpush.msra.mxu0 0.0
      %543 = vmatpush.msra.mxu0 0.0
      %544 = vmatpush.msra.mxu0 0.0
      %545 = vmatpush.msra.mxu0 0.0
      %546 = vmatpush.msra.mxu0 0.0
      %547 = vmatpush.msra.mxu0 %v530
      %548 = vmatmul.f32.gmra.mxu0 %v527
      %v549 = vpop.f32.mrf.mxu0
      %v550 = vadd.f32 0.0, %v549
      %551 = vdwg.mxu0
      %v552 = vld [vmem:[%s0] sm:$0xff]
      %s553 = scalar_lea.vmem %s215, 40
      %v554 = vld [vmem:[%s553] sm:$0xff]
      %v556 = vsel %vm225, %v552, 0
      %v559 = vsel %vm229, %v550, 0
      %561 = vmatpush.msra.mxu0 0.0
      %562 = vmatpush.msra.mxu0 0.0
      %563 = vmatpush.msra.mxu0 0.0
      %564 = vmatpush.msra.mxu0 0.0
      %565 = vmatpush.msra.mxu0 0.0
      %566 = vmatpush.msra.mxu0 0.0
      %567 = vmatpush.msra.mxu0 0.0
      %568 = vmatpush.msra.mxu0 0.0
      %569 = vmatpush.msra.mxu0 0.0
      %570 = vmatpush.msra.mxu0 0.0
      %571 = vmatpush.msra.mxu0 0.0
      %572 = vmatpush.msra.mxu0 0.0
      %573 = vmatpush.msra.mxu0 0.0
      %574 = vmatpush.msra.mxu0 0.0
      %575 = vmatpush.msra.mxu0 0.0
      %576 = vmatpush.msra.mxu0 %v559
      %577 = vmatmul.f32.gmra.mxu0 %v556
      %v578 = vpop.f32.mrf.mxu0
      %v579 = vadd.f32 %v554, %v578
      %580 = vdwg.mxu0
      %s581 = scalar_lea.vmem %s221, 40
      %582 = vst.msk [vmem:[%s581] sm:$0xff] %vm281, %v579
      %s583 = scalar_lea.vmem %s209, 24
      %v584 = vld [vmem:[%s583] sm:$0xf]
      %v585 = vld [vmem:[%s1] sm:$0xf]
      %v587 = vsel %vm225, %v584, 0
      %v590 = vsel %vm229, %v585, 0
      %592 = vmatpush.msra.mxu0 0.0
      %593 = vmatpush.msra.mxu0 0.0
      %594 = vmatpush.msra.mxu0 0.0
      %595 = vmatpush.msra.mxu0 0.0
      %596 = vmatpush.msra.mxu0 0.0
      %597 = vmatpush.msra.mxu0 0.0
      %598 = vmatpush.msra.mxu0 0.0
      %599 = vmatpush.msra.mxu0 0.0
      %600 = vmatpush.msra.mxu0 0.0
      %601 = vmatpush.msra.mxu0 0.0
      %602 = vmatpush.msra.mxu0 0.0
      %603 = vmatpush.msra.mxu0 0.0
      %604 = vmatpush.msra.mxu0 0.0
      %605 = vmatpush.msra.mxu0 0.0
      %606 = vmatpush.msra.mxu0 0.0
      %607 = vmatpush.msra.mxu0 %v590
      %608 = vmatmul.f32.gmra.mxu0 %v587
      %v609 = vpop.f32.mrf.mxu0
      %v610 = vadd.f32 0.0, %v609
      %611 = vdwg.mxu0
      %v612 = vld [vmem:[%s0] sm:$0xff]
      %s613 = scalar_lea.vmem %s215, 48
      %v614 = vld [vmem:[%s613] sm:$0xff]
      %v616 = vsel %vm225, %v612, 0
      %v619 = vsel %vm229, %v610, 0
      %621 = vmatpush.msra.mxu0 0.0
      %622 = vmatpush.msra.mxu0 0.0
      %623 = vmatpush.msra.mxu0 0.0
      %624 = vmatpush.msra.mxu0 0.0
      %625 = vmatpush.msra.mxu0 0.0
      %626 = vmatpush.msra.mxu0 0.0
      %627 = vmatpush.msra.mxu0 0.0
      %628 = vmatpush.msra.mxu0 0.0
      %629 = vmatpush.msra.mxu0 0.0
      %630 = vmatpush.msra.mxu0 0.0
      %631 = vmatpush.msra.mxu0 0.0
      %632 = vmatpush.msra.mxu0 0.0
      %633 = vmatpush.msra.mxu0 0.0
      %634 = vmatpush.msra.mxu0 0.0
      %635 = vmatpush.msra.mxu0 0.0
      %636 = vmatpush.msra.mxu0 %v619
      %637 = vmatmul.f32.gmra.mxu0 %v616
      %v638 = vpop.f32.mrf.mxu0
      %v639 = vadd.f32 %v614, %v638
      %640 = vdwg.mxu0
      %s641 = scalar_lea.vmem %s221, 48
      %642 = vst.msk [vmem:[%s641] sm:$0xff] %vm281, %v639
      %s643 = scalar_lea.vmem %s209, 28
      %v644 = vld [vmem:[%s643] sm:$0xf]
      %v645 = vld [vmem:[%s1] sm:$0xf]
      %v647 = vsel %vm225, %v644, 0
      %v650 = vsel %vm229, %v645, 0
      %652 = vmatpush.msra.mxu0 0.0
      %653 = vmatpush.msra.mxu0 0.0
      %654 = vmatpush.msra.mxu0 0.0
      %655 = vmatpush.msra.mxu0 0.0
      %656 = vmatpush.msra.mxu0 0.0
      %657 = vmatpush.msra.mxu0 0.0
      %658 = vmatpush.msra.mxu0 0.0
      %659 = vmatpush.msra.mxu0 0.0
      %660 = vmatpush.msra.mxu0 0.0
      %661 = vmatpush.msra.mxu0 0.0
      %662 = vmatpush.msra.mxu0 0.0
      %663 = vmatpush.msra.mxu0 0.0
      %664 = vmatpush.msra.mxu0 0.0
      %665 = vmatpush.msra.mxu0 0.0
      %666 = vmatpush.msra.mxu0 0.0
      %667 = vmatpush.msra.mxu0 %v650
      %668 = vmatmul.f32.gmra.mxu0 %v647
      %v669 = vpop.f32.mrf.mxu0
      %v670 = vadd.f32 0.0, %v669
      %671 = vdwg.mxu0
      %v672 = vld [vmem:[%s0] sm:$0xff]
      %s673 = scalar_lea.vmem %s215, 56
      %v674 = vld [vmem:[%s673] sm:$0xff]
      %v676 = vsel %vm225, %v672, 0
      %v679 = vsel %vm229, %v670, 0
      %681 = vmatpush.msra.mxu0 0.0
      %682 = vmatpush.msra.mxu0 0.0
      %683 = vmatpush.msra.mxu0 0.0
      %684 = vmatpush.msra.mxu0 0.0
      %685 = vmatpush.msra.mxu0 0.0
      %686 = vmatpush.msra.mxu0 0.0
      %687 = vmatpush.msra.mxu0 0.0
      %688 = vmatpush.msra.mxu0 0.0
      %689 = vmatpush.msra.mxu0 0.0
      %690 = vmatpush.msra.mxu0 0.0
      %691 = vmatpush.msra.mxu0 0.0
      %692 = vmatpush.msra.mxu0 0.0
      %693 = vmatpush.msra.mxu0 0.0
      %694 = vmatpush.msra.mxu0 0.0
      %695 = vmatpush.msra.mxu0 0.0
      %696 = vmatpush.msra.mxu0 %v679
      %697 = vmatmul.f32.gmra.mxu0 %v676
      %v698 = vpop.f32.mrf.mxu0
      %v699 = vadd.f32 %v674, %v698
      %700 = vdwg.mxu0
      %s701 = scalar_lea.vmem %s221, 56
      %702 = vst.msk [vmem:[%s701] sm:$0xff] %vm281, %v699
      %s703 = smul.u32 8, %s15
      %p704 = scmp.lt.s32.totalorder %s703, 63
      %s705 = scalar_select %p704, %s703, 63
      %s706 = smul.addr %s705, 8
      %s707 = scalar_lea.vmem %s4, %s706
      // Predicated region
      $region37: #{feature_net_forward.25} parent=35 // pred_check
        %p708 = pneg %p127
      $region38: #{feature_net_forward.25} parent=35 // pred_check_branch
        %710 = sbr.rel (%p708) target = $region40
      $region39: #{feature_net_forward.25} parent=35 // pred_region
        %s711 = smul.u32 8, %s15
      $region40: #{feature_net_forward.25} parent=35 // pred_fallthru
        _
    $region36: #{feature_net_forward.25} parent=5 // pred_fallthru
      _
    %p712 = scmp.le.s32.totalorder 2, %s10
    // Predicated region
    $region41: #{feature_net_forward.25} parent=5 // pred_check
      %p713 = pneg %p712
    $region42: #{feature_net_forward.25} parent=5 // pred_check_branch
      %715 = sbr.rel (%p713) target = $region44
    $region43: #{feature_net_forward.25} parent=5 // pred_region
      %s716 = ssub.s32 %s10, 2
      // Predicated region
      $region45: #{feature_net_forward.25} parent=43 // pred_check
        %p717 = pneg %p133
      $region46: #{feature_net_forward.25} parent=43 // pred_check_branch
        %719 = sbr.rel (%p717) target = $region48
      $region47: #{feature_net_forward.25} parent=43 // pred_region
        %s720 = smul.u32 8, %s16
        %p721 = scmp.lt.s32.totalorder %s720, 63
        %s722 = scalar_select %p721, %s720, 63
        %s723 = smul.addr %s722, 8
        %s724 = scalar_lea.vmem %s4, %s723
      $region48: #{feature_net_forward.25} parent=43 // pred_fallthru
        _
    $region44: #{feature_net_forward.25} parent=5 // pred_fallthru
      _
  $region6: #{feature_net_forward.25} parent=0 // loop_footer
    %s14 = sadd.s32 1, %s10
  $region7: #{feature_net_forward.25} parent=0 // loop_footer_branch
    %9 = sbr.rel target = $region3
  $region8: #{feature_net_forward.25} parent=0 // loop_exit
    _

// kernel: feature_net_forward.27
$region0: #{feature_net_forward.27}
  #allocation0 [shape = 'u32[]', space=smem, size = 0x4, offset = 0x4, fixed_abs, tag = 'smem constant byte address 0x4 - core index']
  #allocation1 [shape = 'u32[72,128]{1,0:T(1,128)}', space=vmem, size = 0x9000, scoped, tag = 'internal scratch']
  %s0 = inlined_call_operand.vmem [shape: f32[16,8], index: 0, kind: input, shape index: {}]
  %s1 = inlined_call_operand.vmem [shape: f32[8,16], index: 1, kind: input, shape index: {}]
  %s2 = inlined_call_operand.vmem [shape: f32[64,8,8], index: 2, kind: input, shape index: {}]
  %s3 = inlined_call_operand.vmem [shape: f32[64,16,16], index: 3, kind: input, shape index: {}]
  %s4 = inlined_call_operand.vmem [shape: f32[64,16,16], index: 4, kind: output, shape index: {}]
  %s5 = sld [smem:[#allocation0]]
  $region49: #{feature_net_forward.27} parent=0
    _
  %s7 = ssub.s32 1, %s5
  %s8 = scalar_select 0, %s7, %s5
  loop: start=0, step=1, limit=10
  $region2: #{feature_net_forward.27} parent=0 // loop_pre_header
    _
  $region3: #{feature_net_forward.27} parent=0 // loop_header
    %s10 = sphi 0, %s14
    %p11 = scmp.ge.s32.totalorder %s10, 10
    %s18 = sphi 0, %s18
    %s20 = sphi 0, %s18
    %s21 = sphi 0, %s20
    %s35 = sphi 0, %s21
    %s39 = sphi 0, %s39
    %s41 = sphi 0, %s39
    %s42 = sphi 0, %s41
    %s56 = sphi 0, %s42
    %s62 = sphi 0, %s64
    %s65 = sphi 0, %s62
    %s66 = sphi 0, %s65
    %s82 = sphi 0, %s66
    %s88 = sphi 0, %s90
    %s91 = sphi 0, %s88
    %s92 = sphi 0, %s91
    %s108 = sphi 0, %s92
    %s114 = sphi 0, %s116
    %s117 = sphi 0, %s114
    %s118 = sphi 0, %s117
    %s134 = sphi 0, %s118
  $region4: #{feature_net_forward.27} parent=0 // loop_header_branch
    %13 = sbr.rel (%p11) target = $region8
  $region5: #{feature_net_forward.27} parent=0 // loop_body
    %s15 = ssub.s32 %s10, 1
    %s16 = ssub.s32 %s10, 2
    %s17 = sadd.s32 %s10, 1
    %s19 = sadd.s32 %s18, 1
    %p22 = scmp.eq.s32.totalorder %s10, 7
    %p23 = scmp.ne.s32.totalorder %s18, %s20
    %p24 = scmp.eq.s32.totalorder %s10, 0
    %p25 = por %p23, %p24
    %p26 = scmp.ne.s32.totalorder %s18, %s20
    %p27 = scmp.eq.s32.totalorder %s15, 7
    %p28 = por %p26, %p27
    %p29 = scmp.ne.s32.totalorder %s20, %s21
    %p30 = scmp.eq.s32.totalorder %s15, 0
    %p31 = por %p29, %p30
    %p32 = scmp.ne.s32.totalorder %s20, %s21
    %p33 = scmp.eq.s32.totalorder %s16, 7
    %p34 = por %p32, %p33
    %p36 = scmp.ne.s32.totalorder %s21, %s35
    %p37 = scmp.eq.s32.totalorder %s16, 0
    %p38 = por %p36, %p37
    %s40 = sadd.s32 %s39, 1
    %p43 = scmp.eq.s32.totalorder %s10, 7
    %p44 = scmp.ne.s32.totalorder %s39, %s41
    %p45 = scmp.eq.s32.totalorder %s10, 0
    %p46 = por %p44, %p45
    %p47 = scmp.ne.s32.totalorder %s39, %s41
    %p48 = scmp.eq.s32.totalorder %s15, 7
    %p49 = por %p47, %p48
    %p50 = scmp.ne.s32.totalorder %s41, %s42
    %p51 = scmp.eq.s32.totalorder %s15, 0
    %p52 = por %p50, %p51
    %p53 = scmp.ne.s32.totalorder %s41, %s42
    %p54 = scmp.eq.s32.totalorder %s16, 7
    %p55 = por %p53, %p54
    %p57 = scmp.ne.s32.totalorder %s42, %s56
    %p58 = scmp.eq.s32.totalorder %s16, 0
    %p59 = por %p57, %p58
    %s60 = ssub.s32 %s10, %s17
    %p61 = scmp.eq.s32.totalorder %s60, 0
    %s63 = sadd.s32 %s62, 1
    %s64 = scalar_select %p61, %s62, %s63
    %p67 = pneg %p61
    %p68 = scmp.eq.s32.totalorder %s10, 7
    %p69 = por %p67, %p68
    %p70 = scmp.ne.s32.totalorder %s62, %s65
    %p71 = scmp.eq.s32.totalorder %s10, 0
    %p72 = por %p70, %p71
    %p73 = scmp.ne.s32.totalorder %s62, %s65
    %p74 = scmp.eq.s32.totalorder %s15, 7
    %p75 = por %p73, %p74
    %p76 = scmp.ne.s32.totalorder %s65, %s66
    %p77 = scmp.eq.s32.totalorder %s15, 0
    %p78 = por %p76, %p77
    %p79 = scmp.ne.s32.totalorder %s65, %s66
    %p80 = scmp.eq.s32.totalorder %s16, 7
    %p81 = por %p79, %p80
    %p83 = scmp.ne.s32.totalorder %s66, %s82
    %p84 = scmp.eq.s32.totalorder %s16, 0
    %p85 = por %p83, %p84
    %s86 = ssub.s32 %s10, %s17
    %p87 = scmp.eq.s32.totalorder %s86, 0
    %s89 = sadd.s32 %s88, 1
    %s90 = scalar_select %p87, %s88, %s89
    %p93 = pneg %p87
    %p94 = scmp.eq.s32.totalorder %s10, 7
    %p95 = por %p93, %p94
    %p96 = scmp.ne.s32.totalorder %s88, %s91
    %p97 = scmp.eq.s32.totalorder %s10, 0
    %p98 = por %p96, %p97
    %p99 = scmp.ne.s32.totalorder %s88, %s91
    %p100 = scmp.eq.s32.totalorder %s15, 7
    %p101 = por %p99, %p100
    %p102 = scmp.ne.s32.totalorder %s91, %s92
    %p103 = scmp.eq.s32.totalorder %s15, 0
    %p104 = por %p102, %p103
    %p105 = scmp.ne.s32.totalorder %s91, %s92
    %p106 = scmp.eq.s32.totalorder %s16, 7
    %p107 = por %p105, %p106
    %p109 = scmp.ne.s32.totalorder %s92, %s108
    %p110 = scmp.eq.s32.totalorder %s16, 0
    %p111 = por %p109, %p110
    %s112 = ssub.s32 %s10, %s17
    %p113 = scmp.eq.s32.totalorder %s112, 0
    %s115 = sadd.s32 %s114, 1
    %s116 = scalar_select %p113, %s114, %s115
    %p119 = pneg %p113
    %p120 = scmp.eq.s32.totalorder %s10, 7
    %p121 = por %p119, %p120
    %p122 = scmp.ne.s32.totalorder %s114, %s117
    %p123 = scmp.eq.s32.totalorder %s10, 0
    %p124 = por %p122, %p123
    %p125 = scmp.ne.s32.totalorder %s114, %s117
    %p126 = scmp.eq.s32.totalorder %s15, 7
    %p127 = por %p125, %p126
    %p128 = scmp.ne.s32.totalorder %s117, %s118
    %p129 = scmp.eq.s32.totalorder %s15, 0
    %p130 = por %p128, %p129
    %p131 = scmp.ne.s32.totalorder %s117, %s118
    %p132 = scmp.eq.s32.totalorder %s16, 7
    %p133 = por %p131, %p132
    %p135 = scmp.ne.s32.totalorder %s118, %s134
    %p136 = scmp.eq.s32.totalorder %s16, 0
    %p137 = por %p135, %p136
    %p138 = scmp.le.s32.totalorder 1, %s10
    %p139 = scmp.lt.s32.totalorder %s10, 9
    %p140 = pnand %p138, %p139
    %p141 = pneg %p140
    // Predicated region
    $region9: #{feature_net_forward.27} parent=5 // pred_check
      _
    $region10: #{feature_net_forward.27} parent=5 // pred_check_branch
      %143 = sbr.rel (%p140) target = $region12
    $region11: #{feature_net_forward.27} parent=5 // pred_region
      %s144 = ssub.s32 %s10, 1
      // Predicated region
      $region13: #{feature_net_forward.27} parent=11 // pred_check
        %p145 = pneg %p31
      $region14: #{feature_net_forward.27} parent=11 // pred_check_branch
        %147 = sbr.rel (%p145) target = $region16
      $region15: #{feature_net_forward.27} parent=11 // pred_region
        _
      $region16: #{feature_net_forward.27} parent=11 // pred_fallthru
        _
      // Predicated region
      $region17: #{feature_net_forward.27} parent=11 // pred_check
        %p148 = pneg %p52
      $region18: #{feature_net_forward.27} parent=11 // pred_check_branch
        %150 = sbr.rel (%p148) target = $region20
      $region19: #{feature_net_forward.27} parent=11 // pred_region
        _
      $region20: #{feature_net_forward.27} parent=11 // pred_fallthru
        _
    $region12: #{feature_net_forward.27} parent=5 // pred_fallthru
      _
    %p151 = scmp.lt.s32.totalorder %s10, 8
    // Predicated region
    $region21: #{feature_net_forward.27} parent=5 // pred_check
      %p152 = pneg %p151
    $region22: #{feature_net_forward.27} parent=5 // pred_check_branch
      %154 = sbr.rel (%p152) target = $region24
    $region23: #{feature_net_forward.27} parent=5 // pred_region
      // Predicated region
      $region25: #{feature_net_forward.27} parent=23 // pred_check
        %p155 = pneg %p72
      $region26: #{feature_net_forward.27} parent=23 // pred_check_branch
        %157 = sbr.rel (%p155) target = $region28
      $region27: #{feature_net_forward.27} parent=23 // pred_region
        %s158 = smul.u32 8, %s10
        %p159 = scmp.lt.s32.totalorder %s158, 63
        %s160 = scalar_select %p159, %s158, 63
        %s161 = smul.addr %s160, 8
        %s162 = scalar_lea.vmem %s2, %s161
        %s163 = smul.u32 8, %s10
      $region28: #{feature_net_forward.27} parent=23 // pred_fallthru
        _
      // Predicated region
      $region29: #{feature_net_forward.27} parent=23 // pred_check
        %p164 = pneg %p98
      $region30: #{feature_net_forward.27} parent=23 // pred_check_branch
        %166 = sbr.rel (%p164) target = $region32
      $region31: #{feature_net_forward.27} parent=23 // pred_region
        %s167 = smul.u32 8, %s10
        %p168 = scmp.lt.s32.totalorder %s167, 63
        %s169 = scalar_select %p168, %s167, 63
        %s170 = smul.addr %s169, 2
        %s171 = smul.addr %s170, 8
        %s172 = scalar_lea.vmem %s3, %s171
        %s173 = smul.u32 8, %s10
      $region32: #{feature_net_forward.27} parent=23 // pred_fallthru
        _
    $region24: #{feature_net_forward.27} parent=5 // pred_fallthru
      _
    %p174 = scmp.le.s32.totalorder 1, %s10
    %p175 = scmp.lt.s32.totalorder %s10, 9
    %p176 = pnand %p174, %p175
    %p177 = pneg %p176
    // Predicated region
    $region33: #{feature_net_forward.27} parent=5 // pred_check
      _
    $region34: #{feature_net_forward.27} parent=5 // pred_check_branch
      %179 = sbr.rel (%p176) target = $region36
    $region35: #{feature_net_forward.27} parent=5 // pred_region
      %s180 = ssub.s32 %s10, 1
      %p181 = pneg %p31
      %p182 = pneg %p28
      %p183 = pneg %p52
      %p184 = pneg %p49
      %s185 = smul.u32 8, %s15
      %p186 = scmp.lt.s32.totalorder %s185, 63
      %s187 = scalar_select %p186, %s185, 63
      %s188 = smul.addr %s187, 8
      %s189 = scalar_lea.vmem %s2, %s188
      %p190 = pneg %p78
      %p191 = pneg %p75
      %s192 = smul.u32 8, %s15
      %p193 = scmp.lt.s32.totalorder %s192, 63
      %s194 = scalar_select %p193, %s192, 63
      %s195 = smul.addr %s194, 2
      %s196 = smul.addr %s195, 8
      %s197 = scalar_lea.vmem %s3, %s196
      %p198 = pneg %p104
      %p199 = pneg %p101
      %p200 = pneg %p130
      %p201 = pneg %p127
      %s202 = smul.u32 8, %s15
      %p203 = scmp.lt.s32.totalorder %s202, 63
      %s204 = scalar_select %p203, %s202, 63
      %s205 = smul.addr %s204, 2
      %s206 = smul.addr %s205, 8
      %s207 = scalar_lea.vmem %s4, %s206
      %s208 = smul.u32 8, %s15
      %p209 = scmp.lt.s32.totalorder %s208, 63
      %s210 = scalar_select %p209, %s208, 63
      %s211 = smul.addr %s210, 8
      %s212 = scalar_lea.vmem %s2, %s211
      %s213 = smul.u32 8, %s15
      %s214 = smul.u32 8, %s15
      %p215 = scmp.lt.s32.totalorder %s214, 63
      %s216 = scalar_select %p215, %s214, 63
      %s217 = smul.addr %s216, 2
      %s218 = smul.addr %s217, 8
      %s219 = scalar_lea.vmem %s3, %s218
      %s220 = smul.u32 8, %s15
      %s221 = smul.u32 8, %s15
      %p222 = scmp.lt.s32.totalorder %s221, 63
      %s223 = scalar_select %p222, %s221, 63
      %s224 = smul.addr %s223, 2
      %s225 = smul.addr %s224, 8
      %s226 = scalar_lea.vmem %s4, %s225
      %s227 = smul.u32 8, %s15
      %v228 = vld [vmem:[%s212] sm:$0xff]
      %v229 = vld [vmem:[%s1] sm:$0xff]
      %vm230 = vcmask 64512
      %v232 = vsel %vm230, %v228, 0
      %234 = vmatpush.msra.mxu0 0.0
      %235 = vmatpush.msra.mxu0 0.0
      %236 = vmatpush.msra.mxu0 0.0
      %237 = vmatpush.msra.mxu0 0.0
      %238 = vmatpush.msra.mxu0 0.0
      %239 = vmatpush.msra.mxu0 0.0
      %240 = vmatpush.msra.mxu0 0.0
      %241 = vmatpush.msra.mxu0 0.0
      %242 = vmatpush.msra.mxu0 0.0
      %243 = vmatpush.msra.mxu0 0.0
      %244 = vmatpush.msra.mxu0 0.0
      %245 = vmatpush.msra.mxu0 0.0
      %246 = vmatpush.msra.mxu0 0.0
      %247 = vmatpush.msra.mxu0 0.0
      %248 = vmatpush.msra.mxu0 0.0
      %249 = vmatpush.msra.mxu0 %v229
      %250 = vmatmul.f32.gmra.mxu0 %v232
      %v251 = vpop.f32.mrf.mxu0
      %v252 = vadd.f32 0.0, %v251
      %253 = vdwg.mxu0
      %v254 = vld [vmem:[%s0] sm:$0xff]
      %v255 = vld [vmem:[%s0 + $0x8] sm:$0xff]
      %v256 = vld [vmem:[%s219] sm:$0xff]
      %v257 = vld [vmem:[%s219 + $0x8] sm:$0xff]
      %v259 = vsel %vm230, %v254, 0
      %v262 = vsel %vm230, %v255, 0
      %264 = vmatpush.msra.mxu0 0.0
      %265 = vmatpush.msra.mxu0 0.0
      %266 = vmatpush.msra.mxu0 0.0
      %267 = vmatpush.msra.mxu0 0.0
      %268 = vmatpush.msra.mxu0 0.0
      %269 = vmatpush.msra.mxu0 0.0
      %270 = vmatpush.msra.mxu0 0.0
      %271 = vmatpush.msra.mxu0 0.0
      %272 = vmatpush.msra.mxu0 0.0
      %273 = vmatpush.msra.mxu0 0.0
      %274 = vmatpush.msra.mxu0 0.0
      %275 = vmatpush.msra.mxu0 0.0
      %276 = vmatpush.msra.mxu0 0.0
      %277 = vmatpush.msra.mxu0 0.0
      %278 = vmatpush.msra.mxu0 0.0
      %279 = vmatpush.msra.mxu0 %v252
      %280 = vmatmul.f32.gmra.mxu0 %v259
      %v281 = vpop.f32.mrf.mxu0
      %v282 = vadd.f32 %v256, %v281
      %283 = vmatmul.f32.gmra.mxu0 %v262
      %v284 = vpop.f32.mrf.mxu0
      %v285 = vadd.f32 %v257, %v284
      %286 = vdwg.mxu0
      %vm287 = vcmask 130048
      %288 = vst.msk [vmem:[%s226] sm:$0xff] %vm287, %v282
      %289 = vst.msk [vmem:[%s226 + $0x8] sm:$0xff] %vm287, %v285
      %s290 = scalar_lea.vmem %s212, 8
      %v291 = vld [vmem:[%s290] sm:$0xff]
      %v292 = vld [vmem:[%s1] sm:$0xff]
      %v294 = vsel %vm230, %v291, 0
      %296 = vmatpush.msra.mxu0 0.0
      %297 = vmatpush.msra.mxu0 0.0
      %298 = vmatpush.msra.mxu0 0.0
      %299 = vmatpush.msra.mxu0 0.0
      %300 = vmatpush.msra.mxu0 0.0
      %301 = vmatpush.msra.mxu0 0.0
      %302 = vmatpush.msra.mxu0 0.0
      %303 = vmatpush.msra.mxu0 0.0
      %304 = vmatpush.msra.mxu0 0.0
      %305 = vmatpush.msra.mxu0 0.0
      %306 = vmatpush.msra.mxu0 0.0
      %307 = vmatpush.msra.mxu0 0.0
      %308 = vmatpush.msra.mxu0 0.0
      %309 = vmatpush.msra.mxu0 0.0
      %310 = vmatpush.msra.mxu0 0.0
      %311 = vmatpush.msra.mxu0 %v292
      %312 = vmatmul.f32.gmra.mxu0 %v294
      %v313 = vpop.f32.mrf.mxu0
      %v314 = vadd.f32 0.0, %v313
      %315 = vdwg.mxu0
      %v316 = vld [vmem:[%s0] sm:$0xff]
      %v317 = vld [vmem:[%s0 + $0x8] sm:$0xff]
      %s318 = scalar_lea.vmem %s219, 16
      %v319 = vld [vmem:[%s318] sm:$0xff]
      %v320 = vld [vmem:[%s318 + $0x8] sm:$0xff]
      %v322 = vsel %vm230, %v316, 0
      %v325 = vsel %vm230, %v317, 0
      %327 = vmatpush.msra.mxu0 0.0
      %328 = vmatpush.msra.mxu0 0.0
      %329 = vmatpush.msra.mxu0 0.0
      %330 = vmatpush.msra.mxu0 0.0
      %331 = vmatpush.msra.mxu0 0.0
      %332 = vmatpush.msra.mxu0 0.0
      %333 = vmatpush.msra.mxu0 0.0
      %334 = vmatpush.msra.mxu0 0.0
      %335 = vmatpush.msra.mxu0 0.0
      %336 = vmatpush.msra.mxu0 0.0
      %337 = vmatpush.msra.mxu0 0.0
      %338 = vmatpush.msra.mxu0 0.0
      %339 = vmatpush.msra.mxu0 0.0
      %340 = vmatpush.msra.mxu0 0.0
      %341 = vmatpush.msra.mxu0 0.0
      %342 = vmatpush.msra.mxu0 %v314
      %343 = vmatmul.f32.gmra.mxu0 %v322
      %v344 = vpop.f32.mrf.mxu0
      %v345 = vadd.f32 %v319, %v344
      %346 = vmatmul.f32.gmra.mxu0 %v325
      %v347 = vpop.f32.mrf.mxu0
      %v348 = vadd.f32 %v320, %v347
      %349 = vdwg.mxu0
      %s350 = scalar_lea.vmem %s226, 16
      %351 = vst.msk [vmem:[%s350] sm:$0xff] %vm287, %v345
      %352 = vst.msk [vmem:[%s350 + $0x8] sm:$0xff] %vm287, %v348
      %s353 = scalar_lea.vmem %s212, 16
      %v354 = vld [vmem:[%s353] sm:$0xff]
      %v355 = vld [vmem:[%s1] sm:$0xff]
      %v357 = vsel %vm230, %v354, 0
      %359 = vmatpush.msra.mxu0 0.0
      %360 = vmatpush.msra.mxu0 0.0
      %361 = vmatpush.msra.mxu0 0.0
      %362 = vmatpush.msra.mxu0 0.0
      %363 = vmatpush.msra.mxu0 0.0
      %364 = vmatpush.msra.mxu0 0.0
      %365 = vmatpush.msra.mxu0 0.0
      %366 = vmatpush.msra.mxu0 0.0
      %367 = vmatpush.msra.mxu0 0.0
      %368 = vmatpush.msra.mxu0 0.0
      %369 = vmatpush.msra.mxu0 0.0
      %370 = vmatpush.msra.mxu0 0.0
      %371 = vmatpush.msra.mxu0 0.0
      %372 = vmatpush.msra.mxu0 0.0
      %373 = vmatpush.msra.mxu0 0.0
      %374 = vmatpush.msra.mxu0 %v355
      %375 = vmatmul.f32.gmra.mxu0 %v357
      %v376 = vpop.f32.mrf.mxu0
      %v377 = vadd.f32 0.0, %v376
      %378 = vdwg.mxu0
      %v379 = vld [vmem:[%s0] sm:$0xff]
      %v380 = vld [vmem:[%s0 + $0x8] sm:$0xff]
      %s381 = scalar_lea.vmem %s219, 32
      %v382 = vld [vmem:[%s381] sm:$0xff]
      %v383 = vld [vmem:[%s381 + $0x8] sm:$0xff]
      %v385 = vsel %vm230, %v379, 0
      %v388 = vsel %vm230, %v380, 0
      %390 = vmatpush.msra.mxu0 0.0
      %391 = vmatpush.msra.mxu0 0.0
      %392 = vmatpush.msra.mxu0 0.0
      %393 = vmatpush.msra.mxu0 0.0
      %394 = vmatpush.msra.mxu0 0.0
      %395 = vmatpush.msra.mxu0 0.0
      %396 = vmatpush.msra.mxu0 0.0
      %397 = vmatpush.msra.mxu0 0.0
      %398 = vmatpush.msra.mxu0 0.0
      %399 = vmatpush.msra.mxu0 0.0
      %400 = vmatpush.msra.mxu0 0.0
      %401 = vmatpush.msra.mxu0 0.0
      %402 = vmatpush.msra.mxu0 0.0
      %403 = vmatpush.msra.mxu0 0.0
      %404 = vmatpush.msra.mxu0 0.0
      %405 = vmatpush.msra.mxu0 %v377
      %406 = vmatmul.f32.gmra.mxu0 %v385
      %v407 = vpop.f32.mrf.mxu0
      %v408 = vadd.f32 %v382, %v407
      %409 = vmatmul.f32.gmra.mxu0 %v388
      %v410 = vpop.f32.mrf.mxu0
      %v411 = vadd.f32 %v383, %v410
      %412 = vdwg.mxu0
      %s413 = scalar_lea.vmem %s226, 32
      %414 = vst.msk [vmem:[%s413] sm:$0xff] %vm287, %v408
      %415 = vst.msk [vmem:[%s413 + $0x8] sm:$0xff] %vm287, %v411
      %s416 = scalar_lea.vmem %s212, 24
      %v417 = vld [vmem:[%s416] sm:$0xff]
      %v418 = vld [vmem:[%s1] sm:$0xff]
      %v420 = vsel %vm230, %v417, 0
      %422 = vmatpush.msra.mxu0 0.0
      %423 = vmatpush.msra.mxu0 0.0
      %424 = vmatpush.msra.mxu0 0.0
      %425 = vmatpush.msra.mxu0 0.0
      %426 = vmatpush.msra.mxu0 0.0
      %427 = vmatpush.msra.mxu0 0.0
      %428 = vmatpush.msra.mxu0 0.0
      %429 = vmatpush.msra.mxu0 0.0
      %430 = vmatpush.msra.mxu0 0.0
      %431 = vmatpush.msra.mxu0 0.0
      %432 = vmatpush.msra.mxu0 0.0
      %433 = vmatpush.msra.mxu0 0.0
      %434 = vmatpush.msra.mxu0 0.0
      %435 = vmatpush.msra.mxu0 0.0
      %436 = vmatpush.msra.mxu0 0.0
      %437 = vmatpush.msra.mxu0 %v418
      %438 = vmatmul.f32.gmra.mxu0 %v420
      %v439 = vpop.f32.mrf.mxu0
      %v440 = vadd.f32 0.0, %v439
      %441 = vdwg.mxu0
      %v442 = vld [vmem:[%s0] sm:$0xff]
      %v443 = vld [vmem:[%s0 + $0x8] sm:$0xff]
      %s444 = scalar_lea.vmem %s219, 48
      %v445 = vld [vmem:[%s444] sm:$0xff]
      %v446 = vld [vmem:[%s444 + $0x8] sm:$0xff]
      %v448 = vsel %vm230, %v442, 0
      %v451 = vsel %vm230, %v443, 0
      %453 = vmatpush.msra.mxu0 0.0
      %454 = vmatpush.msra.mxu0 0.0
      %455 = vmatpush.msra.mxu0 0.0
      %456 = vmatpush.msra.mxu0 0.0
      %457 = vmatpush.msra.mxu0 0.0
      %458 = vmatpush.msra.mxu0 0.0
      %459 = vmatpush.msra.mxu0 0.0
      %460 = vmatpush.msra.mxu0 0.0
      %461 = vmatpush.msra.mxu0 0.0
      %462 = vmatpush.msra.mxu0 0.0
      %463 = vmatpush.msra.mxu0 0.0
      %464 = vmatpush.msra.mxu0 0.0
      %465 = vmatpush.msra.mxu0 0.0
      %466 = vmatpush.msra.mxu0 0.0
      %467 = vmatpush.msra.mxu0 0.0
      %468 = vmatpush.msra.mxu0 %v440
      %469 = vmatmul.f32.gmra.mxu0 %v448
      %v470 = vpop.f32.mrf.mxu0
      %v471 = vadd.f32 %v445, %v470
      %472 = vmatmul.f32.gmra.mxu0 %v451
      %v473 = vpop.f32.mrf.mxu0
      %v474 = vadd.f32 %v446, %v473
      %475 = vdwg.mxu0
      %s476 = scalar_lea.vmem %s226, 48
      %477 = vst.msk [vmem:[%s476] sm:$0xff] %vm287, %v471
      %478 = vst.msk [vmem:[%s476 + $0x8] sm:$0xff] %vm287, %v474
      %s479 = scalar_lea.vmem %s212, 32
      %v480 = vld [vmem:[%s479] sm:$0xff]
      %v481 = vld [vmem:[%s1] sm:$0xff]
      %v483 = vsel %vm230, %v480, 0
      %485 = vmatpush.msra.mxu0 0.0
      %486 = vmatpush.msra.mxu0 0.0
      %487 = vmatpush.msra.mxu0 0.0
      %488 = vmatpush.msra.mxu0 0.0
      %489 = vmatpush.msra.mxu0 0.0
      %490 = vmatpush.msra.mxu0 0.0
      %491 = vmatpush.msra.mxu0 0.0
      %492 = vmatpush.msra.mxu0 0.0
      %493 = vmatpush.msra.mxu0 0.0
      %494 = vmatpush.msra.mxu0 0.0
      %495 = vmatpush.msra.mxu0 0.0
      %496 = vmatpush.msra.mxu0 0.0
      %497 = vmatpush.msra.mxu0 0.0
      %498 = vmatpush.msra.mxu0 0.0
      %499 = vmatpush.msra.mxu0 0.0
      %500 = vmatpush.msra.mxu0 %v481
      %501 = vmatmul.f32.gmra.mxu0 %v483
      %v502 = vpop.f32.mrf.mxu0
      %v503 = vadd.f32 0.0, %v502
      %504 = vdwg.mxu0
      %v505 = vld [vmem:[%s0] sm:$0xff]
      %v506 = vld [vmem:[%s0 + $0x8] sm:$0xff]
      %s507 = scalar_lea.vmem %s219, 64
      %v508 = vld [vmem:[%s507] sm:$0xff]
      %v509 = vld [vmem:[%s507 + $0x8] sm:$0xff]
      %v511 = vsel %vm230, %v505, 0
      %v514 = vsel %vm230, %v506, 0
      %516 = vmatpush.msra.mxu0 0.0
      %517 = vmatpush.msra.mxu0 0.0
      %518 = vmatpush.msra.mxu0 0.0
      %519 = vmatpush.msra.mxu0 0.0
      %520 = vmatpush.msra.mxu0 0.0
      %521 = vmatpush.msra.mxu0 0.0
      %522 = vmatpush.msra.mxu0 0.0
      %523 = vmatpush.msra.mxu0 0.0
      %524 = vmatpush.msra.mxu0 0.0
      %525 = vmatpush.msra.mxu0 0.0
      %526 = vmatpush.msra.mxu0 0.0
      %527 = vmatpush.msra.mxu0 0.0
      %528 = vmatpush.msra.mxu0 0.0
      %529 = vmatpush.msra.mxu0 0.0
      %530 = vmatpush.msra.mxu0 0.0
      %531 = vmatpush.msra.mxu0 %v503
      %532 = vmatmul.f32.gmra.mxu0 %v511
      %v533 = vpop.f32.mrf.mxu0
      %v534 = vadd.f32 %v508, %v533
      %535 = vmatmul.f32.gmra.mxu0 %v514
      %v536 = vpop.f32.mrf.mxu0
      %v537 = vadd.f32 %v509, %v536
      %538 = vdwg.mxu0
      %s539 = scalar_lea.vmem %s226, 64
      %540 = vst.msk [vmem:[%s539] sm:$0xff] %vm287, %v534
      %541 = vst.msk [vmem:[%s539 + $0x8] sm:$0xff] %vm287, %v537
      %s542 = scalar_lea.vmem %s212, 40
      %v543 = vld [vmem:[%s542] sm:$0xff]
      %v544 = vld [vmem:[%s1] sm:$0xff]
      %v546 = vsel %vm230, %v543, 0
      %548 = vmatpush.msra.mxu0 0.0
      %549 = vmatpush.msra.mxu0 0.0
      %550 = vmatpush.msra.mxu0 0.0
      %551 = vmatpush.msra.mxu0 0.0
      %552 = vmatpush.msra.mxu0 0.0
      %553 = vmatpush.msra.mxu0 0.0
      %554 = vmatpush.msra.mxu0 0.0
      %555 = vmatpush.msra.mxu0 0.0
      %556 = vmatpush.msra.mxu0 0.0
      %557 = vmatpush.msra.mxu0 0.0
      %558 = vmatpush.msra.mxu0 0.0
      %559 = vmatpush.msra.mxu0 0.0
      %560 = vmatpush.msra.mxu0 0.0
      %561 = vmatpush.msra.mxu0 0.0
      %562 = vmatpush.msra.mxu0 0.0
      %563 = vmatpush.msra.mxu0 %v544
      %564 = vmatmul.f32.gmra.mxu0 %v546
      %v565 = vpop.f32.mrf.mxu0
      %v566 = vadd.f32 0.0, %v565
      %567 = vdwg.mxu0
      %v568 = vld [vmem:[%s0] sm:$0xff]
      %v569 = vld [vmem:[%s0 + $0x8] sm:$0xff]
      %s570 = scalar_lea.vmem %s219, 80
      %v571 = vld [vmem:[%s570] sm:$0xff]
      %v572 = vld [vmem:[%s570 + $0x8] sm:$0xff]
      %v574 = vsel %vm230, %v568, 0
      %v577 = vsel %vm230, %v569, 0
      %579 = vmatpush.msra.mxu0 0.0
      %580 = vmatpush.msra.mxu0 0.0
      %581 = vmatpush.msra.mxu0 0.0
      %582 = vmatpush.msra.mxu0 0.0
      %583 = vmatpush.msra.mxu0 0.0
      %584 = vmatpush.msra.mxu0 0.0
      %585 = vmatpush.msra.mxu0 0.0
      %586 = vmatpush.msra.mxu0 0.0
      %587 = vmatpush.msra.mxu0 0.0
      %588 = vmatpush.msra.mxu0 0.0
      %589 = vmatpush.msra.mxu0 0.0
      %590 = vmatpush.msra.mxu0 0.0
      %591 = vmatpush.msra.mxu0 0.0
      %592 = vmatpush.msra.mxu0 0.0
      %593 = vmatpush.msra.mxu0 0.0
      %594 = vmatpush.msra.mxu0 %v566
      %595 = vmatmul.f32.gmra.mxu0 %v574
      %v596 = vpop.f32.mrf.mxu0
      %v597 = vadd.f32 %v571, %v596
      %598 = vmatmul.f32.gmra.mxu0 %v577
      %v599 = vpop.f32.mrf.mxu0
      %v600 = vadd.f32 %v572, %v599
      %601 = vdwg.mxu0
      %s602 = scalar_lea.vmem %s226, 80
      %603 = vst.msk [vmem:[%s602] sm:$0xff] %vm287, %v597
      %604 = vst.msk [vmem:[%s602 + $0x8] sm:$0xff] %vm287, %v600
      %s605 = scalar_lea.vmem %s212, 48
      %v606 = vld [vmem:[%s605] sm:$0xff]
      %v607 = vld [vmem:[%s1] sm:$0xff]
      %v609 = vsel %vm230, %v606, 0
      %611 = vmatpush.msra.mxu0 0.0
      %612 = vmatpush.msra.mxu0 0.0
      %613 = vmatpush.msra.mxu0 0.0
      %614 = vmatpush.msra.mxu0 0.0
      %615 = vmatpush.msra.mxu0 0.0
      %616 = vmatpush.msra.mxu0 0.0
      %617 = vmatpush.msra.mxu0 0.0
      %618 = vmatpush.msra.mxu0 0.0
      %619 = vmatpush.msra.mxu0 0.0
      %620 = vmatpush.msra.mxu0 0.0
      %621 = vmatpush.msra.mxu0 0.0
      %622 = vmatpush.msra.mxu0 0.0
      %623 = vmatpush.msra.mxu0 0.0
      %624 = vmatpush.msra.mxu0 0.0
      %625 = vmatpush.msra.mxu0 0.0
      %626 = vmatpush.msra.mxu0 %v607
      %627 = vmatmul.f32.gmra.mxu0 %v609
      %v628 = vpop.f32.mrf.mxu0
      %v629 = vadd.f32 0.0, %v628
      %630 = vdwg.mxu0
      %v631 = vld [vmem:[%s0] sm:$0xff]
      %v632 = vld [vmem:[%s0 + $0x8] sm:$0xff]
      %s633 = scalar_lea.vmem %s219, 96
      %v634 = vld [vmem:[%s633] sm:$0xff]
      %v635 = vld [vmem:[%s633 + $0x8] sm:$0xff]
      %v637 = vsel %vm230, %v631, 0
      %v640 = vsel %vm230, %v632, 0
      %642 = vmatpush.msra.mxu0 0.0
      %643 = vmatpush.msra.mxu0 0.0
      %644 = vmatpush.msra.mxu0 0.0
      %645 = vmatpush.msra.mxu0 0.0
      %646 = vmatpush.msra.mxu0 0.0
      %647 = vmatpush.msra.mxu0 0.0
      %648 = vmatpush.msra.mxu0 0.0
      %649 = vmatpush.msra.mxu0 0.0
      %650 = vmatpush.msra.mxu0 0.0
      %651 = vmatpush.msra.mxu0 0.0
      %652 = vmatpush.msra.mxu0 0.0
      %653 = vmatpush.msra.mxu0 0.0
      %654 = vmatpush.msra.mxu0 0.0
      %655 = vmatpush.msra.mxu0 0.0
      %656 = vmatpush.msra.mxu0 0.0
      %657 = vmatpush.msra.mxu0 %v629
      %658 = vmatmul.f32.gmra.mxu0 %v637
      %v659 = vpop.f32.mrf.mxu0
      %v660 = vadd.f32 %v634, %v659
      %661 = vmatmul.f32.gmra.mxu0 %v640
      %v662 = vpop.f32.mrf.mxu0
      %v663 = vadd.f32 %v635, %v662
      %664 = vdwg.mxu0
      %s665 = scalar_lea.vmem %s226, 96
      %666 = vst.msk [vmem:[%s665] sm:$0xff] %vm287, %v660
      %667 = vst.msk [vmem:[%s665 + $0x8] sm:$0xff] %vm287, %v663
      %s668 = scalar_lea.vmem %s212, 56
      %v669 = vld [vmem:[%s668] sm:$0xff]
      %v670 = vld [vmem:[%s1] sm:$0xff]
      %v672 = vsel %vm230, %v669, 0
      %674 = vmatpush.msra.mxu0 0.0
      %675 = vmatpush.msra.mxu0 0.0
      %676 = vmatpush.msra.mxu0 0.0
      %677 = vmatpush.msra.mxu0 0.0
      %678 = vmatpush.msra.mxu0 0.0
      %679 = vmatpush.msra.mxu0 0.0
      %680 = vmatpush.msra.mxu0 0.0
      %681 = vmatpush.msra.mxu0 0.0
      %682 = vmatpush.msra.mxu0 0.0
      %683 = vmatpush.msra.mxu0 0.0
      %684 = vmatpush.msra.mxu0 0.0
      %685 = vmatpush.msra.mxu0 0.0
      %686 = vmatpush.msra.mxu0 0.0
      %687 = vmatpush.msra.mxu0 0.0
      %688 = vmatpush.msra.mxu0 0.0
      %689 = vmatpush.msra.mxu0 %v670
      %690 = vmatmul.f32.gmra.mxu0 %v672
      %v691 = vpop.f32.mrf.mxu0
      %v692 = vadd.f32 0.0, %v691
      %693 = vdwg.mxu0
      %v694 = vld [vmem:[%s0] sm:$0xff]
      %v695 = vld [vmem:[%s0 + $0x8] sm:$0xff]
      %s696 = scalar_lea.vmem %s219, 112
      %v697 = vld [vmem:[%s696] sm:$0xff]
      %v698 = vld [vmem:[%s696 + $0x8] sm:$0xff]
      %v700 = vsel %vm230, %v694, 0
      %v703 = vsel %vm230, %v695, 0
      %705 = vmatpush.msra.mxu0 0.0
      %706 = vmatpush.msra.mxu0 0.0
      %707 = vmatpush.msra.mxu0 0.0
      %708 = vmatpush.msra.mxu0 0.0
      %709 = vmatpush.msra.mxu0 0.0
      %710 = vmatpush.msra.mxu0 0.0
      %711 = vmatpush.msra.mxu0 0.0
      %712 = vmatpush.msra.mxu0 0.0
      %713 = vmatpush.msra.mxu0 0.0
      %714 = vmatpush.msra.mxu0 0.0
      %715 = vmatpush.msra.mxu0 0.0
      %716 = vmatpush.msra.mxu0 0.0
      %717 = vmatpush.msra.mxu0 0.0
      %718 = vmatpush.msra.mxu0 0.0
      %719 = vmatpush.msra.mxu0 0.0
      %720 = vmatpush.msra.mxu0 %v692
      %721 = vmatmul.f32.gmra.mxu0 %v700
      %v722 = vpop.f32.mrf.mxu0
      %v723 = vadd.f32 %v697, %v722
      %724 = vmatmul.f32.gmra.mxu0 %v703
      %v725 = vpop.f32.mrf.mxu0
      %v726 = vadd.f32 %v698, %v725
      %727 = vdwg.mxu0
      %s728 = scalar_lea.vmem %s226, 112
      %729 = vst.msk [vmem:[%s728] sm:$0xff] %vm287, %v723
      %730 = vst.msk [vmem:[%s728 + $0x8] sm:$0xff] %vm287, %v726
      %s731 = smul.u32 8, %s15
      %p732 = scmp.lt.s32.totalorder %s731, 63
      %s733 = scalar_select %p732, %s731, 63
      %s734 = smul.addr %s733, 2
      %s735 = smul.addr %s734, 8
      %s736 = scalar_lea.vmem %s4, %s735
      // Predicated region
      $region37: #{feature_net_forward.27} parent=35 // pred_check
        %p737 = pneg %p127
      $region38: #{feature_net_forward.27} parent=35 // pred_check_branch
        %739 = sbr.rel (%p737) target = $region40
      $region39: #{feature_net_forward.27} parent=35 // pred_region
        %s740 = smul.u32 8, %s15
      $region40: #{feature_net_forward.27} parent=35 // pred_fallthru
        _
    $region36: #{feature_net_forward.27} parent=5 // pred_fallthru
      _
    %p741 = scmp.le.s32.totalorder 2, %s10
    // Predicated region
    $region41: #{feature_net_forward.27} parent=5 // pred_check
      %p742 = pneg %p741
    $region42: #{feature_net_forward.27} parent=5 // pred_check_branch
      %744 = sbr.rel (%p742) target = $region44
    $region43: #{feature_net_forward.27} parent=5 // pred_region
      %s745 = ssub.s32 %s10, 2
      // Predicated region
      $region45: #{feature_net_forward.27} parent=43 // pred_check
        %p746 = pneg %p133
      $region46: #{feature_net_forward.27} parent=43 // pred_check_branch
        %748 = sbr.rel (%p746) target = $region48
      $region47: #{feature_net_forward.27} parent=43 // pred_region
        %s749 = smul.u32 8, %s16
        %p750 = scmp.lt.s32.totalorder %s749, 63
        %s751 = scalar_select %p750, %s749, 63
        %s752 = smul.addr %s751, 2
        %s753 = smul.addr %s752, 8
        %s754 = scalar_lea.vmem %s4, %s753
      $region48: #{feature_net_forward.27} parent=43 // pred_fallthru
        _
    $region44: #{feature_net_forward.27} parent=5 // pred_fallthru
      _
  $region6: #{feature_net_forward.27} parent=0 // loop_footer
    %s14 = sadd.s32 1, %s10
  $region7: #{feature_net_forward.27} parent=0 // loop_footer_branch
    %9 = sbr.rel target = $region3
  $region8: #{feature_net_forward.27} parent=0 // loop_exit
    _

// kernel: feature_net_forward.28
$region0: #{feature_net_forward.28}
  #allocation0 [shape = 'u32[]', space=smem, size = 0x4, offset = 0x4, fixed_abs, tag = 'smem constant byte address 0x4 - core index']
  #allocation1 [shape = 'u32[72,128]{1,0:T(1,128)}', space=vmem, size = 0x9000, scoped, tag = 'internal scratch']
  %s0 = inlined_call_operand.vmem [shape: bf16[16,288], index: 0, kind: input, shape index: {}]
  %s1 = inlined_call_operand.vmem [shape: bf16[2,288,64], index: 1, kind: input, shape index: {}]
  %s2 = inlined_call_operand.vmem [shape: f32[16,1], index: 2, kind: input, shape index: {}]
  %s3 = inlined_call_operand.vmem [shape: f32[2,16,64], index: 3, kind: output, shape index: {}]
  %s4 = sld [smem:[#allocation0]]
  $region45: #{feature_net_forward.28} parent=0
    _
  %s6 = ssub.s32 1, %s4
  %s7 = scalar_select 0, %s6, %s4
  loop: start=0, step=1, limit=4
  $region2: #{feature_net_forward.28} parent=0 // loop_pre_header
    _
  $region3: #{feature_net_forward.28} parent=0 // loop_header
    %s9 = sphi 0, %s13
    %p10 = scmp.ge.s32.totalorder %s9, 4
    %s16 = sphi 0, %s28
    %s17 = sphi 0, %s24
    %s18 = sphi 0, %s16
    %s19 = sphi 0, %s17
    %s20 = sphi 0, %s18
    %s21 = sphi 0, %s19
    %s29 = sphi 0, %s29
    %s31 = sphi 0, %s29
    %s32 = sphi 0, %s31
    %s46 = sphi 0, %s32
    %s54 = sphi 0, %s56
    %s57 = sphi 0, %s54
    %s58 = sphi 0, %s57
    %s74 = sphi 0, %s58
    %s78 = sphi 0, %s78
    %s80 = sphi 0, %s78
    %s81 = sphi 0, %s80
    %s95 = sphi 0, %s81
    %s103 = sphi 0, %s105
    %s106 = sphi 0, %s103
    %s107 = sphi 0, %s106
    %s123 = sphi 0, %s107
  $region4: #{feature_net_forward.28} parent=0 // loop_header_branch
    %12 = sbr.rel (%p10) target = $region8
  $region5: #{feature_net_forward.28} parent=0 // loop_body
    %s14 = ssub.s32 %s9, 1
    %s15 = ssub.s32 %s9, 2
    %s22 = sadd.s32 1, %s17
    %p23 = scmp.ge.s32.totalorder %s22, 1
    %s24 = scalar_select %p23, 0, %s22
    %s25 = sadd.s32 1, %s16
    %s26 = scalar_select %p23, %s25, %s16
    %p27 = scmp.ge.s32.totalorder %s26, 2
    %s28 = scalar_select %p27, 0, %s26
    %s30 = sadd.s32 %s29, 1
    %p33 = scmp.eq.s32.totalorder %s9, 1
    %p34 = scmp.ne.s32.totalorder %s29, %s31
    %p35 = scmp.eq.s32.totalorder %s9, 0
    %p36 = por %p34, %p35
    %p37 = scmp.ne.s32.totalorder %s29, %s31
    %p38 = scmp.eq.s32.totalorder %s14, 1
    %p39 = por %p37, %p38
    %p40 = scmp.ne.s32.totalorder %s31, %s32
    %p41 = scmp.eq.s32.totalorder %s14, 0
    %p42 = por %p40, %p41
    %p43 = scmp.ne.s32.totalorder %s31, %s32
    %p44 = scmp.eq.s32.totalorder %s15, 1
    %p45 = por %p43, %p44
    %p47 = scmp.ne.s32.totalorder %s32, %s46
    %p48 = scmp.eq.s32.totalorder %s15, 0
    %p49 = por %p47, %p48
    %s50 = ssub.s32 %s16, %s28
    %s51 = ssub.s32 %s17, %s24
    %s52 = sor.u32 %s50, %s51
    %p53 = scmp.eq.s32.totalorder %s52, 0
    %s55 = sadd.s32 %s54, 1
    %s56 = scalar_select %p53, %s54, %s55
    %p59 = pneg %p53
    %p60 = scmp.eq.s32.totalorder %s9, 1
    %p61 = por %p59, %p60
    %p62 = scmp.ne.s32.totalorder %s54, %s57
    %p63 = scmp.eq.s32.totalorder %s9, 0
    %p64 = por %p62, %p63
    %p65 = scmp.ne.s32.totalorder %s54, %s57
    %p66 = scmp.eq.s32.totalorder %s14, 1
    %p67 = por %p65, %p66
    %p68 = scmp.ne.s32.totalorder %s57, %s58
    %p69 = scmp.eq.s32.totalorder %s14, 0
    %p70 = por %p68, %p69
    %p71 = scmp.ne.s32.totalorder %s57, %s58
    %p72 = scmp.eq.s32.totalorder %s15, 1
    %p73 = por %p71, %p72
    %p75 = scmp.ne.s32.totalorder %s58, %s74
    %p76 = scmp.eq.s32.totalorder %s15, 0
    %p77 = por %p75, %p76
    %s79 = sadd.s32 %s78, 1
    %p82 = scmp.eq.s32.totalorder %s9, 1
    %p83 = scmp.ne.s32.totalorder %s78, %s80
    %p84 = scmp.eq.s32.totalorder %s9, 0
    %p85 = por %p83, %p84
    %p86 = scmp.ne.s32.totalorder %s78, %s80
    %p87 = scmp.eq.s32.totalorder %s14, 1
    %p88 = por %p86, %p87
    %p89 = scmp.ne.s32.totalorder %s80, %s81
    %p90 = scmp.eq.s32.totalorder %s14, 0
    %p91 = por %p89, %p90
    %p92 = scmp.ne.s32.totalorder %s80, %s81
    %p93 = scmp.eq.s32.totalorder %s15, 1
    %p94 = por %p92, %p93
    %p96 = scmp.ne.s32.totalorder %s81, %s95
    %p97 = scmp.eq.s32.totalorder %s15, 0
    %p98 = por %p96, %p97
    %s99 = ssub.s32 %s16, %s28
    %s100 = ssub.s32 %s17, %s24
    %s101 = sor.u32 %s99, %s100
    %p102 = scmp.eq.s32.totalorder %s101, 0
    %s104 = sadd.s32 %s103, 1
    %s105 = scalar_select %p102, %s103, %s104
    %p108 = pneg %p102
    %p109 = scmp.eq.s32.totalorder %s9, 1
    %p110 = por %p108, %p109
    %p111 = scmp.ne.s32.totalorder %s103, %s106
    %p112 = scmp.eq.s32.totalorder %s9, 0
    %p113 = por %p111, %p112
    %p114 = scmp.ne.s32.totalorder %s103, %s106
    %p115 = scmp.eq.s32.totalorder %s14, 1
    %p116 = por %p114, %p115
    %p117 = scmp.ne.s32.totalorder %s106, %s107
    %p118 = scmp.eq.s32.totalorder %s14, 0
    %p119 = por %p117, %p118
    %p120 = scmp.ne.s32.totalorder %s106, %s107
    %p121 = scmp.eq.s32.totalorder %s15, 1
    %p122 = por %p120, %p121
    %p124 = scmp.ne.s32.totalorder %s107, %s123
    %p125 = scmp.eq.s32.totalorder %s15, 0
    %p126 = por %p124, %p125
    %p127 = scmp.le.s32.totalorder 1, %s9
    %p128 = scmp.lt.s32.totalorder %s9, 3
    %p129 = pnand %p127, %p128
    %p130 = pneg %p129
    // Predicated region
    $region9: #{feature_net_forward.28} parent=5 // pred_check
      _
    $region10: #{feature_net_forward.28} parent=5 // pred_check_branch
      %132 = sbr.rel (%p129) target = $region12
    $region11: #{feature_net_forward.28} parent=5 // pred_region
      %s133 = ssub.s32 %s9, 1
      // Predicated region
      $region13: #{feature_net_forward.28} parent=11 // pred_check
        %p134 = pneg %p42
      $region14: #{feature_net_forward.28} parent=11 // pred_check_branch
        %136 = sbr.rel (%p134) target = $region16
      $region15: #{feature_net_forward.28} parent=11 // pred_region
        _
      $region16: #{feature_net_forward.28} parent=11 // pred_fallthru
        _
      // Predicated region
      $region17: #{feature_net_forward.28} parent=11 // pred_check
        %p137 = pneg %p91
      $region18: #{feature_net_forward.28} parent=11 // pred_check_branch
        %139 = sbr.rel (%p137) target = $region20
      $region19: #{feature_net_forward.28} parent=11 // pred_region
        _
      $region20: #{feature_net_forward.28} parent=11 // pred_fallthru
        _
    $region12: #{feature_net_forward.28} parent=5 // pred_fallthru
      _
    %p140 = scmp.lt.s32.totalorder %s9, 2
    // Predicated region
    $region21: #{feature_net_forward.28} parent=5 // pred_check
      %p141 = pneg %p140
    $region22: #{feature_net_forward.28} parent=5 // pred_check_branch
      %143 = sbr.rel (%p141) target = $region24
    $region23: #{feature_net_forward.28} parent=5 // pred_region
      // Predicated region
      $region25: #{feature_net_forward.28} parent=23 // pred_check
        %p144 = pneg %p64
      $region26: #{feature_net_forward.28} parent=23 // pred_check_branch
        %146 = sbr.rel (%p144) target = $region28
      $region27: #{feature_net_forward.28} parent=23 // pred_region
        %p147 = scmp.lt.s32.totalorder %s16, 1
        %s148 = scalar_select %p147, %s16, 1
        %p149 = scmp.lt.s32.totalorder %s17, 0
        %s150 = scalar_select %p149, %s17, 0
        %s151 = smul.addr %s148, 36
        %s152 = sadd.s32 %s150, %s151
        %s153 = smul.addr %s152, 4
        %s154 = scalar_lea.vmem %s1, %s153
      $region28: #{feature_net_forward.28} parent=23 // pred_fallthru
        _
    $region24: #{feature_net_forward.28} parent=5 // pred_fallthru
      _
    %p155 = scmp.le.s32.totalorder 1, %s9
    %p156 = scmp.lt.s32.totalorder %s9, 3
    %p157 = pnand %p155, %p156
    %p158 = pneg %p157
    // Predicated region
    $region29: #{feature_net_forward.28} parent=5 // pred_check
      _
    $region30: #{feature_net_forward.28} parent=5 // pred_check_branch
      %160 = sbr.rel (%p157) target = $region32
    $region31: #{feature_net_forward.28} parent=5 // pred_region
      %s161 = ssub.s32 %s9, 1
      %p162 = pneg %p42
      %p163 = pneg %p39
      %p164 = scmp.lt.s32.totalorder %s18, 1
      %s165 = scalar_select %p164, %s18, 1
      %p166 = scmp.lt.s32.totalorder %s19, 0
      %s167 = scalar_select %p166, %s19, 0
      %s168 = smul.addr %s165, 36
      %s169 = sadd.s32 %s167, %s168
      %s170 = smul.addr %s169, 4
      %s171 = scalar_lea.vmem %s1, %s170
      %p172 = pneg %p70
      %p173 = pneg %p67
      %p174 = pneg %p91
      %p175 = pneg %p88
      %p176 = pneg %p119
      %p177 = pneg %p116
      %p178 = scmp.lt.s32.totalorder %s18, 1
      %s179 = scalar_select %p178, %s18, 1
      %p180 = scmp.lt.s32.totalorder %s19, 0
      %s181 = scalar_select %p180, %s19, 0
      %s182 = smul.addr %s179, 2
      %s183 = sadd.s32 %s181, %s182
      %s184 = smul.addr %s183, 8
      %s185 = scalar_lea.vmem %s3, %s184
      %p186 = scmp.lt.s32.totalorder %s18, 1
      %s187 = scalar_select %p186, %s18, 1
      %p188 = scmp.lt.s32.totalorder %s19, 0
      %s189 = scalar_select %p188, %s19, 0
      %s190 = smul.addr %s187, 36
      %s191 = sadd.s32 %s189, %s190
      %s192 = smul.addr %s191, 4
      %s193 = scalar_lea.vmem %s1, %s192
      %p194 = scmp.lt.s32.totalorder %s18, 1
      %s195 = scalar_select %p194, %s18, 1
      %p196 = scmp.lt.s32.totalorder %s19, 0
      %s197 = scalar_select %p196, %s19, 0
      %s198 = smul.addr %s195, 2
      %s199 = sadd.s32 %s197, %s198
      %s200 = smul.addr %s199, 8
      %s201 = scalar_lea.vmem %s3, %s200
      %v203 = vld [vmem:[%s0] sm:$0xff]
      %v204 = vld [vmem:[%s0 + $0x8] sm:$0xf]
      %v205 = vld [vmem:[%s0 + $0xc] sm:$0xff]
      %v206 = vld [vmem:[%s0 + $0x14] sm:$0xf]
      %v207 = vld [vmem:[%s193] sm:$0xf]
      %v208 = vld [vmem:[%s193 + $0x4] sm:$0xf]
      %v209 = vld [vmem:[%s193 + $0x8] sm:$0xf]
      %v210 = vld [vmem:[%s193 + $0xc] sm:$0xf]
      %v211 = vld [vmem:[%s193 + $0x10] sm:$0xf]
      %v212 = vld [vmem:[%s193 + $0x14] sm:$0xf]
      %v213 = vld [vmem:[%s193 + $0x18] sm:$0xf]
      %v214 = vld [vmem:[%s193 + $0x1c] sm:$0xf]
      %v215 = vld [vmem:[%s193 + $0x20] sm:$0xf]
      %v216 = vld [vmem:[%s193 + $0x24] sm:$0xf]
      %v217 = vld [vmem:[%s193 + $0x28] sm:$0xf]
      %v218 = vld [vmem:[%s193 + $0x2c] sm:$0xf]
      %v219 = vld [vmem:[%s193 + $0x30] sm:$0xf]
      %v220 = vld [vmem:[%s193 + $0x34] sm:$0xf]
      %v221 = vld [vmem:[%s193 + $0x38] sm:$0xf]
      %v222 = vld [vmem:[%s193 + $0x3c] sm:$0xf]
      %v223 = vld [vmem:[%s193 + $0x40] sm:$0xf]
      %v224 = vld [vmem:[%s193 + $0x44] sm:$0xf]
      %v225 = vld [vmem:[%s193 + $0x48] sm:$0xf]
      %v226 = vld [vmem:[%s193 + $0x4c] sm:$0xf]
      %v227 = vld [vmem:[%s193 + $0x50] sm:$0xf]
      %v228 = vld [vmem:[%s193 + $0x54] sm:$0xf]
      %v229 = vld [vmem:[%s193 + $0x58] sm:$0xf]
      %v230 = vld [vmem:[%s193 + $0x5c] sm:$0xf]
      %v231 = vld [vmem:[%s193 + $0x60] sm:$0xf]
      %v232 = vld [vmem:[%s193 + $0x64] sm:$0xf]
      %v233 = vld [vmem:[%s193 + $0x68] sm:$0xf]
      %v234 = vld [vmem:[%s193 + $0x6c] sm:$0xf]
      %v235 = vld [vmem:[%s193 + $0x70] sm:$0xf]
      %v236 = vld [vmem:[%s193 + $0x74] sm:$0xf]
      %v237 = vld [vmem:[%s193 + $0x78] sm:$0xf]
      %v238 = vld [vmem:[%s193 + $0x7c] sm:$0xf]
      %v239 = vld [vmem:[%s193 + $0x80] sm:$0xf]
      %v240 = vld [vmem:[%s193 + $0x84] sm:$0xf]
      %v241 = vld [vmem:[%s193 + $0x88] sm:$0xf]
      %v242 = vld [vmem:[%s193 + $0x8c] sm:$0xf]
      %v243 = vld [vmem:[%s2] sm:$0xff]
      %v244 = vld [vmem:[%s2 + $0x8] sm:$0xff]
      %246 = vset.pattern.permute.xlu0 0
      %247 = vperm.xlu0 %246, %v243
      %v248 = vpop.permute.xlu0 %247
      %251 = vset.pattern.permute.xlu0 0
      %252 = vperm.xlu0 %251, %v244
      %v253 = vpop.permute.xlu0 %252
      %v259 = vunpack.c.l.b16 %v203
      %v260 = vunpack.c.h.b16 %v203
      %v261 = vunpack.c.l.b16 %v204
      %v262 = vunpack.c.l.b16 %v205
      %v263 = vunpack.c.h.b16 %v205
      %v264 = vunpack.c.l.b16 %v206
      %v265 = vpack.c.b16 %v262, %v259
      %v266 = vpack.c.b16 %v263, %v260
      %v267 = vpack.c.b16 %v264, %v261
      %v306 = vunpack.c.l.b16 %v207
      %v307 = vunpack.c.l.b16 %v208
      %v308 = vunpack.c.l.b16 %v209
      %v309 = vunpack.c.l.b16 %v210
      %v310 = vunpack.c.l.b16 %v211
      %v311 = vunpack.c.l.b16 %v212
      %v312 = vunpack.c.l.b16 %v213
      %v313 = vunpack.c.l.b16 %v214
      %v314 = vunpack.c.l.b16 %v215
      %v315 = vunpack.c.l.b16 %v216
      %v316 = vunpack.c.l.b16 %v217
      %v317 = vunpack.c.l.b16 %v218
      %v318 = vunpack.c.l.b16 %v219
      %v319 = vunpack.c.l.b16 %v220
      %v320 = vunpack.c.l.b16 %v221
      %v321 = vunpack.c.l.b16 %v222
      %v322 = vunpack.c.l.b16 %v223
      %v323 = vunpack.c.l.b16 %v224
      %v324 = vunpack.c.l.b16 %v225
      %v325 = vunpack.c.l.b16 %v226
      %v326 = vunpack.c.l.b16 %v227
      %v327 = vunpack.c.l.b16 %v228
      %v328 = vunpack.c.l.b16 %v229
      %v329 = vunpack.c.l.b16 %v230
      %v330 = vunpack.c.l.b16 %v231
      %v331 = vunpack.c.l.b16 %v232
      %v332 = vunpack.c.l.b16 %v233
      %v333 = vunpack.c.l.b16 %v234
      %v334 = vunpack.c.l.b16 %v235
      %v335 = vunpack.c.l.b16 %v236
      %v336 = vunpack.c.l.b16 %v237
      %v337 = vunpack.c.l.b16 %v238
      %v338 = vunpack.c.l.b16 %v239
      %v339 = vunpack.c.l.b16 %v240
      %v340 = vunpack.c.l.b16 %v241
      %v341 = vunpack.c.l.b16 %v242
      %v342 = vpack.c.b16 %v307, %v306
      %v343 = vpack.c.b16 %v309, %v308
      %v344 = vpack.c.b16 %v311, %v310
      %v345 = vpack.c.b16 %v313, %v312
      %v346 = vpack.c.b16 %v315, %v314
      %v347 = vpack.c.b16 %v317, %v316
      %v348 = vpack.c.b16 %v319, %v318
      %v349 = vpack.c.b16 %v321, %v320
      %v350 = vpack.c.b16 %v323, %v322
      %v351 = vpack.c.b16 %v325, %v324
      %v352 = vpack.c.b16 %v327, %v326
      %v353 = vpack.c.b16 %v329, %v328
      %v354 = vpack.c.b16 %v331, %v330
      %v355 = vpack.c.b16 %v333, %v332
      %v356 = vpack.c.b16 %v335, %v334
      %v357 = vpack.c.b16 %v337, %v336
      %v358 = vpack.c.b16 %v339, %v338
      %v359 = vpack.c.b16 %v341, %v340
      %vm378 = vcmask 261120
      %v380 = vsel %vm378, %v267, 0
      %382 = vmatpush.bf16.msra.mxu0 %v349
      %383 = vmatpush.bf16.msra.mxu0 %v348
      %384 = vmatpush.bf16.msra.mxu0 %v347
      %385 = vmatpush.bf16.msra.mxu0 %v346
      %386 = vmatpush.bf16.msra.mxu0 %v345
      %387 = vmatpush.bf16.msra.mxu0 %v344
      %388 = vmatpush.bf16.msra.mxu0 %v343
      %389 = vmatpush.bf16.msra.mxu0 %v342
      %390 = vmatmul.bf16.gmra.mxu0 %v265
      %v391 = vpop.f32.mrf.mxu0
      %v392 = vadd.f32 %v248, %v391
      %v393 = vpop.f32.mrf.mxu0
      %v394 = vadd.f32 %v253, %v393
      %395 = vdwg.mxu0
      %396 = vmatpush.bf16.msra.mxu0 %v357
      %397 = vmatpush.bf16.msra.mxu0 %v356
      %398 = vmatpush.bf16.msra.mxu0 %v355
      %399 = vmatpush.bf16.msra.mxu0 %v354
      %400 = vmatpush.bf16.msra.mxu0 %v353
      %401 = vmatpush.bf16.msra.mxu0 %v352
      %402 = vmatpush.bf16.msra.mxu0 %v351
      %403 = vmatpush.bf16.msra.mxu0 %v350
      %404 = vmatmul.bf16.gmra.mxu0 %v266
      %v405 = vpop.f32.mrf.mxu0
      %v406 = vadd.f32 %v392, %v405
      %v407 = vpop.f32.mrf.mxu0
      %v408 = vadd.f32 %v394, %v407
      %409 = vdwg.mxu0
      %410 = vmatpush.bf16.msra.mxu0 0
      %411 = vmatpush.bf16.msra.mxu0 0
      %412 = vmatpush.bf16.msra.mxu0 0
      %413 = vmatpush.bf16.msra.mxu0 0
      %414 = vmatpush.bf16.msra.mxu0 0
      %415 = vmatpush.bf16.msra.mxu0 0
      %416 = vmatpush.bf16.msra.mxu0 %v359
      %417 = vmatpush.bf16.msra.mxu0 %v358
      %418 = vmatmul.bf16.gmra.mxu0 %v380
      %v419 = vpop.f32.mrf.mxu0
      %v420 = vadd.f32 %v406, %v419
      %v421 = vpop.f32.mrf.mxu0
      %v422 = vadd.f32 %v408, %v421
      %423 = vdwg.mxu0
      %vm424 = vcmask 523264
      %425 = vst.msk [vmem:[%s201] sm:$0xff] %vm424, %v420
      %426 = vst.msk [vmem:[%s201 + $0x8] sm:$0xff] %vm424, %v422
      %p427 = scmp.lt.s32.totalorder %s18, 1
      %s428 = scalar_select %p427, %s18, 1
      %p429 = scmp.lt.s32.totalorder %s19, 0
      %s430 = scalar_select %p429, %s19, 0
      %s431 = smul.addr %s428, 2
      %s432 = sadd.s32 %s430, %s431
      %s433 = smul.addr %s432, 8
      %s434 = scalar_lea.vmem %s3, %s433
      // Predicated region
      $region33: #{feature_net_forward.28} parent=31 // pred_check
        %p435 = pneg %p116
      $region34: #{feature_net_forward.28} parent=31 // pred_check_branch
        %437 = sbr.rel (%p435) target = $region36
      $region35: #{feature_net_forward.28} parent=31 // pred_region
        _
      $region36: #{feature_net_forward.28} parent=31 // pred_fallthru
        _
    $region32: #{feature_net_forward.28} parent=5 // pred_fallthru
      _
    %p438 = scmp.le.s32.totalorder 2, %s9
    // Predicated region
    $region37: #{feature_net_forward.28} parent=5 // pred_check
      %p439 = pneg %p438
    $region38: #{feature_net_forward.28} parent=5 // pred_check_branch
      %441 = sbr.rel (%p439) target = $region40
    $region39: #{feature_net_forward.28} parent=5 // pred_region
      %s442 = ssub.s32 %s9, 2
      // Predicated region
      $region41: #{feature_net_forward.28} parent=39 // pred_check
        %p443 = pneg %p122
      $region42: #{feature_net_forward.28} parent=39 // pred_check_branch
        %445 = sbr.rel (%p443) target = $region44
      $region43: #{feature_net_forward.28} parent=39 // pred_region
        %p446 = scmp.lt.s32.totalorder %s20, 1
        %s447 = scalar_select %p446, %s20, 1
        %p448 = scmp.lt.s32.totalorder %s21, 0
        %s449 = scalar_select %p448, %s21, 0
        %s450 = smul.addr %s447, 2
        %s451 = sadd.s32 %s449, %s450
        %s452 = smul.addr %s451, 8
        %s453 = scalar_lea.vmem %s3, %s452
      $region44: #{feature_net_forward.28} parent=39 // pred_fallthru
        _
    $region40: #{feature_net_forward.28} parent=5 // pred_fallthru
      _
  $region6: #{feature_net_forward.28} parent=0 // loop_footer
    %s13 = sadd.s32 1, %s9
  $region7: #{feature_net_forward.28} parent=0 // loop_footer_branch
    %8 = sbr.rel target = $region3
  $region8: #{feature_net_forward.28} parent=0 // loop_exit
    _

// kernel: feature_net_forward.29
$region0: #{feature_net_forward.29}
  #allocation0 [shape = 'u32[]', space=smem, size = 0x4, offset = 0x4, fixed_abs, tag = 'smem constant byte address 0x4 - core index']
  #allocation1 [shape = 'u32[72,128]{1,0:T(1,128)}', space=vmem, size = 0x9000, scoped, tag = 'internal scratch']
  %s0 = inlined_call_operand.vmem [shape: bf16[8,288], index: 0, kind: input, shape index: {}]
  %s1 = inlined_call_operand.vmem [shape: bf16[2,288,256], index: 1, kind: input, shape index: {}]
  %s2 = inlined_call_operand.vmem [shape: f32[8,1], index: 2, kind: input, shape index: {}]
  %s3 = inlined_call_operand.vmem [shape: f32[2,8,256], index: 3, kind: output, shape index: {}]
  %s4 = sld [smem:[#allocation0]]
  $region45: #{feature_net_forward.29} parent=0
    _
  %s6 = ssub.s32 1, %s4
  %s7 = scalar_select 0, %s6, %s4
  loop: start=0, step=1, limit=4
  $region2: #{feature_net_forward.29} parent=0 // loop_pre_header
    _
  $region3: #{feature_net_forward.29} parent=0 // loop_header
    %s9 = sphi 0, %s13
    %p10 = scmp.ge.s32.totalorder %s9, 4
    %s16 = sphi 0, %s28
    %s17 = sphi 0, %s24
    %s18 = sphi 0, %s16
    %s19 = sphi 0, %s17
    %s20 = sphi 0, %s18
    %s21 = sphi 0, %s19
    %s29 = sphi 0, %s29
    %s31 = sphi 0, %s29
    %s32 = sphi 0, %s31
    %s46 = sphi 0, %s32
    %s54 = sphi 0, %s56
    %s57 = sphi 0, %s54
    %s58 = sphi 0, %s57
    %s74 = sphi 0, %s58
    %s78 = sphi 0, %s78
    %s80 = sphi 0, %s78
    %s81 = sphi 0, %s80
    %s95 = sphi 0, %s81
    %s103 = sphi 0, %s105
    %s106 = sphi 0, %s103
    %s107 = sphi 0, %s106
    %s123 = sphi 0, %s107
  $region4: #{feature_net_forward.29} parent=0 // loop_header_branch
    %12 = sbr.rel (%p10) target = $region8
  $region5: #{feature_net_forward.29} parent=0 // loop_body
    %s14 = ssub.s32 %s9, 1
    %s15 = ssub.s32 %s9, 2
    %s22 = sadd.s32 1, %s17
    %p23 = scmp.ge.s32.totalorder %s22, 1
    %s24 = scalar_select %p23, 0, %s22
    %s25 = sadd.s32 1, %s16
    %s26 = scalar_select %p23, %s25, %s16
    %p27 = scmp.ge.s32.totalorder %s26, 2
    %s28 = scalar_select %p27, 0, %s26
    %s30 = sadd.s32 %s29, 1
    %p33 = scmp.eq.s32.totalorder %s9, 1
    %p34 = scmp.ne.s32.totalorder %s29, %s31
    %p35 = scmp.eq.s32.totalorder %s9, 0
    %p36 = por %p34, %p35
    %p37 = scmp.ne.s32.totalorder %s29, %s31
    %p38 = scmp.eq.s32.totalorder %s14, 1
    %p39 = por %p37, %p38
    %p40 = scmp.ne.s32.totalorder %s31, %s32
    %p41 = scmp.eq.s32.totalorder %s14, 0
    %p42 = por %p40, %p41
    %p43 = scmp.ne.s32.totalorder %s31, %s32
    %p44 = scmp.eq.s32.totalorder %s15, 1
    %p45 = por %p43, %p44
    %p47 = scmp.ne.s32.totalorder %s32, %s46
    %p48 = scmp.eq.s32.totalorder %s15, 0
    %p49 = por %p47, %p48
    %s50 = ssub.s32 %s16, %s28
    %s51 = ssub.s32 %s17, %s24
    %s52 = sor.u32 %s50, %s51
    %p53 = scmp.eq.s32.totalorder %s52, 0
    %s55 = sadd.s32 %s54, 1
    %s56 = scalar_select %p53, %s54, %s55
    %p59 = pneg %p53
    %p60 = scmp.eq.s32.totalorder %s9, 1
    %p61 = por %p59, %p60
    %p62 = scmp.ne.s32.totalorder %s54, %s57
    %p63 = scmp.eq.s32.totalorder %s9, 0
    %p64 = por %p62, %p63
    %p65 = scmp.ne.s32.totalorder %s54, %s57
    %p66 = scmp.eq.s32.totalorder %s14, 1
    %p67 = por %p65, %p66
    %p68 = scmp.ne.s32.totalorder %s57, %s58
    %p69 = scmp.eq.s32.totalorder %s14, 0
    %p70 = por %p68, %p69
    %p71 = scmp.ne.s32.totalorder %s57, %s58
    %p72 = scmp.eq.s32.totalorder %s15, 1
    %p73 = por %p71, %p72
    %p75 = scmp.ne.s32.totalorder %s58, %s74
    %p76 = scmp.eq.s32.totalorder %s15, 0
    %p77 = por %p75, %p76
    %s79 = sadd.s32 %s78, 1
    %p82 = scmp.eq.s32.totalorder %s9, 1
    %p83 = scmp.ne.s32.totalorder %s78, %s80
    %p84 = scmp.eq.s32.totalorder %s9, 0
    %p85 = por %p83, %p84
    %p86 = scmp.ne.s32.totalorder %s78, %s80
    %p87 = scmp.eq.s32.totalorder %s14, 1
    %p88 = por %p86, %p87
    %p89 = scmp.ne.s32.totalorder %s80, %s81
    %p90 = scmp.eq.s32.totalorder %s14, 0
    %p91 = por %p89, %p90
    %p92 = scmp.ne.s32.totalorder %s80, %s81
    %p93 = scmp.eq.s32.totalorder %s15, 1
    %p94 = por %p92, %p93
    %p96 = scmp.ne.s32.totalorder %s81, %s95
    %p97 = scmp.eq.s32.totalorder %s15, 0
    %p98 = por %p96, %p97
    %s99 = ssub.s32 %s16, %s28
    %s100 = ssub.s32 %s17, %s24
    %s101 = sor.u32 %s99, %s100
    %p102 = scmp.eq.s32.totalorder %s101, 0
    %s104 = sadd.s32 %s103, 1
    %s105 = scalar_select %p102, %s103, %s104
    %p108 = pneg %p102
    %p109 = scmp.eq.s32.totalorder %s9, 1
    %p110 = por %p108, %p109
    %p111 = scmp.ne.s32.totalorder %s103, %s106
    %p112 = scmp.eq.s32.totalorder %s9, 0
    %p113 = por %p111, %p112
    %p114 = scmp.ne.s32.totalorder %s103, %s106
    %p115 = scmp.eq.s32.totalorder %s14, 1
    %p116 = por %p114, %p115
    %p117 = scmp.ne.s32.totalorder %s106, %s107
    %p118 = scmp.eq.s32.totalorder %s14, 0
    %p119 = por %p117, %p118
    %p120 = scmp.ne.s32.totalorder %s106, %s107
    %p121 = scmp.eq.s32.totalorder %s15, 1
    %p122 = por %p120, %p121
    %p124 = scmp.ne.s32.totalorder %s107, %s123
    %p125 = scmp.eq.s32.totalorder %s15, 0
    %p126 = por %p124, %p125
    %p127 = scmp.le.s32.totalorder 1, %s9
    %p128 = scmp.lt.s32.totalorder %s9, 3
    %p129 = pnand %p127, %p128
    %p130 = pneg %p129
    // Predicated region
    $region9: #{feature_net_forward.29} parent=5 // pred_check
      _
    $region10: #{feature_net_forward.29} parent=5 // pred_check_branch
      %132 = sbr.rel (%p129) target = $region12
    $region11: #{feature_net_forward.29} parent=5 // pred_region
      %s133 = ssub.s32 %s9, 1
      // Predicated region
      $region13: #{feature_net_forward.29} parent=11 // pred_check
        %p134 = pneg %p42
      $region14: #{feature_net_forward.29} parent=11 // pred_check_branch
        %136 = sbr.rel (%p134) target = $region16
      $region15: #{feature_net_forward.29} parent=11 // pred_region
        _
      $region16: #{feature_net_forward.29} parent=11 // pred_fallthru
        _
      // Predicated region
      $region17: #{feature_net_forward.29} parent=11 // pred_check
        %p137 = pneg %p91
      $region18: #{feature_net_forward.29} parent=11 // pred_check_branch
        %139 = sbr.rel (%p137) target = $region20
      $region19: #{feature_net_forward.29} parent=11 // pred_region
        _
      $region20: #{feature_net_forward.29} parent=11 // pred_fallthru
        _
    $region12: #{feature_net_forward.29} parent=5 // pred_fallthru
      _
    %p140 = scmp.lt.s32.totalorder %s9, 2
    // Predicated region
    $region21: #{feature_net_forward.29} parent=5 // pred_check
      %p141 = pneg %p140
    $region22: #{feature_net_forward.29} parent=5 // pred_check_branch
      %143 = sbr.rel (%p141) target = $region24
    $region23: #{feature_net_forward.29} parent=5 // pred_region
      // Predicated region
      $region25: #{feature_net_forward.29} parent=23 // pred_check
        %p144 = pneg %p64
      $region26: #{feature_net_forward.29} parent=23 // pred_check_branch
        %146 = sbr.rel (%p144) target = $region28
      $region27: #{feature_net_forward.29} parent=23 // pred_region
        %s147 = smul.u32 2, %s17
        %p148 = scmp.lt.s32.totalorder %s16, 1
        %s149 = scalar_select %p148, %s16, 1
        %p150 = scmp.lt.s32.totalorder %s147, 1
        %s151 = scalar_select %p150, %s147, 1
        %s152 = smul.addr %s149, 72
        %s153 = sadd.s32 %s151, %s152
        %s154 = smul.addr %s153, 4
        %s155 = scalar_lea.vmem %s1, %s154
        %s156 = smul.u32 2, %s17
      $region28: #{feature_net_forward.29} parent=23 // pred_fallthru
        _
    $region24: #{feature_net_forward.29} parent=5 // pred_fallthru
      _
    %p157 = scmp.le.s32.totalorder 1, %s9
    %p158 = scmp.lt.s32.totalorder %s9, 3
    %p159 = pnand %p157, %p158
    %p160 = pneg %p159
    // Predicated region
    $region29: #{feature_net_forward.29} parent=5 // pred_check
      _
    $region30: #{feature_net_forward.29} parent=5 // pred_check_branch
      %162 = sbr.rel (%p159) target = $region32
    $region31: #{feature_net_forward.29} parent=5 // pred_region
      %s163 = ssub.s32 %s9, 1
      %p164 = pneg %p42
      %p165 = pneg %p39
      %s166 = smul.u32 2, %s19
      %p167 = scmp.lt.s32.totalorder %s18, 1
      %s168 = scalar_select %p167, %s18, 1
      %p169 = scmp.lt.s32.totalorder %s166, 1
      %s170 = scalar_select %p169, %s166, 1
      %s171 = smul.addr %s168, 72
      %s172 = sadd.s32 %s170, %s171
      %s173 = smul.addr %s172, 4
      %s174 = scalar_lea.vmem %s1, %s173
      %p175 = pneg %p70
      %p176 = pneg %p67
      %p177 = pneg %p91
      %p178 = pneg %p88
      %p179 = pneg %p119
      %p180 = pneg %p116
      %s181 = smul.u32 2, %s19
      %p182 = scmp.lt.s32.totalorder %s18, 1
      %s183 = scalar_select %p182, %s18, 1
      %p184 = scmp.lt.s32.totalorder %s181, 1
      %s185 = scalar_select %p184, %s181, 1
      %s186 = smul.addr %s183, 2
      %s187 = sadd.s32 %s185, %s186
      %s188 = smul.addr %s187, 8
      %s189 = scalar_lea.vmem %s3, %s188
      %s190 = smul.u32 2, %s19
      %p191 = scmp.lt.s32.totalorder %s18, 1
      %s192 = scalar_select %p191, %s18, 1
      %p193 = scmp.lt.s32.totalorder %s190, 1
      %s194 = scalar_select %p193, %s190, 1
      %s195 = smul.addr %s192, 72
      %s196 = sadd.s32 %s194, %s195
      %s197 = smul.addr %s196, 4
      %s198 = scalar_lea.vmem %s1, %s197
      %s199 = smul.u32 2, %s19
      %s200 = smul.u32 2, %s19
      %p201 = scmp.lt.s32.totalorder %s18, 1
      %s202 = scalar_select %p201, %s18, 1
      %p203 = scmp.lt.s32.totalorder %s200, 1
      %s204 = scalar_select %p203, %s200, 1
      %s205 = smul.addr %s202, 2
      %s206 = sadd.s32 %s204, %s205
      %s207 = smul.addr %s206, 8
      %s208 = scalar_lea.vmem %s3, %s207
      %s209 = smul.u32 2, %s19
      %v211 = vld [vmem:[%s0] sm:$0xff]
      %v212 = vld [vmem:[%s0 + $0x8] sm:$0xf]
      %v213 = vld [vmem:[%s198] sm:$0xff]
      %v214 = vld [vmem:[%s198 + $0x8] sm:$0xff]
      %v215 = vld [vmem:[%s198 + $0x10] sm:$0xff]
      %v216 = vld [vmem:[%s198 + $0x18] sm:$0xff]
      %v217 = vld [vmem:[%s198 + $0x20] sm:$0xff]
      %v218 = vld [vmem:[%s198 + $0x28] sm:$0xff]
      %v219 = vld [vmem:[%s198 + $0x30] sm:$0xff]
      %v220 = vld [vmem:[%s198 + $0x38] sm:$0xff]
      %v221 = vld [vmem:[%s198 + $0x40] sm:$0xff]
      %v222 = vld [vmem:[%s198 + $0x48] sm:$0xff]
      %v223 = vld [vmem:[%s198 + $0x50] sm:$0xff]
      %v224 = vld [vmem:[%s198 + $0x58] sm:$0xff]
      %v225 = vld [vmem:[%s198 + $0x60] sm:$0xff]
      %v226 = vld [vmem:[%s198 + $0x68] sm:$0xff]
      %v227 = vld [vmem:[%s198 + $0x70] sm:$0xff]
      %v228 = vld [vmem:[%s198 + $0x78] sm:$0xff]
      %v229 = vld [vmem:[%s198 + $0x80] sm:$0xff]
      %v230 = vld [vmem:[%s198 + $0x88] sm:$0xff]
      %v231 = vld [vmem:[%s198 + $0x90] sm:$0xff]
      %v232 = vld [vmem:[%s198 + $0x98] sm:$0xff]
      %v233 = vld [vmem:[%s198 + $0xa0] sm:$0xff]
      %v234 = vld [vmem:[%s198 + $0xa8] sm:$0xff]
      %v235 = vld [vmem:[%s198 + $0xb0] sm:$0xff]
      %v236 = vld [vmem:[%s198 + $0xb8] sm:$0xff]
      %v237 = vld [vmem:[%s198 + $0xc0] sm:$0xff]
      %v238 = vld [vmem:[%s198 + $0xc8] sm:$0xff]
      %v239 = vld [vmem:[%s198 + $0xd0] sm:$0xff]
      %v240 = vld [vmem:[%s198 + $0xd8] sm:$0xff]
      %v241 = vld [vmem:[%s198 + $0xe0] sm:$0xff]
      %v242 = vld [vmem:[%s198 + $0xe8] sm:$0xff]
      %v243 = vld [vmem:[%s198 + $0xf0] sm:$0xff]
      %v244 = vld [vmem:[%s198 + $0xf8] sm:$0xff]
      %v245 = vld [vmem:[%s198 + $0x100] sm:$0xff]
      %v246 = vld [vmem:[%s198 + $0x108] sm:$0xff]
      %v247 = vld [vmem:[%s198 + $0x110] sm:$0xff]
      %v248 = vld [vmem:[%s198 + $0x118] sm:$0xff]
      %v249 = vld [vmem:[%s2] sm:$0xff]
      %251 = vset.pattern.permute.xlu0 0
      %252 = vperm.xlu0 %251, %v249
      %v253 = vpop.permute.xlu0 %252
      %v257 = vunpack.c.l.b16 %v211
      %v258 = vunpack.c.h.b16 %v211
      %v259 = vunpack.c.l.b16 %v212
      %v260 = vpack.c.b16 %v257, %v257
      %v261 = vpack.c.b16 %v258, %v258
      %v262 = vpack.c.b16 %v259, %v259
      %v301 = vunpack.c.l.b16 %v213
      %v302 = vunpack.c.h.b16 %v213
      %v303 = vunpack.c.l.b16 %v214
      %v304 = vunpack.c.h.b16 %v214
      %v305 = vunpack.c.l.b16 %v215
      %v306 = vunpack.c.h.b16 %v215
      %v307 = vunpack.c.l.b16 %v216
      %v308 = vunpack.c.h.b16 %v216
      %v309 = vunpack.c.l.b16 %v217
      %v310 = vunpack.c.h.b16 %v217
      %v311 = vunpack.c.l.b16 %v218
      %v312 = vunpack.c.h.b16 %v218
      %v313 = vunpack.c.l.b16 %v219
      %v314 = vunpack.c.h.b16 %v219
      %v315 = vunpack.c.l.b16 %v220
      %v316 = vunpack.c.h.b16 %v220
      %v317 = vunpack.c.l.b16 %v221
      %v318 = vunpack.c.h.b16 %v221
      %v319 = vunpack.c.l.b16 %v222
      %v320 = vunpack.c.h.b16 %v222
      %v321 = vunpack.c.l.b16 %v223
      %v322 = vunpack.c.h.b16 %v223
      %v323 = vunpack.c.l.b16 %v224
      %v324 = vunpack.c.h.b16 %v224
      %v325 = vunpack.c.l.b16 %v225
      %v326 = vunpack.c.h.b16 %v225
      %v327 = vunpack.c.l.b16 %v226
      %v328 = vunpack.c.h.b16 %v226
      %v329 = vunpack.c.l.b16 %v227
      %v330 = vunpack.c.h.b16 %v227
      %v331 = vunpack.c.l.b16 %v228
      %v332 = vunpack.c.h.b16 %v228
      %v333 = vunpack.c.l.b16 %v229
      %v334 = vunpack.c.h.b16 %v229
      %v335 = vunpack.c.l.b16 %v230
      %v336 = vunpack.c.h.b16 %v230
      %v337 = vunpack.c.l.b16 %v231
      %v338 = vunpack.c.h.b16 %v231
      %v339 = vunpack.c.l.b16 %v232
      %v340 = vunpack.c.h.b16 %v232
      %v341 = vunpack.c.l.b16 %v233
      %v342 = vunpack.c.h.b16 %v233
      %v343 = vunpack.c.l.b16 %v234
      %v344 = vunpack.c.h.b16 %v234
      %v345 = vunpack.c.l.b16 %v235
      %v346 = vunpack.c.h.b16 %v235
      %v347 = vunpack.c.l.b16 %v236
      %v348 = vunpack.c.h.b16 %v236
      %v349 = vunpack.c.l.b16 %v237
      %v350 = vunpack.c.h.b16 %v237
      %v351 = vunpack.c.l.b16 %v238
      %v352 = vunpack.c.h.b16 %v238
      %v353 = vunpack.c.l.b16 %v239
      %v354 = vunpack.c.h.b16 %v239
      %v355 = vunpack.c.l.b16 %v240
      %v356 = vunpack.c.h.b16 %v240
      %v357 = vunpack.c.l.b16 %v241
      %v358 = vunpack.c.h.b16 %v241
      %v359 = vunpack.c.l.b16 %v242
      %v360 = vunpack.c.h.b16 %v242
      %v361 = vunpack.c.l.b16 %v243
      %v362 = vunpack.c.h.b16 %v243
      %v363 = vunpack.c.l.b16 %v244
      %v364 = vunpack.c.h.b16 %v244
      %v365 = vunpack.c.l.b16 %v245
      %v366 = vunpack.c.h.b16 %v245
      %v367 = vunpack.c.l.b16 %v246
      %v368 = vunpack.c.h.b16 %v246
      %v369 = vunpack.c.l.b16 %v247
      %v370 = vunpack.c.h.b16 %v247
      %v371 = vunpack.c.l.b16 %v248
      %v372 = vunpack.c.h.b16 %v248
      %v373 = vpack.c.b16 %v303, %v301
      %v374 = vpack.c.b16 %v304, %v302
      %v375 = vpack.c.b16 %v307, %v305
      %v376 = vpack.c.b16 %v308, %v306
      %v377 = vpack.c.b16 %v311, %v309
      %v378 = vpack.c.b16 %v312, %v310
      %v379 = vpack.c.b16 %v315, %v313
      %v380 = vpack.c.b16 %v316, %v314
      %v381 = vpack.c.b16 %v319, %v317
      %v382 = vpack.c.b16 %v320, %v318
      %v383 = vpack.c.b16 %v323, %v321
      %v384 = vpack.c.b16 %v324, %v322
      %v385 = vpack.c.b16 %v327, %v325
      %v386 = vpack.c.b16 %v328, %v326
      %v387 = vpack.c.b16 %v331, %v329
      %v388 = vpack.c.b16 %v332, %v330
      %v389 = vpack.c.b16 %v335, %v333
      %v390 = vpack.c.b16 %v336, %v334
      %v391 = vpack.c.b16 %v339, %v337
      %v392 = vpack.c.b16 %v340, %v338
      %v393 = vpack.c.b16 %v343, %v341
      %v394 = vpack.c.b16 %v344, %v342
      %v395 = vpack.c.b16 %v347, %v345
      %v396 = vpack.c.b16 %v348, %v346
      %v397 = vpack.c.b16 %v351, %v349
      %v398 = vpack.c.b16 %v352, %v350
      %v399 = vpack.c.b16 %v355, %v353
      %v400 = vpack.c.b16 %v356, %v354
      %v401 = vpack.c.b16 %v359, %v357
      %v402 = vpack.c.b16 %v360, %v358
      %v403 = vpack.c.b16 %v363, %v361
      %v404 = vpack.c.b16 %v364, %v362
      %v405 = vpack.c.b16 %v367, %v365
      %v406 = vpack.c.b16 %v368, %v366
      %v407 = vpack.c.b16 %v371, %v369
      %v408 = vpack.c.b16 %v372, %v370
      %vm445 = vcmask 261120
      %v447 = vsel %vm445, %v262, 0
      %449 = vmatpush.bf16.msra.mxu0 %v387
      %450 = vmatpush.bf16.msra.mxu0 %v385
      %451 = vmatpush.bf16.msra.mxu0 %v383
      %452 = vmatpush.bf16.msra.mxu0 %v381
      %453 = vmatpush.bf16.msra.mxu0 %v379
      %454 = vmatpush.bf16.msra.mxu0 %v377
      %455 = vmatpush.bf16.msra.mxu0 %v375
      %456 = vmatpush.bf16.msra.mxu0 %v373
      %457 = vmatmul.bf16.gmra.mxu0 %v260
      %v458 = vpop.f32.mrf.mxu0
      %v459 = vadd.f32 %v253, %v458
      %v460 = vpop.f32.mrf.mxu0
      %461 = vdwg.mxu0
      %462 = vmatpush.bf16.msra.mxu0 %v403
      %463 = vmatpush.bf16.msra.mxu0 %v401
      %464 = vmatpush.bf16.msra.mxu0 %v399
      %465 = vmatpush.bf16.msra.mxu0 %v397
      %466 = vmatpush.bf16.msra.mxu0 %v395
      %467 = vmatpush.bf16.msra.mxu0 %v393
      %468 = vmatpush.bf16.msra.mxu0 %v391
      %469 = vmatpush.bf16.msra.mxu0 %v389
      %470 = vmatmul.bf16.gmra.mxu0 %v261
      %v471 = vpop.f32.mrf.mxu0
      %v472 = vadd.f32 %v459, %v471
      %v473 = vpop.f32.mrf.mxu0
      %474 = vdwg.mxu0
      %475 = vmatpush.bf16.msra.mxu0 0
      %476 = vmatpush.bf16.msra.mxu0 0
      %477 = vmatpush.bf16.msra.mxu0 0
      %478 = vmatpush.bf16.msra.mxu0 0
      %479 = vmatpush.bf16.msra.mxu0 0
      %480 = vmatpush.bf16.msra.mxu0 0
      %481 = vmatpush.bf16.msra.mxu0 %v407
      %482 = vmatpush.bf16.msra.mxu0 %v405
      %483 = vmatmul.bf16.gmra.mxu0 %v447
      %v484 = vpop.f32.mrf.mxu0
      %v485 = vadd.f32 %v472, %v484
      %v486 = vpop.f32.mrf.mxu0
      %487 = vdwg.mxu0
      %488 = vmatpush.bf16.msra.mxu0 %v388
      %489 = vmatpush.bf16.msra.mxu0 %v386
      %490 = vmatpush.bf16.msra.mxu0 %v384
      %491 = vmatpush.bf16.msra.mxu0 %v382
      %492 = vmatpush.bf16.msra.mxu0 %v380
      %493 = vmatpush.bf16.msra.mxu0 %v378
      %494 = vmatpush.bf16.msra.mxu0 %v376
      %495 = vmatpush.bf16.msra.mxu0 %v374
      %496 = vmatmul.bf16.gmra.mxu0 %v260
      %v497 = vpop.f32.mrf.mxu0
      %v498 = vadd.f32 %v253, %v497
      %v499 = vpop.f32.mrf.mxu0
      %500 = vdwg.mxu0
      %501 = vmatpush.bf16.msra.mxu0 %v404
      %502 = vmatpush.bf16.msra.mxu0 %v402
      %503 = vmatpush.bf16.msra.mxu0 %v400
      %504 = vmatpush.bf16.msra.mxu0 %v398
      %505 = vmatpush.bf16.msra.mxu0 %v396
      %506 = vmatpush.bf16.msra.mxu0 %v394
      %507 = vmatpush.bf16.msra.mxu0 %v392
      %508 = vmatpush.bf16.msra.mxu0 %v390
      %509 = vmatmul.bf16.gmra.mxu0 %v261
      %v510 = vpop.f32.mrf.mxu0
      %v511 = vadd.f32 %v498, %v510
      %v512 = vpop.f32.mrf.mxu0
      %513 = vdwg.mxu0
      %514 = vmatpush.bf16.msra.mxu0 0
      %515 = vmatpush.bf16.msra.mxu0 0
      %516 = vmatpush.bf16.msra.mxu0 0
      %517 = vmatpush.bf16.msra.mxu0 0
      %518 = vmatpush.bf16.msra.mxu0 0
      %519 = vmatpush.bf16.msra.mxu0 0
      %520 = vmatpush.bf16.msra.mxu0 %v408
      %521 = vmatpush.bf16.msra.mxu0 %v406
      %522 = vmatmul.bf16.gmra.mxu0 %v447
      %v523 = vpop.f32.mrf.mxu0
      %v524 = vadd.f32 %v511, %v523
      %v525 = vpop.f32.mrf.mxu0
      %526 = vdwg.mxu0
      %527 = vst [vmem:[%s208] sm:$0xff] %v485
      %528 = vst [vmem:[%s208 + $0x8] sm:$0xff] %v524
      %s529 = smul.u32 2, %s19
      %p530 = scmp.lt.s32.totalorder %s18, 1
      %s531 = scalar_select %p530, %s18, 1
      %p532 = scmp.lt.s32.totalorder %s529, 1
      %s533 = scalar_select %p532, %s529, 1
      %s534 = smul.addr %s531, 2
      %s535 = sadd.s32 %s533, %s534
      %s536 = smul.addr %s535, 8
      %s537 = scalar_lea.vmem %s3, %s536
      // Predicated region
      $region33: #{feature_net_forward.29} parent=31 // pred_check
        %p538 = pneg %p116
      $region34: #{feature_net_forward.29} parent=31 // pred_check_branch
        %540 = sbr.rel (%p538) target = $region36
      $region35: #{feature_net_forward.29} parent=31 // pred_region
        %s541 = smul.u32 2, %s19
      $region36: #{feature_net_forward.29} parent=31 // pred_fallthru
        _
    $region32: #{feature_net_forward.29} parent=5 // pred_fallthru
      _
    %p542 = scmp.le.s32.totalorder 2, %s9
    // Predicated region
    $region37: #{feature_net_forward.29} parent=5 // pred_check
      %p543 = pneg %p542
    $region38: #{feature_net_forward.29} parent=5 // pred_check_branch
      %545 = sbr.rel (%p543) target = $region40
    $region39: #{feature_net_forward.29} parent=5 // pred_region
      %s546 = ssub.s32 %s9, 2
      // Predicated region
      $region41: #{feature_net_forward.29} parent=39 // pred_check
        %p547 = pneg %p122
      $region42: #{feature_net_forward.29} parent=39 // pred_check_branch
        %549 = sbr.rel (%p547) target = $region44
      $region43: #{feature_net_forward.29} parent=39 // pred_region
        %s550 = smul.u32 2, %s21
        %p551 = scmp.lt.s32.totalorder %s20, 1
        %s552 = scalar_select %p551, %s20, 1
        %p553 = scmp.lt.s32.totalorder %s550, 1
        %s554 = scalar_select %p553, %s550, 1
        %s555 = smul.addr %s552, 2
        %s556 = sadd.s32 %s554, %s555
        %s557 = smul.addr %s556, 8
        %s558 = scalar_lea.vmem %s3, %s557
      $region44: #{feature_net_forward.29} parent=39 // pred_fallthru
        _
    $region40: #{feature_net_forward.29} parent=5 // pred_fallthru
      _
  $region6: #{feature_net_forward.29} parent=0 // loop_footer
    %s13 = sadd.s32 1, %s9
  $region7: #{feature_net_forward.29} parent=0 // loop_footer_branch
    %8 = sbr.rel target = $region3
  $region8: #{feature_net_forward.29} parent=0 // loop_exit
    _

</llo_original>
